<compile_context>
chip_gen: v7x
topology: tpu7x:2x2x1
jax: 0.10.0
libtpu: 0.0.40
codegen_flags: <defaults>
</compile_context>

<pallas_src>
import jax
import jax.numpy as jnp
import numpy as np
from jax import lax
from jax.experimental import pallas as pl
from jax.experimental.pallas import tpu as pltpu

_EPS = 1e-5
_EXPANSION = 4


# ------------------------------ Pallas kernel --------------------------------

def _const_spec(shape, single_buffer):
    """Full-array block, constant index_map (resident across the grid)."""
    nd = len(shape)

    def index_map(n):
        return (0,) * nd

    if single_buffer and hasattr(pl, "Buffered"):
        # Grid-invariant operand: one VMEM buffer is enough (never re-DMA'd).
        return pl.BlockSpec(shape, index_map, pipeline_mode=pl.Buffered(1))
    return pl.BlockSpec(shape, index_map)


def _build_bottleneck_call(batch, h, w, cin, cmid, cexp, stride, p_w,
                           has_proj, mm_dtype, out_dtype, single_buffer_consts):
    """Fused bottleneck pallas_call for one static configuration."""
    s = stride
    ho, wo = h // s, w // s
    p_h = ho + 3                       # phase-plane dims: conv pad ring + slack
    rows_in = p_h * p_w                # rows of one flattened phase plane
    rows_plane = ho * p_w              # plane rows holding output pixels
    nphase = s * s

    item_mm = jnp.dtype(mm_dtype).itemsize
    item_out = jnp.dtype(out_dtype).itemsize

    # Row-tile size: t_h output image rows per tile (tile_rows plane rows).
    # Keep in-tile f32 intermediates to a few hundred KiB so they never spill.
    def _tile_bytes(th):
        return th * p_w * (3 * cmid * item_mm + 2 * cmid * 4 + 3 * cexp * 4)

    t_h = 1
    for cand in range(1, min(ho, 8) + 1):
        if ho % cand == 0 and _tile_bytes(cand) <= (1 << 20):
            t_h = cand
    tile_rows = t_h * p_w
    n_tiles = ho // t_h

    # Shortcut subsample: output pixel (oy, ox) <- padded input (s*oy+1, s*ox+1)
    ph_sc = (1 % s) * s + (1 % s)
    shift_sc = (1 // s) * p_w + (1 // s)

    def kernel(x_ref, m_ref, w1_ref, s1_ref, b1_ref, w2_ref, s2_ref, b2_ref,
               w3_ref, s3_ref, b3_ref, *rest):
        if has_proj:
            ws_ref, ss_ref, bs_ref, out_ref, y1_scr = rest
        else:
            out_ref, y1_scr = rest

        # conv1 (1x1) + BN1 + ReLU over the whole phase-split input.  Result
        # (== the zero-padded conv2 input) is staged in VMEM in the matmul
        # dtype, with the conv-padding re-zero folded into the single write.
        for ph in range(nphase):
            y1 = jnp.dot(x_ref[ph], w1_ref[...],
                         preferred_element_type=jnp.float32)
            y1 = jnp.maximum(y1 * s1_ref[...] + b1_ref[...], 0.0)
            y1_scr[ph] = (y1 * m_ref[ph]).astype(y1_scr.dtype)

        def tile_body(i, carry):
            row0 = i * tile_rows                    # first plane row of tile

            # conv2 (3x3, stride s): per dy, concatenate the 3 dx-shifted taps
            # along K and do one (tile_rows, 3*cmid) @ (3*cmid, cmid) matmul.
            acc = jnp.zeros((tile_rows, cmid), jnp.float32)
            for dy in range(3):
                taps = []
                for dx in range(3):
                    ph = (dy % s) * s + (dx % s)
                    shift = (dy // s) * p_w + (dx // s)
                    taps.append(y1_scr[ph, pl.ds(row0 + shift, tile_rows), :])
                slab = jnp.concatenate(taps, axis=1)    # (tile_rows, 3*cmid)
                acc = acc + jnp.dot(slab, w2_ref[dy],
                                    preferred_element_type=jnp.float32)
            y2 = jnp.maximum(acc * s2_ref[...] + b2_ref[...], 0.0)

            # conv3 (1x1) + BN3.
            y3 = jnp.dot(y2.astype(mm_dtype), w3_ref[...],
                         preferred_element_type=jnp.float32)
            y3 = y3 * s3_ref[...] + b3_ref[...]

            # Shortcut: the strided spatial subsample is just another
            # contiguous row-slice of the phase-split input.  (Identity path
            # adds the compute-dtype cast of x; a small, accepted deviation
            # from the f32 PyTorch reference when compute_dtype=bf16.)
            sc_src = x_ref[ph_sc, pl.ds(row0 + shift_sc, tile_rows), :]
            if has_proj:
                sc = jnp.dot(sc_src, ws_ref[...],
                             preferred_element_type=jnp.float32)
                sc = sc * ss_ref[...] + bs_ref[...]
            else:
                sc = sc_src.astype(jnp.float32)

            y = jnp.maximum(y3 + sc, 0.0).astype(out_ref.dtype)

            # Compact store: drop the pad/slack columns (cols >= wo) in-kernel
            # so the wrapper never does an output-sized HBM round-trip crop.
            orow0 = i * (t_h * wo)
            for r in range(t_h):
                out_ref[pl.ds(orow0 + r * wo, wo), :] = \
                    y[r * p_w:r * p_w + wo, :]
            return carry

        if n_tiles == 1:
            tile_body(0, 0)
        else:
            lax.fori_loop(0, n_tiles, tile_body, 0)

    def cs(shape):
        return _const_spec(shape, single_buffer_consts)

    in_specs = [
        pl.BlockSpec((None, nphase, rows_in, cin), lambda n: (n, 0, 0, 0)),
        cs((nphase, rows_in, 1)),                               # padding mask
        cs((cin, cmid)), cs((1, cmid)), cs((1, cmid)),
        cs((3, 3 * cmid, cmid)), cs((1, cmid)), cs((1, cmid)),
        cs((cmid, cexp)), cs((1, cexp)), cs((1, cexp)),
    ]
    if has_proj:
        in_specs += [cs((cin, cexp)), cs((1, cexp)), cs((1, cexp))]

    # VMEM working-set estimate -> explicit scoped-VMEM limit (>= 32 MiB so it
    # is never below the v6e/v7x defaults, capped at v7x's 64 MiB physical).
    x_block = nphase * rows_in * cin * item_mm
    out_block = ho * wo * cexp * item_out
    const_bytes = (nphase * rows_in * 128 * item_mm              # mask (lane-padded)
                   + (cin * cmid + 3 * (3 * cmid) * cmid + cmid * cexp
                      + (cin * cexp if has_proj else 0)) * item_mm
                   + (4 * cmid + 2 * cexp + (2 * cexp if has_proj else 0)) * 4)
    scratch_bytes = nphase * rows_in * cmid * item_mm
    const_mult = 1 if single_buffer_consts else 2
    vmem_est = (2 * x_block + 2 * out_block + const_mult * const_bytes
                + scratch_bytes + 2 * _tile_bytes(t_h))
    vmem_limit = int(min(max(32 * 1024 * 1024, 3 * vmem_est // 2 + (2 << 20)),
                         64 * 1024 * 1024))

    flops = 2 * batch * (nphase * rows_in * cin * cmid
                         + 9 * rows_plane * cmid * cmid
                         + rows_plane * cmid * cexp
                         + (rows_plane * cin * cexp if has_proj else 0))
    bytes_accessed = (batch * nphase * rows_in * cin * item_mm
                      + batch * ho * wo * cexp * item_out
                      + const_bytes)

    return pl.pallas_call(
        kernel,
        out_shape=jax.ShapeDtypeStruct((batch, ho * wo, cexp), out_dtype),
        grid=(batch,),
        in_specs=in_specs,
        out_specs=pl.BlockSpec((None, ho * wo, cexp), lambda n: (n, 0, 0)),
        scratch_shapes=[pltpu.VMEM((nphase, rows_in, cmid), mm_dtype)],
        compiler_params=pltpu.CompilerParams(
            dimension_semantics=("parallel",),
            vmem_limit_bytes=vmem_limit),
        cost_estimate=pl.CostEstimate(flops=flops, transcendentals=0,
                                      bytes_accessed=bytes_accessed),
    )


# -------------------------------- JAX glue -----------------------------------

def _bn_fold(gamma, beta, mean, var):
    scale = gamma / jnp.sqrt(var + _EPS)
    shift = beta - mean * scale
    return scale, shift


def _phase_split(x, stride, p_h, p_w):
    """(N,H,W,C) -> (N, s*s, p_h*p_w, C): zero-pad (conv pad=1 + slack) and
    split the spatial dims by stride phase.  This one cheap XLA transform
    replaces both im2col and the strided shortcut subsample."""
    n, h, w, c = x.shape
    s = stride
    xp = jnp.pad(x, ((0, 0), (1, s * p_h - h - 1), (1, s * p_w - w - 1), (0, 0)))
    xp = xp.reshape(n, p_h, s, p_w, s, c).transpose(0, 2, 4, 1, 3, 5)
    return xp.reshape(n, s * s, p_h * p_w, c)


def _pad_mask(stride, h, w, p_h, p_w):
    """1.0 at positions holding real pixels, 0.0 on the zero-padding ring."""
    s = stride
    a = np.arange(p_h)[:, None]
    b = np.arange(p_w)[None, :]
    mask = np.zeros((s, s, p_h, p_w), np.float32)
    for pr in range(s):
        for pc in range(s):
            rr = pr + s * a
            cc = pc + s * b
            mask[pr, pc] = ((rr >= 1) & (rr <= h) & (cc >= 1) & (cc <= w))
    return jnp.asarray(mask.reshape(s * s, p_h * p_w, 1))


def bottleneck_forward(x, params, stride, *, compute_dtype=jnp.bfloat16):
    """x: (N, H, W, Cin) NHWC -> (N, Ho, Wo, out_channels*4) in compute_dtype.

    The whole residual block (3 convs + 3 BNs + shortcut + add + ReLU) runs in
    a single fused Pallas kernel; HBM traffic is one read of the phase-split
    input plus one compact write of the output."""
    n, h, w, cin = x.shape
    cmid = params["w1"].shape[-1]
    cexp = params["w3"].shape[-1]
    s = stride
    assert h % s == 0 and w % s == 0, "spatial dims must be divisible by stride"
    ho, wo = h // s, w // s
    p_h = ho + 3
    p_w = wo + 3
    while (p_h * p_w) % 8 != 0:        # sublane-align the flattened phase planes
        p_w += 1
    has_proj = "ws" in params

    xph = _phase_split(x, s, p_h, p_w).astype(compute_dtype)
    mask = _pad_mask(s, h, w, p_h, p_w).astype(compute_dtype)

    s1, b1 = _bn_fold(*params["bn1"])
    s2, b2 = _bn_fold(*params["bn2"])
    s3, b3 = _bn_fold(*params["bn3"])

    f32 = jnp.float32
    args = [
        xph, mask,
        params["w1"].reshape(cin, cmid).astype(compute_dtype),
        s1.reshape(1, cmid).astype(f32), b1.reshape(1, cmid).astype(f32),
        # (ky,kx,cin,cout) -> (ky, kx*cin, cout): rows ordered dx-major to
        # match the in-kernel per-dy K-slab concatenation.
        params["w2"].reshape(3, 3 * cmid, cmid).astype(compute_dtype),
        s2.reshape(1, cmid).astype(f32), b2.reshape(1, cmid).astype(f32),
        params["w3"].reshape(cmid, cexp).astype(compute_dtype),
        s3.reshape(1, cexp).astype(f32), b3.reshape(1, cexp).astype(f32),
    ]
    if has_proj:
        ss, bs = _bn_fold(*params["bns"])
        args += [
            params["ws"].reshape(cin, cexp).astype(compute_dtype),
            ss.reshape(1, cexp).astype(f32), bs.reshape(1, cexp).astype(f32),
        ]

    def build(single_buffer_consts):
        return _build_bottleneck_call(n, h, w, cin, cmid, cexp, s, p_w,
                                      has_proj, compute_dtype, compute_dtype,
                                      single_buffer_consts)

    try:
        out = build(True)(*args)
    except Exception:
        # This jax/Mosaic build rejected pl.Buffered(1) on the constant
        # operands; fall back to default double buffering (correctness first).
        out = build(False)(*args)

    return out.reshape(n, ho, wo, cexp)


def init_params(key, in_channels, out_channels, stride):
    cexp = out_channels * _EXPANSION
    keys = jax.random.split(key, 8)

    def conv_w(k, shape):
        fan_in = int(np.prod(shape[:-1]))
        return jax.random.normal(k, shape, jnp.float32) / np.sqrt(fan_in)

    def bn(k, c):
        k1, k2, k3, k4 = jax.random.split(k, 4)
        gamma = 1.0 + 0.1 * jax.random.normal(k1, (c,), jnp.float32)
        beta = 0.1 * jax.random.normal(k2, (c,), jnp.float32)
        mean = 0.1 * jax.random.normal(k3, (c,), jnp.float32)
        var = jnp.abs(jax.random.normal(k4, (c,), jnp.float32)) + 0.5
        return (gamma, beta, mean, var)

    params = dict(
        w1=conv_w(keys[0], (1, 1, in_channels, out_channels)),
        bn1=bn(keys[1], out_channels),
        w2=conv_w(keys[2], (3, 3, out_channels, out_channels)),
        bn2=bn(keys[3], out_channels),
        w3=conv_w(keys[4], (1, 1, out_channels, cexp)),
        bn3=bn(keys[5], cexp),
    )
    if stride != 1 or in_channels != cexp:
        params["ws"] = conv_w(keys[6], (1, 1, in_channels, cexp))
        params["bns"] = bn(keys[7], cexp)
    return params


# ----------------------------- pure-JAX reference ----------------------------

def reference_forward(x, params, stride):
    def conv(a, wgt, s, padding):
        return lax.conv_general_dilated(
            a, wgt, (s, s), padding,
            dimension_numbers=("NHWC", "HWIO", "NHWC"))

    def bn(a, p):
        gamma, beta, mean, var = p
        return gamma * (a - mean) / jnp.sqrt(var + _EPS) + beta

    y = jax.nn.relu(bn(conv(x, params["w1"], 1, "VALID"), params["bn1"]))
    y = jax.nn.relu(bn(conv(y, params["w2"], stride, [(1, 1), (1, 1)]), params["bn2"]))
    y = bn(conv(y, params["w3"], 1, "VALID"), params["bn3"])
    if "ws" in params:
        sc = bn(conv(x, params["ws"], stride, "VALID"), params["bns"])
    else:
        sc = x
    return jax.nn.relu(y + sc)


# ----------------------------------- main ------------------------------------

def _run_case(key, n, h, w, in_channels, out_channels, stride, compute_dtype, tol):
    kx, kp = jax.random.split(key)
    x = jax.random.normal(kx, (n, h, w, in_channels), jnp.float32)
    params = init_params(kp, in_channels, out_channels, stride)
    out = jax.block_until_ready(
        bottleneck_forward(x, params, stride, compute_dtype=compute_dtype))
    ref = reference_forward(x, params, stride)
    assert out.shape == ref.shape, (out.shape, ref.shape)
    out_f = np.asarray(out.astype(jnp.float32))
    ref_f = np.asarray(ref)
    if not np.allclose(out_f, ref_f, rtol=tol, atol=tol):
        err = float(np.max(np.abs(out_f - ref_f)))
        raise SystemExit(
            f"Pallas output mismatch (max abs err {err:.3e}, tol {tol})")


if __name__ == "__main__":
    key = jax.random.PRNGKey(0)
    k1, k2, k3 = jax.random.split(key, 3)
    k4 = jax.random.fold_in(key, 4)

    # strided block with projection shortcut (f32 check)
    _run_case(k1, 2, 16, 16, 16, 8, 2, jnp.float32, 1e-3)
    # stride-1 block with identity shortcut (in_channels == out_channels*4);
    # ho=16 -> two row tiles, exercising the in-kernel fori_loop tiling.
    _run_case(k2, 2, 16, 16, 32, 8, 1, jnp.float32, 1e-3)
    # bf16 MXU fast path (v6e/v7x); tolerance loosened for bf16 rounding
    _run_case(k3, 2, 16, 16, 16, 8, 2, jnp.bfloat16, 1e-1)
    # stride-1 block with projection shortcut (f32 check)
    _run_case(k4, 1, 8, 8, 16, 8, 1, jnp.float32, 1e-3)

    print("KERNEL_OK")
</pallas_src>

<mosaic_0001>
module attributes {stable_mosaic.version = 11 : i64} {
  func.func @kernel(%arg0: i32, %arg1: memref<1x4x176x16xf32, #tpu.memory_space<vmem>>, %arg2: memref<4x176x1xf32, #tpu.memory_space<vmem>>, %arg3: memref<16x8xf32, #tpu.memory_space<vmem>>, %arg4: memref<1x8xf32, #tpu.memory_space<vmem>>, %arg5: memref<1x8xf32, #tpu.memory_space<vmem>>, %arg6: memref<3x24x8xf32, #tpu.memory_space<vmem>>, %arg7: memref<1x8xf32, #tpu.memory_space<vmem>>, %arg8: memref<1x8xf32, #tpu.memory_space<vmem>>, %arg9: memref<8x32xf32, #tpu.memory_space<vmem>>, %arg10: memref<1x32xf32, #tpu.memory_space<vmem>>, %arg11: memref<1x32xf32, #tpu.memory_space<vmem>>, %arg12: memref<16x32xf32, #tpu.memory_space<vmem>>, %arg13: memref<1x32xf32, #tpu.memory_space<vmem>>, %arg14: memref<1x32xf32, #tpu.memory_space<vmem>>, %arg15: memref<1x64x32xf32, #tpu.memory_space<vmem>>, %arg16: memref<4x176x8xf32, #tpu.memory_space<vmem>>) attributes {dimension_semantics = [#tpu.dimension_semantics<parallel>], iteration_bounds = array<i64: 2>, scalar_prefetch = 0 : i64, scratch_operands = 1 : i64, tpu.core_type = #tpu.core_type<tc>, window_params = [{transform_indices = @transform_0, window_bounds = array<i64: 1, 4, 176, 16>}, {pipeline_mode = #tpu.pipeline_mode<synchronous>, transform_indices = @transform_1, window_bounds = array<i64: 4, 176, 1>}, {pipeline_mode = #tpu.pipeline_mode<synchronous>, transform_indices = @transform_2, window_bounds = array<i64: 16, 8>}, {pipeline_mode = #tpu.pipeline_mode<synchronous>, transform_indices = @transform_3, window_bounds = array<i64: 1, 8>}, {pipeline_mode = #tpu.pipeline_mode<synchronous>, transform_indices = @transform_4, window_bounds = array<i64: 1, 8>}, {pipeline_mode = #tpu.pipeline_mode<synchronous>, transform_indices = @transform_5, window_bounds = array<i64: 3, 24, 8>}, {pipeline_mode = #tpu.pipeline_mode<synchronous>, transform_indices = @transform_6, window_bounds = array<i64: 1, 8>}, {pipeline_mode = #tpu.pipeline_mode<synchronous>, transform_indices = @transform_7, window_bounds = array<i64: 1, 8>}, {pipeline_mode = #tpu.pipeline_mode<synchronous>, transform_indices = @transform_8, window_bounds = array<i64: 8, 32>}, {pipeline_mode = #tpu.pipeline_mode<synchronous>, transform_indices = @transform_9, window_bounds = array<i64: 1, 32>}, {pipeline_mode = #tpu.pipeline_mode<synchronous>, transform_indices = @transform_10, window_bounds = array<i64: 1, 32>}, {pipeline_mode = #tpu.pipeline_mode<synchronous>, transform_indices = @transform_11, window_bounds = array<i64: 16, 32>}, {pipeline_mode = #tpu.pipeline_mode<synchronous>, transform_indices = @transform_12, window_bounds = array<i64: 1, 32>}, {pipeline_mode = #tpu.pipeline_mode<synchronous>, transform_indices = @transform_13, window_bounds = array<i64: 1, 32>}, {transform_indices = @transform_14, window_bounds = array<i64: 1, 64, 32>}]} {
    %c0 = arith.constant 0 : index
    %c0_0 = arith.constant 0 : index
    %c0_1 = arith.constant 0 : index
    %c0_2 = arith.constant 0 : index
    %0 = vector.load %arg1[%c0, %c0_0, %c0_1, %c0_2] : memref<1x4x176x16xf32, #tpu.memory_space<vmem>>, vector<1x1x176x16xf32>
    %1 = vector.shape_cast %0 : vector<1x1x176x16xf32> to vector<176x16xf32>
    %c0_3 = arith.constant 0 : index
    %c0_4 = arith.constant 0 : index
    %2 = vector.load %arg3[%c0_3, %c0_4] : memref<16x8xf32, #tpu.memory_space<vmem>>, vector<16x8xf32>
    %cst = arith.constant dense<0.000000e+00> : vector<176x8xf32>
    %3 = tpu.matmul %1, %2, %cst {dimension_numbers = #tpu.dot_dimension_numbers<[1], [0], [0], [1], [0, 0, 1, 1], [], []>} : vector<176x16xf32>, vector<16x8xf32>, vector<176x8xf32> -> vector<176x8xf32>
    %c0_5 = arith.constant 0 : index
    %c0_6 = arith.constant 0 : index
    %4 = vector.load %arg4[%c0_5, %c0_6] : memref<1x8xf32, #tpu.memory_space<vmem>>, vector<1x8xf32>
    %5 = vector.broadcast %4 : vector<1x8xf32> to vector<176x8xf32>
    %6 = arith.mulf %3, %5 : vector<176x8xf32>
    %c0_7 = arith.constant 0 : index
    %c0_8 = arith.constant 0 : index
    %7 = vector.load %arg5[%c0_7, %c0_8] : memref<1x8xf32, #tpu.memory_space<vmem>>, vector<1x8xf32>
    %8 = vector.broadcast %7 : vector<1x8xf32> to vector<176x8xf32>
    %9 = arith.addf %6, %8 : vector<176x8xf32>
    %cst_9 = arith.constant 0.000000e+00 : f32
    %10 = vector.broadcast %cst_9 : f32 to vector<176x8xf32>
    %11 = arith.maximumf %9, %10 : vector<176x8xf32>
    %c0_10 = arith.constant 0 : index
    %c0_11 = arith.constant 0 : index
    %c0_12 = arith.constant 0 : index
    %12 = vector.load %arg2[%c0_10, %c0_11, %c0_12] : memref<4x176x1xf32, #tpu.memory_space<vmem>>, vector<1x176x1xf32>
    %13 = vector.shape_cast %12 : vector<1x176x1xf32> to vector<176x1xf32>
    %14 = vector.broadcast %13 : vector<176x1xf32> to vector<176x8xf32>
    %15 = arith.mulf %11, %14 : vector<176x8xf32>
    %c0_13 = arith.constant 0 : index
    %c0_14 = arith.constant 0 : index
    %c0_15 = arith.constant 0 : index
    %16 = vector.load %arg16[%c0_13, %c0_14, %c0_15] : memref<4x176x8xf32, #tpu.memory_space<vmem>>, vector<1x176x8xf32>
    %17 = vector.shape_cast %16 : vector<1x176x8xf32> to vector<176x8xf32>
    %18 = vector.shape_cast %15 : vector<176x8xf32> to vector<1x176x8xf32>
    tpu.vector_store %arg16[%c0_13, %c0_14, %c0_15], %18 {strides = array<i32>} : memref<4x176x8xf32, #tpu.memory_space<vmem>>, vector<1x176x8xf32>,
    %c0_16 = arith.constant 0 : index
    %c1 = arith.constant 1 : index
    %c0_17 = arith.constant 0 : index
    %c0_18 = arith.constant 0 : index
    %19 = vector.load %arg1[%c0_16, %c1, %c0_17, %c0_18] : memref<1x4x176x16xf32, #tpu.memory_space<vmem>>, vector<1x1x176x16xf32>
    %20 = vector.shape_cast %19 : vector<1x1x176x16xf32> to vector<176x16xf32>
    %c0_19 = arith.constant 0 : index
    %c0_20 = arith.constant 0 : index
    %21 = vector.load %arg3[%c0_19, %c0_20] : memref<16x8xf32, #tpu.memory_space<vmem>>, vector<16x8xf32>
    %cst_21 = arith.constant dense<0.000000e+00> : vector<176x8xf32>
    %22 = tpu.matmul %20, %21, %cst_21 {dimension_numbers = #tpu.dot_dimension_numbers<[1], [0], [0], [1], [0, 0, 1, 1], [], []>} : vector<176x16xf32>, vector<16x8xf32>, vector<176x8xf32> -> vector<176x8xf32>
    %c0_22 = arith.constant 0 : index
    %c0_23 = arith.constant 0 : index
    %23 = vector.load %arg4[%c0_22, %c0_23] : memref<1x8xf32, #tpu.memory_space<vmem>>, vector<1x8xf32>
    %24 = vector.broadcast %23 : vector<1x8xf32> to vector<176x8xf32>
    %25 = arith.mulf %22, %24 : vector<176x8xf32>
    %c0_24 = arith.constant 0 : index
    %c0_25 = arith.constant 0 : index
    %26 = vector.load %arg5[%c0_24, %c0_25] : memref<1x8xf32, #tpu.memory_space<vmem>>, vector<1x8xf32>
    %27 = vector.broadcast %26 : vector<1x8xf32> to vector<176x8xf32>
    %28 = arith.addf %25, %27 : vector<176x8xf32>
    %cst_26 = arith.constant 0.000000e+00 : f32
    %29 = vector.broadcast %cst_26 : f32 to vector<176x8xf32>
    %30 = arith.maximumf %28, %29 : vector<176x8xf32>
    %c1_27 = arith.constant 1 : index
    %c0_28 = arith.constant 0 : index
    %c0_29 = arith.constant 0 : index
    %31 = vector.load %arg2[%c1_27, %c0_28, %c0_29] : memref<4x176x1xf32, #tpu.memory_space<vmem>>, vector<1x176x1xf32>
    %32 = vector.shape_cast %31 : vector<1x176x1xf32> to vector<176x1xf32>
    %33 = vector.broadcast %32 : vector<176x1xf32> to vector<176x8xf32>
    %34 = arith.mulf %30, %33 : vector<176x8xf32>
    %c1_30 = arith.constant 1 : index
    %c0_31 = arith.constant 0 : index
    %c0_32 = arith.constant 0 : index
    %35 = vector.load %arg16[%c1_30, %c0_31, %c0_32] : memref<4x176x8xf32, #tpu.memory_space<vmem>>, vector<1x176x8xf32>
    %36 = vector.shape_cast %35 : vector<1x176x8xf32> to vector<176x8xf32>
    %37 = vector.shape_cast %34 : vector<176x8xf32> to vector<1x176x8xf32>
    tpu.vector_store %arg16[%c1_30, %c0_31, %c0_32], %37 {strides = array<i32>} : memref<4x176x8xf32, #tpu.memory_space<vmem>>, vector<1x176x8xf32>,
    %c0_33 = arith.constant 0 : index
    %c2 = arith.constant 2 : index
    %c0_34 = arith.constant 0 : index
    %c0_35 = arith.constant 0 : index
    %38 = vector.load %arg1[%c0_33, %c2, %c0_34, %c0_35] : memref<1x4x176x16xf32, #tpu.memory_space<vmem>>, vector<1x1x176x16xf32>
    %39 = vector.shape_cast %38 : vector<1x1x176x16xf32> to vector<176x16xf32>
    %c0_36 = arith.constant 0 : index
    %c0_37 = arith.constant 0 : index
    %40 = vector.load %arg3[%c0_36, %c0_37] : memref<16x8xf32, #tpu.memory_space<vmem>>, vector<16x8xf32>
    %cst_38 = arith.constant dense<0.000000e+00> : vector<176x8xf32>
    %41 = tpu.matmul %39, %40, %cst_38 {dimension_numbers = #tpu.dot_dimension_numbers<[1], [0], [0], [1], [0, 0, 1, 1], [], []>} : vector<176x16xf32>, vector<16x8xf32>, vector<176x8xf32> -> vector<176x8xf32>
    %c0_39 = arith.constant 0 : index
    %c0_40 = arith.constant 0 : index
    %42 = vector.load %arg4[%c0_39, %c0_40] : memref<1x8xf32, #tpu.memory_space<vmem>>, vector<1x8xf32>
    %43 = vector.broadcast %42 : vector<1x8xf32> to vector<176x8xf32>
    %44 = arith.mulf %41, %43 : vector<176x8xf32>
    %c0_41 = arith.constant 0 : index
    %c0_42 = arith.constant 0 : index
    %45 = vector.load %arg5[%c0_41, %c0_42] : memref<1x8xf32, #tpu.memory_space<vmem>>, vector<1x8xf32>
    %46 = vector.broadcast %45 : vector<1x8xf32> to vector<176x8xf32>
    %47 = arith.addf %44, %46 : vector<176x8xf32>
    %cst_43 = arith.constant 0.000000e+00 : f32
    %48 = vector.broadcast %cst_43 : f32 to vector<176x8xf32>
    %49 = arith.maximumf %47, %48 : vector<176x8xf32>
    %c2_44 = arith.constant 2 : index
    %c0_45 = arith.constant 0 : index
    %c0_46 = arith.constant 0 : index
    %50 = vector.load %arg2[%c2_44, %c0_45, %c0_46] : memref<4x176x1xf32, #tpu.memory_space<vmem>>, vector<1x176x1xf32>
    %51 = vector.shape_cast %50 : vector<1x176x1xf32> to vector<176x1xf32>
    %52 = vector.broadcast %51 : vector<176x1xf32> to vector<176x8xf32>
    %53 = arith.mulf %49, %52 : vector<176x8xf32>
    %c2_47 = arith.constant 2 : index
    %c0_48 = arith.constant 0 : index
    %c0_49 = arith.constant 0 : index
    %54 = vector.load %arg16[%c2_47, %c0_48, %c0_49] : memref<4x176x8xf32, #tpu.memory_space<vmem>>, vector<1x176x8xf32>
    %55 = vector.shape_cast %54 : vector<1x176x8xf32> to vector<176x8xf32>
    %56 = vector.shape_cast %53 : vector<176x8xf32> to vector<1x176x8xf32>
    tpu.vector_store %arg16[%c2_47, %c0_48, %c0_49], %56 {strides = array<i32>} : memref<4x176x8xf32, #tpu.memory_space<vmem>>, vector<1x176x8xf32>,
    %c0_50 = arith.constant 0 : index
    %c3 = arith.constant 3 : index
    %c0_51 = arith.constant 0 : index
    %c0_52 = arith.constant 0 : index
    %57 = vector.load %arg1[%c0_50, %c3, %c0_51, %c0_52] : memref<1x4x176x16xf32, #tpu.memory_space<vmem>>, vector<1x1x176x16xf32>
    %58 = vector.shape_cast %57 : vector<1x1x176x16xf32> to vector<176x16xf32>
    %c0_53 = arith.constant 0 : index
    %c0_54 = arith.constant 0 : index
    %59 = vector.load %arg3[%c0_53, %c0_54] : memref<16x8xf32, #tpu.memory_space<vmem>>, vector<16x8xf32>
    %cst_55 = arith.constant dense<0.000000e+00> : vector<176x8xf32>
    %60 = tpu.matmul %58, %59, %cst_55 {dimension_numbers = #tpu.dot_dimension_numbers<[1], [0], [0], [1], [0, 0, 1, 1], [], []>} : vector<176x16xf32>, vector<16x8xf32>, vector<176x8xf32> -> vector<176x8xf32>
    %c0_56 = arith.constant 0 : index
    %c0_57 = arith.constant 0 : index
    %61 = vector.load %arg4[%c0_56, %c0_57] : memref<1x8xf32, #tpu.memory_space<vmem>>, vector<1x8xf32>
    %62 = vector.broadcast %61 : vector<1x8xf32> to vector<176x8xf32>
    %63 = arith.mulf %60, %62 : vector<176x8xf32>
    %c0_58 = arith.constant 0 : index
    %c0_59 = arith.constant 0 : index
    %64 = vector.load %arg5[%c0_58, %c0_59] : memref<1x8xf32, #tpu.memory_space<vmem>>, vector<1x8xf32>
    %65 = vector.broadcast %64 : vector<1x8xf32> to vector<176x8xf32>
    %66 = arith.addf %63, %65 : vector<176x8xf32>
    %cst_60 = arith.constant 0.000000e+00 : f32
    %67 = vector.broadcast %cst_60 : f32 to vector<176x8xf32>
    %68 = arith.maximumf %66, %67 : vector<176x8xf32>
    %c3_61 = arith.constant 3 : index
    %c0_62 = arith.constant 0 : index
    %c0_63 = arith.constant 0 : index
    %69 = vector.load %arg2[%c3_61, %c0_62, %c0_63] : memref<4x176x1xf32, #tpu.memory_space<vmem>>, vector<1x176x1xf32>
    %70 = vector.shape_cast %69 : vector<1x176x1xf32> to vector<176x1xf32>
    %71 = vector.broadcast %70 : vector<176x1xf32> to vector<176x8xf32>
    %72 = arith.mulf %68, %71 : vector<176x8xf32>
    %c3_64 = arith.constant 3 : index
    %c0_65 = arith.constant 0 : index
    %c0_66 = arith.constant 0 : index
    %73 = vector.load %arg16[%c3_64, %c0_65, %c0_66] : memref<4x176x8xf32, #tpu.memory_space<vmem>>, vector<1x176x8xf32>
    %74 = vector.shape_cast %73 : vector<1x176x8xf32> to vector<176x8xf32>
    %75 = vector.shape_cast %72 : vector<176x8xf32> to vector<1x176x8xf32>
    tpu.vector_store %arg16[%c3_64, %c0_65, %c0_66], %75 {strides = array<i32>} : memref<4x176x8xf32, #tpu.memory_space<vmem>>, vector<1x176x8xf32>,
    %cst_67 = arith.constant 0.000000e+00 : f32
    %76 = vector.broadcast %cst_67 : f32 to vector<128x8xf32>
    %c0_68 = arith.constant 0 : index
    %c0_69 = arith.constant 0 : index
    %c0_70 = arith.constant 0 : index
    %77 = vector.load %arg16[%c0_68, %c0_69, %c0_70] : memref<4x176x8xf32, #tpu.memory_space<vmem>>, vector<1x128x8xf32>
    %78 = vector.shape_cast %77 : vector<1x128x8xf32> to vector<128x8xf32>
    %c1_71 = arith.constant 1 : index
    %c0_72 = arith.constant 0 : index
    %c0_73 = arith.constant 0 : index
    %79 = vector.load %arg16[%c1_71, %c0_72, %c0_73] : memref<4x176x8xf32, #tpu.memory_space<vmem>>, vector<1x128x8xf32>
    %80 = vector.shape_cast %79 : vector<1x128x8xf32> to vector<128x8xf32>
    %c0_74 = arith.constant 0 : index
    %c1_75 = arith.constant 1 : index
    %c0_76 = arith.constant 0 : index
    %81 = vector.load %arg16[%c0_74, %c1_75, %c0_76] : memref<4x176x8xf32, #tpu.memory_space<vmem>>, vector<1x128x8xf32>
    %82 = vector.shape_cast %81 : vector<1x128x8xf32> to vector<128x8xf32>
    %83 = tpu.concatenate %78, %80, %82 in 1 : vector<128x8xf32>, vector<128x8xf32>, vector<128x8xf32> -> vector<128x24xf32>
    %c0_77 = arith.constant 0 : index
    %c0_78 = arith.constant 0 : index
    %c0_79 = arith.constant 0 : index
    %84 = vector.load %arg6[%c0_77, %c0_78, %c0_79] : memref<3x24x8xf32, #tpu.memory_space<vmem>>, vector<1x24x8xf32>
    %85 = vector.shape_cast %84 : vector<1x24x8xf32> to vector<24x8xf32>
    %cst_80 = arith.constant dense<0.000000e+00> : vector<128x8xf32>
    %86 = tpu.matmul %83, %85, %cst_80 {dimension_numbers = #tpu.dot_dimension_numbers<[1], [0], [0], [1], [0, 0, 1, 1], [], []>} : vector<128x24xf32>, vector<24x8xf32>, vector<128x8xf32> -> vector<128x8xf32>
    %87 = arith.addf %76, %86 : vector<128x8xf32>
    %c2_81 = arith.constant 2 : index
    %c0_82 = arith.constant 0 : index
    %c0_83 = arith.constant 0 : index
    %88 = vector.load %arg16[%c2_81, %c0_82, %c0_83] : memref<4x176x8xf32, #tpu.memory_space<vmem>>, vector<1x128x8xf32>
    %89 = vector.shape_cast %88 : vector<1x128x8xf32> to vector<128x8xf32>
    %c3_84 = arith.constant 3 : index
    %c0_85 = arith.constant 0 : index
    %c0_86 = arith.constant 0 : index
    %90 = vector.load %arg16[%c3_84, %c0_85, %c0_86] : memref<4x176x8xf32, #tpu.memory_space<vmem>>, vector<1x128x8xf32>
    %91 = vector.shape_cast %90 : vector<1x128x8xf32> to vector<128x8xf32>
    %c2_87 = arith.constant 2 : index
    %c1_88 = arith.constant 1 : index
    %c0_89 = arith.constant 0 : index
    %92 = vector.load %arg16[%c2_87, %c1_88, %c0_89] : memref<4x176x8xf32, #tpu.memory_space<vmem>>, vector<1x128x8xf32>
    %93 = vector.shape_cast %92 : vector<1x128x8xf32> to vector<128x8xf32>
    %94 = tpu.concatenate %89, %91, %93 in 1 : vector<128x8xf32>, vector<128x8xf32>, vector<128x8xf32> -> vector<128x24xf32>
    %c1_90 = arith.constant 1 : index
    %c0_91 = arith.constant 0 : index
    %c0_92 = arith.constant 0 : index
    %95 = vector.load %arg6[%c1_90, %c0_91, %c0_92] : memref<3x24x8xf32, #tpu.memory_space<vmem>>, vector<1x24x8xf32>
    %96 = vector.shape_cast %95 : vector<1x24x8xf32> to vector<24x8xf32>
    %cst_93 = arith.constant dense<0.000000e+00> : vector<128x8xf32>
    %97 = tpu.matmul %94, %96, %cst_93 {dimension_numbers = #tpu.dot_dimension_numbers<[1], [0], [0], [1], [0, 0, 1, 1], [], []>} : vector<128x24xf32>, vector<24x8xf32>, vector<128x8xf32> -> vector<128x8xf32>
    %98 = arith.addf %87, %97 : vector<128x8xf32>
    %c0_94 = arith.constant 0 : index
    %c16 = arith.constant 16 : index
    %c0_95 = arith.constant 0 : index
    %99 = vector.load %arg16[%c0_94, %c16, %c0_95] : memref<4x176x8xf32, #tpu.memory_space<vmem>>, vector<1x128x8xf32>
    %100 = vector.shape_cast %99 : vector<1x128x8xf32> to vector<128x8xf32>
    %c1_96 = arith.constant 1 : index
    %c16_97 = arith.constant 16 : index
    %c0_98 = arith.constant 0 : index
    %101 = vector.load %arg16[%c1_96, %c16_97, %c0_98] : memref<4x176x8xf32, #tpu.memory_space<vmem>>, vector<1x128x8xf32>
    %102 = vector.shape_cast %101 : vector<1x128x8xf32> to vector<128x8xf32>
    %c0_99 = arith.constant 0 : index
    %c17 = arith.constant 17 : index
    %c0_100 = arith.constant 0 : index
    %103 = vector.load %arg16[%c0_99, %c17, %c0_100] : memref<4x176x8xf32, #tpu.memory_space<vmem>>, vector<1x128x8xf32>
    %104 = vector.shape_cast %103 : vector<1x128x8xf32> to vector<128x8xf32>
    %105 = tpu.concatenate %100, %102, %104 in 1 : vector<128x8xf32>, vector<128x8xf32>, vector<128x8xf32> -> vector<128x24xf32>
    %c2_101 = arith.constant 2 : index
    %c0_102 = arith.constant 0 : index
    %c0_103 = arith.constant 0 : index
    %106 = vector.load %arg6[%c2_101, %c0_102, %c0_103] : memref<3x24x8xf32, #tpu.memory_space<vmem>>, vector<1x24x8xf32>
    %107 = vector.shape_cast %106 : vector<1x24x8xf32> to vector<24x8xf32>
    %cst_104 = arith.constant dense<0.000000e+00> : vector<128x8xf32>
    %108 = tpu.matmul %105, %107, %cst_104 {dimension_numbers = #tpu.dot_dimension_numbers<[1], [0], [0], [1], [0, 0, 1, 1], [], []>} : vector<128x24xf32>, vector<24x8xf32>, vector<128x8xf32> -> vector<128x8xf32>
    %109 = arith.addf %98, %108 : vector<128x8xf32>
    %c0_105 = arith.constant 0 : index
    %c0_106 = arith.constant 0 : index
    %110 = vector.load %arg7[%c0_105, %c0_106] : memref<1x8xf32, #tpu.memory_space<vmem>>, vector<1x8xf32>
    %111 = vector.broadcast %110 : vector<1x8xf32> to vector<128x8xf32>
    %112 = arith.mulf %109, %111 : vector<128x8xf32>
    %c0_107 = arith.constant 0 : index
    %c0_108 = arith.constant 0 : index
    %113 = vector.load %arg8[%c0_107, %c0_108] : memref<1x8xf32, #tpu.memory_space<vmem>>, vector<1x8xf32>
    %114 = vector.broadcast %113 : vector<1x8xf32> to vector<128x8xf32>
    %115 = arith.addf %112, %114 : vector<128x8xf32>
    %cst_109 = arith.constant 0.000000e+00 : f32
    %116 = vector.broadcast %cst_109 : f32 to vector<128x8xf32>
    %117 = arith.maximumf %115, %116 : vector<128x8xf32>
    %c0_110 = arith.constant 0 : index
    %c0_111 = arith.constant 0 : index
    %118 = vector.load %arg9[%c0_110, %c0_111] : memref<8x32xf32, #tpu.memory_space<vmem>>, vector<8x32xf32>
    %cst_112 = arith.constant dense<0.000000e+00> : vector<128x32xf32>
    %119 = tpu.matmul %117, %118, %cst_112 {dimension_numbers = #tpu.dot_dimension_numbers<[1], [0], [0], [1], [0, 0, 1, 1], [], []>} : vector<128x8xf32>, vector<8x32xf32>, vector<128x32xf32> -> vector<128x32xf32>
    %c0_113 = arith.constant 0 : index
    %c0_114 = arith.constant 0 : index
    %120 = vector.load %arg10[%c0_113, %c0_114] : memref<1x32xf32, #tpu.memory_space<vmem>>, vector<1x32xf32>
    %121 = vector.broadcast %120 : vector<1x32xf32> to vector<128x32xf32>
    %122 = arith.mulf %119, %121 : vector<128x32xf32>
    %c0_115 = arith.constant 0 : index
    %c0_116 = arith.constant 0 : index
    %123 = vector.load %arg11[%c0_115, %c0_116] : memref<1x32xf32, #tpu.memory_space<vmem>>, vector<1x32xf32>
    %124 = vector.broadcast %123 : vector<1x32xf32> to vector<128x32xf32>
    %125 = arith.addf %122, %124 : vector<128x32xf32>
    %c0_117 = arith.constant 0 : index
    %c3_118 = arith.constant 3 : index
    %c0_119 = arith.constant 0 : index
    %c0_120 = arith.constant 0 : index
    %126 = vector.load %arg1[%c0_117, %c3_118, %c0_119, %c0_120] : memref<1x4x176x16xf32, #tpu.memory_space<vmem>>, vector<1x1x128x16xf32>
    %127 = vector.shape_cast %126 : vector<1x1x128x16xf32> to vector<128x16xf32>
    %c0_121 = arith.constant 0 : index
    %c0_122 = arith.constant 0 : index
    %128 = vector.load %arg12[%c0_121, %c0_122] : memref<16x32xf32, #tpu.memory_space<vmem>>, vector<16x32xf32>
    %cst_123 = arith.constant dense<0.000000e+00> : vector<128x32xf32>
    %129 = tpu.matmul %127, %128, %cst_123 {dimension_numbers = #tpu.dot_dimension_numbers<[1], [0], [0], [1], [0, 0, 1, 1], [], []>} : vector<128x16xf32>, vector<16x32xf32>, vector<128x32xf32> -> vector<128x32xf32>
    %c0_124 = arith.constant 0 : index
    %c0_125 = arith.constant 0 : index
    %130 = vector.load %arg13[%c0_124, %c0_125] : memref<1x32xf32, #tpu.memory_space<vmem>>, vector<1x32xf32>
    %131 = vector.broadcast %130 : vector<1x32xf32> to vector<128x32xf32>
    %132 = arith.mulf %129, %131 : vector<128x32xf32>
    %c0_126 = arith.constant 0 : index
    %c0_127 = arith.constant 0 : index
    %133 = vector.load %arg14[%c0_126, %c0_127] : memref<1x32xf32, #tpu.memory_space<vmem>>, vector<1x32xf32>
    %134 = vector.broadcast %133 : vector<1x32xf32> to vector<128x32xf32>
    %135 = arith.addf %132, %134 : vector<128x32xf32>
    %136 = arith.addf %125, %135 : vector<128x32xf32>
    %cst_128 = arith.constant 0.000000e+00 : f32
    %137 = vector.broadcast %cst_128 : f32 to vector<128x32xf32>
    %138 = arith.maximumf %136, %137 : vector<128x32xf32>
    %139 = vector.extract_strided_slice %138 {offsets = [0, 0], sizes = [8, 32], strides = [1, 1]} : vector<128x32xf32> to vector<8x32xf32>
    %c0_129 = arith.constant 0 : index
    %c0_130 = arith.constant 0 : index
    %c0_131 = arith.constant 0 : index
    %140 = vector.load %arg15[%c0_129, %c0_130, %c0_131] : memref<1x64x32xf32, #tpu.memory_space<vmem>>, vector<1x8x32xf32>
    %141 = vector.shape_cast %140 : vector<1x8x32xf32> to vector<8x32xf32>
    %142 = vector.shape_cast %139 : vector<8x32xf32> to vector<1x8x32xf32>
    tpu.vector_store %arg15[%c0_129, %c0_130, %c0_131], %142 {strides = array<i32>} : memref<1x64x32xf32, #tpu.memory_space<vmem>>, vector<1x8x32xf32>,
    %143 = vector.extract_strided_slice %138 {offsets = [16, 0], sizes = [8, 32], strides = [1, 1]} : vector<128x32xf32> to vector<8x32xf32>
    %c0_132 = arith.constant 0 : index
    %c8 = arith.constant 8 : index
    %c0_133 = arith.constant 0 : index
    %144 = vector.load %arg15[%c0_132, %c8, %c0_133] : memref<1x64x32xf32, #tpu.memory_space<vmem>>, vector<1x8x32xf32>
    %145 = vector.shape_cast %144 : vector<1x8x32xf32> to vector<8x32xf32>
    %146 = vector.shape_cast %143 : vector<8x32xf32> to vector<1x8x32xf32>
    tpu.vector_store %arg15[%c0_132, %c8, %c0_133], %146 {strides = array<i32>} : memref<1x64x32xf32, #tpu.memory_space<vmem>>, vector<1x8x32xf32>,
    %147 = vector.extract_strided_slice %138 {offsets = [32, 0], sizes = [8, 32], strides = [1, 1]} : vector<128x32xf32> to vector<8x32xf32>
    %c0_134 = arith.constant 0 : index
    %c16_135 = arith.constant 16 : index
    %c0_136 = arith.constant 0 : index
    %148 = vector.load %arg15[%c0_134, %c16_135, %c0_136] : memref<1x64x32xf32, #tpu.memory_space<vmem>>, vector<1x8x32xf32>
    %149 = vector.shape_cast %148 : vector<1x8x32xf32> to vector<8x32xf32>
    %150 = vector.shape_cast %147 : vector<8x32xf32> to vector<1x8x32xf32>
    tpu.vector_store %arg15[%c0_134, %c16_135, %c0_136], %150 {strides = array<i32>} : memref<1x64x32xf32, #tpu.memory_space<vmem>>, vector<1x8x32xf32>,
    %151 = vector.extract_strided_slice %138 {offsets = [48, 0], sizes = [8, 32], strides = [1, 1]} : vector<128x32xf32> to vector<8x32xf32>
    %c0_137 = arith.constant 0 : index
    %c24 = arith.constant 24 : index
    %c0_138 = arith.constant 0 : index
    %152 = vector.load %arg15[%c0_137, %c24, %c0_138] : memref<1x64x32xf32, #tpu.memory_space<vmem>>, vector<1x8x32xf32>
    %153 = vector.shape_cast %152 : vector<1x8x32xf32> to vector<8x32xf32>
    %154 = vector.shape_cast %151 : vector<8x32xf32> to vector<1x8x32xf32>
    tpu.vector_store %arg15[%c0_137, %c24, %c0_138], %154 {strides = array<i32>} : memref<1x64x32xf32, #tpu.memory_space<vmem>>, vector<1x8x32xf32>,
    %155 = vector.extract_strided_slice %138 {offsets = [64, 0], sizes = [8, 32], strides = [1, 1]} : vector<128x32xf32> to vector<8x32xf32>
    %c0_139 = arith.constant 0 : index
    %c32 = arith.constant 32 : index
    %c0_140 = arith.constant 0 : index
    %156 = vector.load %arg15[%c0_139, %c32, %c0_140] : memref<1x64x32xf32, #tpu.memory_space<vmem>>, vector<1x8x32xf32>
    %157 = vector.shape_cast %156 : vector<1x8x32xf32> to vector<8x32xf32>
    %158 = vector.shape_cast %155 : vector<8x32xf32> to vector<1x8x32xf32>
    tpu.vector_store %arg15[%c0_139, %c32, %c0_140], %158 {strides = array<i32>} : memref<1x64x32xf32, #tpu.memory_space<vmem>>, vector<1x8x32xf32>,
    %159 = vector.extract_strided_slice %138 {offsets = [80, 0], sizes = [8, 32], strides = [1, 1]} : vector<128x32xf32> to vector<8x32xf32>
    %c0_141 = arith.constant 0 : index
    %c40 = arith.constant 40 : index
    %c0_142 = arith.constant 0 : index
    %160 = vector.load %arg15[%c0_141, %c40, %c0_142] : memref<1x64x32xf32, #tpu.memory_space<vmem>>, vector<1x8x32xf32>
    %161 = vector.shape_cast %160 : vector<1x8x32xf32> to vector<8x32xf32>
    %162 = vector.shape_cast %159 : vector<8x32xf32> to vector<1x8x32xf32>
    tpu.vector_store %arg15[%c0_141, %c40, %c0_142], %162 {strides = array<i32>} : memref<1x64x32xf32, #tpu.memory_space<vmem>>, vector<1x8x32xf32>,
    %163 = vector.extract_strided_slice %138 {offsets = [96, 0], sizes = [8, 32], strides = [1, 1]} : vector<128x32xf32> to vector<8x32xf32>
    %c0_143 = arith.constant 0 : index
    %c48 = arith.constant 48 : index
    %c0_144 = arith.constant 0 : index
    %164 = vector.load %arg15[%c0_143, %c48, %c0_144] : memref<1x64x32xf32, #tpu.memory_space<vmem>>, vector<1x8x32xf32>
    %165 = vector.shape_cast %164 : vector<1x8x32xf32> to vector<8x32xf32>
    %166 = vector.shape_cast %163 : vector<8x32xf32> to vector<1x8x32xf32>
    tpu.vector_store %arg15[%c0_143, %c48, %c0_144], %166 {strides = array<i32>} : memref<1x64x32xf32, #tpu.memory_space<vmem>>, vector<1x8x32xf32>,
    %167 = vector.extract_strided_slice %138 {offsets = [112, 0], sizes = [8, 32], strides = [1, 1]} : vector<128x32xf32> to vector<8x32xf32>
    %c0_145 = arith.constant 0 : index
    %c56 = arith.constant 56 : index
    %c0_146 = arith.constant 0 : index
    %168 = vector.load %arg15[%c0_145, %c56, %c0_146] : memref<1x64x32xf32, #tpu.memory_space<vmem>>, vector<1x8x32xf32>
    %169 = vector.shape_cast %168 : vector<1x8x32xf32> to vector<8x32xf32>
    %170 = vector.shape_cast %167 : vector<8x32xf32> to vector<1x8x32xf32>
    tpu.vector_store %arg15[%c0_145, %c56, %c0_146], %170 {strides = array<i32>} : memref<1x64x32xf32, #tpu.memory_space<vmem>>, vector<1x8x32xf32>,
    return
  }
  func.func @transform_0(%arg0: i32) -> (i32, i32, i32, i32) {
    %c0_i32 = arith.constant 0 : i32
    %c0_i32_0 = arith.constant 0 : i32
    %c0_i32_1 = arith.constant 0 : i32
    %c0_i32_2 = arith.constant 0 : i32
    return %arg0, %c0_i32, %c0_i32_0, %c0_i32_1 : i32, i32, i32, i32
  }
  func.func @transform_1(%arg0: i32) -> (i32, i32, i32) {
    %c0_i32 = arith.constant 0 : i32
    %c0_i32_0 = arith.constant 0 : i32
    %c0_i32_1 = arith.constant 0 : i32
    %c0_i32_2 = arith.constant 0 : i32
    return %c0_i32, %c0_i32_0, %c0_i32_1 : i32, i32, i32
  }
  func.func @transform_2(%arg0: i32) -> (i32, i32) {
    %c0_i32 = arith.constant 0 : i32
    %c0_i32_0 = arith.constant 0 : i32
    %c0_i32_1 = arith.constant 0 : i32
    return %c0_i32, %c0_i32_0 : i32, i32
  }
  func.func @transform_3(%arg0: i32) -> (i32, i32) {
    %c0_i32 = arith.constant 0 : i32
    %c0_i32_0 = arith.constant 0 : i32
    %c0_i32_1 = arith.constant 0 : i32
    return %c0_i32, %c0_i32_0 : i32, i32
  }
  func.func @transform_4(%arg0: i32) -> (i32, i32) {
    %c0_i32 = arith.constant 0 : i32
    %c0_i32_0 = arith.constant 0 : i32
    %c0_i32_1 = arith.constant 0 : i32
    return %c0_i32, %c0_i32_0 : i32, i32
  }
  func.func @transform_5(%arg0: i32) -> (i32, i32, i32) {
    %c0_i32 = arith.constant 0 : i32
    %c0_i32_0 = arith.constant 0 : i32
    %c0_i32_1 = arith.constant 0 : i32
    %c0_i32_2 = arith.constant 0 : i32
    return %c0_i32, %c0_i32_0, %c0_i32_1 : i32, i32, i32
  }
  func.func @transform_6(%arg0: i32) -> (i32, i32) {
    %c0_i32 = arith.constant 0 : i32
    %c0_i32_0 = arith.constant 0 : i32
    %c0_i32_1 = arith.constant 0 : i32
    return %c0_i32, %c0_i32_0 : i32, i32
  }
  func.func @transform_7(%arg0: i32) -> (i32, i32) {
    %c0_i32 = arith.constant 0 : i32
    %c0_i32_0 = arith.constant 0 : i32
    %c0_i32_1 = arith.constant 0 : i32
    return %c0_i32, %c0_i32_0 : i32, i32
  }
  func.func @transform_8(%arg0: i32) -> (i32, i32) {
    %c0_i32 = arith.constant 0 : i32
    %c0_i32_0 = arith.constant 0 : i32
    %c0_i32_1 = arith.constant 0 : i32
    return %c0_i32, %c0_i32_0 : i32, i32
  }
  func.func @transform_9(%arg0: i32) -> (i32, i32) {
    %c0_i32 = arith.constant 0 : i32
    %c0_i32_0 = arith.constant 0 : i32
    %c0_i32_1 = arith.constant 0 : i32
    return %c0_i32, %c0_i32_0 : i32, i32
  }
  func.func @transform_10(%arg0: i32) -> (i32, i32) {
    %c0_i32 = arith.constant 0 : i32
    %c0_i32_0 = arith.constant 0 : i32
    %c0_i32_1 = arith.constant 0 : i32
    return %c0_i32, %c0_i32_0 : i32, i32
  }
  func.func @transform_11(%arg0: i32) -> (i32, i32) {
    %c0_i32 = arith.constant 0 : i32
    %c0_i32_0 = arith.constant 0 : i32
    %c0_i32_1 = arith.constant 0 : i32
    return %c0_i32, %c0_i32_0 : i32, i32
  }
  func.func @transform_12(%arg0: i32) -> (i32, i32) {
    %c0_i32 = arith.constant 0 : i32
    %c0_i32_0 = arith.constant 0 : i32
    %c0_i32_1 = arith.constant 0 : i32
    return %c0_i32, %c0_i32_0 : i32, i32
  }
  func.func @transform_13(%arg0: i32) -> (i32, i32) {
    %c0_i32 = arith.constant 0 : i32
    %c0_i32_0 = arith.constant 0 : i32
    %c0_i32_1 = arith.constant 0 : i32
    return %c0_i32, %c0_i32_0 : i32, i32
  }
  func.func @transform_14(%arg0: i32) -> (i32, i32, i32) {
    %c0_i32 = arith.constant 0 : i32
    %c0_i32_0 = arith.constant 0 : i32
    %c0_i32_1 = arith.constant 0 : i32
    return %arg0, %c0_i32, %c0_i32_0 : i32, i32, i32
  }
}

module attributes {stable_mosaic.version = 11 : i64} {
  func.func @kernel(%arg0: i32, %arg1: memref<1x4x176x16xf32, #tpu.memory_space<vmem>>, %arg2: memref<4x176x1xf32, #tpu.memory_space<vmem>>, %arg3: memref<16x8xf32, #tpu.memory_space<vmem>>, %arg4: memref<1x8xf32, #tpu.memory_space<vmem>>, %arg5: memref<1x8xf32, #tpu.memory_space<vmem>>, %arg6: memref<3x24x8xf32, #tpu.memory_space<vmem>>, %arg7: memref<1x8xf32, #tpu.memory_space<vmem>>, %arg8: memref<1x8xf32, #tpu.memory_space<vmem>>, %arg9: memref<8x32xf32, #tpu.memory_space<vmem>>, %arg10: memref<1x32xf32, #tpu.memory_space<vmem>>, %arg11: memref<1x32xf32, #tpu.memory_space<vmem>>, %arg12: memref<16x32xf32, #tpu.memory_space<vmem>>, %arg13: memref<1x32xf32, #tpu.memory_space<vmem>>, %arg14: memref<1x32xf32, #tpu.memory_space<vmem>>, %arg15: memref<1x64x32xf32, #tpu.memory_space<vmem>>, %arg16: memref<4x176x8xf32, #tpu.memory_space<vmem>>) attributes {dimension_semantics = [#tpu.dimension_semantics<parallel>], iteration_bounds = array<i64: 2>, scalar_prefetch = 0 : i64, scratch_operands = 1 : i64, tpu.core_type = #tpu.core_type<tc>, window_params = [{transform_indices = @transform_0, window_bounds = array<i64: 1, 4, 176, 16>}, {pipeline_mode = #tpu.pipeline_mode<synchronous>, transform_indices = @transform_1, window_bounds = array<i64: 4, 176, 1>}, {pipeline_mode = #tpu.pipeline_mode<synchronous>, transform_indices = @transform_2, window_bounds = array<i64: 16, 8>}, {pipeline_mode = #tpu.pipeline_mode<synchronous>, transform_indices = @transform_3, window_bounds = array<i64: 1, 8>}, {pipeline_mode = #tpu.pipeline_mode<synchronous>, transform_indices = @transform_4, window_bounds = array<i64: 1, 8>}, {pipeline_mode = #tpu.pipeline_mode<synchronous>, transform_indices = @transform_5, window_bounds = array<i64: 3, 24, 8>}, {pipeline_mode = #tpu.pipeline_mode<synchronous>, transform_indices = @transform_6, window_bounds = array<i64: 1, 8>}, {pipeline_mode = #tpu.pipeline_mode<synchronous>, transform_indices = @transform_7, window_bounds = array<i64: 1, 8>}, {pipeline_mode = #tpu.pipeline_mode<synchronous>, transform_indices = @transform_8, window_bounds = array<i64: 8, 32>}, {pipeline_mode = #tpu.pipeline_mode<synchronous>, transform_indices = @transform_9, window_bounds = array<i64: 1, 32>}, {pipeline_mode = #tpu.pipeline_mode<synchronous>, transform_indices = @transform_10, window_bounds = array<i64: 1, 32>}, {pipeline_mode = #tpu.pipeline_mode<synchronous>, transform_indices = @transform_11, window_bounds = array<i64: 16, 32>}, {pipeline_mode = #tpu.pipeline_mode<synchronous>, transform_indices = @transform_12, window_bounds = array<i64: 1, 32>}, {pipeline_mode = #tpu.pipeline_mode<synchronous>, transform_indices = @transform_13, window_bounds = array<i64: 1, 32>}, {transform_indices = @transform_14, window_bounds = array<i64: 1, 64, 32>}]} {
    %c0 = arith.constant 0 : index
    %c0_0 = arith.constant 0 : index
    %c0_1 = arith.constant 0 : index
    %c0_2 = arith.constant 0 : index
    %0 = vector.load %arg1[%c0, %c0_0, %c0_1, %c0_2] : memref<1x4x176x16xf32, #tpu.memory_space<vmem>>, vector<1x1x176x16xf32>
    %1 = vector.shape_cast %0 : vector<1x1x176x16xf32> to vector<176x16xf32>
    %c0_3 = arith.constant 0 : index
    %c0_4 = arith.constant 0 : index
    %2 = vector.load %arg3[%c0_3, %c0_4] : memref<16x8xf32, #tpu.memory_space<vmem>>, vector<16x8xf32>
    %cst = arith.constant dense<0.000000e+00> : vector<176x8xf32>
    %3 = tpu.matmul %1, %2, %cst {dimension_numbers = #tpu.dot_dimension_numbers<[1], [0], [0], [1], [0, 0, 1, 1], [], []>} : vector<176x16xf32>, vector<16x8xf32>, vector<176x8xf32> -> vector<176x8xf32>
    %c0_5 = arith.constant 0 : index
    %c0_6 = arith.constant 0 : index
    %4 = vector.load %arg4[%c0_5, %c0_6] : memref<1x8xf32, #tpu.memory_space<vmem>>, vector<1x8xf32>
    %5 = vector.broadcast %4 : vector<1x8xf32> to vector<176x8xf32>
    %6 = arith.mulf %3, %5 : vector<176x8xf32>
    %c0_7 = arith.constant 0 : index
    %c0_8 = arith.constant 0 : index
    %7 = vector.load %arg5[%c0_7, %c0_8] : memref<1x8xf32, #tpu.memory_space<vmem>>, vector<1x8xf32>
    %8 = vector.broadcast %7 : vector<1x8xf32> to vector<176x8xf32>
    %9 = arith.addf %6, %8 : vector<176x8xf32>
    %cst_9 = arith.constant 0.000000e+00 : f32
    %10 = vector.broadcast %cst_9 : f32 to vector<176x8xf32>
    %11 = arith.maximumf %9, %10 : vector<176x8xf32>
    %c0_10 = arith.constant 0 : index
    %c0_11 = arith.constant 0 : index
    %c0_12 = arith.constant 0 : index
    %12 = vector.load %arg2[%c0_10, %c0_11, %c0_12] : memref<4x176x1xf32, #tpu.memory_space<vmem>>, vector<1x176x1xf32>
    %13 = vector.shape_cast %12 : vector<1x176x1xf32> to vector<176x1xf32>
    %14 = vector.broadcast %13 : vector<176x1xf32> to vector<176x8xf32>
    %15 = arith.mulf %11, %14 : vector<176x8xf32>
    %c0_13 = arith.constant 0 : index
    %c0_14 = arith.constant 0 : index
    %c0_15 = arith.constant 0 : index
    %16 = vector.load %arg16[%c0_13, %c0_14, %c0_15] : memref<4x176x8xf32, #tpu.memory_space<vmem>>, vector<1x176x8xf32>
    %17 = vector.shape_cast %16 : vector<1x176x8xf32> to vector<176x8xf32>
    %18 = vector.shape_cast %15 : vector<176x8xf32> to vector<1x176x8xf32>
    tpu.vector_store %arg16[%c0_13, %c0_14, %c0_15], %18 {strides = array<i32>} : memref<4x176x8xf32, #tpu.memory_space<vmem>>, vector<1x176x8xf32>,
    %c0_16 = arith.constant 0 : index
    %c1 = arith.constant 1 : index
    %c0_17 = arith.constant 0 : index
    %c0_18 = arith.constant 0 : index
    %19 = vector.load %arg1[%c0_16, %c1, %c0_17, %c0_18] : memref<1x4x176x16xf32, #tpu.memory_space<vmem>>, vector<1x1x176x16xf32>
    %20 = vector.shape_cast %19 : vector<1x1x176x16xf32> to vector<176x16xf32>
    %c0_19 = arith.constant 0 : index
    %c0_20 = arith.constant 0 : index
    %21 = vector.load %arg3[%c0_19, %c0_20] : memref<16x8xf32, #tpu.memory_space<vmem>>, vector<16x8xf32>
    %cst_21 = arith.constant dense<0.000000e+00> : vector<176x8xf32>
    %22 = tpu.matmul %20, %21, %cst_21 {dimension_numbers = #tpu.dot_dimension_numbers<[1], [0], [0], [1], [0, 0, 1, 1], [], []>} : vector<176x16xf32>, vector<16x8xf32>, vector<176x8xf32> -> vector<176x8xf32>
    %c0_22 = arith.constant 0 : index
    %c0_23 = arith.constant 0 : index
    %23 = vector.load %arg4[%c0_22, %c0_23] : memref<1x8xf32, #tpu.memory_space<vmem>>, vector<1x8xf32>
    %24 = vector.broadcast %23 : vector<1x8xf32> to vector<176x8xf32>
    %25 = arith.mulf %22, %24 : vector<176x8xf32>
    %c0_24 = arith.constant 0 : index
    %c0_25 = arith.constant 0 : index
    %26 = vector.load %arg5[%c0_24, %c0_25] : memref<1x8xf32, #tpu.memory_space<vmem>>, vector<1x8xf32>
    %27 = vector.broadcast %26 : vector<1x8xf32> to vector<176x8xf32>
    %28 = arith.addf %25, %27 : vector<176x8xf32>
    %cst_26 = arith.constant 0.000000e+00 : f32
    %29 = vector.broadcast %cst_26 : f32 to vector<176x8xf32>
    %30 = arith.maximumf %28, %29 : vector<176x8xf32>
    %c1_27 = arith.constant 1 : index
    %c0_28 = arith.constant 0 : index
    %c0_29 = arith.constant 0 : index
    %31 = vector.load %arg2[%c1_27, %c0_28, %c0_29] : memref<4x176x1xf32, #tpu.memory_space<vmem>>, vector<1x176x1xf32>
    %32 = vector.shape_cast %31 : vector<1x176x1xf32> to vector<176x1xf32>
    %33 = vector.broadcast %32 : vector<176x1xf32> to vector<176x8xf32>
    %34 = arith.mulf %30, %33 : vector<176x8xf32>
    %c1_30 = arith.constant 1 : index
    %c0_31 = arith.constant 0 : index
    %c0_32 = arith.constant 0 : index
    %35 = vector.load %arg16[%c1_30, %c0_31, %c0_32] : memref<4x176x8xf32, #tpu.memory_space<vmem>>, vector<1x176x8xf32>
    %36 = vector.shape_cast %35 : vector<1x176x8xf32> to vector<176x8xf32>
    %37 = vector.shape_cast %34 : vector<176x8xf32> to vector<1x176x8xf32>
    tpu.vector_store %arg16[%c1_30, %c0_31, %c0_32], %37 {strides = array<i32>} : memref<4x176x8xf32, #tpu.memory_space<vmem>>, vector<1x176x8xf32>,
    %c0_33 = arith.constant 0 : index
    %c2 = arith.constant 2 : index
    %c0_34 = arith.constant 0 : index
    %c0_35 = arith.constant 0 : index
    %38 = vector.load %arg1[%c0_33, %c2, %c0_34, %c0_35] : memref<1x4x176x16xf32, #tpu.memory_space<vmem>>, vector<1x1x176x16xf32>
    %39 = vector.shape_cast %38 : vector<1x1x176x16xf32> to vector<176x16xf32>
    %c0_36 = arith.constant 0 : index
    %c0_37 = arith.constant 0 : index
    %40 = vector.load %arg3[%c0_36, %c0_37] : memref<16x8xf32, #tpu.memory_space<vmem>>, vector<16x8xf32>
    %cst_38 = arith.constant dense<0.000000e+00> : vector<176x8xf32>
    %41 = tpu.matmul %39, %40, %cst_38 {dimension_numbers = #tpu.dot_dimension_numbers<[1], [0], [0], [1], [0, 0, 1, 1], [], []>} : vector<176x16xf32>, vector<16x8xf32>, vector<176x8xf32> -> vector<176x8xf32>
    %c0_39 = arith.constant 0 : index
    %c0_40 = arith.constant 0 : index
    %42 = vector.load %arg4[%c0_39, %c0_40] : memref<1x8xf32, #tpu.memory_space<vmem>>, vector<1x8xf32>
    %43 = vector.broadcast %42 : vector<1x8xf32> to vector<176x8xf32>
    %44 = arith.mulf %41, %43 : vector<176x8xf32>
    %c0_41 = arith.constant 0 : index
    %c0_42 = arith.constant 0 : index
    %45 = vector.load %arg5[%c0_41, %c0_42] : memref<1x8xf32, #tpu.memory_space<vmem>>, vector<1x8xf32>
    %46 = vector.broadcast %45 : vector<1x8xf32> to vector<176x8xf32>
    %47 = arith.addf %44, %46 : vector<176x8xf32>
    %cst_43 = arith.constant 0.000000e+00 : f32
    %48 = vector.broadcast %cst_43 : f32 to vector<176x8xf32>
    %49 = arith.maximumf %47, %48 : vector<176x8xf32>
    %c2_44 = arith.constant 2 : index
    %c0_45 = arith.constant 0 : index
    %c0_46 = arith.constant 0 : index
    %50 = vector.load %arg2[%c2_44, %c0_45, %c0_46] : memref<4x176x1xf32, #tpu.memory_space<vmem>>, vector<1x176x1xf32>
    %51 = vector.shape_cast %50 : vector<1x176x1xf32> to vector<176x1xf32>
    %52 = vector.broadcast %51 : vector<176x1xf32> to vector<176x8xf32>
    %53 = arith.mulf %49, %52 : vector<176x8xf32>
    %c2_47 = arith.constant 2 : index
    %c0_48 = arith.constant 0 : index
    %c0_49 = arith.constant 0 : index
    %54 = vector.load %arg16[%c2_47, %c0_48, %c0_49] : memref<4x176x8xf32, #tpu.memory_space<vmem>>, vector<1x176x8xf32>
    %55 = vector.shape_cast %54 : vector<1x176x8xf32> to vector<176x8xf32>
    %56 = vector.shape_cast %53 : vector<176x8xf32> to vector<1x176x8xf32>
    tpu.vector_store %arg16[%c2_47, %c0_48, %c0_49], %56 {strides = array<i32>} : memref<4x176x8xf32, #tpu.memory_space<vmem>>, vector<1x176x8xf32>,
    %c0_50 = arith.constant 0 : index
    %c3 = arith.constant 3 : index
    %c0_51 = arith.constant 0 : index
    %c0_52 = arith.constant 0 : index
    %57 = vector.load %arg1[%c0_50, %c3, %c0_51, %c0_52] : memref<1x4x176x16xf32, #tpu.memory_space<vmem>>, vector<1x1x176x16xf32>
    %58 = vector.shape_cast %57 : vector<1x1x176x16xf32> to vector<176x16xf32>
    %c0_53 = arith.constant 0 : index
    %c0_54 = arith.constant 0 : index
    %59 = vector.load %arg3[%c0_53, %c0_54] : memref<16x8xf32, #tpu.memory_space<vmem>>, vector<16x8xf32>
    %cst_55 = arith.constant dense<0.000000e+00> : vector<176x8xf32>
    %60 = tpu.matmul %58, %59, %cst_55 {dimension_numbers = #tpu.dot_dimension_numbers<[1], [0], [0], [1], [0, 0, 1, 1], [], []>} : vector<176x16xf32>, vector<16x8xf32>, vector<176x8xf32> -> vector<176x8xf32>
    %c0_56 = arith.constant 0 : index
    %c0_57 = arith.constant 0 : index
    %61 = vector.load %arg4[%c0_56, %c0_57] : memref<1x8xf32, #tpu.memory_space<vmem>>, vector<1x8xf32>
    %62 = vector.broadcast %61 : vector<1x8xf32> to vector<176x8xf32>
    %63 = arith.mulf %60, %62 : vector<176x8xf32>
    %c0_58 = arith.constant 0 : index
    %c0_59 = arith.constant 0 : index
    %64 = vector.load %arg5[%c0_58, %c0_59] : memref<1x8xf32, #tpu.memory_space<vmem>>, vector<1x8xf32>
    %65 = vector.broadcast %64 : vector<1x8xf32> to vector<176x8xf32>
    %66 = arith.addf %63, %65 : vector<176x8xf32>
    %cst_60 = arith.constant 0.000000e+00 : f32
    %67 = vector.broadcast %cst_60 : f32 to vector<176x8xf32>
    %68 = arith.maximumf %66, %67 : vector<176x8xf32>
    %c3_61 = arith.constant 3 : index
    %c0_62 = arith.constant 0 : index
    %c0_63 = arith.constant 0 : index
    %69 = vector.load %arg2[%c3_61, %c0_62, %c0_63] : memref<4x176x1xf32, #tpu.memory_space<vmem>>, vector<1x176x1xf32>
    %70 = vector.shape_cast %69 : vector<1x176x1xf32> to vector<176x1xf32>
    %71 = vector.broadcast %70 : vector<176x1xf32> to vector<176x8xf32>
    %72 = arith.mulf %68, %71 : vector<176x8xf32>
    %c3_64 = arith.constant 3 : index
    %c0_65 = arith.constant 0 : index
    %c0_66 = arith.constant 0 : index
    %73 = vector.load %arg16[%c3_64, %c0_65, %c0_66] : memref<4x176x8xf32, #tpu.memory_space<vmem>>, vector<1x176x8xf32>
    %74 = vector.shape_cast %73 : vector<1x176x8xf32> to vector<176x8xf32>
    %75 = vector.shape_cast %72 : vector<176x8xf32> to vector<1x176x8xf32>
    tpu.vector_store %arg16[%c3_64, %c0_65, %c0_66], %75 {strides = array<i32>} : memref<4x176x8xf32, #tpu.memory_space<vmem>>, vector<1x176x8xf32>,
    %cst_67 = arith.constant 0.000000e+00 : f32
    %76 = vector.broadcast %cst_67 : f32 to vector<128x8xf32>
    %c0_68 = arith.constant 0 : index
    %c0_69 = arith.constant 0 : index
    %c0_70 = arith.constant 0 : index
    %77 = vector.load %arg16[%c0_68, %c0_69, %c0_70] : memref<4x176x8xf32, #tpu.memory_space<vmem>>, vector<1x128x8xf32>
    %78 = vector.shape_cast %77 : vector<1x128x8xf32> to vector<128x8xf32>
    %c1_71 = arith.constant 1 : index
    %c0_72 = arith.constant 0 : index
    %c0_73 = arith.constant 0 : index
    %79 = vector.load %arg16[%c1_71, %c0_72, %c0_73] : memref<4x176x8xf32, #tpu.memory_space<vmem>>, vector<1x128x8xf32>
    %80 = vector.shape_cast %79 : vector<1x128x8xf32> to vector<128x8xf32>
    %c0_74 = arith.constant 0 : index
    %c1_75 = arith.constant 1 : index
    %c0_76 = arith.constant 0 : index
    %81 = vector.load %arg16[%c0_74, %c1_75, %c0_76] : memref<4x176x8xf32, #tpu.memory_space<vmem>>, vector<1x128x8xf32>
    %82 = vector.shape_cast %81 : vector<1x128x8xf32> to vector<128x8xf32>
    %83 = tpu.concatenate %78, %80, %82 in 1 : vector<128x8xf32>, vector<128x8xf32>, vector<128x8xf32> -> vector<128x24xf32>
    %c0_77 = arith.constant 0 : index
    %c0_78 = arith.constant 0 : index
    %c0_79 = arith.constant 0 : index
    %84 = vector.load %arg6[%c0_77, %c0_78, %c0_79] : memref<3x24x8xf32, #tpu.memory_space<vmem>>, vector<1x24x8xf32>
    %85 = vector.shape_cast %84 : vector<1x24x8xf32> to vector<24x8xf32>
    %cst_80 = arith.constant dense<0.000000e+00> : vector<128x8xf32>
    %86 = tpu.matmul %83, %85, %cst_80 {dimension_numbers = #tpu.dot_dimension_numbers<[1], [0], [0], [1], [0, 0, 1, 1], [], []>} : vector<128x24xf32>, vector<24x8xf32>, vector<128x8xf32> -> vector<128x8xf32>
    %87 = arith.addf %76, %86 : vector<128x8xf32>
    %c2_81 = arith.constant 2 : index
    %c0_82 = arith.constant 0 : index
    %c0_83 = arith.constant 0 : index
    %88 = vector.load %arg16[%c2_81, %c0_82, %c0_83] : memref<4x176x8xf32, #tpu.memory_space<vmem>>, vector<1x128x8xf32>
    %89 = vector.shape_cast %88 : vector<1x128x8xf32> to vector<128x8xf32>
    %c3_84 = arith.constant 3 : index
    %c0_85 = arith.constant 0 : index
    %c0_86 = arith.constant 0 : index
    %90 = vector.load %arg16[%c3_84, %c0_85, %c0_86] : memref<4x176x8xf32, #tpu.memory_space<vmem>>, vector<1x128x8xf32>
    %91 = vector.shape_cast %90 : vector<1x128x8xf32> to vector<128x8xf32>
    %c2_87 = arith.constant 2 : index
    %c1_88 = arith.constant 1 : index
    %c0_89 = arith.constant 0 : index
    %92 = vector.load %arg16[%c2_87, %c1_88, %c0_89] : memref<4x176x8xf32, #tpu.memory_space<vmem>>, vector<1x128x8xf32>
    %93 = vector.shape_cast %92 : vector<1x128x8xf32> to vector<128x8xf32>
    %94 = tpu.concatenate %89, %91, %93 in 1 : vector<128x8xf32>, vector<128x8xf32>, vector<128x8xf32> -> vector<128x24xf32>
    %c1_90 = arith.constant 1 : index
    %c0_91 = arith.constant 0 : index
    %c0_92 = arith.constant 0 : index
    %95 = vector.load %arg6[%c1_90, %c0_91, %c0_92] : memref<3x24x8xf32, #tpu.memory_space<vmem>>, vector<1x24x8xf32>
    %96 = vector.shape_cast %95 : vector<1x24x8xf32> to vector<24x8xf32>
    %cst_93 = arith.constant dense<0.000000e+00> : vector<128x8xf32>
    %97 = tpu.matmul %94, %96, %cst_93 {dimension_numbers = #tpu.dot_dimension_numbers<[1], [0], [0], [1], [0, 0, 1, 1], [], []>} : vector<128x24xf32>, vector<24x8xf32>, vector<128x8xf32> -> vector<128x8xf32>
    %98 = arith.addf %87, %97 : vector<128x8xf32>
    %c0_94 = arith.constant 0 : index
    %c16 = arith.constant 16 : index
    %c0_95 = arith.constant 0 : index
    %99 = vector.load %arg16[%c0_94, %c16, %c0_95] : memref<4x176x8xf32, #tpu.memory_space<vmem>>, vector<1x128x8xf32>
    %100 = vector.shape_cast %99 : vector<1x128x8xf32> to vector<128x8xf32>
    %c1_96 = arith.constant 1 : index
    %c16_97 = arith.constant 16 : index
    %c0_98 = arith.constant 0 : index
    %101 = vector.load %arg16[%c1_96, %c16_97, %c0_98] : memref<4x176x8xf32, #tpu.memory_space<vmem>>, vector<1x128x8xf32>
    %102 = vector.shape_cast %101 : vector<1x128x8xf32> to vector<128x8xf32>
    %c0_99 = arith.constant 0 : index
    %c17 = arith.constant 17 : index
    %c0_100 = arith.constant 0 : index
    %103 = vector.load %arg16[%c0_99, %c17, %c0_100] : memref<4x176x8xf32, #tpu.memory_space<vmem>>, vector<1x128x8xf32>
    %104 = vector.shape_cast %103 : vector<1x128x8xf32> to vector<128x8xf32>
    %105 = tpu.concatenate %100, %102, %104 in 1 : vector<128x8xf32>, vector<128x8xf32>, vector<128x8xf32> -> vector<128x24xf32>
    %c2_101 = arith.constant 2 : index
    %c0_102 = arith.constant 0 : index
    %c0_103 = arith.constant 0 : index
    %106 = vector.load %arg6[%c2_101, %c0_102, %c0_103] : memref<3x24x8xf32, #tpu.memory_space<vmem>>, vector<1x24x8xf32>
    %107 = vector.shape_cast %106 : vector<1x24x8xf32> to vector<24x8xf32>
    %cst_104 = arith.constant dense<0.000000e+00> : vector<128x8xf32>
    %108 = tpu.matmul %105, %107, %cst_104 {dimension_numbers = #tpu.dot_dimension_numbers<[1], [0], [0], [1], [0, 0, 1, 1], [], []>} : vector<128x24xf32>, vector<24x8xf32>, vector<128x8xf32> -> vector<128x8xf32>
    %109 = arith.addf %98, %108 : vector<128x8xf32>
    %c0_105 = arith.constant 0 : index
    %c0_106 = arith.constant 0 : index
    %110 = vector.load %arg7[%c0_105, %c0_106] : memref<1x8xf32, #tpu.memory_space<vmem>>, vector<1x8xf32>
    %111 = vector.broadcast %110 : vector<1x8xf32> to vector<128x8xf32>
    %112 = arith.mulf %109, %111 : vector<128x8xf32>
    %c0_107 = arith.constant 0 : index
    %c0_108 = arith.constant 0 : index
    %113 = vector.load %arg8[%c0_107, %c0_108] : memref<1x8xf32, #tpu.memory_space<vmem>>, vector<1x8xf32>
    %114 = vector.broadcast %113 : vector<1x8xf32> to vector<128x8xf32>
    %115 = arith.addf %112, %114 : vector<128x8xf32>
    %cst_109 = arith.constant 0.000000e+00 : f32
    %116 = vector.broadcast %cst_109 : f32 to vector<128x8xf32>
    %117 = arith.maximumf %115, %116 : vector<128x8xf32>
    %c0_110 = arith.constant 0 : index
    %c0_111 = arith.constant 0 : index
    %118 = vector.load %arg9[%c0_110, %c0_111] : memref<8x32xf32, #tpu.memory_space<vmem>>, vector<8x32xf32>
    %cst_112 = arith.constant dense<0.000000e+00> : vector<128x32xf32>
    %119 = tpu.matmul %117, %118, %cst_112 {dimension_numbers = #tpu.dot_dimension_numbers<[1], [0], [0], [1], [0, 0, 1, 1], [], []>} : vector<128x8xf32>, vector<8x32xf32>, vector<128x32xf32> -> vector<128x32xf32>
    %c0_113 = arith.constant 0 : index
    %c0_114 = arith.constant 0 : index
    %120 = vector.load %arg10[%c0_113, %c0_114] : memref<1x32xf32, #tpu.memory_space<vmem>>, vector<1x32xf32>
    %121 = vector.broadcast %120 : vector<1x32xf32> to vector<128x32xf32>
    %122 = arith.mulf %119, %121 : vector<128x32xf32>
    %c0_115 = arith.constant 0 : index
    %c0_116 = arith.constant 0 : index
    %123 = vector.load %arg11[%c0_115, %c0_116] : memref<1x32xf32, #tpu.memory_space<vmem>>, vector<1x32xf32>
    %124 = vector.broadcast %123 : vector<1x32xf32> to vector<128x32xf32>
    %125 = arith.addf %122, %124 : vector<128x32xf32>
    %c0_117 = arith.constant 0 : index
    %c3_118 = arith.constant 3 : index
    %c0_119 = arith.constant 0 : index
    %c0_120 = arith.constant 0 : index
    %126 = vector.load %arg1[%c0_117, %c3_118, %c0_119, %c0_120] : memref<1x4x176x16xf32, #tpu.memory_space<vmem>>, vector<1x1x128x16xf32>
    %127 = vector.shape_cast %126 : vector<1x1x128x16xf32> to vector<128x16xf32>
    %c0_121 = arith.constant 0 : index
    %c0_122 = arith.constant 0 : index
    %128 = vector.load %arg12[%c0_121, %c0_122] : memref<16x32xf32, #tpu.memory_space<vmem>>, vector<16x32xf32>
    %cst_123 = arith.constant dense<0.000000e+00> : vector<128x32xf32>
    %129 = tpu.matmul %127, %128, %cst_123 {dimension_numbers = #tpu.dot_dimension_numbers<[1], [0], [0], [1], [0, 0, 1, 1], [], []>} : vector<128x16xf32>, vector<16x32xf32>, vector<128x32xf32> -> vector<128x32xf32>
    %c0_124 = arith.constant 0 : index
    %c0_125 = arith.constant 0 : index
    %130 = vector.load %arg13[%c0_124, %c0_125] : memref<1x32xf32, #tpu.memory_space<vmem>>, vector<1x32xf32>
    %131 = vector.broadcast %130 : vector<1x32xf32> to vector<128x32xf32>
    %132 = arith.mulf %129, %131 : vector<128x32xf32>
    %c0_126 = arith.constant 0 : index
    %c0_127 = arith.constant 0 : index
    %133 = vector.load %arg14[%c0_126, %c0_127] : memref<1x32xf32, #tpu.memory_space<vmem>>, vector<1x32xf32>
    %134 = vector.broadcast %133 : vector<1x32xf32> to vector<128x32xf32>
    %135 = arith.addf %132, %134 : vector<128x32xf32>
    %136 = arith.addf %125, %135 : vector<128x32xf32>
    %cst_128 = arith.constant 0.000000e+00 : f32
    %137 = vector.broadcast %cst_128 : f32 to vector<128x32xf32>
    %138 = arith.maximumf %136, %137 : vector<128x32xf32>
    %139 = vector.extract_strided_slice %138 {offsets = [0, 0], sizes = [8, 32], strides = [1, 1]} : vector<128x32xf32> to vector<8x32xf32>
    %c0_129 = arith.constant 0 : index
    %c0_130 = arith.constant 0 : index
    %c0_131 = arith.constant 0 : index
    %140 = vector.load %arg15[%c0_129, %c0_130, %c0_131] : memref<1x64x32xf32, #tpu.memory_space<vmem>>, vector<1x8x32xf32>
    %141 = vector.shape_cast %140 : vector<1x8x32xf32> to vector<8x32xf32>
    %142 = vector.shape_cast %139 : vector<8x32xf32> to vector<1x8x32xf32>
    tpu.vector_store %arg15[%c0_129, %c0_130, %c0_131], %142 {strides = array<i32>} : memref<1x64x32xf32, #tpu.memory_space<vmem>>, vector<1x8x32xf32>,
    %143 = vector.extract_strided_slice %138 {offsets = [16, 0], sizes = [8, 32], strides = [1, 1]} : vector<128x32xf32> to vector<8x32xf32>
    %c0_132 = arith.constant 0 : index
    %c8 = arith.constant 8 : index
    %c0_133 = arith.constant 0 : index
    %144 = vector.load %arg15[%c0_132, %c8, %c0_133] : memref<1x64x32xf32, #tpu.memory_space<vmem>>, vector<1x8x32xf32>
    %145 = vector.shape_cast %144 : vector<1x8x32xf32> to vector<8x32xf32>
    %146 = vector.shape_cast %143 : vector<8x32xf32> to vector<1x8x32xf32>
    tpu.vector_store %arg15[%c0_132, %c8, %c0_133], %146 {strides = array<i32>} : memref<1x64x32xf32, #tpu.memory_space<vmem>>, vector<1x8x32xf32>,
    %147 = vector.extract_strided_slice %138 {offsets = [32, 0], sizes = [8, 32], strides = [1, 1]} : vector<128x32xf32> to vector<8x32xf32>
    %c0_134 = arith.constant 0 : index
    %c16_135 = arith.constant 16 : index
    %c0_136 = arith.constant 0 : index
    %148 = vector.load %arg15[%c0_134, %c16_135, %c0_136] : memref<1x64x32xf32, #tpu.memory_space<vmem>>, vector<1x8x32xf32>
    %149 = vector.shape_cast %148 : vector<1x8x32xf32> to vector<8x32xf32>
    %150 = vector.shape_cast %147 : vector<8x32xf32> to vector<1x8x32xf32>
    tpu.vector_store %arg15[%c0_134, %c16_135, %c0_136], %150 {strides = array<i32>} : memref<1x64x32xf32, #tpu.memory_space<vmem>>, vector<1x8x32xf32>,
    %151 = vector.extract_strided_slice %138 {offsets = [48, 0], sizes = [8, 32], strides = [1, 1]} : vector<128x32xf32> to vector<8x32xf32>
    %c0_137 = arith.constant 0 : index
    %c24 = arith.constant 24 : index
    %c0_138 = arith.constant 0 : index
    %152 = vector.load %arg15[%c0_137, %c24, %c0_138] : memref<1x64x32xf32, #tpu.memory_space<vmem>>, vector<1x8x32xf32>
    %153 = vector.shape_cast %152 : vector<1x8x32xf32> to vector<8x32xf32>
    %154 = vector.shape_cast %151 : vector<8x32xf32> to vector<1x8x32xf32>
    tpu.vector_store %arg15[%c0_137, %c24, %c0_138], %154 {strides = array<i32>} : memref<1x64x32xf32, #tpu.memory_space<vmem>>, vector<1x8x32xf32>,
    %155 = vector.extract_strided_slice %138 {offsets = [64, 0], sizes = [8, 32], strides = [1, 1]} : vector<128x32xf32> to vector<8x32xf32>
    %c0_139 = arith.constant 0 : index
    %c32 = arith.constant 32 : index
    %c0_140 = arith.constant 0 : index
    %156 = vector.load %arg15[%c0_139, %c32, %c0_140] : memref<1x64x32xf32, #tpu.memory_space<vmem>>, vector<1x8x32xf32>
    %157 = vector.shape_cast %156 : vector<1x8x32xf32> to vector<8x32xf32>
    %158 = vector.shape_cast %155 : vector<8x32xf32> to vector<1x8x32xf32>
    tpu.vector_store %arg15[%c0_139, %c32, %c0_140], %158 {strides = array<i32>} : memref<1x64x32xf32, #tpu.memory_space<vmem>>, vector<1x8x32xf32>,
    %159 = vector.extract_strided_slice %138 {offsets = [80, 0], sizes = [8, 32], strides = [1, 1]} : vector<128x32xf32> to vector<8x32xf32>
    %c0_141 = arith.constant 0 : index
    %c40 = arith.constant 40 : index
    %c0_142 = arith.constant 0 : index
    %160 = vector.load %arg15[%c0_141, %c40, %c0_142] : memref<1x64x32xf32, #tpu.memory_space<vmem>>, vector<1x8x32xf32>
    %161 = vector.shape_cast %160 : vector<1x8x32xf32> to vector<8x32xf32>
    %162 = vector.shape_cast %159 : vector<8x32xf32> to vector<1x8x32xf32>
    tpu.vector_store %arg15[%c0_141, %c40, %c0_142], %162 {strides = array<i32>} : memref<1x64x32xf32, #tpu.memory_space<vmem>>, vector<1x8x32xf32>,
    %163 = vector.extract_strided_slice %138 {offsets = [96, 0], sizes = [8, 32], strides = [1, 1]} : vector<128x32xf32> to vector<8x32xf32>
    %c0_143 = arith.constant 0 : index
    %c48 = arith.constant 48 : index
    %c0_144 = arith.constant 0 : index
    %164 = vector.load %arg15[%c0_143, %c48, %c0_144] : memref<1x64x32xf32, #tpu.memory_space<vmem>>, vector<1x8x32xf32>
    %165 = vector.shape_cast %164 : vector<1x8x32xf32> to vector<8x32xf32>
    %166 = vector.shape_cast %163 : vector<8x32xf32> to vector<1x8x32xf32>
    tpu.vector_store %arg15[%c0_143, %c48, %c0_144], %166 {strides = array<i32>} : memref<1x64x32xf32, #tpu.memory_space<vmem>>, vector<1x8x32xf32>,
    %167 = vector.extract_strided_slice %138 {offsets = [112, 0], sizes = [8, 32], strides = [1, 1]} : vector<128x32xf32> to vector<8x32xf32>
    %c0_145 = arith.constant 0 : index
    %c56 = arith.constant 56 : index
    %c0_146 = arith.constant 0 : index
    %168 = vector.load %arg15[%c0_145, %c56, %c0_146] : memref<1x64x32xf32, #tpu.memory_space<vmem>>, vector<1x8x32xf32>
    %169 = vector.shape_cast %168 : vector<1x8x32xf32> to vector<8x32xf32>
    %170 = vector.shape_cast %167 : vector<8x32xf32> to vector<1x8x32xf32>
    tpu.vector_store %arg15[%c0_145, %c56, %c0_146], %170 {strides = array<i32>} : memref<1x64x32xf32, #tpu.memory_space<vmem>>, vector<1x8x32xf32>,
    return
  }
  func.func @transform_0(%arg0: i32) -> (i32, i32, i32, i32) {
    %c0_i32 = arith.constant 0 : i32
    %c0_i32_0 = arith.constant 0 : i32
    %c0_i32_1 = arith.constant 0 : i32
    %c0_i32_2 = arith.constant 0 : i32
    return %arg0, %c0_i32, %c0_i32_0, %c0_i32_1 : i32, i32, i32, i32
  }
  func.func @transform_1(%arg0: i32) -> (i32, i32, i32) {
    %c0_i32 = arith.constant 0 : i32
    %c0_i32_0 = arith.constant 0 : i32
    %c0_i32_1 = arith.constant 0 : i32
    %c0_i32_2 = arith.constant 0 : i32
    return %c0_i32, %c0_i32_0, %c0_i32_1 : i32, i32, i32
  }
  func.func @transform_2(%arg0: i32) -> (i32, i32) {
    %c0_i32 = arith.constant 0 : i32
    %c0_i32_0 = arith.constant 0 : i32
    %c0_i32_1 = arith.constant 0 : i32
    return %c0_i32, %c0_i32_0 : i32, i32
  }
  func.func @transform_3(%arg0: i32) -> (i32, i32) {
    %c0_i32 = arith.constant 0 : i32
    %c0_i32_0 = arith.constant 0 : i32
    %c0_i32_1 = arith.constant 0 : i32
    return %c0_i32, %c0_i32_0 : i32, i32
  }
  func.func @transform_4(%arg0: i32) -> (i32, i32) {
    %c0_i32 = arith.constant 0 : i32
    %c0_i32_0 = arith.constant 0 : i32
    %c0_i32_1 = arith.constant 0 : i32
    return %c0_i32, %c0_i32_0 : i32, i32
  }
  func.func @transform_5(%arg0: i32) -> (i32, i32, i32) {
    %c0_i32 = arith.constant 0 : i32
    %c0_i32_0 = arith.constant 0 : i32
    %c0_i32_1 = arith.constant 0 : i32
    %c0_i32_2 = arith.constant 0 : i32
    return %c0_i32, %c0_i32_0, %c0_i32_1 : i32, i32, i32
  }
  func.func @transform_6(%arg0: i32) -> (i32, i32) {
    %c0_i32 = arith.constant 0 : i32
    %c0_i32_0 = arith.constant 0 : i32
    %c0_i32_1 = arith.constant 0 : i32
    return %c0_i32, %c0_i32_0 : i32, i32
  }
  func.func @transform_7(%arg0: i32) -> (i32, i32) {
    %c0_i32 = arith.constant 0 : i32
    %c0_i32_0 = arith.constant 0 : i32
    %c0_i32_1 = arith.constant 0 : i32
    return %c0_i32, %c0_i32_0 : i32, i32
  }
  func.func @transform_8(%arg0: i32) -> (i32, i32) {
    %c0_i32 = arith.constant 0 : i32
    %c0_i32_0 = arith.constant 0 : i32
    %c0_i32_1 = arith.constant 0 : i32
    return %c0_i32, %c0_i32_0 : i32, i32
  }
  func.func @transform_9(%arg0: i32) -> (i32, i32) {
    %c0_i32 = arith.constant 0 : i32
    %c0_i32_0 = arith.constant 0 : i32
    %c0_i32_1 = arith.constant 0 : i32
    return %c0_i32, %c0_i32_0 : i32, i32
  }
  func.func @transform_10(%arg0: i32) -> (i32, i32) {
    %c0_i32 = arith.constant 0 : i32
    %c0_i32_0 = arith.constant 0 : i32
    %c0_i32_1 = arith.constant 0 : i32
    return %c0_i32, %c0_i32_0 : i32, i32
  }
  func.func @transform_11(%arg0: i32) -> (i32, i32) {
    %c0_i32 = arith.constant 0 : i32
    %c0_i32_0 = arith.constant 0 : i32
    %c0_i32_1 = arith.constant 0 : i32
    return %c0_i32, %c0_i32_0 : i32, i32
  }
  func.func @transform_12(%arg0: i32) -> (i32, i32) {
    %c0_i32 = arith.constant 0 : i32
    %c0_i32_0 = arith.constant 0 : i32
    %c0_i32_1 = arith.constant 0 : i32
    return %c0_i32, %c0_i32_0 : i32, i32
  }
  func.func @transform_13(%arg0: i32) -> (i32, i32) {
    %c0_i32 = arith.constant 0 : i32
    %c0_i32_0 = arith.constant 0 : i32
    %c0_i32_1 = arith.constant 0 : i32
    return %c0_i32, %c0_i32_0 : i32, i32
  }
  func.func @transform_14(%arg0: i32) -> (i32, i32, i32) {
    %c0_i32 = arith.constant 0 : i32
    %c0_i32_0 = arith.constant 0 : i32
    %c0_i32_1 = arith.constant 0 : i32
    return %arg0, %c0_i32, %c0_i32_0 : i32, i32, i32
  }
}

</mosaic_0001>

<llo_original>
// kernel: tpu_custom_call.1
$region0: #{tpu_custom_call.1}
  #allocation0 [shape = 'u32[]', space=smem, size = 0x4, offset = 0x4, fixed_abs, tag = 'smem constant byte address 0x4 - core index']
  #allocation1 [shape = 'u32[144,128]{1,0:T(1,128)}', space=vmem, size = 0x12000, scoped, tag = 'internal scratch']
  #allocation2 [shape = 'f32[4,176,8]{2,1,0:T(8,128)}', space=vmem, size = 0x58000, scoped, tag = 'scratch operand']
  %s0 = inlined_call_operand.vmem [shape: f32[2,4,176,16], index: 0, kind: input, shape index: {}]
  %s1 = inlined_call_operand.vmem [shape: f32[4,176,1], index: 1, kind: input, shape index: {}]
  %s2 = inlined_call_operand.vmem [shape: f32[16,8], index: 2, kind: input, shape index: {}]
  %s3 = inlined_call_operand.vmem [shape: f32[1,8], index: 3, kind: input, shape index: {}]
  %s4 = inlined_call_operand.vmem [shape: f32[1,8], index: 4, kind: input, shape index: {}]
  %s5 = inlined_call_operand.vmem [shape: f32[3,24,8], index: 5, kind: input, shape index: {}]
  %s6 = inlined_call_operand.vmem [shape: f32[1,8], index: 6, kind: input, shape index: {}]
  %s7 = inlined_call_operand.vmem [shape: f32[1,8], index: 7, kind: input, shape index: {}]
  %s8 = inlined_call_operand.vmem [shape: f32[8,32], index: 8, kind: input, shape index: {}]
  %s9 = inlined_call_operand.vmem [shape: f32[1,32], index: 9, kind: input, shape index: {}]
  %s10 = inlined_call_operand.vmem [shape: f32[1,32], index: 10, kind: input, shape index: {}]
  %s11 = inlined_call_operand.vmem [shape: f32[16,32], index: 11, kind: input, shape index: {}]
  %s12 = inlined_call_operand.vmem [shape: f32[1,32], index: 12, kind: input, shape index: {}]
  %s13 = inlined_call_operand.vmem [shape: f32[1,32], index: 13, kind: input, shape index: {}]
  %s14 = inlined_call_operand.vmem [shape: f32[2,64,32], index: 14, kind: output, shape index: {}]
  %s15 = sld [smem:[#allocation0]]
  $region89: #{tpu_custom_call.1} parent=0
    _
  %s17 = ssub.s32 1, %s15
  %s18 = scalar_select 0, %s17, %s15
  loop: start=0, step=1, limit=4
  $region2: #{tpu_custom_call.1} parent=0 // loop_pre_header
    _
  $region3: #{tpu_custom_call.1} parent=0 // loop_header
    %s20 = sphi 0, %s24
    %p21 = scmp.ge.s32.totalorder %s20, 4
    %s30 = sphi 0, %s32
    %s33 = sphi 0, %s30
    %s34 = sphi 0, %s33
    %s50 = sphi 0, %s34
    %s54 = sphi 0, %s54
    %s56 = sphi 0, %s54
    %s57 = sphi 0, %s56
    %s71 = sphi 0, %s57
    %s75 = sphi 0, %s75
    %s77 = sphi 0, %s75
    %s78 = sphi 0, %s77
    %s92 = sphi 0, %s78
    %s96 = sphi 0, %s96
    %s98 = sphi 0, %s96
    %s99 = sphi 0, %s98
    %s113 = sphi 0, %s99
    %s117 = sphi 0, %s117
    %s119 = sphi 0, %s117
    %s120 = sphi 0, %s119
    %s134 = sphi 0, %s120
    %s138 = sphi 0, %s138
    %s140 = sphi 0, %s138
    %s141 = sphi 0, %s140
    %s155 = sphi 0, %s141
    %s159 = sphi 0, %s159
    %s161 = sphi 0, %s159
    %s162 = sphi 0, %s161
    %s176 = sphi 0, %s162
    %s180 = sphi 0, %s180
    %s182 = sphi 0, %s180
    %s183 = sphi 0, %s182
    %s197 = sphi 0, %s183
    %s201 = sphi 0, %s201
    %s203 = sphi 0, %s201
    %s204 = sphi 0, %s203
    %s218 = sphi 0, %s204
    %s222 = sphi 0, %s222
    %s224 = sphi 0, %s222
    %s225 = sphi 0, %s224
    %s239 = sphi 0, %s225
    %s243 = sphi 0, %s243
    %s245 = sphi 0, %s243
    %s246 = sphi 0, %s245
    %s260 = sphi 0, %s246
    %s264 = sphi 0, %s264
    %s266 = sphi 0, %s264
    %s267 = sphi 0, %s266
    %s281 = sphi 0, %s267
    %s285 = sphi 0, %s285
    %s287 = sphi 0, %s285
    %s288 = sphi 0, %s287
    %s302 = sphi 0, %s288
    %s306 = sphi 0, %s306
    %s308 = sphi 0, %s306
    %s309 = sphi 0, %s308
    %s323 = sphi 0, %s309
    %s329 = sphi 0, %s331
    %s332 = sphi 0, %s329
    %s333 = sphi 0, %s332
    %s349 = sphi 0, %s333
  $region4: #{tpu_custom_call.1} parent=0 // loop_header_branch
    %23 = sbr.rel (%p21) target = $region8
  $region5: #{tpu_custom_call.1} parent=0 // loop_body
    %s25 = ssub.s32 %s20, 1
    %s26 = ssub.s32 %s20, 2
    %s27 = sadd.s32 %s20, 1
    %s28 = ssub.s32 %s20, %s27
    %p29 = scmp.eq.s32.totalorder %s28, 0
    %s31 = sadd.s32 %s30, 1
    %s32 = scalar_select %p29, %s30, %s31
    %p35 = pneg %p29
    %p36 = scmp.eq.s32.totalorder %s20, 1
    %p37 = por %p35, %p36
    %p38 = scmp.ne.s32.totalorder %s30, %s33
    %p39 = scmp.eq.s32.totalorder %s20, 0
    %p40 = por %p38, %p39
    %p41 = scmp.ne.s32.totalorder %s30, %s33
    %p42 = scmp.eq.s32.totalorder %s25, 1
    %p43 = por %p41, %p42
    %p44 = scmp.ne.s32.totalorder %s33, %s34
    %p45 = scmp.eq.s32.totalorder %s25, 0
    %p46 = por %p44, %p45
    %p47 = scmp.ne.s32.totalorder %s33, %s34
    %p48 = scmp.eq.s32.totalorder %s26, 1
    %p49 = por %p47, %p48
    %p51 = scmp.ne.s32.totalorder %s34, %s50
    %p52 = scmp.eq.s32.totalorder %s26, 0
    %p53 = por %p51, %p52
    %s55 = sadd.s32 %s54, 1
    %p58 = scmp.eq.s32.totalorder %s20, 1
    %p59 = scmp.ne.s32.totalorder %s54, %s56
    %p60 = scmp.eq.s32.totalorder %s20, 0
    %p61 = por %p59, %p60
    %p62 = scmp.ne.s32.totalorder %s54, %s56
    %p63 = scmp.eq.s32.totalorder %s25, 1
    %p64 = por %p62, %p63
    %p65 = scmp.ne.s32.totalorder %s56, %s57
    %p66 = scmp.eq.s32.totalorder %s25, 0
    %p67 = por %p65, %p66
    %p68 = scmp.ne.s32.totalorder %s56, %s57
    %p69 = scmp.eq.s32.totalorder %s26, 1
    %p70 = por %p68, %p69
    %p72 = scmp.ne.s32.totalorder %s57, %s71
    %p73 = scmp.eq.s32.totalorder %s26, 0
    %p74 = por %p72, %p73
    %s76 = sadd.s32 %s75, 1
    %p79 = scmp.eq.s32.totalorder %s20, 1
    %p80 = scmp.ne.s32.totalorder %s75, %s77
    %p81 = scmp.eq.s32.totalorder %s20, 0
    %p82 = por %p80, %p81
    %p83 = scmp.ne.s32.totalorder %s75, %s77
    %p84 = scmp.eq.s32.totalorder %s25, 1
    %p85 = por %p83, %p84
    %p86 = scmp.ne.s32.totalorder %s77, %s78
    %p87 = scmp.eq.s32.totalorder %s25, 0
    %p88 = por %p86, %p87
    %p89 = scmp.ne.s32.totalorder %s77, %s78
    %p90 = scmp.eq.s32.totalorder %s26, 1
    %p91 = por %p89, %p90
    %p93 = scmp.ne.s32.totalorder %s78, %s92
    %p94 = scmp.eq.s32.totalorder %s26, 0
    %p95 = por %p93, %p94
    %s97 = sadd.s32 %s96, 1
    %p100 = scmp.eq.s32.totalorder %s20, 1
    %p101 = scmp.ne.s32.totalorder %s96, %s98
    %p102 = scmp.eq.s32.totalorder %s20, 0
    %p103 = por %p101, %p102
    %p104 = scmp.ne.s32.totalorder %s96, %s98
    %p105 = scmp.eq.s32.totalorder %s25, 1
    %p106 = por %p104, %p105
    %p107 = scmp.ne.s32.totalorder %s98, %s99
    %p108 = scmp.eq.s32.totalorder %s25, 0
    %p109 = por %p107, %p108
    %p110 = scmp.ne.s32.totalorder %s98, %s99
    %p111 = scmp.eq.s32.totalorder %s26, 1
    %p112 = por %p110, %p111
    %p114 = scmp.ne.s32.totalorder %s99, %s113
    %p115 = scmp.eq.s32.totalorder %s26, 0
    %p116 = por %p114, %p115
    %s118 = sadd.s32 %s117, 1
    %p121 = scmp.eq.s32.totalorder %s20, 1
    %p122 = scmp.ne.s32.totalorder %s117, %s119
    %p123 = scmp.eq.s32.totalorder %s20, 0
    %p124 = por %p122, %p123
    %p125 = scmp.ne.s32.totalorder %s117, %s119
    %p126 = scmp.eq.s32.totalorder %s25, 1
    %p127 = por %p125, %p126
    %p128 = scmp.ne.s32.totalorder %s119, %s120
    %p129 = scmp.eq.s32.totalorder %s25, 0
    %p130 = por %p128, %p129
    %p131 = scmp.ne.s32.totalorder %s119, %s120
    %p132 = scmp.eq.s32.totalorder %s26, 1
    %p133 = por %p131, %p132
    %p135 = scmp.ne.s32.totalorder %s120, %s134
    %p136 = scmp.eq.s32.totalorder %s26, 0
    %p137 = por %p135, %p136
    %s139 = sadd.s32 %s138, 1
    %p142 = scmp.eq.s32.totalorder %s20, 1
    %p143 = scmp.ne.s32.totalorder %s138, %s140
    %p144 = scmp.eq.s32.totalorder %s20, 0
    %p145 = por %p143, %p144
    %p146 = scmp.ne.s32.totalorder %s138, %s140
    %p147 = scmp.eq.s32.totalorder %s25, 1
    %p148 = por %p146, %p147
    %p149 = scmp.ne.s32.totalorder %s140, %s141
    %p150 = scmp.eq.s32.totalorder %s25, 0
    %p151 = por %p149, %p150
    %p152 = scmp.ne.s32.totalorder %s140, %s141
    %p153 = scmp.eq.s32.totalorder %s26, 1
    %p154 = por %p152, %p153
    %p156 = scmp.ne.s32.totalorder %s141, %s155
    %p157 = scmp.eq.s32.totalorder %s26, 0
    %p158 = por %p156, %p157
    %s160 = sadd.s32 %s159, 1
    %p163 = scmp.eq.s32.totalorder %s20, 1
    %p164 = scmp.ne.s32.totalorder %s159, %s161
    %p165 = scmp.eq.s32.totalorder %s20, 0
    %p166 = por %p164, %p165
    %p167 = scmp.ne.s32.totalorder %s159, %s161
    %p168 = scmp.eq.s32.totalorder %s25, 1
    %p169 = por %p167, %p168
    %p170 = scmp.ne.s32.totalorder %s161, %s162
    %p171 = scmp.eq.s32.totalorder %s25, 0
    %p172 = por %p170, %p171
    %p173 = scmp.ne.s32.totalorder %s161, %s162
    %p174 = scmp.eq.s32.totalorder %s26, 1
    %p175 = por %p173, %p174
    %p177 = scmp.ne.s32.totalorder %s162, %s176
    %p178 = scmp.eq.s32.totalorder %s26, 0
    %p179 = por %p177, %p178
    %s181 = sadd.s32 %s180, 1
    %p184 = scmp.eq.s32.totalorder %s20, 1
    %p185 = scmp.ne.s32.totalorder %s180, %s182
    %p186 = scmp.eq.s32.totalorder %s20, 0
    %p187 = por %p185, %p186
    %p188 = scmp.ne.s32.totalorder %s180, %s182
    %p189 = scmp.eq.s32.totalorder %s25, 1
    %p190 = por %p188, %p189
    %p191 = scmp.ne.s32.totalorder %s182, %s183
    %p192 = scmp.eq.s32.totalorder %s25, 0
    %p193 = por %p191, %p192
    %p194 = scmp.ne.s32.totalorder %s182, %s183
    %p195 = scmp.eq.s32.totalorder %s26, 1
    %p196 = por %p194, %p195
    %p198 = scmp.ne.s32.totalorder %s183, %s197
    %p199 = scmp.eq.s32.totalorder %s26, 0
    %p200 = por %p198, %p199
    %s202 = sadd.s32 %s201, 1
    %p205 = scmp.eq.s32.totalorder %s20, 1
    %p206 = scmp.ne.s32.totalorder %s201, %s203
    %p207 = scmp.eq.s32.totalorder %s20, 0
    %p208 = por %p206, %p207
    %p209 = scmp.ne.s32.totalorder %s201, %s203
    %p210 = scmp.eq.s32.totalorder %s25, 1
    %p211 = por %p209, %p210
    %p212 = scmp.ne.s32.totalorder %s203, %s204
    %p213 = scmp.eq.s32.totalorder %s25, 0
    %p214 = por %p212, %p213
    %p215 = scmp.ne.s32.totalorder %s203, %s204
    %p216 = scmp.eq.s32.totalorder %s26, 1
    %p217 = por %p215, %p216
    %p219 = scmp.ne.s32.totalorder %s204, %s218
    %p220 = scmp.eq.s32.totalorder %s26, 0
    %p221 = por %p219, %p220
    %s223 = sadd.s32 %s222, 1
    %p226 = scmp.eq.s32.totalorder %s20, 1
    %p227 = scmp.ne.s32.totalorder %s222, %s224
    %p228 = scmp.eq.s32.totalorder %s20, 0
    %p229 = por %p227, %p228
    %p230 = scmp.ne.s32.totalorder %s222, %s224
    %p231 = scmp.eq.s32.totalorder %s25, 1
    %p232 = por %p230, %p231
    %p233 = scmp.ne.s32.totalorder %s224, %s225
    %p234 = scmp.eq.s32.totalorder %s25, 0
    %p235 = por %p233, %p234
    %p236 = scmp.ne.s32.totalorder %s224, %s225
    %p237 = scmp.eq.s32.totalorder %s26, 1
    %p238 = por %p236, %p237
    %p240 = scmp.ne.s32.totalorder %s225, %s239
    %p241 = scmp.eq.s32.totalorder %s26, 0
    %p242 = por %p240, %p241
    %s244 = sadd.s32 %s243, 1
    %p247 = scmp.eq.s32.totalorder %s20, 1
    %p248 = scmp.ne.s32.totalorder %s243, %s245
    %p249 = scmp.eq.s32.totalorder %s20, 0
    %p250 = por %p248, %p249
    %p251 = scmp.ne.s32.totalorder %s243, %s245
    %p252 = scmp.eq.s32.totalorder %s25, 1
    %p253 = por %p251, %p252
    %p254 = scmp.ne.s32.totalorder %s245, %s246
    %p255 = scmp.eq.s32.totalorder %s25, 0
    %p256 = por %p254, %p255
    %p257 = scmp.ne.s32.totalorder %s245, %s246
    %p258 = scmp.eq.s32.totalorder %s26, 1
    %p259 = por %p257, %p258
    %p261 = scmp.ne.s32.totalorder %s246, %s260
    %p262 = scmp.eq.s32.totalorder %s26, 0
    %p263 = por %p261, %p262
    %s265 = sadd.s32 %s264, 1
    %p268 = scmp.eq.s32.totalorder %s20, 1
    %p269 = scmp.ne.s32.totalorder %s264, %s266
    %p270 = scmp.eq.s32.totalorder %s20, 0
    %p271 = por %p269, %p270
    %p272 = scmp.ne.s32.totalorder %s264, %s266
    %p273 = scmp.eq.s32.totalorder %s25, 1
    %p274 = por %p272, %p273
    %p275 = scmp.ne.s32.totalorder %s266, %s267
    %p276 = scmp.eq.s32.totalorder %s25, 0
    %p277 = por %p275, %p276
    %p278 = scmp.ne.s32.totalorder %s266, %s267
    %p279 = scmp.eq.s32.totalorder %s26, 1
    %p280 = por %p278, %p279
    %p282 = scmp.ne.s32.totalorder %s267, %s281
    %p283 = scmp.eq.s32.totalorder %s26, 0
    %p284 = por %p282, %p283
    %s286 = sadd.s32 %s285, 1
    %p289 = scmp.eq.s32.totalorder %s20, 1
    %p290 = scmp.ne.s32.totalorder %s285, %s287
    %p291 = scmp.eq.s32.totalorder %s20, 0
    %p292 = por %p290, %p291
    %p293 = scmp.ne.s32.totalorder %s285, %s287
    %p294 = scmp.eq.s32.totalorder %s25, 1
    %p295 = por %p293, %p294
    %p296 = scmp.ne.s32.totalorder %s287, %s288
    %p297 = scmp.eq.s32.totalorder %s25, 0
    %p298 = por %p296, %p297
    %p299 = scmp.ne.s32.totalorder %s287, %s288
    %p300 = scmp.eq.s32.totalorder %s26, 1
    %p301 = por %p299, %p300
    %p303 = scmp.ne.s32.totalorder %s288, %s302
    %p304 = scmp.eq.s32.totalorder %s26, 0
    %p305 = por %p303, %p304
    %s307 = sadd.s32 %s306, 1
    %p310 = scmp.eq.s32.totalorder %s20, 1
    %p311 = scmp.ne.s32.totalorder %s306, %s308
    %p312 = scmp.eq.s32.totalorder %s20, 0
    %p313 = por %p311, %p312
    %p314 = scmp.ne.s32.totalorder %s306, %s308
    %p315 = scmp.eq.s32.totalorder %s25, 1
    %p316 = por %p314, %p315
    %p317 = scmp.ne.s32.totalorder %s308, %s309
    %p318 = scmp.eq.s32.totalorder %s25, 0
    %p319 = por %p317, %p318
    %p320 = scmp.ne.s32.totalorder %s308, %s309
    %p321 = scmp.eq.s32.totalorder %s26, 1
    %p322 = por %p320, %p321
    %p324 = scmp.ne.s32.totalorder %s309, %s323
    %p325 = scmp.eq.s32.totalorder %s26, 0
    %p326 = por %p324, %p325
    %s327 = ssub.s32 %s20, %s27
    %p328 = scmp.eq.s32.totalorder %s327, 0
    %s330 = sadd.s32 %s329, 1
    %s331 = scalar_select %p328, %s329, %s330
    %p334 = pneg %p328
    %p335 = scmp.eq.s32.totalorder %s20, 1
    %p336 = por %p334, %p335
    %p337 = scmp.ne.s32.totalorder %s329, %s332
    %p338 = scmp.eq.s32.totalorder %s20, 0
    %p339 = por %p337, %p338
    %p340 = scmp.ne.s32.totalorder %s329, %s332
    %p341 = scmp.eq.s32.totalorder %s25, 1
    %p342 = por %p340, %p341
    %p343 = scmp.ne.s32.totalorder %s332, %s333
    %p344 = scmp.eq.s32.totalorder %s25, 0
    %p345 = por %p343, %p344
    %p346 = scmp.ne.s32.totalorder %s332, %s333
    %p347 = scmp.eq.s32.totalorder %s26, 1
    %p348 = por %p346, %p347
    %p350 = scmp.ne.s32.totalorder %s333, %s349
    %p351 = scmp.eq.s32.totalorder %s26, 0
    %p352 = por %p350, %p351
    %p353 = scmp.le.s32.totalorder 1, %s20
    %p354 = scmp.lt.s32.totalorder %s20, 3
    %p355 = pnand %p353, %p354
    %p356 = pneg %p355
    // Predicated region
    $region9: #{tpu_custom_call.1} parent=5 // pred_check
      _
    $region10: #{tpu_custom_call.1} parent=5 // pred_check_branch
      %358 = sbr.rel (%p355) target = $region12
    $region11: #{tpu_custom_call.1} parent=5 // pred_region
      %s359 = ssub.s32 %s20, 1
      // Predicated region
      $region13: #{tpu_custom_call.1} parent=11 // pred_check
        %p360 = pneg %p67
      $region14: #{tpu_custom_call.1} parent=11 // pred_check_branch
        %362 = sbr.rel (%p360) target = $region16
      $region15: #{tpu_custom_call.1} parent=11 // pred_region
        _
      $region16: #{tpu_custom_call.1} parent=11 // pred_fallthru
        _
      // Predicated region
      $region17: #{tpu_custom_call.1} parent=11 // pred_check
        %p363 = pneg %p88
      $region18: #{tpu_custom_call.1} parent=11 // pred_check_branch
        %365 = sbr.rel (%p363) target = $region20
      $region19: #{tpu_custom_call.1} parent=11 // pred_region
        _
      $region20: #{tpu_custom_call.1} parent=11 // pred_fallthru
        _
      // Predicated region
      $region21: #{tpu_custom_call.1} parent=11 // pred_check
        %p366 = pneg %p109
      $region22: #{tpu_custom_call.1} parent=11 // pred_check_branch
        %368 = sbr.rel (%p366) target = $region24
      $region23: #{tpu_custom_call.1} parent=11 // pred_region
        _
      $region24: #{tpu_custom_call.1} parent=11 // pred_fallthru
        _
      // Predicated region
      $region25: #{tpu_custom_call.1} parent=11 // pred_check
        %p369 = pneg %p130
      $region26: #{tpu_custom_call.1} parent=11 // pred_check_branch
        %371 = sbr.rel (%p369) target = $region28
      $region27: #{tpu_custom_call.1} parent=11 // pred_region
        _
      $region28: #{tpu_custom_call.1} parent=11 // pred_fallthru
        _
      // Predicated region
      $region29: #{tpu_custom_call.1} parent=11 // pred_check
        %p372 = pneg %p151
      $region30: #{tpu_custom_call.1} parent=11 // pred_check_branch
        %374 = sbr.rel (%p372) target = $region32
      $region31: #{tpu_custom_call.1} parent=11 // pred_region
        _
      $region32: #{tpu_custom_call.1} parent=11 // pred_fallthru
        _
      // Predicated region
      $region33: #{tpu_custom_call.1} parent=11 // pred_check
        %p375 = pneg %p172
      $region34: #{tpu_custom_call.1} parent=11 // pred_check_branch
        %377 = sbr.rel (%p375) target = $region36
      $region35: #{tpu_custom_call.1} parent=11 // pred_region
        _
      $region36: #{tpu_custom_call.1} parent=11 // pred_fallthru
        _
      // Predicated region
      $region37: #{tpu_custom_call.1} parent=11 // pred_check
        %p378 = pneg %p193
      $region38: #{tpu_custom_call.1} parent=11 // pred_check_branch
        %380 = sbr.rel (%p378) target = $region40
      $region39: #{tpu_custom_call.1} parent=11 // pred_region
        _
      $region40: #{tpu_custom_call.1} parent=11 // pred_fallthru
        _
      // Predicated region
      $region41: #{tpu_custom_call.1} parent=11 // pred_check
        %p381 = pneg %p214
      $region42: #{tpu_custom_call.1} parent=11 // pred_check_branch
        %383 = sbr.rel (%p381) target = $region44
      $region43: #{tpu_custom_call.1} parent=11 // pred_region
        _
      $region44: #{tpu_custom_call.1} parent=11 // pred_fallthru
        _
      // Predicated region
      $region45: #{tpu_custom_call.1} parent=11 // pred_check
        %p384 = pneg %p235
      $region46: #{tpu_custom_call.1} parent=11 // pred_check_branch
        %386 = sbr.rel (%p384) target = $region48
      $region47: #{tpu_custom_call.1} parent=11 // pred_region
        _
      $region48: #{tpu_custom_call.1} parent=11 // pred_fallthru
        _
      // Predicated region
      $region49: #{tpu_custom_call.1} parent=11 // pred_check
        %p387 = pneg %p256
      $region50: #{tpu_custom_call.1} parent=11 // pred_check_branch
        %389 = sbr.rel (%p387) target = $region52
      $region51: #{tpu_custom_call.1} parent=11 // pred_region
        _
      $region52: #{tpu_custom_call.1} parent=11 // pred_fallthru
        _
      // Predicated region
      $region53: #{tpu_custom_call.1} parent=11 // pred_check
        %p390 = pneg %p277
      $region54: #{tpu_custom_call.1} parent=11 // pred_check_branch
        %392 = sbr.rel (%p390) target = $region56
      $region55: #{tpu_custom_call.1} parent=11 // pred_region
        _
      $region56: #{tpu_custom_call.1} parent=11 // pred_fallthru
        _
      // Predicated region
      $region57: #{tpu_custom_call.1} parent=11 // pred_check
        %p393 = pneg %p298
      $region58: #{tpu_custom_call.1} parent=11 // pred_check_branch
        %395 = sbr.rel (%p393) target = $region60
      $region59: #{tpu_custom_call.1} parent=11 // pred_region
        _
      $region60: #{tpu_custom_call.1} parent=11 // pred_fallthru
        _
      // Predicated region
      $region61: #{tpu_custom_call.1} parent=11 // pred_check
        %p396 = pneg %p319
      $region62: #{tpu_custom_call.1} parent=11 // pred_check_branch
        %398 = sbr.rel (%p396) target = $region64
      $region63: #{tpu_custom_call.1} parent=11 // pred_region
        _
      $region64: #{tpu_custom_call.1} parent=11 // pred_fallthru
        _
    $region12: #{tpu_custom_call.1} parent=5 // pred_fallthru
      _
    %p399 = scmp.lt.s32.totalorder %s20, 2
    // Predicated region
    $region65: #{tpu_custom_call.1} parent=5 // pred_check
      %p400 = pneg %p399
    $region66: #{tpu_custom_call.1} parent=5 // pred_check_branch
      %402 = sbr.rel (%p400) target = $region68
    $region67: #{tpu_custom_call.1} parent=5 // pred_region
      // Predicated region
      $region69: #{tpu_custom_call.1} parent=67 // pred_check
        %p403 = pneg %p40
      $region70: #{tpu_custom_call.1} parent=67 // pred_check_branch
        %405 = sbr.rel (%p403) target = $region72
      $region71: #{tpu_custom_call.1} parent=67 // pred_region
        %p406 = scmp.lt.s32.totalorder %s20, 1
        %s407 = scalar_select %p406, %s20, 1
        %s408 = smul.addr %s407, 88
        %s409 = smul.addr %s408, 8
        %s410 = scalar_lea.vmem %s0, %s409
      $region72: #{tpu_custom_call.1} parent=67 // pred_fallthru
        _
    $region68: #{tpu_custom_call.1} parent=5 // pred_fallthru
      _
    %p411 = scmp.le.s32.totalorder 1, %s20
    %p412 = scmp.lt.s32.totalorder %s20, 3
    %p413 = pnand %p411, %p412
    %p414 = pneg %p413
    // Predicated region
    $region73: #{tpu_custom_call.1} parent=5 // pred_check
      _
    $region74: #{tpu_custom_call.1} parent=5 // pred_check_branch
      %416 = sbr.rel (%p413) target = $region76
    $region75: #{tpu_custom_call.1} parent=5 // pred_region
      %s417 = ssub.s32 %s20, 1
      %p418 = scmp.lt.s32.totalorder %s25, 1
      %s419 = scalar_select %p418, %s25, 1
      %s420 = smul.addr %s419, 88
      %s421 = smul.addr %s420, 8
      %s422 = scalar_lea.vmem %s0, %s421
      %p423 = pneg %p46
      %p424 = pneg %p43
      %p425 = pneg %p67
      %p426 = pneg %p64
      %p427 = pneg %p88
      %p428 = pneg %p85
      %p429 = pneg %p109
      %p430 = pneg %p106
      %p431 = pneg %p130
      %p432 = pneg %p127
      %p433 = pneg %p151
      %p434 = pneg %p148
      %p435 = pneg %p172
      %p436 = pneg %p169
      %p437 = pneg %p193
      %p438 = pneg %p190
      %p439 = pneg %p214
      %p440 = pneg %p211
      %p441 = pneg %p235
      %p442 = pneg %p232
      %p443 = pneg %p256
      %p444 = pneg %p253
      %p445 = pneg %p277
      %p446 = pneg %p274
      %p447 = pneg %p298
      %p448 = pneg %p295
      %p449 = pneg %p319
      %p450 = pneg %p316
      %p451 = pneg %p345
      %p452 = pneg %p342
      %p453 = scmp.lt.s32.totalorder %s25, 1
      %s454 = scalar_select %p453, %s25, 1
      %s455 = smul.addr %s454, 8
      %s456 = smul.addr %s455, 8
      %s457 = scalar_lea.vmem %s14, %s456
      %p458 = scmp.lt.s32.totalorder %s25, 1
      %s459 = scalar_select %p458, %s25, 1
      %s460 = smul.addr %s459, 88
      %s461 = smul.addr %s460, 8
      %s462 = scalar_lea.vmem %s0, %s461
      %p463 = scmp.lt.s32.totalorder %s25, 1
      %s464 = scalar_select %p463, %s25, 1
      %s465 = smul.addr %s464, 8
      %s466 = smul.addr %s465, 8
      %s467 = scalar_lea.vmem %s14, %s466
      %v468 = vld [vmem:[%s462] sm:$0xff]
      %v469 = vld [vmem:[%s462 + $0x8] sm:$0xff]
      %v470 = vld [vmem:[%s462 + $0x10] sm:$0xff]
      %v471 = vld [vmem:[%s462 + $0x18] sm:$0xff]
      %v472 = vld [vmem:[%s462 + $0x20] sm:$0xff]
      %v473 = vld [vmem:[%s462 + $0x28] sm:$0xff]
      %v474 = vld [vmem:[%s462 + $0x30] sm:$0xff]
      %v475 = vld [vmem:[%s462 + $0x38] sm:$0xff]
      %v476 = vld [vmem:[%s462 + $0x40] sm:$0xff]
      %v477 = vld [vmem:[%s462 + $0x48] sm:$0xff]
      %v478 = vld [vmem:[%s462 + $0x50] sm:$0xff]
      %v479 = vld [vmem:[%s462 + $0x58] sm:$0xff]
      %v480 = vld [vmem:[%s462 + $0x60] sm:$0xff]
      %v481 = vld [vmem:[%s462 + $0x68] sm:$0xff]
      %v482 = vld [vmem:[%s462 + $0x70] sm:$0xff]
      %v483 = vld [vmem:[%s462 + $0x78] sm:$0xff]
      %v484 = vld [vmem:[%s462 + $0x80] sm:$0xff]
      %v485 = vld [vmem:[%s462 + $0x88] sm:$0xff]
      %v486 = vld [vmem:[%s462 + $0x90] sm:$0xff]
      %v487 = vld [vmem:[%s462 + $0x98] sm:$0xff]
      %v488 = vld [vmem:[%s462 + $0xa0] sm:$0xff]
      %v489 = vld [vmem:[%s462 + $0xa8] sm:$0xff]
      %v490 = vld [vmem:[%s2] sm:$0xff]
      %v491 = vld [vmem:[%s2 + $0x8] sm:$0xff]
      %vm492 = vcmask 130048
      %v494 = vsel %vm492, %v468, 0
      %v497 = vsel %vm492, %v469, 0
      %v500 = vsel %vm492, %v470, 0
      %v503 = vsel %vm492, %v471, 0
      %v506 = vsel %vm492, %v472, 0
      %v509 = vsel %vm492, %v473, 0
      %v512 = vsel %vm492, %v474, 0
      %v515 = vsel %vm492, %v475, 0
      %v518 = vsel %vm492, %v476, 0
      %v521 = vsel %vm492, %v477, 0
      %v524 = vsel %vm492, %v478, 0
      %v527 = vsel %vm492, %v479, 0
      %v530 = vsel %vm492, %v480, 0
      %v533 = vsel %vm492, %v481, 0
      %v536 = vsel %vm492, %v482, 0
      %v539 = vsel %vm492, %v483, 0
      %v542 = vsel %vm492, %v484, 0
      %v545 = vsel %vm492, %v485, 0
      %v548 = vsel %vm492, %v486, 0
      %v551 = vsel %vm492, %v487, 0
      %v554 = vsel %vm492, %v488, 0
      %v557 = vsel %vm492, %v489, 0
      %559 = vmatprep.subr.mxu0 0.0
      %560 = vmatpush1.msra.mxu0 %v490
      %561 = vmatprep.subr.mxu0 0.0
      %562 = vmatpush1.msra.mxu0 %v491
      %563 = vmatprep.subr.mxu0 0.0
      %564 = vmatpush1.msra.mxu0 0.0
      %565 = vmatprep.subr.mxu0 0.0
      %566 = vmatpush1.msra.mxu0 0.0
      %567 = vmatprep.subr.mxu0 0.0
      %568 = vmatpush1.msra.mxu0 0.0
      %569 = vmatprep.subr.mxu0 0.0
      %570 = vmatpush1.msra.mxu0 0.0
      %571 = vmatprep.subr.mxu0 0.0
      %572 = vmatpush1.msra.mxu0 0.0
      %573 = vmatprep.subr.mxu0 0.0
      %574 = vmatpush1.msra.mxu0 0.0
      %575 = vmatprep.subr.mxu0 0.0
      %576 = vmatpush1.msra.mxu0 0.0
      %577 = vmatprep.subr.mxu0 0.0
      %578 = vmatpush1.msra.mxu0 0.0
      %579 = vmatprep.subr.mxu0 0.0
      %580 = vmatpush1.msra.mxu0 0.0
      %581 = vmatprep.subr.mxu0 0.0
      %582 = vmatpush1.msra.mxu0 0.0
      %583 = vmatprep.subr.mxu0 0.0
      %584 = vmatpush1.msra.mxu0 0.0
      %585 = vmatprep.subr.mxu0 0.0
      %586 = vmatpush1.msra.mxu0 0.0
      %587 = vmatprep.subr.mxu0 0.0
      %588 = vmatpush1.msra.mxu0 0.0
      %589 = vmatprep.subr.mxu0 0.0
      %590 = vmatpush1.msra.mxu0 0.0
      %591 = vmatprep.subr.mxu0 0.0
      %592 = vmatpush1.msra.mxu0 0.0
      %593 = vmatprep.subr.mxu0 0.0
      %594 = vmatpush1.msra.mxu0 0.0
      %595 = vmatprep.subr.mxu0 0.0
      %596 = vmatpush1.msra.mxu0 0.0
      %597 = vmatprep.subr.mxu0 0.0
      %598 = vmatpush1.msra.mxu0 0.0
      %599 = vmatprep.subr.mxu0 0.0
      %600 = vmatpush1.msra.mxu0 0.0
      %601 = vmatprep.subr.mxu0 0.0
      %602 = vmatpush1.msra.mxu0 0.0
      %603 = vmatprep.subr.mxu0 0.0
      %604 = vmatpush1.msra.mxu0 0.0
      %605 = vmatprep.subr.mxu0 0.0
      %606 = vmatpush1.msra.mxu0 0.0
      %607 = vmatprep.subr.mxu0 0.0
      %608 = vmatpush1.msra.mxu0 0.0
      %609 = vmatprep.subr.mxu0 0.0
      %610 = vmatpush1.msra.mxu0 0.0
      %611 = vmatprep.subr.mxu0 0.0
      %612 = vmatpush1.msra.mxu0 0.0
      %613 = vmatprep.subr.mxu0 0.0
      %614 = vmatpush1.msra.mxu0 0.0
      %615 = vmatprep.subr.mxu0 0.0
      %616 = vmatpush1.msra.mxu0 0.0
      %617 = vmatprep.subr.mxu0 0.0
      %618 = vmatpush1.msra.mxu0 0.0
      %619 = vmatprep.subr.mxu0 0.0
      %620 = vmatpush1.msra.mxu0 0.0
      %621 = vmatprep.subr.mxu0 0.0
      %622 = vmatpush1.msra.mxu0 0.0
      %623 = vmatprep.mubr.f32.mxu0 0.0
      %624 = vmatmul.mubr.f32.gmra.mrb[0].mxu0 %v494
      %v625 = vpop.f32.mrb[0].mxu0
      %v626 = vadd.f32 0.0, %v625
      %v627 = vpop.f32.mrb[0].mxu0
      %628 = vmatprep.mubr.f32.mxu0 0.0
      %629 = vmatmul.mubr.f32.gmra.mrb[0].mxu0 %v497
      %v630 = vpop.f32.mrb[0].mxu0
      %v631 = vadd.f32 0.0, %v630
      %v632 = vpop.f32.mrb[0].mxu0
      %633 = vmatprep.mubr.f32.mxu0 0.0
      %634 = vmatmul.mubr.f32.gmra.mrb[0].mxu0 %v500
      %v635 = vpop.f32.mrb[0].mxu0
      %v636 = vadd.f32 0.0, %v635
      %v637 = vpop.f32.mrb[0].mxu0
      %638 = vmatprep.mubr.f32.mxu0 0.0
      %639 = vmatmul.mubr.f32.gmra.mrb[0].mxu0 %v503
      %v640 = vpop.f32.mrb[0].mxu0
      %v641 = vadd.f32 0.0, %v640
      %v642 = vpop.f32.mrb[0].mxu0
      %643 = vmatprep.mubr.f32.mxu0 0.0
      %644 = vmatmul.mubr.f32.gmra.mrb[0].mxu0 %v506
      %v645 = vpop.f32.mrb[0].mxu0
      %v646 = vadd.f32 0.0, %v645
      %v647 = vpop.f32.mrb[0].mxu0
      %648 = vmatprep.mubr.f32.mxu0 0.0
      %649 = vmatmul.mubr.f32.gmra.mrb[0].mxu0 %v509
      %v650 = vpop.f32.mrb[0].mxu0
      %v651 = vadd.f32 0.0, %v650
      %v652 = vpop.f32.mrb[0].mxu0
      %653 = vmatprep.mubr.f32.mxu0 0.0
      %654 = vmatmul.mubr.f32.gmra.mrb[0].mxu0 %v512
      %v655 = vpop.f32.mrb[0].mxu0
      %v656 = vadd.f32 0.0, %v655
      %v657 = vpop.f32.mrb[0].mxu0
      %658 = vmatprep.mubr.f32.mxu0 0.0
      %659 = vmatmul.mubr.f32.gmra.mrb[0].mxu0 %v515
      %v660 = vpop.f32.mrb[0].mxu0
      %v661 = vadd.f32 0.0, %v660
      %v662 = vpop.f32.mrb[0].mxu0
      %663 = vmatprep.mubr.f32.mxu0 0.0
      %664 = vmatmul.mubr.f32.gmra.mrb[0].mxu0 %v518
      %v665 = vpop.f32.mrb[0].mxu0
      %v666 = vadd.f32 0.0, %v665
      %v667 = vpop.f32.mrb[0].mxu0
      %668 = vmatprep.mubr.f32.mxu0 0.0
      %669 = vmatmul.mubr.f32.gmra.mrb[0].mxu0 %v521
      %v670 = vpop.f32.mrb[0].mxu0
      %v671 = vadd.f32 0.0, %v670
      %v672 = vpop.f32.mrb[0].mxu0
      %673 = vmatprep.mubr.f32.mxu0 0.0
      %674 = vmatmul.mubr.f32.gmra.mrb[0].mxu0 %v524
      %v675 = vpop.f32.mrb[0].mxu0
      %v676 = vadd.f32 0.0, %v675
      %v677 = vpop.f32.mrb[0].mxu0
      %678 = vmatprep.mubr.f32.mxu0 0.0
      %679 = vmatmul.mubr.f32.gmra.mrb[0].mxu0 %v527
      %v680 = vpop.f32.mrb[0].mxu0
      %v681 = vadd.f32 0.0, %v680
      %v682 = vpop.f32.mrb[0].mxu0
      %683 = vmatprep.mubr.f32.mxu0 0.0
      %684 = vmatmul.mubr.f32.gmra.mrb[0].mxu0 %v530
      %v685 = vpop.f32.mrb[0].mxu0
      %v686 = vadd.f32 0.0, %v685
      %v687 = vpop.f32.mrb[0].mxu0
      %688 = vmatprep.mubr.f32.mxu0 0.0
      %689 = vmatmul.mubr.f32.gmra.mrb[0].mxu0 %v533
      %v690 = vpop.f32.mrb[0].mxu0
      %v691 = vadd.f32 0.0, %v690
      %v692 = vpop.f32.mrb[0].mxu0
      %693 = vmatprep.mubr.f32.mxu0 0.0
      %694 = vmatmul.mubr.f32.gmra.mrb[0].mxu0 %v536
      %v695 = vpop.f32.mrb[0].mxu0
      %v696 = vadd.f32 0.0, %v695
      %v697 = vpop.f32.mrb[0].mxu0
      %698 = vmatprep.mubr.f32.mxu0 0.0
      %699 = vmatmul.mubr.f32.gmra.mrb[0].mxu0 %v539
      %v700 = vpop.f32.mrb[0].mxu0
      %v701 = vadd.f32 0.0, %v700
      %v702 = vpop.f32.mrb[0].mxu0
      %703 = vmatprep.mubr.f32.mxu0 0.0
      %704 = vmatmul.mubr.f32.gmra.mrb[0].mxu0 %v542
      %v705 = vpop.f32.mrb[0].mxu0
      %v706 = vadd.f32 0.0, %v705
      %v707 = vpop.f32.mrb[0].mxu0
      %708 = vmatprep.mubr.f32.mxu0 0.0
      %709 = vmatmul.mubr.f32.gmra.mrb[0].mxu0 %v545
      %v710 = vpop.f32.mrb[0].mxu0
      %v711 = vadd.f32 0.0, %v710
      %v712 = vpop.f32.mrb[0].mxu0
      %713 = vmatprep.mubr.f32.mxu0 0.0
      %714 = vmatmul.mubr.f32.gmra.mrb[0].mxu0 %v548
      %v715 = vpop.f32.mrb[0].mxu0
      %v716 = vadd.f32 0.0, %v715
      %v717 = vpop.f32.mrb[0].mxu0
      %718 = vmatprep.mubr.f32.mxu0 0.0
      %719 = vmatmul.mubr.f32.gmra.mrb[0].mxu0 %v551
      %v720 = vpop.f32.mrb[0].mxu0
      %v721 = vadd.f32 0.0, %v720
      %v722 = vpop.f32.mrb[0].mxu0
      %723 = vmatprep.mubr.f32.mxu0 0.0
      %724 = vmatmul.mubr.f32.gmra.mrb[0].mxu0 %v554
      %v725 = vpop.f32.mrb[0].mxu0
      %v726 = vadd.f32 0.0, %v725
      %v727 = vpop.f32.mrb[0].mxu0
      %728 = vmatprep.mubr.f32.mxu0 0.0
      %729 = vmatmul.mubr.f32.gmra.mrb[0].mxu0 %v557
      %v730 = vpop.f32.mrb[0].mxu0
      %v731 = vadd.f32 0.0, %v730
      %v732 = vpop.f32.mrb[0].mxu0
      %733 = vdwg.mxu0
      %v734 = vld [vmem:[%s3] sm:$0x1]
      %v736 = vlaneseq
      %v737 = vshrl.u32 %v736, 7
      %v738 = vsub.s32 0, %v737
      %v739 = vrot.slane %v734, %v738
      %v741 = vmul.f32 %v626, %v739
      %v742 = vmul.f32 %v631, %v739
      %v743 = vmul.f32 %v636, %v739
      %v744 = vmul.f32 %v641, %v739
      %v745 = vmul.f32 %v646, %v739
      %v746 = vmul.f32 %v651, %v739
      %v747 = vmul.f32 %v656, %v739
      %v748 = vmul.f32 %v661, %v739
      %v749 = vmul.f32 %v666, %v739
      %v750 = vmul.f32 %v671, %v739
      %v751 = vmul.f32 %v676, %v739
      %v752 = vmul.f32 %v681, %v739
      %v753 = vmul.f32 %v686, %v739
      %v754 = vmul.f32 %v691, %v739
      %v755 = vmul.f32 %v696, %v739
      %v756 = vmul.f32 %v701, %v739
      %v757 = vmul.f32 %v706, %v739
      %v758 = vmul.f32 %v711, %v739
      %v759 = vmul.f32 %v716, %v739
      %v760 = vmul.f32 %v721, %v739
      %v761 = vmul.f32 %v726, %v739
      %v762 = vmul.f32 %v731, %v739
      %v763 = vld [vmem:[%s4] sm:$0x1]
      %v765 = vlaneseq
      %v766 = vshrl.u32 %v765, 7
      %v767 = vsub.s32 0, %v766
      %v768 = vrot.slane %v763, %v767
      %v770 = vadd.f32 %v741, %v768
      %v771 = vadd.f32 %v742, %v768
      %v772 = vadd.f32 %v743, %v768
      %v773 = vadd.f32 %v744, %v768
      %v774 = vadd.f32 %v745, %v768
      %v775 = vadd.f32 %v746, %v768
      %v776 = vadd.f32 %v747, %v768
      %v777 = vadd.f32 %v748, %v768
      %v778 = vadd.f32 %v749, %v768
      %v779 = vadd.f32 %v750, %v768
      %v780 = vadd.f32 %v751, %v768
      %v781 = vadd.f32 %v752, %v768
      %v782 = vadd.f32 %v753, %v768
      %v783 = vadd.f32 %v754, %v768
      %v784 = vadd.f32 %v755, %v768
      %v785 = vadd.f32 %v756, %v768
      %v786 = vadd.f32 %v757, %v768
      %v787 = vadd.f32 %v758, %v768
      %v788 = vadd.f32 %v759, %v768
      %v789 = vadd.f32 %v760, %v768
      %v790 = vadd.f32 %v761, %v768
      %v791 = vadd.f32 %v762, %v768
      %v792 = vmax.f32 %v770, 0.0
      %v793 = vmax.f32 %v771, 0.0
      %v794 = vmax.f32 %v772, 0.0
      %v795 = vmax.f32 %v773, 0.0
      %v796 = vmax.f32 %v774, 0.0
      %v797 = vmax.f32 %v775, 0.0
      %v798 = vmax.f32 %v776, 0.0
      %v799 = vmax.f32 %v777, 0.0
      %v800 = vmax.f32 %v778, 0.0
      %v801 = vmax.f32 %v779, 0.0
      %v802 = vmax.f32 %v780, 0.0
      %v803 = vmax.f32 %v781, 0.0
      %v804 = vmax.f32 %v782, 0.0
      %v805 = vmax.f32 %v783, 0.0
      %v806 = vmax.f32 %v784, 0.0
      %v807 = vmax.f32 %v785, 0.0
      %v808 = vmax.f32 %v786, 0.0
      %v809 = vmax.f32 %v787, 0.0
      %v810 = vmax.f32 %v788, 0.0
      %v811 = vmax.f32 %v789, 0.0
      %v812 = vmax.f32 %v790, 0.0
      %v813 = vmax.f32 %v791, 0.0
      %v814 = vld [vmem:[%s1] sm:$0xff]
      %v815 = vld [vmem:[%s1 + $0x8] sm:$0xff]
      %v816 = vld [vmem:[%s1 + $0x10] sm:$0xff]
      %v817 = vld [vmem:[%s1 + $0x18] sm:$0xff]
      %v818 = vld [vmem:[%s1 + $0x20] sm:$0xff]
      %v819 = vld [vmem:[%s1 + $0x28] sm:$0xff]
      %v820 = vld [vmem:[%s1 + $0x30] sm:$0xff]
      %v821 = vld [vmem:[%s1 + $0x38] sm:$0xff]
      %v822 = vld [vmem:[%s1 + $0x40] sm:$0xff]
      %v823 = vld [vmem:[%s1 + $0x48] sm:$0xff]
      %v824 = vld [vmem:[%s1 + $0x50] sm:$0xff]
      %v825 = vld [vmem:[%s1 + $0x58] sm:$0xff]
      %v826 = vld [vmem:[%s1 + $0x60] sm:$0xff]
      %v827 = vld [vmem:[%s1 + $0x68] sm:$0xff]
      %v828 = vld [vmem:[%s1 + $0x70] sm:$0xff]
      %v829 = vld [vmem:[%s1 + $0x78] sm:$0xff]
      %v830 = vld [vmem:[%s1 + $0x80] sm:$0xff]
      %v831 = vld [vmem:[%s1 + $0x88] sm:$0xff]
      %v832 = vld [vmem:[%s1 + $0x90] sm:$0xff]
      %v833 = vld [vmem:[%s1 + $0x98] sm:$0xff]
      %v834 = vld [vmem:[%s1 + $0xa0] sm:$0xff]
      %v835 = vld [vmem:[%s1 + $0xa8] sm:$0xff]
      %837 = vset.pattern.permute.xlu0 0
      %838 = vperm.xlu0 %837, %v814
      %v839 = vpop.permute.xlu0 %838
      %842 = vset.pattern.permute.xlu0 0
      %843 = vperm.xlu0 %842, %v815
      %v844 = vpop.permute.xlu0 %843
      %847 = vset.pattern.permute.xlu0 0
      %848 = vperm.xlu0 %847, %v816
      %v849 = vpop.permute.xlu0 %848
      %852 = vset.pattern.permute.xlu0 0
      %853 = vperm.xlu0 %852, %v817
      %v854 = vpop.permute.xlu0 %853
      %857 = vset.pattern.permute.xlu0 0
      %858 = vperm.xlu0 %857, %v818
      %v859 = vpop.permute.xlu0 %858
      %862 = vset.pattern.permute.xlu0 0
      %863 = vperm.xlu0 %862, %v819
      %v864 = vpop.permute.xlu0 %863
      %867 = vset.pattern.permute.xlu0 0
      %868 = vperm.xlu0 %867, %v820
      %v869 = vpop.permute.xlu0 %868
      %872 = vset.pattern.permute.xlu0 0
      %873 = vperm.xlu0 %872, %v821
      %v874 = vpop.permute.xlu0 %873
      %877 = vset.pattern.permute.xlu0 0
      %878 = vperm.xlu0 %877, %v822
      %v879 = vpop.permute.xlu0 %878
      %882 = vset.pattern.permute.xlu0 0
      %883 = vperm.xlu0 %882, %v823
      %v884 = vpop.permute.xlu0 %883
      %887 = vset.pattern.permute.xlu0 0
      %888 = vperm.xlu0 %887, %v824
      %v889 = vpop.permute.xlu0 %888
      %892 = vset.pattern.permute.xlu0 0
      %893 = vperm.xlu0 %892, %v825
      %v894 = vpop.permute.xlu0 %893
      %897 = vset.pattern.permute.xlu0 0
      %898 = vperm.xlu0 %897, %v826
      %v899 = vpop.permute.xlu0 %898
      %902 = vset.pattern.permute.xlu0 0
      %903 = vperm.xlu0 %902, %v827
      %v904 = vpop.permute.xlu0 %903
      %907 = vset.pattern.permute.xlu0 0
      %908 = vperm.xlu0 %907, %v828
      %v909 = vpop.permute.xlu0 %908
      %912 = vset.pattern.permute.xlu0 0
      %913 = vperm.xlu0 %912, %v829
      %v914 = vpop.permute.xlu0 %913
      %917 = vset.pattern.permute.xlu0 0
      %918 = vperm.xlu0 %917, %v830
      %v919 = vpop.permute.xlu0 %918
      %922 = vset.pattern.permute.xlu0 0
      %923 = vperm.xlu0 %922, %v831
      %v924 = vpop.permute.xlu0 %923
      %927 = vset.pattern.permute.xlu0 0
      %928 = vperm.xlu0 %927, %v832
      %v929 = vpop.permute.xlu0 %928
      %932 = vset.pattern.permute.xlu0 0
      %933 = vperm.xlu0 %932, %v833
      %v934 = vpop.permute.xlu0 %933
      %937 = vset.pattern.permute.xlu0 0
      %938 = vperm.xlu0 %937, %v834
      %v939 = vpop.permute.xlu0 %938
      %942 = vset.pattern.permute.xlu0 0
      %943 = vperm.xlu0 %942, %v835
      %v944 = vpop.permute.xlu0 %943
      %v946 = vmul.f32 %v792, %v839
      %v947 = vmul.f32 %v793, %v844
      %v948 = vmul.f32 %v794, %v849
      %v949 = vmul.f32 %v795, %v854
      %v950 = vmul.f32 %v796, %v859
      %v951 = vmul.f32 %v797, %v864
      %v952 = vmul.f32 %v798, %v869
      %v953 = vmul.f32 %v799, %v874
      %v954 = vmul.f32 %v800, %v879
      %v955 = vmul.f32 %v801, %v884
      %v956 = vmul.f32 %v802, %v889
      %v957 = vmul.f32 %v803, %v894
      %v958 = vmul.f32 %v804, %v899
      %v959 = vmul.f32 %v805, %v904
      %v960 = vmul.f32 %v806, %v909
      %v961 = vmul.f32 %v807, %v914
      %v962 = vmul.f32 %v808, %v919
      %v963 = vmul.f32 %v809, %v924
      %v964 = vmul.f32 %v810, %v929
      %v965 = vmul.f32 %v811, %v934
      %v966 = vmul.f32 %v812, %v939
      %v967 = vmul.f32 %v813, %v944
      %vm968 = vcmask 64512
      %969 = vst.msk [vmem:[#allocation2] sm:$0xff] %vm968, %v946
      %970 = vst.msk [vmem:[#allocation2 + $0x8] sm:$0xff] %vm968, %v947
      %971 = vst.msk [vmem:[#allocation2 + $0x10] sm:$0xff] %vm968, %v948
      %972 = vst.msk [vmem:[#allocation2 + $0x18] sm:$0xff] %vm968, %v949
      %973 = vst.msk [vmem:[#allocation2 + $0x20] sm:$0xff] %vm968, %v950
      %974 = vst.msk [vmem:[#allocation2 + $0x28] sm:$0xff] %vm968, %v951
      %975 = vst.msk [vmem:[#allocation2 + $0x30] sm:$0xff] %vm968, %v952
      %976 = vst.msk [vmem:[#allocation2 + $0x38] sm:$0xff] %vm968, %v953
      %977 = vst.msk [vmem:[#allocation2 + $0x40] sm:$0xff] %vm968, %v954
      %978 = vst.msk [vmem:[#allocation2 + $0x48] sm:$0xff] %vm968, %v955
      %979 = vst.msk [vmem:[#allocation2 + $0x50] sm:$0xff] %vm968, %v956
      %980 = vst.msk [vmem:[#allocation2 + $0x58] sm:$0xff] %vm968, %v957
      %981 = vst.msk [vmem:[#allocation2 + $0x60] sm:$0xff] %vm968, %v958
      %982 = vst.msk [vmem:[#allocation2 + $0x68] sm:$0xff] %vm968, %v959
      %983 = vst.msk [vmem:[#allocation2 + $0x70] sm:$0xff] %vm968, %v960
      %984 = vst.msk [vmem:[#allocation2 + $0x78] sm:$0xff] %vm968, %v961
      %985 = vst.msk [vmem:[#allocation2 + $0x80] sm:$0xff] %vm968, %v962
      %986 = vst.msk [vmem:[#allocation2 + $0x88] sm:$0xff] %vm968, %v963
      %987 = vst.msk [vmem:[#allocation2 + $0x90] sm:$0xff] %vm968, %v964
      %988 = vst.msk [vmem:[#allocation2 + $0x98] sm:$0xff] %vm968, %v965
      %989 = vst.msk [vmem:[#allocation2 + $0xa0] sm:$0xff] %vm968, %v966
      %990 = vst.msk [vmem:[#allocation2 + $0xa8] sm:$0xff] %vm968, %v967
      %s991 = scalar_lea.vmem %s462, 176
      %v992 = vld [vmem:[%s991] sm:$0xff]
      %v993 = vld [vmem:[%s991 + $0x8] sm:$0xff]
      %v994 = vld [vmem:[%s991 + $0x10] sm:$0xff]
      %v995 = vld [vmem:[%s991 + $0x18] sm:$0xff]
      %v996 = vld [vmem:[%s991 + $0x20] sm:$0xff]
      %v997 = vld [vmem:[%s991 + $0x28] sm:$0xff]
      %v998 = vld [vmem:[%s991 + $0x30] sm:$0xff]
      %v999 = vld [vmem:[%s991 + $0x38] sm:$0xff]
      %v1000 = vld [vmem:[%s991 + $0x40] sm:$0xff]
      %v1001 = vld [vmem:[%s991 + $0x48] sm:$0xff]
      %v1002 = vld [vmem:[%s991 + $0x50] sm:$0xff]
      %v1003 = vld [vmem:[%s991 + $0x58] sm:$0xff]
      %v1004 = vld [vmem:[%s991 + $0x60] sm:$0xff]
      %v1005 = vld [vmem:[%s991 + $0x68] sm:$0xff]
      %v1006 = vld [vmem:[%s991 + $0x70] sm:$0xff]
      %v1007 = vld [vmem:[%s991 + $0x78] sm:$0xff]
      %v1008 = vld [vmem:[%s991 + $0x80] sm:$0xff]
      %v1009 = vld [vmem:[%s991 + $0x88] sm:$0xff]
      %v1010 = vld [vmem:[%s991 + $0x90] sm:$0xff]
      %v1011 = vld [vmem:[%s991 + $0x98] sm:$0xff]
      %v1012 = vld [vmem:[%s991 + $0xa0] sm:$0xff]
      %v1013 = vld [vmem:[%s991 + $0xa8] sm:$0xff]
      %v1014 = vld [vmem:[%s2] sm:$0xff]
      %v1015 = vld [vmem:[%s2 + $0x8] sm:$0xff]
      %v1017 = vsel %vm492, %v992, 0
      %v1020 = vsel %vm492, %v993, 0
      %v1023 = vsel %vm492, %v994, 0
      %v1026 = vsel %vm492, %v995, 0
      %v1029 = vsel %vm492, %v996, 0
      %v1032 = vsel %vm492, %v997, 0
      %v1035 = vsel %vm492, %v998, 0
      %v1038 = vsel %vm492, %v999, 0
      %v1041 = vsel %vm492, %v1000, 0
      %v1044 = vsel %vm492, %v1001, 0
      %v1047 = vsel %vm492, %v1002, 0
      %v1050 = vsel %vm492, %v1003, 0
      %v1053 = vsel %vm492, %v1004, 0
      %v1056 = vsel %vm492, %v1005, 0
      %v1059 = vsel %vm492, %v1006, 0
      %v1062 = vsel %vm492, %v1007, 0
      %v1065 = vsel %vm492, %v1008, 0
      %v1068 = vsel %vm492, %v1009, 0
      %v1071 = vsel %vm492, %v1010, 0
      %v1074 = vsel %vm492, %v1011, 0
      %v1077 = vsel %vm492, %v1012, 0
      %v1080 = vsel %vm492, %v1013, 0
      %1082 = vmatprep.subr.mxu0 0.0
      %1083 = vmatpush1.msra.mxu0 %v1014
      %1084 = vmatprep.subr.mxu0 0.0
      %1085 = vmatpush1.msra.mxu0 %v1015
      %1086 = vmatprep.subr.mxu0 0.0
      %1087 = vmatpush1.msra.mxu0 0.0
      %1088 = vmatprep.subr.mxu0 0.0
      %1089 = vmatpush1.msra.mxu0 0.0
      %1090 = vmatprep.subr.mxu0 0.0
      %1091 = vmatpush1.msra.mxu0 0.0
      %1092 = vmatprep.subr.mxu0 0.0
      %1093 = vmatpush1.msra.mxu0 0.0
      %1094 = vmatprep.subr.mxu0 0.0
      %1095 = vmatpush1.msra.mxu0 0.0
      %1096 = vmatprep.subr.mxu0 0.0
      %1097 = vmatpush1.msra.mxu0 0.0
      %1098 = vmatprep.subr.mxu0 0.0
      %1099 = vmatpush1.msra.mxu0 0.0
      %1100 = vmatprep.subr.mxu0 0.0
      %1101 = vmatpush1.msra.mxu0 0.0
      %1102 = vmatprep.subr.mxu0 0.0
      %1103 = vmatpush1.msra.mxu0 0.0
      %1104 = vmatprep.subr.mxu0 0.0
      %1105 = vmatpush1.msra.mxu0 0.0
      %1106 = vmatprep.subr.mxu0 0.0
      %1107 = vmatpush1.msra.mxu0 0.0
      %1108 = vmatprep.subr.mxu0 0.0
      %1109 = vmatpush1.msra.mxu0 0.0
      %1110 = vmatprep.subr.mxu0 0.0
      %1111 = vmatpush1.msra.mxu0 0.0
      %1112 = vmatprep.subr.mxu0 0.0
      %1113 = vmatpush1.msra.mxu0 0.0
      %1114 = vmatprep.subr.mxu0 0.0
      %1115 = vmatpush1.msra.mxu0 0.0
      %1116 = vmatprep.subr.mxu0 0.0
      %1117 = vmatpush1.msra.mxu0 0.0
      %1118 = vmatprep.subr.mxu0 0.0
      %1119 = vmatpush1.msra.mxu0 0.0
      %1120 = vmatprep.subr.mxu0 0.0
      %1121 = vmatpush1.msra.mxu0 0.0
      %1122 = vmatprep.subr.mxu0 0.0
      %1123 = vmatpush1.msra.mxu0 0.0
      %1124 = vmatprep.subr.mxu0 0.0
      %1125 = vmatpush1.msra.mxu0 0.0
      %1126 = vmatprep.subr.mxu0 0.0
      %1127 = vmatpush1.msra.mxu0 0.0
      %1128 = vmatprep.subr.mxu0 0.0
      %1129 = vmatpush1.msra.mxu0 0.0
      %1130 = vmatprep.subr.mxu0 0.0
      %1131 = vmatpush1.msra.mxu0 0.0
      %1132 = vmatprep.subr.mxu0 0.0
      %1133 = vmatpush1.msra.mxu0 0.0
      %1134 = vmatprep.subr.mxu0 0.0
      %1135 = vmatpush1.msra.mxu0 0.0
      %1136 = vmatprep.subr.mxu0 0.0
      %1137 = vmatpush1.msra.mxu0 0.0
      %1138 = vmatprep.subr.mxu0 0.0
      %1139 = vmatpush1.msra.mxu0 0.0
      %1140 = vmatprep.subr.mxu0 0.0
      %1141 = vmatpush1.msra.mxu0 0.0
      %1142 = vmatprep.subr.mxu0 0.0
      %1143 = vmatpush1.msra.mxu0 0.0
      %1144 = vmatprep.subr.mxu0 0.0
      %1145 = vmatpush1.msra.mxu0 0.0
      %1146 = vmatprep.mubr.f32.mxu0 0.0
      %1147 = vmatmul.mubr.f32.gmra.mrb[0].mxu0 %v1017
      %v1148 = vpop.f32.mrb[0].mxu0
      %v1149 = vadd.f32 0.0, %v1148
      %v1150 = vpop.f32.mrb[0].mxu0
      %1151 = vmatprep.mubr.f32.mxu0 0.0
      %1152 = vmatmul.mubr.f32.gmra.mrb[0].mxu0 %v1020
      %v1153 = vpop.f32.mrb[0].mxu0
      %v1154 = vadd.f32 0.0, %v1153
      %v1155 = vpop.f32.mrb[0].mxu0
      %1156 = vmatprep.mubr.f32.mxu0 0.0
      %1157 = vmatmul.mubr.f32.gmra.mrb[0].mxu0 %v1023
      %v1158 = vpop.f32.mrb[0].mxu0
      %v1159 = vadd.f32 0.0, %v1158
      %v1160 = vpop.f32.mrb[0].mxu0
      %1161 = vmatprep.mubr.f32.mxu0 0.0
      %1162 = vmatmul.mubr.f32.gmra.mrb[0].mxu0 %v1026
      %v1163 = vpop.f32.mrb[0].mxu0
      %v1164 = vadd.f32 0.0, %v1163
      %v1165 = vpop.f32.mrb[0].mxu0
      %1166 = vmatprep.mubr.f32.mxu0 0.0
      %1167 = vmatmul.mubr.f32.gmra.mrb[0].mxu0 %v1029
      %v1168 = vpop.f32.mrb[0].mxu0
      %v1169 = vadd.f32 0.0, %v1168
      %v1170 = vpop.f32.mrb[0].mxu0
      %1171 = vmatprep.mubr.f32.mxu0 0.0
      %1172 = vmatmul.mubr.f32.gmra.mrb[0].mxu0 %v1032
      %v1173 = vpop.f32.mrb[0].mxu0
      %v1174 = vadd.f32 0.0, %v1173
      %v1175 = vpop.f32.mrb[0].mxu0
      %1176 = vmatprep.mubr.f32.mxu0 0.0
      %1177 = vmatmul.mubr.f32.gmra.mrb[0].mxu0 %v1035
      %v1178 = vpop.f32.mrb[0].mxu0
      %v1179 = vadd.f32 0.0, %v1178
      %v1180 = vpop.f32.mrb[0].mxu0
      %1181 = vmatprep.mubr.f32.mxu0 0.0
      %1182 = vmatmul.mubr.f32.gmra.mrb[0].mxu0 %v1038
      %v1183 = vpop.f32.mrb[0].mxu0
      %v1184 = vadd.f32 0.0, %v1183
      %v1185 = vpop.f32.mrb[0].mxu0
      %1186 = vmatprep.mubr.f32.mxu0 0.0
      %1187 = vmatmul.mubr.f32.gmra.mrb[0].mxu0 %v1041
      %v1188 = vpop.f32.mrb[0].mxu0
      %v1189 = vadd.f32 0.0, %v1188
      %v1190 = vpop.f32.mrb[0].mxu0
      %1191 = vmatprep.mubr.f32.mxu0 0.0
      %1192 = vmatmul.mubr.f32.gmra.mrb[0].mxu0 %v1044
      %v1193 = vpop.f32.mrb[0].mxu0
      %v1194 = vadd.f32 0.0, %v1193
      %v1195 = vpop.f32.mrb[0].mxu0
      %1196 = vmatprep.mubr.f32.mxu0 0.0
      %1197 = vmatmul.mubr.f32.gmra.mrb[0].mxu0 %v1047
      %v1198 = vpop.f32.mrb[0].mxu0
      %v1199 = vadd.f32 0.0, %v1198
      %v1200 = vpop.f32.mrb[0].mxu0
      %1201 = vmatprep.mubr.f32.mxu0 0.0
      %1202 = vmatmul.mubr.f32.gmra.mrb[0].mxu0 %v1050
      %v1203 = vpop.f32.mrb[0].mxu0
      %v1204 = vadd.f32 0.0, %v1203
      %v1205 = vpop.f32.mrb[0].mxu0
      %1206 = vmatprep.mubr.f32.mxu0 0.0
      %1207 = vmatmul.mubr.f32.gmra.mrb[0].mxu0 %v1053
      %v1208 = vpop.f32.mrb[0].mxu0
      %v1209 = vadd.f32 0.0, %v1208
      %v1210 = vpop.f32.mrb[0].mxu0
      %1211 = vmatprep.mubr.f32.mxu0 0.0
      %1212 = vmatmul.mubr.f32.gmra.mrb[0].mxu0 %v1056
      %v1213 = vpop.f32.mrb[0].mxu0
      %v1214 = vadd.f32 0.0, %v1213
      %v1215 = vpop.f32.mrb[0].mxu0
      %1216 = vmatprep.mubr.f32.mxu0 0.0
      %1217 = vmatmul.mubr.f32.gmra.mrb[0].mxu0 %v1059
      %v1218 = vpop.f32.mrb[0].mxu0
      %v1219 = vadd.f32 0.0, %v1218
      %v1220 = vpop.f32.mrb[0].mxu0
      %1221 = vmatprep.mubr.f32.mxu0 0.0
      %1222 = vmatmul.mubr.f32.gmra.mrb[0].mxu0 %v1062
      %v1223 = vpop.f32.mrb[0].mxu0
      %v1224 = vadd.f32 0.0, %v1223
      %v1225 = vpop.f32.mrb[0].mxu0
      %1226 = vmatprep.mubr.f32.mxu0 0.0
      %1227 = vmatmul.mubr.f32.gmra.mrb[0].mxu0 %v1065
      %v1228 = vpop.f32.mrb[0].mxu0
      %v1229 = vadd.f32 0.0, %v1228
      %v1230 = vpop.f32.mrb[0].mxu0
      %1231 = vmatprep.mubr.f32.mxu0 0.0
      %1232 = vmatmul.mubr.f32.gmra.mrb[0].mxu0 %v1068
      %v1233 = vpop.f32.mrb[0].mxu0
      %v1234 = vadd.f32 0.0, %v1233
      %v1235 = vpop.f32.mrb[0].mxu0
      %1236 = vmatprep.mubr.f32.mxu0 0.0
      %1237 = vmatmul.mubr.f32.gmra.mrb[0].mxu0 %v1071
      %v1238 = vpop.f32.mrb[0].mxu0
      %v1239 = vadd.f32 0.0, %v1238
      %v1240 = vpop.f32.mrb[0].mxu0
      %1241 = vmatprep.mubr.f32.mxu0 0.0
      %1242 = vmatmul.mubr.f32.gmra.mrb[0].mxu0 %v1074
      %v1243 = vpop.f32.mrb[0].mxu0
      %v1244 = vadd.f32 0.0, %v1243
      %v1245 = vpop.f32.mrb[0].mxu0
      %1246 = vmatprep.mubr.f32.mxu0 0.0
      %1247 = vmatmul.mubr.f32.gmra.mrb[0].mxu0 %v1077
      %v1248 = vpop.f32.mrb[0].mxu0
      %v1249 = vadd.f32 0.0, %v1248
      %v1250 = vpop.f32.mrb[0].mxu0
      %1251 = vmatprep.mubr.f32.mxu0 0.0
      %1252 = vmatmul.mubr.f32.gmra.mrb[0].mxu0 %v1080
      %v1253 = vpop.f32.mrb[0].mxu0
      %v1254 = vadd.f32 0.0, %v1253
      %v1255 = vpop.f32.mrb[0].mxu0
      %1256 = vdwg.mxu0
      %v1257 = vld [vmem:[%s3] sm:$0x1]
      %v1259 = vlaneseq
      %v1260 = vshrl.u32 %v1259, 7
      %v1261 = vsub.s32 0, %v1260
      %v1262 = vrot.slane %v1257, %v1261
      %v1264 = vmul.f32 %v1149, %v1262
      %v1265 = vmul.f32 %v1154, %v1262
      %v1266 = vmul.f32 %v1159, %v1262
      %v1267 = vmul.f32 %v1164, %v1262
      %v1268 = vmul.f32 %v1169, %v1262
      %v1269 = vmul.f32 %v1174, %v1262
      %v1270 = vmul.f32 %v1179, %v1262
      %v1271 = vmul.f32 %v1184, %v1262
      %v1272 = vmul.f32 %v1189, %v1262
      %v1273 = vmul.f32 %v1194, %v1262
      %v1274 = vmul.f32 %v1199, %v1262
      %v1275 = vmul.f32 %v1204, %v1262
      %v1276 = vmul.f32 %v1209, %v1262
      %v1277 = vmul.f32 %v1214, %v1262
      %v1278 = vmul.f32 %v1219, %v1262
      %v1279 = vmul.f32 %v1224, %v1262
      %v1280 = vmul.f32 %v1229, %v1262
      %v1281 = vmul.f32 %v1234, %v1262
      %v1282 = vmul.f32 %v1239, %v1262
      %v1283 = vmul.f32 %v1244, %v1262
      %v1284 = vmul.f32 %v1249, %v1262
      %v1285 = vmul.f32 %v1254, %v1262
      %v1286 = vld [vmem:[%s4] sm:$0x1]
      %v1288 = vlaneseq
      %v1289 = vshrl.u32 %v1288, 7
      %v1290 = vsub.s32 0, %v1289
      %v1291 = vrot.slane %v1286, %v1290
      %v1293 = vadd.f32 %v1264, %v1291
      %v1294 = vadd.f32 %v1265, %v1291
      %v1295 = vadd.f32 %v1266, %v1291
      %v1296 = vadd.f32 %v1267, %v1291
      %v1297 = vadd.f32 %v1268, %v1291
      %v1298 = vadd.f32 %v1269, %v1291
      %v1299 = vadd.f32 %v1270, %v1291
      %v1300 = vadd.f32 %v1271, %v1291
      %v1301 = vadd.f32 %v1272, %v1291
      %v1302 = vadd.f32 %v1273, %v1291
      %v1303 = vadd.f32 %v1274, %v1291
      %v1304 = vadd.f32 %v1275, %v1291
      %v1305 = vadd.f32 %v1276, %v1291
      %v1306 = vadd.f32 %v1277, %v1291
      %v1307 = vadd.f32 %v1278, %v1291
      %v1308 = vadd.f32 %v1279, %v1291
      %v1309 = vadd.f32 %v1280, %v1291
      %v1310 = vadd.f32 %v1281, %v1291
      %v1311 = vadd.f32 %v1282, %v1291
      %v1312 = vadd.f32 %v1283, %v1291
      %v1313 = vadd.f32 %v1284, %v1291
      %v1314 = vadd.f32 %v1285, %v1291
      %v1315 = vmax.f32 %v1293, 0.0
      %v1316 = vmax.f32 %v1294, 0.0
      %v1317 = vmax.f32 %v1295, 0.0
      %v1318 = vmax.f32 %v1296, 0.0
      %v1319 = vmax.f32 %v1297, 0.0
      %v1320 = vmax.f32 %v1298, 0.0
      %v1321 = vmax.f32 %v1299, 0.0
      %v1322 = vmax.f32 %v1300, 0.0
      %v1323 = vmax.f32 %v1301, 0.0
      %v1324 = vmax.f32 %v1302, 0.0
      %v1325 = vmax.f32 %v1303, 0.0
      %v1326 = vmax.f32 %v1304, 0.0
      %v1327 = vmax.f32 %v1305, 0.0
      %v1328 = vmax.f32 %v1306, 0.0
      %v1329 = vmax.f32 %v1307, 0.0
      %v1330 = vmax.f32 %v1308, 0.0
      %v1331 = vmax.f32 %v1309, 0.0
      %v1332 = vmax.f32 %v1310, 0.0
      %v1333 = vmax.f32 %v1311, 0.0
      %v1334 = vmax.f32 %v1312, 0.0
      %v1335 = vmax.f32 %v1313, 0.0
      %v1336 = vmax.f32 %v1314, 0.0
      %s1337 = scalar_lea.vmem %s1, 176
      %v1338 = vld [vmem:[%s1337] sm:$0xff]
      %v1339 = vld [vmem:[%s1337 + $0x8] sm:$0xff]
      %v1340 = vld [vmem:[%s1337 + $0x10] sm:$0xff]
      %v1341 = vld [vmem:[%s1337 + $0x18] sm:$0xff]
      %v1342 = vld [vmem:[%s1337 + $0x20] sm:$0xff]
      %v1343 = vld [vmem:[%s1337 + $0x28] sm:$0xff]
      %v1344 = vld [vmem:[%s1337 + $0x30] sm:$0xff]
      %v1345 = vld [vmem:[%s1337 + $0x38] sm:$0xff]
      %v1346 = vld [vmem:[%s1337 + $0x40] sm:$0xff]
      %v1347 = vld [vmem:[%s1337 + $0x48] sm:$0xff]
      %v1348 = vld [vmem:[%s1337 + $0x50] sm:$0xff]
      %v1349 = vld [vmem:[%s1337 + $0x58] sm:$0xff]
      %v1350 = vld [vmem:[%s1337 + $0x60] sm:$0xff]
      %v1351 = vld [vmem:[%s1337 + $0x68] sm:$0xff]
      %v1352 = vld [vmem:[%s1337 + $0x70] sm:$0xff]
      %v1353 = vld [vmem:[%s1337 + $0x78] sm:$0xff]
      %v1354 = vld [vmem:[%s1337 + $0x80] sm:$0xff]
      %v1355 = vld [vmem:[%s1337 + $0x88] sm:$0xff]
      %v1356 = vld [vmem:[%s1337 + $0x90] sm:$0xff]
      %v1357 = vld [vmem:[%s1337 + $0x98] sm:$0xff]
      %v1358 = vld [vmem:[%s1337 + $0xa0] sm:$0xff]
      %v1359 = vld [vmem:[%s1337 + $0xa8] sm:$0xff]
      %1361 = vset.pattern.permute.xlu0 0
      %1362 = vperm.xlu0 %1361, %v1338
      %v1363 = vpop.permute.xlu0 %1362
      %1366 = vset.pattern.permute.xlu0 0
      %1367 = vperm.xlu0 %1366, %v1339
      %v1368 = vpop.permute.xlu0 %1367
      %1371 = vset.pattern.permute.xlu0 0
      %1372 = vperm.xlu0 %1371, %v1340
      %v1373 = vpop.permute.xlu0 %1372
      %1376 = vset.pattern.permute.xlu0 0
      %1377 = vperm.xlu0 %1376, %v1341
      %v1378 = vpop.permute.xlu0 %1377
      %1381 = vset.pattern.permute.xlu0 0
      %1382 = vperm.xlu0 %1381, %v1342
      %v1383 = vpop.permute.xlu0 %1382
      %1386 = vset.pattern.permute.xlu0 0
      %1387 = vperm.xlu0 %1386, %v1343
      %v1388 = vpop.permute.xlu0 %1387
      %1391 = vset.pattern.permute.xlu0 0
      %1392 = vperm.xlu0 %1391, %v1344
      %v1393 = vpop.permute.xlu0 %1392
      %1396 = vset.pattern.permute.xlu0 0
      %1397 = vperm.xlu0 %1396, %v1345
      %v1398 = vpop.permute.xlu0 %1397
      %1401 = vset.pattern.permute.xlu0 0
      %1402 = vperm.xlu0 %1401, %v1346
      %v1403 = vpop.permute.xlu0 %1402
      %1406 = vset.pattern.permute.xlu0 0
      %1407 = vperm.xlu0 %1406, %v1347
      %v1408 = vpop.permute.xlu0 %1407
      %1411 = vset.pattern.permute.xlu0 0
      %1412 = vperm.xlu0 %1411, %v1348
      %v1413 = vpop.permute.xlu0 %1412
      %1416 = vset.pattern.permute.xlu0 0
      %1417 = vperm.xlu0 %1416, %v1349
      %v1418 = vpop.permute.xlu0 %1417
      %1421 = vset.pattern.permute.xlu0 0
      %1422 = vperm.xlu0 %1421, %v1350
      %v1423 = vpop.permute.xlu0 %1422
      %1426 = vset.pattern.permute.xlu0 0
      %1427 = vperm.xlu0 %1426, %v1351
      %v1428 = vpop.permute.xlu0 %1427
      %1431 = vset.pattern.permute.xlu0 0
      %1432 = vperm.xlu0 %1431, %v1352
      %v1433 = vpop.permute.xlu0 %1432
      %1436 = vset.pattern.permute.xlu0 0
      %1437 = vperm.xlu0 %1436, %v1353
      %v1438 = vpop.permute.xlu0 %1437
      %1441 = vset.pattern.permute.xlu0 0
      %1442 = vperm.xlu0 %1441, %v1354
      %v1443 = vpop.permute.xlu0 %1442
      %1446 = vset.pattern.permute.xlu0 0
      %1447 = vperm.xlu0 %1446, %v1355
      %v1448 = vpop.permute.xlu0 %1447
      %1451 = vset.pattern.permute.xlu0 0
      %1452 = vperm.xlu0 %1451, %v1356
      %v1453 = vpop.permute.xlu0 %1452
      %1456 = vset.pattern.permute.xlu0 0
      %1457 = vperm.xlu0 %1456, %v1357
      %v1458 = vpop.permute.xlu0 %1457
      %1461 = vset.pattern.permute.xlu0 0
      %1462 = vperm.xlu0 %1461, %v1358
      %v1463 = vpop.permute.xlu0 %1462
      %1466 = vset.pattern.permute.xlu0 0
      %1467 = vperm.xlu0 %1466, %v1359
      %v1468 = vpop.permute.xlu0 %1467
      %v1470 = vmul.f32 %v1315, %v1363
      %v1471 = vmul.f32 %v1316, %v1368
      %v1472 = vmul.f32 %v1317, %v1373
      %v1473 = vmul.f32 %v1318, %v1378
      %v1474 = vmul.f32 %v1319, %v1383
      %v1475 = vmul.f32 %v1320, %v1388
      %v1476 = vmul.f32 %v1321, %v1393
      %v1477 = vmul.f32 %v1322, %v1398
      %v1478 = vmul.f32 %v1323, %v1403
      %v1479 = vmul.f32 %v1324, %v1408
      %v1480 = vmul.f32 %v1325, %v1413
      %v1481 = vmul.f32 %v1326, %v1418
      %v1482 = vmul.f32 %v1327, %v1423
      %v1483 = vmul.f32 %v1328, %v1428
      %v1484 = vmul.f32 %v1329, %v1433
      %v1485 = vmul.f32 %v1330, %v1438
      %v1486 = vmul.f32 %v1331, %v1443
      %v1487 = vmul.f32 %v1332, %v1448
      %v1488 = vmul.f32 %v1333, %v1453
      %v1489 = vmul.f32 %v1334, %v1458
      %v1490 = vmul.f32 %v1335, %v1463
      %v1491 = vmul.f32 %v1336, %v1468
      %s1492 = scalar_lea.vmem [#allocation2], 176
      %1493 = vst.msk [vmem:[%s1492] sm:$0xff] %vm968, %v1470
      %1494 = vst.msk [vmem:[%s1492 + $0x8] sm:$0xff] %vm968, %v1471
      %1495 = vst.msk [vmem:[%s1492 + $0x10] sm:$0xff] %vm968, %v1472
      %1496 = vst.msk [vmem:[%s1492 + $0x18] sm:$0xff] %vm968, %v1473
      %1497 = vst.msk [vmem:[%s1492 + $0x20] sm:$0xff] %vm968, %v1474
      %1498 = vst.msk [vmem:[%s1492 + $0x28] sm:$0xff] %vm968, %v1475
      %1499 = vst.msk [vmem:[%s1492 + $0x30] sm:$0xff] %vm968, %v1476
      %1500 = vst.msk [vmem:[%s1492 + $0x38] sm:$0xff] %vm968, %v1477
      %1501 = vst.msk [vmem:[%s1492 + $0x40] sm:$0xff] %vm968, %v1478
      %1502 = vst.msk [vmem:[%s1492 + $0x48] sm:$0xff] %vm968, %v1479
      %1503 = vst.msk [vmem:[%s1492 + $0x50] sm:$0xff] %vm968, %v1480
      %1504 = vst.msk [vmem:[%s1492 + $0x58] sm:$0xff] %vm968, %v1481
      %1505 = vst.msk [vmem:[%s1492 + $0x60] sm:$0xff] %vm968, %v1482
      %1506 = vst.msk [vmem:[%s1492 + $0x68] sm:$0xff] %vm968, %v1483
      %1507 = vst.msk [vmem:[%s1492 + $0x70] sm:$0xff] %vm968, %v1484
      %1508 = vst.msk [vmem:[%s1492 + $0x78] sm:$0xff] %vm968, %v1485
      %1509 = vst.msk [vmem:[%s1492 + $0x80] sm:$0xff] %vm968, %v1486
      %1510 = vst.msk [vmem:[%s1492 + $0x88] sm:$0xff] %vm968, %v1487
      %1511 = vst.msk [vmem:[%s1492 + $0x90] sm:$0xff] %vm968, %v1488
      %1512 = vst.msk [vmem:[%s1492 + $0x98] sm:$0xff] %vm968, %v1489
      %1513 = vst.msk [vmem:[%s1492 + $0xa0] sm:$0xff] %vm968, %v1490
      %1514 = vst.msk [vmem:[%s1492 + $0xa8] sm:$0xff] %vm968, %v1491
      %s1515 = scalar_lea.vmem %s462, 352
      %v1516 = vld [vmem:[%s1515] sm:$0xff]
      %v1517 = vld [vmem:[%s1515 + $0x8] sm:$0xff]
      %v1518 = vld [vmem:[%s1515 + $0x10] sm:$0xff]
      %v1519 = vld [vmem:[%s1515 + $0x18] sm:$0xff]
      %v1520 = vld [vmem:[%s1515 + $0x20] sm:$0xff]
      %v1521 = vld [vmem:[%s1515 + $0x28] sm:$0xff]
      %v1522 = vld [vmem:[%s1515 + $0x30] sm:$0xff]
      %v1523 = vld [vmem:[%s1515 + $0x38] sm:$0xff]
      %v1524 = vld [vmem:[%s1515 + $0x40] sm:$0xff]
      %v1525 = vld [vmem:[%s1515 + $0x48] sm:$0xff]
      %v1526 = vld [vmem:[%s1515 + $0x50] sm:$0xff]
      %v1527 = vld [vmem:[%s1515 + $0x58] sm:$0xff]
      %v1528 = vld [vmem:[%s1515 + $0x60] sm:$0xff]
      %v1529 = vld [vmem:[%s1515 + $0x68] sm:$0xff]
      %v1530 = vld [vmem:[%s1515 + $0x70] sm:$0xff]
      %v1531 = vld [vmem:[%s1515 + $0x78] sm:$0xff]
      %v1532 = vld [vmem:[%s1515 + $0x80] sm:$0xff]
      %v1533 = vld [vmem:[%s1515 + $0x88] sm:$0xff]
      %v1534 = vld [vmem:[%s1515 + $0x90] sm:$0xff]
      %v1535 = vld [vmem:[%s1515 + $0x98] sm:$0xff]
      %v1536 = vld [vmem:[%s1515 + $0xa0] sm:$0xff]
      %v1537 = vld [vmem:[%s1515 + $0xa8] sm:$0xff]
      %v1538 = vld [vmem:[%s2] sm:$0xff]
      %v1539 = vld [vmem:[%s2 + $0x8] sm:$0xff]
      %v1541 = vsel %vm492, %v1516, 0
      %v1544 = vsel %vm492, %v1517, 0
      %v1547 = vsel %vm492, %v1518, 0
      %v1550 = vsel %vm492, %v1519, 0
      %v1553 = vsel %vm492, %v1520, 0
      %v1556 = vsel %vm492, %v1521, 0
      %v1559 = vsel %vm492, %v1522, 0
      %v1562 = vsel %vm492, %v1523, 0
      %v1565 = vsel %vm492, %v1524, 0
      %v1568 = vsel %vm492, %v1525, 0
      %v1571 = vsel %vm492, %v1526, 0
      %v1574 = vsel %vm492, %v1527, 0
      %v1577 = vsel %vm492, %v1528, 0
      %v1580 = vsel %vm492, %v1529, 0
      %v1583 = vsel %vm492, %v1530, 0
      %v1586 = vsel %vm492, %v1531, 0
      %v1589 = vsel %vm492, %v1532, 0
      %v1592 = vsel %vm492, %v1533, 0
      %v1595 = vsel %vm492, %v1534, 0
      %v1598 = vsel %vm492, %v1535, 0
      %v1601 = vsel %vm492, %v1536, 0
      %v1604 = vsel %vm492, %v1537, 0
      %1606 = vmatprep.subr.mxu0 0.0
      %1607 = vmatpush1.msra.mxu0 %v1538
      %1608 = vmatprep.subr.mxu0 0.0
      %1609 = vmatpush1.msra.mxu0 %v1539
      %1610 = vmatprep.subr.mxu0 0.0
      %1611 = vmatpush1.msra.mxu0 0.0
      %1612 = vmatprep.subr.mxu0 0.0
      %1613 = vmatpush1.msra.mxu0 0.0
      %1614 = vmatprep.subr.mxu0 0.0
      %1615 = vmatpush1.msra.mxu0 0.0
      %1616 = vmatprep.subr.mxu0 0.0
      %1617 = vmatpush1.msra.mxu0 0.0
      %1618 = vmatprep.subr.mxu0 0.0
      %1619 = vmatpush1.msra.mxu0 0.0
      %1620 = vmatprep.subr.mxu0 0.0
      %1621 = vmatpush1.msra.mxu0 0.0
      %1622 = vmatprep.subr.mxu0 0.0
      %1623 = vmatpush1.msra.mxu0 0.0
      %1624 = vmatprep.subr.mxu0 0.0
      %1625 = vmatpush1.msra.mxu0 0.0
      %1626 = vmatprep.subr.mxu0 0.0
      %1627 = vmatpush1.msra.mxu0 0.0
      %1628 = vmatprep.subr.mxu0 0.0
      %1629 = vmatpush1.msra.mxu0 0.0
      %1630 = vmatprep.subr.mxu0 0.0
      %1631 = vmatpush1.msra.mxu0 0.0
      %1632 = vmatprep.subr.mxu0 0.0
      %1633 = vmatpush1.msra.mxu0 0.0
      %1634 = vmatprep.subr.mxu0 0.0
      %1635 = vmatpush1.msra.mxu0 0.0
      %1636 = vmatprep.subr.mxu0 0.0
      %1637 = vmatpush1.msra.mxu0 0.0
      %1638 = vmatprep.subr.mxu0 0.0
      %1639 = vmatpush1.msra.mxu0 0.0
      %1640 = vmatprep.subr.mxu0 0.0
      %1641 = vmatpush1.msra.mxu0 0.0
      %1642 = vmatprep.subr.mxu0 0.0
      %1643 = vmatpush1.msra.mxu0 0.0
      %1644 = vmatprep.subr.mxu0 0.0
      %1645 = vmatpush1.msra.mxu0 0.0
      %1646 = vmatprep.subr.mxu0 0.0
      %1647 = vmatpush1.msra.mxu0 0.0
      %1648 = vmatprep.subr.mxu0 0.0
      %1649 = vmatpush1.msra.mxu0 0.0
      %1650 = vmatprep.subr.mxu0 0.0
      %1651 = vmatpush1.msra.mxu0 0.0
      %1652 = vmatprep.subr.mxu0 0.0
      %1653 = vmatpush1.msra.mxu0 0.0
      %1654 = vmatprep.subr.mxu0 0.0
      %1655 = vmatpush1.msra.mxu0 0.0
      %1656 = vmatprep.subr.mxu0 0.0
      %1657 = vmatpush1.msra.mxu0 0.0
      %1658 = vmatprep.subr.mxu0 0.0
      %1659 = vmatpush1.msra.mxu0 0.0
      %1660 = vmatprep.subr.mxu0 0.0
      %1661 = vmatpush1.msra.mxu0 0.0
      %1662 = vmatprep.subr.mxu0 0.0
      %1663 = vmatpush1.msra.mxu0 0.0
      %1664 = vmatprep.subr.mxu0 0.0
      %1665 = vmatpush1.msra.mxu0 0.0
      %1666 = vmatprep.subr.mxu0 0.0
      %1667 = vmatpush1.msra.mxu0 0.0
      %1668 = vmatprep.subr.mxu0 0.0
      %1669 = vmatpush1.msra.mxu0 0.0
      %1670 = vmatprep.mubr.f32.mxu0 0.0
      %1671 = vmatmul.mubr.f32.gmra.mrb[0].mxu0 %v1541
      %v1672 = vpop.f32.mrb[0].mxu0
      %v1673 = vadd.f32 0.0, %v1672
      %v1674 = vpop.f32.mrb[0].mxu0
      %1675 = vmatprep.mubr.f32.mxu0 0.0
      %1676 = vmatmul.mubr.f32.gmra.mrb[0].mxu0 %v1544
      %v1677 = vpop.f32.mrb[0].mxu0
      %v1678 = vadd.f32 0.0, %v1677
      %v1679 = vpop.f32.mrb[0].mxu0
      %1680 = vmatprep.mubr.f32.mxu0 0.0
      %1681 = vmatmul.mubr.f32.gmra.mrb[0].mxu0 %v1547
      %v1682 = vpop.f32.mrb[0].mxu0
      %v1683 = vadd.f32 0.0, %v1682
      %v1684 = vpop.f32.mrb[0].mxu0
      %1685 = vmatprep.mubr.f32.mxu0 0.0
      %1686 = vmatmul.mubr.f32.gmra.mrb[0].mxu0 %v1550
      %v1687 = vpop.f32.mrb[0].mxu0
      %v1688 = vadd.f32 0.0, %v1687
      %v1689 = vpop.f32.mrb[0].mxu0
      %1690 = vmatprep.mubr.f32.mxu0 0.0
      %1691 = vmatmul.mubr.f32.gmra.mrb[0].mxu0 %v1553
      %v1692 = vpop.f32.mrb[0].mxu0
      %v1693 = vadd.f32 0.0, %v1692
      %v1694 = vpop.f32.mrb[0].mxu0
      %1695 = vmatprep.mubr.f32.mxu0 0.0
      %1696 = vmatmul.mubr.f32.gmra.mrb[0].mxu0 %v1556
      %v1697 = vpop.f32.mrb[0].mxu0
      %v1698 = vadd.f32 0.0, %v1697
      %v1699 = vpop.f32.mrb[0].mxu0
      %1700 = vmatprep.mubr.f32.mxu0 0.0
      %1701 = vmatmul.mubr.f32.gmra.mrb[0].mxu0 %v1559
      %v1702 = vpop.f32.mrb[0].mxu0
      %v1703 = vadd.f32 0.0, %v1702
      %v1704 = vpop.f32.mrb[0].mxu0
      %1705 = vmatprep.mubr.f32.mxu0 0.0
      %1706 = vmatmul.mubr.f32.gmra.mrb[0].mxu0 %v1562
      %v1707 = vpop.f32.mrb[0].mxu0
      %v1708 = vadd.f32 0.0, %v1707
      %v1709 = vpop.f32.mrb[0].mxu0
      %1710 = vmatprep.mubr.f32.mxu0 0.0
      %1711 = vmatmul.mubr.f32.gmra.mrb[0].mxu0 %v1565
      %v1712 = vpop.f32.mrb[0].mxu0
      %v1713 = vadd.f32 0.0, %v1712
      %v1714 = vpop.f32.mrb[0].mxu0
      %1715 = vmatprep.mubr.f32.mxu0 0.0
      %1716 = vmatmul.mubr.f32.gmra.mrb[0].mxu0 %v1568
      %v1717 = vpop.f32.mrb[0].mxu0
      %v1718 = vadd.f32 0.0, %v1717
      %v1719 = vpop.f32.mrb[0].mxu0
      %1720 = vmatprep.mubr.f32.mxu0 0.0
      %1721 = vmatmul.mubr.f32.gmra.mrb[0].mxu0 %v1571
      %v1722 = vpop.f32.mrb[0].mxu0
      %v1723 = vadd.f32 0.0, %v1722
      %v1724 = vpop.f32.mrb[0].mxu0
      %1725 = vmatprep.mubr.f32.mxu0 0.0
      %1726 = vmatmul.mubr.f32.gmra.mrb[0].mxu0 %v1574
      %v1727 = vpop.f32.mrb[0].mxu0
      %v1728 = vadd.f32 0.0, %v1727
      %v1729 = vpop.f32.mrb[0].mxu0
      %1730 = vmatprep.mubr.f32.mxu0 0.0
      %1731 = vmatmul.mubr.f32.gmra.mrb[0].mxu0 %v1577
      %v1732 = vpop.f32.mrb[0].mxu0
      %v1733 = vadd.f32 0.0, %v1732
      %v1734 = vpop.f32.mrb[0].mxu0
      %1735 = vmatprep.mubr.f32.mxu0 0.0
      %1736 = vmatmul.mubr.f32.gmra.mrb[0].mxu0 %v1580
      %v1737 = vpop.f32.mrb[0].mxu0
      %v1738 = vadd.f32 0.0, %v1737
      %v1739 = vpop.f32.mrb[0].mxu0
      %1740 = vmatprep.mubr.f32.mxu0 0.0
      %1741 = vmatmul.mubr.f32.gmra.mrb[0].mxu0 %v1583
      %v1742 = vpop.f32.mrb[0].mxu0
      %v1743 = vadd.f32 0.0, %v1742
      %v1744 = vpop.f32.mrb[0].mxu0
      %1745 = vmatprep.mubr.f32.mxu0 0.0
      %1746 = vmatmul.mubr.f32.gmra.mrb[0].mxu0 %v1586
      %v1747 = vpop.f32.mrb[0].mxu0
      %v1748 = vadd.f32 0.0, %v1747
      %v1749 = vpop.f32.mrb[0].mxu0
      %1750 = vmatprep.mubr.f32.mxu0 0.0
      %1751 = vmatmul.mubr.f32.gmra.mrb[0].mxu0 %v1589
      %v1752 = vpop.f32.mrb[0].mxu0
      %v1753 = vadd.f32 0.0, %v1752
      %v1754 = vpop.f32.mrb[0].mxu0
      %1755 = vmatprep.mubr.f32.mxu0 0.0
      %1756 = vmatmul.mubr.f32.gmra.mrb[0].mxu0 %v1592
      %v1757 = vpop.f32.mrb[0].mxu0
      %v1758 = vadd.f32 0.0, %v1757
      %v1759 = vpop.f32.mrb[0].mxu0
      %1760 = vmatprep.mubr.f32.mxu0 0.0
      %1761 = vmatmul.mubr.f32.gmra.mrb[0].mxu0 %v1595
      %v1762 = vpop.f32.mrb[0].mxu0
      %v1763 = vadd.f32 0.0, %v1762
      %v1764 = vpop.f32.mrb[0].mxu0
      %1765 = vmatprep.mubr.f32.mxu0 0.0
      %1766 = vmatmul.mubr.f32.gmra.mrb[0].mxu0 %v1598
      %v1767 = vpop.f32.mrb[0].mxu0
      %v1768 = vadd.f32 0.0, %v1767
      %v1769 = vpop.f32.mrb[0].mxu0
      %1770 = vmatprep.mubr.f32.mxu0 0.0
      %1771 = vmatmul.mubr.f32.gmra.mrb[0].mxu0 %v1601
      %v1772 = vpop.f32.mrb[0].mxu0
      %v1773 = vadd.f32 0.0, %v1772
      %v1774 = vpop.f32.mrb[0].mxu0
      %1775 = vmatprep.mubr.f32.mxu0 0.0
      %1776 = vmatmul.mubr.f32.gmra.mrb[0].mxu0 %v1604
      %v1777 = vpop.f32.mrb[0].mxu0
      %v1778 = vadd.f32 0.0, %v1777
      %v1779 = vpop.f32.mrb[0].mxu0
      %1780 = vdwg.mxu0
      %v1781 = vld [vmem:[%s3] sm:$0x1]
      %v1783 = vlaneseq
      %v1784 = vshrl.u32 %v1783, 7
      %v1785 = vsub.s32 0, %v1784
      %v1786 = vrot.slane %v1781, %v1785
      %v1788 = vmul.f32 %v1673, %v1786
      %v1789 = vmul.f32 %v1678, %v1786
      %v1790 = vmul.f32 %v1683, %v1786
      %v1791 = vmul.f32 %v1688, %v1786
      %v1792 = vmul.f32 %v1693, %v1786
      %v1793 = vmul.f32 %v1698, %v1786
      %v1794 = vmul.f32 %v1703, %v1786
      %v1795 = vmul.f32 %v1708, %v1786
      %v1796 = vmul.f32 %v1713, %v1786
      %v1797 = vmul.f32 %v1718, %v1786
      %v1798 = vmul.f32 %v1723, %v1786
      %v1799 = vmul.f32 %v1728, %v1786
      %v1800 = vmul.f32 %v1733, %v1786
      %v1801 = vmul.f32 %v1738, %v1786
      %v1802 = vmul.f32 %v1743, %v1786
      %v1803 = vmul.f32 %v1748, %v1786
      %v1804 = vmul.f32 %v1753, %v1786
      %v1805 = vmul.f32 %v1758, %v1786
      %v1806 = vmul.f32 %v1763, %v1786
      %v1807 = vmul.f32 %v1768, %v1786
      %v1808 = vmul.f32 %v1773, %v1786
      %v1809 = vmul.f32 %v1778, %v1786
      %v1810 = vld [vmem:[%s4] sm:$0x1]
      %v1812 = vlaneseq
      %v1813 = vshrl.u32 %v1812, 7
      %v1814 = vsub.s32 0, %v1813
      %v1815 = vrot.slane %v1810, %v1814
      %v1817 = vadd.f32 %v1788, %v1815
      %v1818 = vadd.f32 %v1789, %v1815
      %v1819 = vadd.f32 %v1790, %v1815
      %v1820 = vadd.f32 %v1791, %v1815
      %v1821 = vadd.f32 %v1792, %v1815
      %v1822 = vadd.f32 %v1793, %v1815
      %v1823 = vadd.f32 %v1794, %v1815
      %v1824 = vadd.f32 %v1795, %v1815
      %v1825 = vadd.f32 %v1796, %v1815
      %v1826 = vadd.f32 %v1797, %v1815
      %v1827 = vadd.f32 %v1798, %v1815
      %v1828 = vadd.f32 %v1799, %v1815
      %v1829 = vadd.f32 %v1800, %v1815
      %v1830 = vadd.f32 %v1801, %v1815
      %v1831 = vadd.f32 %v1802, %v1815
      %v1832 = vadd.f32 %v1803, %v1815
      %v1833 = vadd.f32 %v1804, %v1815
      %v1834 = vadd.f32 %v1805, %v1815
      %v1835 = vadd.f32 %v1806, %v1815
      %v1836 = vadd.f32 %v1807, %v1815
      %v1837 = vadd.f32 %v1808, %v1815
      %v1838 = vadd.f32 %v1809, %v1815
      %v1839 = vmax.f32 %v1817, 0.0
      %v1840 = vmax.f32 %v1818, 0.0
      %v1841 = vmax.f32 %v1819, 0.0
      %v1842 = vmax.f32 %v1820, 0.0
      %v1843 = vmax.f32 %v1821, 0.0
      %v1844 = vmax.f32 %v1822, 0.0
      %v1845 = vmax.f32 %v1823, 0.0
      %v1846 = vmax.f32 %v1824, 0.0
      %v1847 = vmax.f32 %v1825, 0.0
      %v1848 = vmax.f32 %v1826, 0.0
      %v1849 = vmax.f32 %v1827, 0.0
      %v1850 = vmax.f32 %v1828, 0.0
      %v1851 = vmax.f32 %v1829, 0.0
      %v1852 = vmax.f32 %v1830, 0.0
      %v1853 = vmax.f32 %v1831, 0.0
      %v1854 = vmax.f32 %v1832, 0.0
      %v1855 = vmax.f32 %v1833, 0.0
      %v1856 = vmax.f32 %v1834, 0.0
      %v1857 = vmax.f32 %v1835, 0.0
      %v1858 = vmax.f32 %v1836, 0.0
      %v1859 = vmax.f32 %v1837, 0.0
      %v1860 = vmax.f32 %v1838, 0.0
      %s1861 = scalar_lea.vmem %s1, 352
      %v1862 = vld [vmem:[%s1861] sm:$0xff]
      %v1863 = vld [vmem:[%s1861 + $0x8] sm:$0xff]
      %v1864 = vld [vmem:[%s1861 + $0x10] sm:$0xff]
      %v1865 = vld [vmem:[%s1861 + $0x18] sm:$0xff]
      %v1866 = vld [vmem:[%s1861 + $0x20] sm:$0xff]
      %v1867 = vld [vmem:[%s1861 + $0x28] sm:$0xff]
      %v1868 = vld [vmem:[%s1861 + $0x30] sm:$0xff]
      %v1869 = vld [vmem:[%s1861 + $0x38] sm:$0xff]
      %v1870 = vld [vmem:[%s1861 + $0x40] sm:$0xff]
      %v1871 = vld [vmem:[%s1861 + $0x48] sm:$0xff]
      %v1872 = vld [vmem:[%s1861 + $0x50] sm:$0xff]
      %v1873 = vld [vmem:[%s1861 + $0x58] sm:$0xff]
      %v1874 = vld [vmem:[%s1861 + $0x60] sm:$0xff]
      %v1875 = vld [vmem:[%s1861 + $0x68] sm:$0xff]
      %v1876 = vld [vmem:[%s1861 + $0x70] sm:$0xff]
      %v1877 = vld [vmem:[%s1861 + $0x78] sm:$0xff]
      %v1878 = vld [vmem:[%s1861 + $0x80] sm:$0xff]
      %v1879 = vld [vmem:[%s1861 + $0x88] sm:$0xff]
      %v1880 = vld [vmem:[%s1861 + $0x90] sm:$0xff]
      %v1881 = vld [vmem:[%s1861 + $0x98] sm:$0xff]
      %v1882 = vld [vmem:[%s1861 + $0xa0] sm:$0xff]
      %v1883 = vld [vmem:[%s1861 + $0xa8] sm:$0xff]
      %1885 = vset.pattern.permute.xlu0 0
      %1886 = vperm.xlu0 %1885, %v1862
      %v1887 = vpop.permute.xlu0 %1886
      %1890 = vset.pattern.permute.xlu0 0
      %1891 = vperm.xlu0 %1890, %v1863
      %v1892 = vpop.permute.xlu0 %1891
      %1895 = vset.pattern.permute.xlu0 0
      %1896 = vperm.xlu0 %1895, %v1864
      %v1897 = vpop.permute.xlu0 %1896
      %1900 = vset.pattern.permute.xlu0 0
      %1901 = vperm.xlu0 %1900, %v1865
      %v1902 = vpop.permute.xlu0 %1901
      %1905 = vset.pattern.permute.xlu0 0
      %1906 = vperm.xlu0 %1905, %v1866
      %v1907 = vpop.permute.xlu0 %1906
      %1910 = vset.pattern.permute.xlu0 0
      %1911 = vperm.xlu0 %1910, %v1867
      %v1912 = vpop.permute.xlu0 %1911
      %1915 = vset.pattern.permute.xlu0 0
      %1916 = vperm.xlu0 %1915, %v1868
      %v1917 = vpop.permute.xlu0 %1916
      %1920 = vset.pattern.permute.xlu0 0
      %1921 = vperm.xlu0 %1920, %v1869
      %v1922 = vpop.permute.xlu0 %1921
      %1925 = vset.pattern.permute.xlu0 0
      %1926 = vperm.xlu0 %1925, %v1870
      %v1927 = vpop.permute.xlu0 %1926
      %1930 = vset.pattern.permute.xlu0 0
      %1931 = vperm.xlu0 %1930, %v1871
      %v1932 = vpop.permute.xlu0 %1931
      %1935 = vset.pattern.permute.xlu0 0
      %1936 = vperm.xlu0 %1935, %v1872
      %v1937 = vpop.permute.xlu0 %1936
      %1940 = vset.pattern.permute.xlu0 0
      %1941 = vperm.xlu0 %1940, %v1873
      %v1942 = vpop.permute.xlu0 %1941
      %1945 = vset.pattern.permute.xlu0 0
      %1946 = vperm.xlu0 %1945, %v1874
      %v1947 = vpop.permute.xlu0 %1946
      %1950 = vset.pattern.permute.xlu0 0
      %1951 = vperm.xlu0 %1950, %v1875
      %v1952 = vpop.permute.xlu0 %1951
      %1955 = vset.pattern.permute.xlu0 0
      %1956 = vperm.xlu0 %1955, %v1876
      %v1957 = vpop.permute.xlu0 %1956
      %1960 = vset.pattern.permute.xlu0 0
      %1961 = vperm.xlu0 %1960, %v1877
      %v1962 = vpop.permute.xlu0 %1961
      %1965 = vset.pattern.permute.xlu0 0
      %1966 = vperm.xlu0 %1965, %v1878
      %v1967 = vpop.permute.xlu0 %1966
      %1970 = vset.pattern.permute.xlu0 0
      %1971 = vperm.xlu0 %1970, %v1879
      %v1972 = vpop.permute.xlu0 %1971
      %1975 = vset.pattern.permute.xlu0 0
      %1976 = vperm.xlu0 %1975, %v1880
      %v1977 = vpop.permute.xlu0 %1976
      %1980 = vset.pattern.permute.xlu0 0
      %1981 = vperm.xlu0 %1980, %v1881
      %v1982 = vpop.permute.xlu0 %1981
      %1985 = vset.pattern.permute.xlu0 0
      %1986 = vperm.xlu0 %1985, %v1882
      %v1987 = vpop.permute.xlu0 %1986
      %1990 = vset.pattern.permute.xlu0 0
      %1991 = vperm.xlu0 %1990, %v1883
      %v1992 = vpop.permute.xlu0 %1991
      %v1994 = vmul.f32 %v1839, %v1887
      %v1995 = vmul.f32 %v1840, %v1892
      %v1996 = vmul.f32 %v1841, %v1897
      %v1997 = vmul.f32 %v1842, %v1902
      %v1998 = vmul.f32 %v1843, %v1907
      %v1999 = vmul.f32 %v1844, %v1912
      %v2000 = vmul.f32 %v1845, %v1917
      %v2001 = vmul.f32 %v1846, %v1922
      %v2002 = vmul.f32 %v1847, %v1927
      %v2003 = vmul.f32 %v1848, %v1932
      %v2004 = vmul.f32 %v1849, %v1937
      %v2005 = vmul.f32 %v1850, %v1942
      %v2006 = vmul.f32 %v1851, %v1947
      %v2007 = vmul.f32 %v1852, %v1952
      %v2008 = vmul.f32 %v1853, %v1957
      %v2009 = vmul.f32 %v1854, %v1962
      %v2010 = vmul.f32 %v1855, %v1967
      %v2011 = vmul.f32 %v1856, %v1972
      %v2012 = vmul.f32 %v1857, %v1977
      %v2013 = vmul.f32 %v1858, %v1982
      %v2014 = vmul.f32 %v1859, %v1987
      %v2015 = vmul.f32 %v1860, %v1992
      %s2016 = scalar_lea.vmem [#allocation2], 352
      %2017 = vst.msk [vmem:[%s2016] sm:$0xff] %vm968, %v1994
      %2018 = vst.msk [vmem:[%s2016 + $0x8] sm:$0xff] %vm968, %v1995
      %2019 = vst.msk [vmem:[%s2016 + $0x10] sm:$0xff] %vm968, %v1996
      %2020 = vst.msk [vmem:[%s2016 + $0x18] sm:$0xff] %vm968, %v1997
      %2021 = vst.msk [vmem:[%s2016 + $0x20] sm:$0xff] %vm968, %v1998
      %2022 = vst.msk [vmem:[%s2016 + $0x28] sm:$0xff] %vm968, %v1999
      %2023 = vst.msk [vmem:[%s2016 + $0x30] sm:$0xff] %vm968, %v2000
      %2024 = vst.msk [vmem:[%s2016 + $0x38] sm:$0xff] %vm968, %v2001
      %2025 = vst.msk [vmem:[%s2016 + $0x40] sm:$0xff] %vm968, %v2002
      %2026 = vst.msk [vmem:[%s2016 + $0x48] sm:$0xff] %vm968, %v2003
      %2027 = vst.msk [vmem:[%s2016 + $0x50] sm:$0xff] %vm968, %v2004
      %2028 = vst.msk [vmem:[%s2016 + $0x58] sm:$0xff] %vm968, %v2005
      %2029 = vst.msk [vmem:[%s2016 + $0x60] sm:$0xff] %vm968, %v2006
      %2030 = vst.msk [vmem:[%s2016 + $0x68] sm:$0xff] %vm968, %v2007
      %2031 = vst.msk [vmem:[%s2016 + $0x70] sm:$0xff] %vm968, %v2008
      %2032 = vst.msk [vmem:[%s2016 + $0x78] sm:$0xff] %vm968, %v2009
      %2033 = vst.msk [vmem:[%s2016 + $0x80] sm:$0xff] %vm968, %v2010
      %2034 = vst.msk [vmem:[%s2016 + $0x88] sm:$0xff] %vm968, %v2011
      %2035 = vst.msk [vmem:[%s2016 + $0x90] sm:$0xff] %vm968, %v2012
      %2036 = vst.msk [vmem:[%s2016 + $0x98] sm:$0xff] %vm968, %v2013
      %2037 = vst.msk [vmem:[%s2016 + $0xa0] sm:$0xff] %vm968, %v2014
      %2038 = vst.msk [vmem:[%s2016 + $0xa8] sm:$0xff] %vm968, %v2015
      %s2039 = scalar_lea.vmem %s462, 528
      %v2040 = vld [vmem:[%s2039] sm:$0xff]
      %v2041 = vld [vmem:[%s2039 + $0x8] sm:$0xff]
      %v2042 = vld [vmem:[%s2039 + $0x10] sm:$0xff]
      %v2043 = vld [vmem:[%s2039 + $0x18] sm:$0xff]
      %v2044 = vld [vmem:[%s2039 + $0x20] sm:$0xff]
      %v2045 = vld [vmem:[%s2039 + $0x28] sm:$0xff]
      %v2046 = vld [vmem:[%s2039 + $0x30] sm:$0xff]
      %v2047 = vld [vmem:[%s2039 + $0x38] sm:$0xff]
      %v2048 = vld [vmem:[%s2039 + $0x40] sm:$0xff]
      %v2049 = vld [vmem:[%s2039 + $0x48] sm:$0xff]
      %v2050 = vld [vmem:[%s2039 + $0x50] sm:$0xff]
      %v2051 = vld [vmem:[%s2039 + $0x58] sm:$0xff]
      %v2052 = vld [vmem:[%s2039 + $0x60] sm:$0xff]
      %v2053 = vld [vmem:[%s2039 + $0x68] sm:$0xff]
      %v2054 = vld [vmem:[%s2039 + $0x70] sm:$0xff]
      %v2055 = vld [vmem:[%s2039 + $0x78] sm:$0xff]
      %v2056 = vld [vmem:[%s2039 + $0x80] sm:$0xff]
      %v2057 = vld [vmem:[%s2039 + $0x88] sm:$0xff]
      %v2058 = vld [vmem:[%s2039 + $0x90] sm:$0xff]
      %v2059 = vld [vmem:[%s2039 + $0x98] sm:$0xff]
      %v2060 = vld [vmem:[%s2039 + $0xa0] sm:$0xff]
      %v2061 = vld [vmem:[%s2039 + $0xa8] sm:$0xff]
      %v2062 = vld [vmem:[%s2] sm:$0xff]
      %v2063 = vld [vmem:[%s2 + $0x8] sm:$0xff]
      %v2065 = vsel %vm492, %v2040, 0
      %v2068 = vsel %vm492, %v2041, 0
      %v2071 = vsel %vm492, %v2042, 0
      %v2074 = vsel %vm492, %v2043, 0
      %v2077 = vsel %vm492, %v2044, 0
      %v2080 = vsel %vm492, %v2045, 0
      %v2083 = vsel %vm492, %v2046, 0
      %v2086 = vsel %vm492, %v2047, 0
      %v2089 = vsel %vm492, %v2048, 0
      %v2092 = vsel %vm492, %v2049, 0
      %v2095 = vsel %vm492, %v2050, 0
      %v2098 = vsel %vm492, %v2051, 0
      %v2101 = vsel %vm492, %v2052, 0
      %v2104 = vsel %vm492, %v2053, 0
      %v2107 = vsel %vm492, %v2054, 0
      %v2110 = vsel %vm492, %v2055, 0
      %v2113 = vsel %vm492, %v2056, 0
      %v2116 = vsel %vm492, %v2057, 0
      %v2119 = vsel %vm492, %v2058, 0
      %v2122 = vsel %vm492, %v2059, 0
      %v2125 = vsel %vm492, %v2060, 0
      %v2128 = vsel %vm492, %v2061, 0
      %2130 = vmatprep.subr.mxu0 0.0
      %2131 = vmatpush1.msra.mxu0 %v2062
      %2132 = vmatprep.subr.mxu0 0.0
      %2133 = vmatpush1.msra.mxu0 %v2063
      %2134 = vmatprep.subr.mxu0 0.0
      %2135 = vmatpush1.msra.mxu0 0.0
      %2136 = vmatprep.subr.mxu0 0.0
      %2137 = vmatpush1.msra.mxu0 0.0
      %2138 = vmatprep.subr.mxu0 0.0
      %2139 = vmatpush1.msra.mxu0 0.0
      %2140 = vmatprep.subr.mxu0 0.0
      %2141 = vmatpush1.msra.mxu0 0.0
      %2142 = vmatprep.subr.mxu0 0.0
      %2143 = vmatpush1.msra.mxu0 0.0
      %2144 = vmatprep.subr.mxu0 0.0
      %2145 = vmatpush1.msra.mxu0 0.0
      %2146 = vmatprep.subr.mxu0 0.0
      %2147 = vmatpush1.msra.mxu0 0.0
      %2148 = vmatprep.subr.mxu0 0.0
      %2149 = vmatpush1.msra.mxu0 0.0
      %2150 = vmatprep.subr.mxu0 0.0
      %2151 = vmatpush1.msra.mxu0 0.0
      %2152 = vmatprep.subr.mxu0 0.0
      %2153 = vmatpush1.msra.mxu0 0.0
      %2154 = vmatprep.subr.mxu0 0.0
      %2155 = vmatpush1.msra.mxu0 0.0
      %2156 = vmatprep.subr.mxu0 0.0
      %2157 = vmatpush1.msra.mxu0 0.0
      %2158 = vmatprep.subr.mxu0 0.0
      %2159 = vmatpush1.msra.mxu0 0.0
      %2160 = vmatprep.subr.mxu0 0.0
      %2161 = vmatpush1.msra.mxu0 0.0
      %2162 = vmatprep.subr.mxu0 0.0
      %2163 = vmatpush1.msra.mxu0 0.0
      %2164 = vmatprep.subr.mxu0 0.0
      %2165 = vmatpush1.msra.mxu0 0.0
      %2166 = vmatprep.subr.mxu0 0.0
      %2167 = vmatpush1.msra.mxu0 0.0
      %2168 = vmatprep.subr.mxu0 0.0
      %2169 = vmatpush1.msra.mxu0 0.0
      %2170 = vmatprep.subr.mxu0 0.0
      %2171 = vmatpush1.msra.mxu0 0.0
      %2172 = vmatprep.subr.mxu0 0.0
      %2173 = vmatpush1.msra.mxu0 0.0
      %2174 = vmatprep.subr.mxu0 0.0
      %2175 = vmatpush1.msra.mxu0 0.0
      %2176 = vmatprep.subr.mxu0 0.0
      %2177 = vmatpush1.msra.mxu0 0.0
      %2178 = vmatprep.subr.mxu0 0.0
      %2179 = vmatpush1.msra.mxu0 0.0
      %2180 = vmatprep.subr.mxu0 0.0
      %2181 = vmatpush1.msra.mxu0 0.0
      %2182 = vmatprep.subr.mxu0 0.0
      %2183 = vmatpush1.msra.mxu0 0.0
      %2184 = vmatprep.subr.mxu0 0.0
      %2185 = vmatpush1.msra.mxu0 0.0
      %2186 = vmatprep.subr.mxu0 0.0
      %2187 = vmatpush1.msra.mxu0 0.0
      %2188 = vmatprep.subr.mxu0 0.0
      %2189 = vmatpush1.msra.mxu0 0.0
      %2190 = vmatprep.subr.mxu0 0.0
      %2191 = vmatpush1.msra.mxu0 0.0
      %2192 = vmatprep.subr.mxu0 0.0
      %2193 = vmatpush1.msra.mxu0 0.0
      %2194 = vmatprep.mubr.f32.mxu0 0.0
      %2195 = vmatmul.mubr.f32.gmra.mrb[0].mxu0 %v2065
      %v2196 = vpop.f32.mrb[0].mxu0
      %v2197 = vadd.f32 0.0, %v2196
      %v2198 = vpop.f32.mrb[0].mxu0
      %2199 = vmatprep.mubr.f32.mxu0 0.0
      %2200 = vmatmul.mubr.f32.gmra.mrb[0].mxu0 %v2068
      %v2201 = vpop.f32.mrb[0].mxu0
      %v2202 = vadd.f32 0.0, %v2201
      %v2203 = vpop.f32.mrb[0].mxu0
      %2204 = vmatprep.mubr.f32.mxu0 0.0
      %2205 = vmatmul.mubr.f32.gmra.mrb[0].mxu0 %v2071
      %v2206 = vpop.f32.mrb[0].mxu0
      %v2207 = vadd.f32 0.0, %v2206
      %v2208 = vpop.f32.mrb[0].mxu0
      %2209 = vmatprep.mubr.f32.mxu0 0.0
      %2210 = vmatmul.mubr.f32.gmra.mrb[0].mxu0 %v2074
      %v2211 = vpop.f32.mrb[0].mxu0
      %v2212 = vadd.f32 0.0, %v2211
      %v2213 = vpop.f32.mrb[0].mxu0
      %2214 = vmatprep.mubr.f32.mxu0 0.0
      %2215 = vmatmul.mubr.f32.gmra.mrb[0].mxu0 %v2077
      %v2216 = vpop.f32.mrb[0].mxu0
      %v2217 = vadd.f32 0.0, %v2216
      %v2218 = vpop.f32.mrb[0].mxu0
      %2219 = vmatprep.mubr.f32.mxu0 0.0
      %2220 = vmatmul.mubr.f32.gmra.mrb[0].mxu0 %v2080
      %v2221 = vpop.f32.mrb[0].mxu0
      %v2222 = vadd.f32 0.0, %v2221
      %v2223 = vpop.f32.mrb[0].mxu0
      %2224 = vmatprep.mubr.f32.mxu0 0.0
      %2225 = vmatmul.mubr.f32.gmra.mrb[0].mxu0 %v2083
      %v2226 = vpop.f32.mrb[0].mxu0
      %v2227 = vadd.f32 0.0, %v2226
      %v2228 = vpop.f32.mrb[0].mxu0
      %2229 = vmatprep.mubr.f32.mxu0 0.0
      %2230 = vmatmul.mubr.f32.gmra.mrb[0].mxu0 %v2086
      %v2231 = vpop.f32.mrb[0].mxu0
      %v2232 = vadd.f32 0.0, %v2231
      %v2233 = vpop.f32.mrb[0].mxu0
      %2234 = vmatprep.mubr.f32.mxu0 0.0
      %2235 = vmatmul.mubr.f32.gmra.mrb[0].mxu0 %v2089
      %v2236 = vpop.f32.mrb[0].mxu0
      %v2237 = vadd.f32 0.0, %v2236
      %v2238 = vpop.f32.mrb[0].mxu0
      %2239 = vmatprep.mubr.f32.mxu0 0.0
      %2240 = vmatmul.mubr.f32.gmra.mrb[0].mxu0 %v2092
      %v2241 = vpop.f32.mrb[0].mxu0
      %v2242 = vadd.f32 0.0, %v2241
      %v2243 = vpop.f32.mrb[0].mxu0
      %2244 = vmatprep.mubr.f32.mxu0 0.0
      %2245 = vmatmul.mubr.f32.gmra.mrb[0].mxu0 %v2095
      %v2246 = vpop.f32.mrb[0].mxu0
      %v2247 = vadd.f32 0.0, %v2246
      %v2248 = vpop.f32.mrb[0].mxu0
      %2249 = vmatprep.mubr.f32.mxu0 0.0
      %2250 = vmatmul.mubr.f32.gmra.mrb[0].mxu0 %v2098
      %v2251 = vpop.f32.mrb[0].mxu0
      %v2252 = vadd.f32 0.0, %v2251
      %v2253 = vpop.f32.mrb[0].mxu0
      %2254 = vmatprep.mubr.f32.mxu0 0.0
      %2255 = vmatmul.mubr.f32.gmra.mrb[0].mxu0 %v2101
      %v2256 = vpop.f32.mrb[0].mxu0
      %v2257 = vadd.f32 0.0, %v2256
      %v2258 = vpop.f32.mrb[0].mxu0
      %2259 = vmatprep.mubr.f32.mxu0 0.0
      %2260 = vmatmul.mubr.f32.gmra.mrb[0].mxu0 %v2104
      %v2261 = vpop.f32.mrb[0].mxu0
      %v2262 = vadd.f32 0.0, %v2261
      %v2263 = vpop.f32.mrb[0].mxu0
      %2264 = vmatprep.mubr.f32.mxu0 0.0
      %2265 = vmatmul.mubr.f32.gmra.mrb[0].mxu0 %v2107
      %v2266 = vpop.f32.mrb[0].mxu0
      %v2267 = vadd.f32 0.0, %v2266
      %v2268 = vpop.f32.mrb[0].mxu0
      %2269 = vmatprep.mubr.f32.mxu0 0.0
      %2270 = vmatmul.mubr.f32.gmra.mrb[0].mxu0 %v2110
      %v2271 = vpop.f32.mrb[0].mxu0
      %v2272 = vadd.f32 0.0, %v2271
      %v2273 = vpop.f32.mrb[0].mxu0
      %2274 = vmatprep.mubr.f32.mxu0 0.0
      %2275 = vmatmul.mubr.f32.gmra.mrb[0].mxu0 %v2113
      %v2276 = vpop.f32.mrb[0].mxu0
      %v2277 = vadd.f32 0.0, %v2276
      %v2278 = vpop.f32.mrb[0].mxu0
      %2279 = vmatprep.mubr.f32.mxu0 0.0
      %2280 = vmatmul.mubr.f32.gmra.mrb[0].mxu0 %v2116
      %v2281 = vpop.f32.mrb[0].mxu0
      %v2282 = vadd.f32 0.0, %v2281
      %v2283 = vpop.f32.mrb[0].mxu0
      %2284 = vmatprep.mubr.f32.mxu0 0.0
      %2285 = vmatmul.mubr.f32.gmra.mrb[0].mxu0 %v2119
      %v2286 = vpop.f32.mrb[0].mxu0
      %v2287 = vadd.f32 0.0, %v2286
      %v2288 = vpop.f32.mrb[0].mxu0
      %2289 = vmatprep.mubr.f32.mxu0 0.0
      %2290 = vmatmul.mubr.f32.gmra.mrb[0].mxu0 %v2122
      %v2291 = vpop.f32.mrb[0].mxu0
      %v2292 = vadd.f32 0.0, %v2291
      %v2293 = vpop.f32.mrb[0].mxu0
      %2294 = vmatprep.mubr.f32.mxu0 0.0
      %2295 = vmatmul.mubr.f32.gmra.mrb[0].mxu0 %v2125
      %v2296 = vpop.f32.mrb[0].mxu0
      %v2297 = vadd.f32 0.0, %v2296
      %v2298 = vpop.f32.mrb[0].mxu0
      %2299 = vmatprep.mubr.f32.mxu0 0.0
      %2300 = vmatmul.mubr.f32.gmra.mrb[0].mxu0 %v2128
      %v2301 = vpop.f32.mrb[0].mxu0
      %v2302 = vadd.f32 0.0, %v2301
      %v2303 = vpop.f32.mrb[0].mxu0
      %2304 = vdwg.mxu0
      %v2305 = vld [vmem:[%s3] sm:$0x1]
      %v2307 = vlaneseq
      %v2308 = vshrl.u32 %v2307, 7
      %v2309 = vsub.s32 0, %v2308
      %v2310 = vrot.slane %v2305, %v2309
      %v2312 = vmul.f32 %v2197, %v2310
      %v2313 = vmul.f32 %v2202, %v2310
      %v2314 = vmul.f32 %v2207, %v2310
      %v2315 = vmul.f32 %v2212, %v2310
      %v2316 = vmul.f32 %v2217, %v2310
      %v2317 = vmul.f32 %v2222, %v2310
      %v2318 = vmul.f32 %v2227, %v2310
      %v2319 = vmul.f32 %v2232, %v2310
      %v2320 = vmul.f32 %v2237, %v2310
      %v2321 = vmul.f32 %v2242, %v2310
      %v2322 = vmul.f32 %v2247, %v2310
      %v2323 = vmul.f32 %v2252, %v2310
      %v2324 = vmul.f32 %v2257, %v2310
      %v2325 = vmul.f32 %v2262, %v2310
      %v2326 = vmul.f32 %v2267, %v2310
      %v2327 = vmul.f32 %v2272, %v2310
      %v2328 = vmul.f32 %v2277, %v2310
      %v2329 = vmul.f32 %v2282, %v2310
      %v2330 = vmul.f32 %v2287, %v2310
      %v2331 = vmul.f32 %v2292, %v2310
      %v2332 = vmul.f32 %v2297, %v2310
      %v2333 = vmul.f32 %v2302, %v2310
      %v2334 = vld [vmem:[%s4] sm:$0x1]
      %v2336 = vlaneseq
      %v2337 = vshrl.u32 %v2336, 7
      %v2338 = vsub.s32 0, %v2337
      %v2339 = vrot.slane %v2334, %v2338
      %v2341 = vadd.f32 %v2312, %v2339
      %v2342 = vadd.f32 %v2313, %v2339
      %v2343 = vadd.f32 %v2314, %v2339
      %v2344 = vadd.f32 %v2315, %v2339
      %v2345 = vadd.f32 %v2316, %v2339
      %v2346 = vadd.f32 %v2317, %v2339
      %v2347 = vadd.f32 %v2318, %v2339
      %v2348 = vadd.f32 %v2319, %v2339
      %v2349 = vadd.f32 %v2320, %v2339
      %v2350 = vadd.f32 %v2321, %v2339
      %v2351 = vadd.f32 %v2322, %v2339
      %v2352 = vadd.f32 %v2323, %v2339
      %v2353 = vadd.f32 %v2324, %v2339
      %v2354 = vadd.f32 %v2325, %v2339
      %v2355 = vadd.f32 %v2326, %v2339
      %v2356 = vadd.f32 %v2327, %v2339
      %v2357 = vadd.f32 %v2328, %v2339
      %v2358 = vadd.f32 %v2329, %v2339
      %v2359 = vadd.f32 %v2330, %v2339
      %v2360 = vadd.f32 %v2331, %v2339
      %v2361 = vadd.f32 %v2332, %v2339
      %v2362 = vadd.f32 %v2333, %v2339
      %v2363 = vmax.f32 %v2341, 0.0
      %v2364 = vmax.f32 %v2342, 0.0
      %v2365 = vmax.f32 %v2343, 0.0
      %v2366 = vmax.f32 %v2344, 0.0
      %v2367 = vmax.f32 %v2345, 0.0
      %v2368 = vmax.f32 %v2346, 0.0
      %v2369 = vmax.f32 %v2347, 0.0
      %v2370 = vmax.f32 %v2348, 0.0
      %v2371 = vmax.f32 %v2349, 0.0
      %v2372 = vmax.f32 %v2350, 0.0
      %v2373 = vmax.f32 %v2351, 0.0
      %v2374 = vmax.f32 %v2352, 0.0
      %v2375 = vmax.f32 %v2353, 0.0
      %v2376 = vmax.f32 %v2354, 0.0
      %v2377 = vmax.f32 %v2355, 0.0
      %v2378 = vmax.f32 %v2356, 0.0
      %v2379 = vmax.f32 %v2357, 0.0
      %v2380 = vmax.f32 %v2358, 0.0
      %v2381 = vmax.f32 %v2359, 0.0
      %v2382 = vmax.f32 %v2360, 0.0
      %v2383 = vmax.f32 %v2361, 0.0
      %v2384 = vmax.f32 %v2362, 0.0
      %s2385 = scalar_lea.vmem %s1, 528
      %v2386 = vld [vmem:[%s2385] sm:$0xff]
      %v2387 = vld [vmem:[%s2385 + $0x8] sm:$0xff]
      %v2388 = vld [vmem:[%s2385 + $0x10] sm:$0xff]
      %v2389 = vld [vmem:[%s2385 + $0x18] sm:$0xff]
      %v2390 = vld [vmem:[%s2385 + $0x20] sm:$0xff]
      %v2391 = vld [vmem:[%s2385 + $0x28] sm:$0xff]
      %v2392 = vld [vmem:[%s2385 + $0x30] sm:$0xff]
      %v2393 = vld [vmem:[%s2385 + $0x38] sm:$0xff]
      %v2394 = vld [vmem:[%s2385 + $0x40] sm:$0xff]
      %v2395 = vld [vmem:[%s2385 + $0x48] sm:$0xff]
      %v2396 = vld [vmem:[%s2385 + $0x50] sm:$0xff]
      %v2397 = vld [vmem:[%s2385 + $0x58] sm:$0xff]
      %v2398 = vld [vmem:[%s2385 + $0x60] sm:$0xff]
      %v2399 = vld [vmem:[%s2385 + $0x68] sm:$0xff]
      %v2400 = vld [vmem:[%s2385 + $0x70] sm:$0xff]
      %v2401 = vld [vmem:[%s2385 + $0x78] sm:$0xff]
      %v2402 = vld [vmem:[%s2385 + $0x80] sm:$0xff]
      %v2403 = vld [vmem:[%s2385 + $0x88] sm:$0xff]
      %v2404 = vld [vmem:[%s2385 + $0x90] sm:$0xff]
      %v2405 = vld [vmem:[%s2385 + $0x98] sm:$0xff]
      %v2406 = vld [vmem:[%s2385 + $0xa0] sm:$0xff]
      %v2407 = vld [vmem:[%s2385 + $0xa8] sm:$0xff]
      %2409 = vset.pattern.permute.xlu0 0
      %2410 = vperm.xlu0 %2409, %v2386
      %v2411 = vpop.permute.xlu0 %2410
      %2414 = vset.pattern.permute.xlu0 0
      %2415 = vperm.xlu0 %2414, %v2387
      %v2416 = vpop.permute.xlu0 %2415
      %2419 = vset.pattern.permute.xlu0 0
      %2420 = vperm.xlu0 %2419, %v2388
      %v2421 = vpop.permute.xlu0 %2420
      %2424 = vset.pattern.permute.xlu0 0
      %2425 = vperm.xlu0 %2424, %v2389
      %v2426 = vpop.permute.xlu0 %2425
      %2429 = vset.pattern.permute.xlu0 0
      %2430 = vperm.xlu0 %2429, %v2390
      %v2431 = vpop.permute.xlu0 %2430
      %2434 = vset.pattern.permute.xlu0 0
      %2435 = vperm.xlu0 %2434, %v2391
      %v2436 = vpop.permute.xlu0 %2435
      %2439 = vset.pattern.permute.xlu0 0
      %2440 = vperm.xlu0 %2439, %v2392
      %v2441 = vpop.permute.xlu0 %2440
      %2444 = vset.pattern.permute.xlu0 0
      %2445 = vperm.xlu0 %2444, %v2393
      %v2446 = vpop.permute.xlu0 %2445
      %2449 = vset.pattern.permute.xlu0 0
      %2450 = vperm.xlu0 %2449, %v2394
      %v2451 = vpop.permute.xlu0 %2450
      %2454 = vset.pattern.permute.xlu0 0
      %2455 = vperm.xlu0 %2454, %v2395
      %v2456 = vpop.permute.xlu0 %2455
      %2459 = vset.pattern.permute.xlu0 0
      %2460 = vperm.xlu0 %2459, %v2396
      %v2461 = vpop.permute.xlu0 %2460
      %2464 = vset.pattern.permute.xlu0 0
      %2465 = vperm.xlu0 %2464, %v2397
      %v2466 = vpop.permute.xlu0 %2465
      %2469 = vset.pattern.permute.xlu0 0
      %2470 = vperm.xlu0 %2469, %v2398
      %v2471 = vpop.permute.xlu0 %2470
      %2474 = vset.pattern.permute.xlu0 0
      %2475 = vperm.xlu0 %2474, %v2399
      %v2476 = vpop.permute.xlu0 %2475
      %2479 = vset.pattern.permute.xlu0 0
      %2480 = vperm.xlu0 %2479, %v2400
      %v2481 = vpop.permute.xlu0 %2480
      %2484 = vset.pattern.permute.xlu0 0
      %2485 = vperm.xlu0 %2484, %v2401
      %v2486 = vpop.permute.xlu0 %2485
      %2489 = vset.pattern.permute.xlu0 0
      %2490 = vperm.xlu0 %2489, %v2402
      %v2491 = vpop.permute.xlu0 %2490
      %2494 = vset.pattern.permute.xlu0 0
      %2495 = vperm.xlu0 %2494, %v2403
      %v2496 = vpop.permute.xlu0 %2495
      %2499 = vset.pattern.permute.xlu0 0
      %2500 = vperm.xlu0 %2499, %v2404
      %v2501 = vpop.permute.xlu0 %2500
      %2504 = vset.pattern.permute.xlu0 0
      %2505 = vperm.xlu0 %2504, %v2405
      %v2506 = vpop.permute.xlu0 %2505
      %2509 = vset.pattern.permute.xlu0 0
      %2510 = vperm.xlu0 %2509, %v2406
      %v2511 = vpop.permute.xlu0 %2510
      %2514 = vset.pattern.permute.xlu0 0
      %2515 = vperm.xlu0 %2514, %v2407
      %v2516 = vpop.permute.xlu0 %2515
      %v2518 = vmul.f32 %v2363, %v2411
      %v2519 = vmul.f32 %v2364, %v2416
      %v2520 = vmul.f32 %v2365, %v2421
      %v2521 = vmul.f32 %v2366, %v2426
      %v2522 = vmul.f32 %v2367, %v2431
      %v2523 = vmul.f32 %v2368, %v2436
      %v2524 = vmul.f32 %v2369, %v2441
      %v2525 = vmul.f32 %v2370, %v2446
      %v2526 = vmul.f32 %v2371, %v2451
      %v2527 = vmul.f32 %v2372, %v2456
      %v2528 = vmul.f32 %v2373, %v2461
      %v2529 = vmul.f32 %v2374, %v2466
      %v2530 = vmul.f32 %v2375, %v2471
      %v2531 = vmul.f32 %v2376, %v2476
      %v2532 = vmul.f32 %v2377, %v2481
      %v2533 = vmul.f32 %v2378, %v2486
      %v2534 = vmul.f32 %v2379, %v2491
      %v2535 = vmul.f32 %v2380, %v2496
      %v2536 = vmul.f32 %v2381, %v2501
      %v2537 = vmul.f32 %v2382, %v2506
      %v2538 = vmul.f32 %v2383, %v2511
      %v2539 = vmul.f32 %v2384, %v2516
      %s2540 = scalar_lea.vmem [#allocation2], 528
      %2541 = vst.msk [vmem:[%s2540] sm:$0xff] %vm968, %v2518
      %2542 = vst.msk [vmem:[%s2540 + $0x8] sm:$0xff] %vm968, %v2519
      %2543 = vst.msk [vmem:[%s2540 + $0x10] sm:$0xff] %vm968, %v2520
      %2544 = vst.msk [vmem:[%s2540 + $0x18] sm:$0xff] %vm968, %v2521
      %2545 = vst.msk [vmem:[%s2540 + $0x20] sm:$0xff] %vm968, %v2522
      %2546 = vst.msk [vmem:[%s2540 + $0x28] sm:$0xff] %vm968, %v2523
      %2547 = vst.msk [vmem:[%s2540 + $0x30] sm:$0xff] %vm968, %v2524
      %2548 = vst.msk [vmem:[%s2540 + $0x38] sm:$0xff] %vm968, %v2525
      %2549 = vst.msk [vmem:[%s2540 + $0x40] sm:$0xff] %vm968, %v2526
      %2550 = vst.msk [vmem:[%s2540 + $0x48] sm:$0xff] %vm968, %v2527
      %2551 = vst.msk [vmem:[%s2540 + $0x50] sm:$0xff] %vm968, %v2528
      %2552 = vst.msk [vmem:[%s2540 + $0x58] sm:$0xff] %vm968, %v2529
      %2553 = vst.msk [vmem:[%s2540 + $0x60] sm:$0xff] %vm968, %v2530
      %2554 = vst.msk [vmem:[%s2540 + $0x68] sm:$0xff] %vm968, %v2531
      %2555 = vst.msk [vmem:[%s2540 + $0x70] sm:$0xff] %vm968, %v2532
      %2556 = vst.msk [vmem:[%s2540 + $0x78] sm:$0xff] %vm968, %v2533
      %2557 = vst.msk [vmem:[%s2540 + $0x80] sm:$0xff] %vm968, %v2534
      %2558 = vst.msk [vmem:[%s2540 + $0x88] sm:$0xff] %vm968, %v2535
      %2559 = vst.msk [vmem:[%s2540 + $0x90] sm:$0xff] %vm968, %v2536
      %2560 = vst.msk [vmem:[%s2540 + $0x98] sm:$0xff] %vm968, %v2537
      %2561 = vst.msk [vmem:[%s2540 + $0xa0] sm:$0xff] %vm968, %v2538
      %2562 = vst.msk [vmem:[%s2540 + $0xa8] sm:$0xff] %vm968, %v2539
      %v2563 = vld [vmem:[#allocation2] sm:$0xff]
      %v2564 = vld [vmem:[#allocation2 + $0x8] sm:$0xff]
      %v2565 = vld [vmem:[#allocation2 + $0x10] sm:$0xff]
      %v2566 = vld [vmem:[#allocation2 + $0x18] sm:$0xff]
      %v2567 = vld [vmem:[#allocation2 + $0x20] sm:$0xff]
      %v2568 = vld [vmem:[#allocation2 + $0x28] sm:$0xff]
      %v2569 = vld [vmem:[#allocation2 + $0x30] sm:$0xff]
      %v2570 = vld [vmem:[#allocation2 + $0x38] sm:$0xff]
      %v2571 = vld [vmem:[#allocation2 + $0x40] sm:$0xff]
      %v2572 = vld [vmem:[#allocation2 + $0x48] sm:$0xff]
      %v2573 = vld [vmem:[#allocation2 + $0x50] sm:$0xff]
      %v2574 = vld [vmem:[#allocation2 + $0x58] sm:$0xff]
      %v2575 = vld [vmem:[#allocation2 + $0x60] sm:$0xff]
      %v2576 = vld [vmem:[#allocation2 + $0x68] sm:$0xff]
      %v2577 = vld [vmem:[#allocation2 + $0x70] sm:$0xff]
      %v2578 = vld [vmem:[#allocation2 + $0x78] sm:$0xff]
      %v2579 = vld [vmem:[%s1492] sm:$0xff]
      %v2580 = vld [vmem:[%s1492 + $0x8] sm:$0xff]
      %v2581 = vld [vmem:[%s1492 + $0x10] sm:$0xff]
      %v2582 = vld [vmem:[%s1492 + $0x18] sm:$0xff]
      %v2583 = vld [vmem:[%s1492 + $0x20] sm:$0xff]
      %v2584 = vld [vmem:[%s1492 + $0x28] sm:$0xff]
      %v2585 = vld [vmem:[%s1492 + $0x30] sm:$0xff]
      %v2586 = vld [vmem:[%s1492 + $0x38] sm:$0xff]
      %v2587 = vld [vmem:[%s1492 + $0x40] sm:$0xff]
      %v2588 = vld [vmem:[%s1492 + $0x48] sm:$0xff]
      %v2589 = vld [vmem:[%s1492 + $0x50] sm:$0xff]
      %v2590 = vld [vmem:[%s1492 + $0x58] sm:$0xff]
      %v2591 = vld [vmem:[%s1492 + $0x60] sm:$0xff]
      %v2592 = vld [vmem:[%s1492 + $0x68] sm:$0xff]
      %v2593 = vld [vmem:[%s1492 + $0x70] sm:$0xff]
      %v2594 = vld [vmem:[%s1492 + $0x78] sm:$0xff]
      %v2595 = vld [vmem:[#allocation2 + $0x1] sm:$0xff]
      %v2596 = vld [vmem:[#allocation2 + $0x9] sm:$0xff]
      %v2597 = vld [vmem:[#allocation2 + $0x11] sm:$0xff]
      %v2598 = vld [vmem:[#allocation2 + $0x19] sm:$0xff]
      %v2599 = vld [vmem:[#allocation2 + $0x21] sm:$0xff]
      %v2600 = vld [vmem:[#allocation2 + $0x29] sm:$0xff]
      %v2601 = vld [vmem:[#allocation2 + $0x31] sm:$0xff]
      %v2602 = vld [vmem:[#allocation2 + $0x39] sm:$0xff]
      %v2603 = vld [vmem:[#allocation2 + $0x41] sm:$0xff]
      %v2604 = vld [vmem:[#allocation2 + $0x49] sm:$0xff]
      %v2605 = vld [vmem:[#allocation2 + $0x51] sm:$0xff]
      %v2606 = vld [vmem:[#allocation2 + $0x59] sm:$0xff]
      %v2607 = vld [vmem:[#allocation2 + $0x61] sm:$0xff]
      %v2608 = vld [vmem:[#allocation2 + $0x69] sm:$0xff]
      %v2609 = vld [vmem:[#allocation2 + $0x71] sm:$0xff]
      %v2610 = vld [vmem:[#allocation2 + $0x79] sm:$0xff]
      %2627 = vrot.lane.b32.xlu0 %v2579, 8
      %v2628 = vpop.permute.xlu0 %2627
      %2629 = vrot.lane.b32.xlu0 %v2580, 8
      %v2630 = vpop.permute.xlu0 %2629
      %2631 = vrot.lane.b32.xlu0 %v2581, 8
      %v2632 = vpop.permute.xlu0 %2631
      %2633 = vrot.lane.b32.xlu0 %v2582, 8
      %v2634 = vpop.permute.xlu0 %2633
      %2635 = vrot.lane.b32.xlu0 %v2583, 8
      %v2636 = vpop.permute.xlu0 %2635
      %2637 = vrot.lane.b32.xlu0 %v2584, 8
      %v2638 = vpop.permute.xlu0 %2637
      %2639 = vrot.lane.b32.xlu0 %v2585, 8
      %v2640 = vpop.permute.xlu0 %2639
      %2641 = vrot.lane.b32.xlu0 %v2586, 8
      %v2642 = vpop.permute.xlu0 %2641
      %2643 = vrot.lane.b32.xlu0 %v2587, 8
      %v2644 = vpop.permute.xlu0 %2643
      %2645 = vrot.lane.b32.xlu0 %v2588, 8
      %v2646 = vpop.permute.xlu0 %2645
      %2647 = vrot.lane.b32.xlu0 %v2589, 8
      %v2648 = vpop.permute.xlu0 %2647
      %2649 = vrot.lane.b32.xlu0 %v2590, 8
      %v2650 = vpop.permute.xlu0 %2649
      %2651 = vrot.lane.b32.xlu0 %v2591, 8
      %v2652 = vpop.permute.xlu0 %2651
      %2653 = vrot.lane.b32.xlu0 %v2592, 8
      %v2654 = vpop.permute.xlu0 %2653
      %2655 = vrot.lane.b32.xlu0 %v2593, 8
      %v2656 = vpop.permute.xlu0 %2655
      %2657 = vrot.lane.b32.xlu0 %v2594, 8
      %v2658 = vpop.permute.xlu0 %2657
      %2691 = vrot.lane.b32.xlu0 %v2595, 16
      %v2692 = vpop.permute.xlu0 %2691
      %2693 = vrot.lane.b32.xlu0 %v2596, 16
      %v2694 = vpop.permute.xlu0 %2693
      %2695 = vrot.lane.b32.xlu0 %v2597, 16
      %v2696 = vpop.permute.xlu0 %2695
      %2697 = vrot.lane.b32.xlu0 %v2598, 16
      %v2698 = vpop.permute.xlu0 %2697
      %2699 = vrot.lane.b32.xlu0 %v2599, 16
      %v2700 = vpop.permute.xlu0 %2699
      %2701 = vrot.lane.b32.xlu0 %v2600, 16
      %v2702 = vpop.permute.xlu0 %2701
      %2703 = vrot.lane.b32.xlu0 %v2601, 16
      %v2704 = vpop.permute.xlu0 %2703
      %2705 = vrot.lane.b32.xlu0 %v2602, 16
      %v2706 = vpop.permute.xlu0 %2705
      %2707 = vrot.lane.b32.xlu0 %v2603, 16
      %v2708 = vpop.permute.xlu0 %2707
      %2709 = vrot.lane.b32.xlu0 %v2604, 16
      %v2710 = vpop.permute.xlu0 %2709
      %2711 = vrot.lane.b32.xlu0 %v2605, 16
      %v2712 = vpop.permute.xlu0 %2711
      %2713 = vrot.lane.b32.xlu0 %v2606, 16
      %v2714 = vpop.permute.xlu0 %2713
      %2715 = vrot.lane.b32.xlu0 %v2607, 16
      %v2716 = vpop.permute.xlu0 %2715
      %2717 = vrot.lane.b32.xlu0 %v2608, 16
      %v2718 = vpop.permute.xlu0 %2717
      %2719 = vrot.lane.b32.xlu0 %v2609, 16
      %v2720 = vpop.permute.xlu0 %2719
      %2721 = vrot.lane.b32.xlu0 %v2610, 16
      %v2722 = vpop.permute.xlu0 %2721
      %v2739 = vsel %vm968, %v2563, %v2628
      %v2740 = vsel %vm968, %v2564, %v2630
      %v2741 = vsel %vm968, %v2565, %v2632
      %v2742 = vsel %vm968, %v2566, %v2634
      %v2743 = vsel %vm968, %v2567, %v2636
      %v2744 = vsel %vm968, %v2568, %v2638
      %v2745 = vsel %vm968, %v2569, %v2640
      %v2746 = vsel %vm968, %v2570, %v2642
      %v2747 = vsel %vm968, %v2571, %v2644
      %v2748 = vsel %vm968, %v2572, %v2646
      %v2749 = vsel %vm968, %v2573, %v2648
      %v2750 = vsel %vm968, %v2574, %v2650
      %v2751 = vsel %vm968, %v2575, %v2652
      %v2752 = vsel %vm968, %v2576, %v2654
      %v2753 = vsel %vm968, %v2577, %v2656
      %v2754 = vsel %vm968, %v2578, %v2658
      %v2755 = vsel %vm492, %v2739, %v2692
      %v2756 = vsel %vm492, %v2740, %v2694
      %v2757 = vsel %vm492, %v2741, %v2696
      %v2758 = vsel %vm492, %v2742, %v2698
      %v2759 = vsel %vm492, %v2743, %v2700
      %v2760 = vsel %vm492, %v2744, %v2702
      %v2761 = vsel %vm492, %v2745, %v2704
      %v2762 = vsel %vm492, %v2746, %v2706
      %v2763 = vsel %vm492, %v2747, %v2708
      %v2764 = vsel %vm492, %v2748, %v2710
      %v2765 = vsel %vm492, %v2749, %v2712
      %v2766 = vsel %vm492, %v2750, %v2714
      %v2767 = vsel %vm492, %v2751, %v2716
      %v2768 = vsel %vm492, %v2752, %v2718
      %v2769 = vsel %vm492, %v2753, %v2720
      %v2770 = vsel %vm492, %v2754, %v2722
      %v2771 = vld [vmem:[%s5] sm:$0xff]
      %v2772 = vld [vmem:[%s5 + $0x8] sm:$0xff]
      %v2773 = vld [vmem:[%s5 + $0x10] sm:$0xff]
      %v2774 = vld [vmem:[%s2016] sm:$0xff]
      %v2775 = vld [vmem:[%s2016 + $0x8] sm:$0xff]
      %v2776 = vld [vmem:[%s2016 + $0x10] sm:$0xff]
      %v2777 = vld [vmem:[%s2016 + $0x18] sm:$0xff]
      %v2778 = vld [vmem:[%s2016 + $0x20] sm:$0xff]
      %v2779 = vld [vmem:[%s2016 + $0x28] sm:$0xff]
      %v2780 = vld [vmem:[%s2016 + $0x30] sm:$0xff]
      %v2781 = vld [vmem:[%s2016 + $0x38] sm:$0xff]
      %v2782 = vld [vmem:[%s2016 + $0x40] sm:$0xff]
      %v2783 = vld [vmem:[%s2016 + $0x48] sm:$0xff]
      %v2784 = vld [vmem:[%s2016 + $0x50] sm:$0xff]
      %v2785 = vld [vmem:[%s2016 + $0x58] sm:$0xff]
      %v2786 = vld [vmem:[%s2016 + $0x60] sm:$0xff]
      %v2787 = vld [vmem:[%s2016 + $0x68] sm:$0xff]
      %v2788 = vld [vmem:[%s2016 + $0x70] sm:$0xff]
      %v2789 = vld [vmem:[%s2016 + $0x78] sm:$0xff]
      %v2790 = vld [vmem:[%s2540] sm:$0xff]
      %v2791 = vld [vmem:[%s2540 + $0x8] sm:$0xff]
      %v2792 = vld [vmem:[%s2540 + $0x10] sm:$0xff]
      %v2793 = vld [vmem:[%s2540 + $0x18] sm:$0xff]
      %v2794 = vld [vmem:[%s2540 + $0x20] sm:$0xff]
      %v2795 = vld [vmem:[%s2540 + $0x28] sm:$0xff]
      %v2796 = vld [vmem:[%s2540 + $0x30] sm:$0xff]
      %v2797 = vld [vmem:[%s2540 + $0x38] sm:$0xff]
      %v2798 = vld [vmem:[%s2540 + $0x40] sm:$0xff]
      %v2799 = vld [vmem:[%s2540 + $0x48] sm:$0xff]
      %v2800 = vld [vmem:[%s2540 + $0x50] sm:$0xff]
      %v2801 = vld [vmem:[%s2540 + $0x58] sm:$0xff]
      %v2802 = vld [vmem:[%s2540 + $0x60] sm:$0xff]
      %v2803 = vld [vmem:[%s2540 + $0x68] sm:$0xff]
      %v2804 = vld [vmem:[%s2540 + $0x70] sm:$0xff]
      %v2805 = vld [vmem:[%s2540 + $0x78] sm:$0xff]
      %v2806 = vld [vmem:[%s2016 + $0x1] sm:$0xff]
      %v2807 = vld [vmem:[%s2016 + $0x9] sm:$0xff]
      %v2808 = vld [vmem:[%s2016 + $0x11] sm:$0xff]
      %v2809 = vld [vmem:[%s2016 + $0x19] sm:$0xff]
      %v2810 = vld [vmem:[%s2016 + $0x21] sm:$0xff]
      %v2811 = vld [vmem:[%s2016 + $0x29] sm:$0xff]
      %v2812 = vld [vmem:[%s2016 + $0x31] sm:$0xff]
      %v2813 = vld [vmem:[%s2016 + $0x39] sm:$0xff]
      %v2814 = vld [vmem:[%s2016 + $0x41] sm:$0xff]
      %v2815 = vld [vmem:[%s2016 + $0x49] sm:$0xff]
      %v2816 = vld [vmem:[%s2016 + $0x51] sm:$0xff]
      %v2817 = vld [vmem:[%s2016 + $0x59] sm:$0xff]
      %v2818 = vld [vmem:[%s2016 + $0x61] sm:$0xff]
      %v2819 = vld [vmem:[%s2016 + $0x69] sm:$0xff]
      %v2820 = vld [vmem:[%s2016 + $0x71] sm:$0xff]
      %v2821 = vld [vmem:[%s2016 + $0x79] sm:$0xff]
      %2838 = vrot.lane.b32.xlu0 %v2790, 8
      %v2839 = vpop.permute.xlu0 %2838
      %2840 = vrot.lane.b32.xlu0 %v2791, 8
      %v2841 = vpop.permute.xlu0 %2840
      %2842 = vrot.lane.b32.xlu0 %v2792, 8
      %v2843 = vpop.permute.xlu0 %2842
      %2844 = vrot.lane.b32.xlu0 %v2793, 8
      %v2845 = vpop.permute.xlu0 %2844
      %2846 = vrot.lane.b32.xlu0 %v2794, 8
      %v2847 = vpop.permute.xlu0 %2846
      %2848 = vrot.lane.b32.xlu0 %v2795, 8
      %v2849 = vpop.permute.xlu0 %2848
      %2850 = vrot.lane.b32.xlu0 %v2796, 8
      %v2851 = vpop.permute.xlu0 %2850
      %2852 = vrot.lane.b32.xlu0 %v2797, 8
      %v2853 = vpop.permute.xlu0 %2852
      %2854 = vrot.lane.b32.xlu0 %v2798, 8
      %v2855 = vpop.permute.xlu0 %2854
      %2856 = vrot.lane.b32.xlu0 %v2799, 8
      %v2857 = vpop.permute.xlu0 %2856
      %2858 = vrot.lane.b32.xlu0 %v2800, 8
      %v2859 = vpop.permute.xlu0 %2858
      %2860 = vrot.lane.b32.xlu0 %v2801, 8
      %v2861 = vpop.permute.xlu0 %2860
      %2862 = vrot.lane.b32.xlu0 %v2802, 8
      %v2863 = vpop.permute.xlu0 %2862
      %2864 = vrot.lane.b32.xlu0 %v2803, 8
      %v2865 = vpop.permute.xlu0 %2864
      %2866 = vrot.lane.b32.xlu0 %v2804, 8
      %v2867 = vpop.permute.xlu0 %2866
      %2868 = vrot.lane.b32.xlu0 %v2805, 8
      %v2869 = vpop.permute.xlu0 %2868
      %2902 = vrot.lane.b32.xlu0 %v2806, 16
      %v2903 = vpop.permute.xlu0 %2902
      %2904 = vrot.lane.b32.xlu0 %v2807, 16
      %v2905 = vpop.permute.xlu0 %2904
      %2906 = vrot.lane.b32.xlu0 %v2808, 16
      %v2907 = vpop.permute.xlu0 %2906
      %2908 = vrot.lane.b32.xlu0 %v2809, 16
      %v2909 = vpop.permute.xlu0 %2908
      %2910 = vrot.lane.b32.xlu0 %v2810, 16
      %v2911 = vpop.permute.xlu0 %2910
      %2912 = vrot.lane.b32.xlu0 %v2811, 16
      %v2913 = vpop.permute.xlu0 %2912
      %2914 = vrot.lane.b32.xlu0 %v2812, 16
      %v2915 = vpop.permute.xlu0 %2914
      %2916 = vrot.lane.b32.xlu0 %v2813, 16
      %v2917 = vpop.permute.xlu0 %2916
      %2918 = vrot.lane.b32.xlu0 %v2814, 16
      %v2919 = vpop.permute.xlu0 %2918
      %2920 = vrot.lane.b32.xlu0 %v2815, 16
      %v2921 = vpop.permute.xlu0 %2920
      %2922 = vrot.lane.b32.xlu0 %v2816, 16
      %v2923 = vpop.permute.xlu0 %2922
      %2924 = vrot.lane.b32.xlu0 %v2817, 16
      %v2925 = vpop.permute.xlu0 %2924
      %2926 = vrot.lane.b32.xlu0 %v2818, 16
      %v2927 = vpop.permute.xlu0 %2926
      %2928 = vrot.lane.b32.xlu0 %v2819, 16
      %v2929 = vpop.permute.xlu0 %2928
      %2930 = vrot.lane.b32.xlu0 %v2820, 16
      %v2931 = vpop.permute.xlu0 %2930
      %2932 = vrot.lane.b32.xlu0 %v2821, 16
      %v2933 = vpop.permute.xlu0 %2932
      %v2950 = vsel %vm968, %v2774, %v2839
      %v2951 = vsel %vm968, %v2775, %v2841
      %v2952 = vsel %vm968, %v2776, %v2843
      %v2953 = vsel %vm968, %v2777, %v2845
      %v2954 = vsel %vm968, %v2778, %v2847
      %v2955 = vsel %vm968, %v2779, %v2849
      %v2956 = vsel %vm968, %v2780, %v2851
      %v2957 = vsel %vm968, %v2781, %v2853
      %v2958 = vsel %vm968, %v2782, %v2855
      %v2959 = vsel %vm968, %v2783, %v2857
      %v2960 = vsel %vm968, %v2784, %v2859
      %v2961 = vsel %vm968, %v2785, %v2861
      %v2962 = vsel %vm968, %v2786, %v2863
      %v2963 = vsel %vm968, %v2787, %v2865
      %v2964 = vsel %vm968, %v2788, %v2867
      %v2965 = vsel %vm968, %v2789, %v2869
      %v2966 = vsel %vm492, %v2950, %v2903
      %v2967 = vsel %vm492, %v2951, %v2905
      %v2968 = vsel %vm492, %v2952, %v2907
      %v2969 = vsel %vm492, %v2953, %v2909
      %v2970 = vsel %vm492, %v2954, %v2911
      %v2971 = vsel %vm492, %v2955, %v2913
      %v2972 = vsel %vm492, %v2956, %v2915
      %v2973 = vsel %vm492, %v2957, %v2917
      %v2974 = vsel %vm492, %v2958, %v2919
      %v2975 = vsel %vm492, %v2959, %v2921
      %v2976 = vsel %vm492, %v2960, %v2923
      %v2977 = vsel %vm492, %v2961, %v2925
      %v2978 = vsel %vm492, %v2962, %v2927
      %v2979 = vsel %vm492, %v2963, %v2929
      %v2980 = vsel %vm492, %v2964, %v2931
      %v2981 = vsel %vm492, %v2965, %v2933
      %s2982 = scalar_lea.vmem %s5, 24
      %v2983 = vld [vmem:[%s2982] sm:$0xff]
      %v2984 = vld [vmem:[%s2982 + $0x8] sm:$0xff]
      %v2985 = vld [vmem:[%s2982 + $0x10] sm:$0xff]
      %vm2986 = vcmask 195584
      %v2988 = vsel %vm2986, %v2966, 0
      %v2991 = vsel %vm2986, %v2967, 0
      %v2994 = vsel %vm2986, %v2968, 0
      %v2997 = vsel %vm2986, %v2969, 0
      %v3000 = vsel %vm2986, %v2970, 0
      %v3003 = vsel %vm2986, %v2971, 0
      %v3006 = vsel %vm2986, %v2972, 0
      %v3009 = vsel %vm2986, %v2973, 0
      %v3012 = vsel %vm2986, %v2974, 0
      %v3015 = vsel %vm2986, %v2975, 0
      %v3018 = vsel %vm2986, %v2976, 0
      %v3021 = vsel %vm2986, %v2977, 0
      %v3024 = vsel %vm2986, %v2978, 0
      %v3027 = vsel %vm2986, %v2979, 0
      %v3030 = vsel %vm2986, %v2980, 0
      %v3033 = vsel %vm2986, %v2981, 0
      %3035 = vmatprep.subr.mxu0 0.0
      %3036 = vmatpush1.msra.mxu0 %v2983
      %3037 = vmatprep.subr.mxu0 0.0
      %3038 = vmatpush1.msra.mxu0 %v2984
      %3039 = vmatprep.subr.mxu0 0.0
      %3040 = vmatpush1.msra.mxu0 %v2985
      %3041 = vmatprep.subr.mxu0 0.0
      %3042 = vmatpush1.msra.mxu0 0.0
      %3043 = vmatprep.subr.mxu0 0.0
      %3044 = vmatpush1.msra.mxu0 0.0
      %3045 = vmatprep.subr.mxu0 0.0
      %3046 = vmatpush1.msra.mxu0 0.0
      %3047 = vmatprep.subr.mxu0 0.0
      %3048 = vmatpush1.msra.mxu0 0.0
      %3049 = vmatprep.subr.mxu0 0.0
      %3050 = vmatpush1.msra.mxu0 0.0
      %3051 = vmatprep.subr.mxu0 0.0
      %3052 = vmatpush1.msra.mxu0 0.0
      %3053 = vmatprep.subr.mxu0 0.0
      %3054 = vmatpush1.msra.mxu0 0.0
      %3055 = vmatprep.subr.mxu0 0.0
      %3056 = vmatpush1.msra.mxu0 0.0
      %3057 = vmatprep.subr.mxu0 0.0
      %3058 = vmatpush1.msra.mxu0 0.0
      %3059 = vmatprep.subr.mxu0 0.0
      %3060 = vmatpush1.msra.mxu0 0.0
      %3061 = vmatprep.subr.mxu0 0.0
      %3062 = vmatpush1.msra.mxu0 0.0
      %3063 = vmatprep.subr.mxu0 0.0
      %3064 = vmatpush1.msra.mxu0 0.0
      %3065 = vmatprep.subr.mxu0 0.0
      %3066 = vmatpush1.msra.mxu0 0.0
      %3067 = vmatprep.subr.mxu0 0.0
      %3068 = vmatpush1.msra.mxu0 0.0
      %3069 = vmatprep.subr.mxu0 0.0
      %3070 = vmatpush1.msra.mxu0 0.0
      %3071 = vmatprep.subr.mxu0 0.0
      %3072 = vmatpush1.msra.mxu0 0.0
      %3073 = vmatprep.subr.mxu0 0.0
      %3074 = vmatpush1.msra.mxu0 0.0
      %3075 = vmatprep.subr.mxu0 0.0
      %3076 = vmatpush1.msra.mxu0 0.0
      %3077 = vmatprep.subr.mxu0 0.0
      %3078 = vmatpush1.msra.mxu0 0.0
      %3079 = vmatprep.subr.mxu0 0.0
      %3080 = vmatpush1.msra.mxu0 0.0
      %3081 = vmatprep.subr.mxu0 0.0
      %3082 = vmatpush1.msra.mxu0 0.0
      %3083 = vmatprep.subr.mxu0 0.0
      %3084 = vmatpush1.msra.mxu0 0.0
      %3085 = vmatprep.subr.mxu0 0.0
      %3086 = vmatpush1.msra.mxu0 0.0
      %3087 = vmatprep.subr.mxu0 0.0
      %3088 = vmatpush1.msra.mxu0 0.0
      %3089 = vmatprep.subr.mxu0 0.0
      %3090 = vmatpush1.msra.mxu0 0.0
      %3091 = vmatprep.subr.mxu0 0.0
      %3092 = vmatpush1.msra.mxu0 0.0
      %3093 = vmatprep.subr.mxu0 0.0
      %3094 = vmatpush1.msra.mxu0 0.0
      %3095 = vmatprep.subr.mxu0 0.0
      %3096 = vmatpush1.msra.mxu0 0.0
      %3097 = vmatprep.subr.mxu0 0.0
      %3098 = vmatpush1.msra.mxu0 0.0
      %3099 = vmatprep.mubr.f32.mxu0 0.0
      %3100 = vmatmul.mubr.f32.gmra.mrb[0].mxu0 %v2988
      %v3101 = vpop.f32.mrb[0].mxu0
      %v3102 = vadd.f32 0.0, %v3101
      %v3103 = vpop.f32.mrb[0].mxu0
      %3104 = vmatprep.mubr.f32.mxu0 0.0
      %3105 = vmatmul.mubr.f32.gmra.mrb[0].mxu0 %v2991
      %v3106 = vpop.f32.mrb[0].mxu0
      %v3107 = vadd.f32 0.0, %v3106
      %v3108 = vpop.f32.mrb[0].mxu0
      %3109 = vmatprep.mubr.f32.mxu0 0.0
      %3110 = vmatmul.mubr.f32.gmra.mrb[0].mxu0 %v2994
      %v3111 = vpop.f32.mrb[0].mxu0
      %v3112 = vadd.f32 0.0, %v3111
      %v3113 = vpop.f32.mrb[0].mxu0
      %3114 = vmatprep.mubr.f32.mxu0 0.0
      %3115 = vmatmul.mubr.f32.gmra.mrb[0].mxu0 %v2997
      %v3116 = vpop.f32.mrb[0].mxu0
      %v3117 = vadd.f32 0.0, %v3116
      %v3118 = vpop.f32.mrb[0].mxu0
      %3119 = vmatprep.mubr.f32.mxu0 0.0
      %3120 = vmatmul.mubr.f32.gmra.mrb[0].mxu0 %v3000
      %v3121 = vpop.f32.mrb[0].mxu0
      %v3122 = vadd.f32 0.0, %v3121
      %v3123 = vpop.f32.mrb[0].mxu0
      %3124 = vmatprep.mubr.f32.mxu0 0.0
      %3125 = vmatmul.mubr.f32.gmra.mrb[0].mxu0 %v3003
      %v3126 = vpop.f32.mrb[0].mxu0
      %v3127 = vadd.f32 0.0, %v3126
      %v3128 = vpop.f32.mrb[0].mxu0
      %3129 = vmatprep.mubr.f32.mxu0 0.0
      %3130 = vmatmul.mubr.f32.gmra.mrb[0].mxu0 %v3006
      %v3131 = vpop.f32.mrb[0].mxu0
      %v3132 = vadd.f32 0.0, %v3131
      %v3133 = vpop.f32.mrb[0].mxu0
      %3134 = vmatprep.mubr.f32.mxu0 0.0
      %3135 = vmatmul.mubr.f32.gmra.mrb[0].mxu0 %v3009
      %v3136 = vpop.f32.mrb[0].mxu0
      %v3137 = vadd.f32 0.0, %v3136
      %v3138 = vpop.f32.mrb[0].mxu0
      %3139 = vmatprep.mubr.f32.mxu0 0.0
      %3140 = vmatmul.mubr.f32.gmra.mrb[0].mxu0 %v3012
      %v3141 = vpop.f32.mrb[0].mxu0
      %v3142 = vadd.f32 0.0, %v3141
      %v3143 = vpop.f32.mrb[0].mxu0
      %3144 = vmatprep.mubr.f32.mxu0 0.0
      %3145 = vmatmul.mubr.f32.gmra.mrb[0].mxu0 %v3015
      %v3146 = vpop.f32.mrb[0].mxu0
      %v3147 = vadd.f32 0.0, %v3146
      %v3148 = vpop.f32.mrb[0].mxu0
      %3149 = vmatprep.mubr.f32.mxu0 0.0
      %3150 = vmatmul.mubr.f32.gmra.mrb[0].mxu0 %v3018
      %v3151 = vpop.f32.mrb[0].mxu0
      %v3152 = vadd.f32 0.0, %v3151
      %v3153 = vpop.f32.mrb[0].mxu0
      %3154 = vmatprep.mubr.f32.mxu0 0.0
      %3155 = vmatmul.mubr.f32.gmra.mrb[0].mxu0 %v3021
      %v3156 = vpop.f32.mrb[0].mxu0
      %v3157 = vadd.f32 0.0, %v3156
      %v3158 = vpop.f32.mrb[0].mxu0
      %3159 = vmatprep.mubr.f32.mxu0 0.0
      %3160 = vmatmul.mubr.f32.gmra.mrb[0].mxu0 %v3024
      %v3161 = vpop.f32.mrb[0].mxu0
      %v3162 = vadd.f32 0.0, %v3161
      %v3163 = vpop.f32.mrb[0].mxu0
      %3164 = vmatprep.mubr.f32.mxu0 0.0
      %3165 = vmatmul.mubr.f32.gmra.mrb[0].mxu0 %v3027
      %v3166 = vpop.f32.mrb[0].mxu0
      %v3167 = vadd.f32 0.0, %v3166
      %v3168 = vpop.f32.mrb[0].mxu0
      %3169 = vmatprep.mubr.f32.mxu0 0.0
      %3170 = vmatmul.mubr.f32.gmra.mrb[0].mxu0 %v3030
      %v3171 = vpop.f32.mrb[0].mxu0
      %v3172 = vadd.f32 0.0, %v3171
      %v3173 = vpop.f32.mrb[0].mxu0
      %3174 = vmatprep.mubr.f32.mxu0 0.0
      %3175 = vmatmul.mubr.f32.gmra.mrb[0].mxu0 %v3033
      %v3176 = vpop.f32.mrb[0].mxu0
      %v3177 = vadd.f32 0.0, %v3176
      %v3178 = vpop.f32.mrb[0].mxu0
      %3179 = vdwg.mxu0
      %v3181 = vsel %vm2986, %v2755, 0
      %v3184 = vsel %vm2986, %v2756, 0
      %v3187 = vsel %vm2986, %v2757, 0
      %v3190 = vsel %vm2986, %v2758, 0
      %v3193 = vsel %vm2986, %v2759, 0
      %v3196 = vsel %vm2986, %v2760, 0
      %v3199 = vsel %vm2986, %v2761, 0
      %v3202 = vsel %vm2986, %v2762, 0
      %v3205 = vsel %vm2986, %v2763, 0
      %v3208 = vsel %vm2986, %v2764, 0
      %v3211 = vsel %vm2986, %v2765, 0
      %v3214 = vsel %vm2986, %v2766, 0
      %v3217 = vsel %vm2986, %v2767, 0
      %v3220 = vsel %vm2986, %v2768, 0
      %v3223 = vsel %vm2986, %v2769, 0
      %v3226 = vsel %vm2986, %v2770, 0
      %3228 = vmatprep.subr.mxu0 0.0
      %3229 = vmatpush1.msra.mxu0 %v2771
      %3230 = vmatprep.subr.mxu0 0.0
      %3231 = vmatpush1.msra.mxu0 %v2772
      %3232 = vmatprep.subr.mxu0 0.0
      %3233 = vmatpush1.msra.mxu0 %v2773
      %3234 = vmatprep.subr.mxu0 0.0
      %3235 = vmatpush1.msra.mxu0 0.0
      %3236 = vmatprep.subr.mxu0 0.0
      %3237 = vmatpush1.msra.mxu0 0.0
      %3238 = vmatprep.subr.mxu0 0.0
      %3239 = vmatpush1.msra.mxu0 0.0
      %3240 = vmatprep.subr.mxu0 0.0
      %3241 = vmatpush1.msra.mxu0 0.0
      %3242 = vmatprep.subr.mxu0 0.0
      %3243 = vmatpush1.msra.mxu0 0.0
      %3244 = vmatprep.subr.mxu0 0.0
      %3245 = vmatpush1.msra.mxu0 0.0
      %3246 = vmatprep.subr.mxu0 0.0
      %3247 = vmatpush1.msra.mxu0 0.0
      %3248 = vmatprep.subr.mxu0 0.0
      %3249 = vmatpush1.msra.mxu0 0.0
      %3250 = vmatprep.subr.mxu0 0.0
      %3251 = vmatpush1.msra.mxu0 0.0
      %3252 = vmatprep.subr.mxu0 0.0
      %3253 = vmatpush1.msra.mxu0 0.0
      %3254 = vmatprep.subr.mxu0 0.0
      %3255 = vmatpush1.msra.mxu0 0.0
      %3256 = vmatprep.subr.mxu0 0.0
      %3257 = vmatpush1.msra.mxu0 0.0
      %3258 = vmatprep.subr.mxu0 0.0
      %3259 = vmatpush1.msra.mxu0 0.0
      %3260 = vmatprep.subr.mxu0 0.0
      %3261 = vmatpush1.msra.mxu0 0.0
      %3262 = vmatprep.subr.mxu0 0.0
      %3263 = vmatpush1.msra.mxu0 0.0
      %3264 = vmatprep.subr.mxu0 0.0
      %3265 = vmatpush1.msra.mxu0 0.0
      %3266 = vmatprep.subr.mxu0 0.0
      %3267 = vmatpush1.msra.mxu0 0.0
      %3268 = vmatprep.subr.mxu0 0.0
      %3269 = vmatpush1.msra.mxu0 0.0
      %3270 = vmatprep.subr.mxu0 0.0
      %3271 = vmatpush1.msra.mxu0 0.0
      %3272 = vmatprep.subr.mxu0 0.0
      %3273 = vmatpush1.msra.mxu0 0.0
      %3274 = vmatprep.subr.mxu0 0.0
      %3275 = vmatpush1.msra.mxu0 0.0
      %3276 = vmatprep.subr.mxu0 0.0
      %3277 = vmatpush1.msra.mxu0 0.0
      %3278 = vmatprep.subr.mxu0 0.0
      %3279 = vmatpush1.msra.mxu0 0.0
      %3280 = vmatprep.subr.mxu0 0.0
      %3281 = vmatpush1.msra.mxu0 0.0
      %3282 = vmatprep.subr.mxu0 0.0
      %3283 = vmatpush1.msra.mxu0 0.0
      %3284 = vmatprep.subr.mxu0 0.0
      %3285 = vmatpush1.msra.mxu0 0.0
      %3286 = vmatprep.subr.mxu0 0.0
      %3287 = vmatpush1.msra.mxu0 0.0
      %3288 = vmatprep.subr.mxu0 0.0
      %3289 = vmatpush1.msra.mxu0 0.0
      %3290 = vmatprep.subr.mxu0 0.0
      %3291 = vmatpush1.msra.mxu0 0.0
      %3292 = vmatprep.mubr.f32.mxu0 0.0
      %3293 = vmatmul.mubr.f32.gmra.mrb[0].mxu0 %v3181
      %v3294 = vpop.f32.mrb[0].mxu0
      %v3295 = vadd.f32 %v3102, %v3294
      %v3296 = vpop.f32.mrb[0].mxu0
      %3297 = vmatprep.mubr.f32.mxu0 0.0
      %3298 = vmatmul.mubr.f32.gmra.mrb[0].mxu0 %v3184
      %v3299 = vpop.f32.mrb[0].mxu0
      %v3300 = vadd.f32 %v3107, %v3299
      %v3301 = vpop.f32.mrb[0].mxu0
      %3302 = vmatprep.mubr.f32.mxu0 0.0
      %3303 = vmatmul.mubr.f32.gmra.mrb[0].mxu0 %v3187
      %v3304 = vpop.f32.mrb[0].mxu0
      %v3305 = vadd.f32 %v3112, %v3304
      %v3306 = vpop.f32.mrb[0].mxu0
      %3307 = vmatprep.mubr.f32.mxu0 0.0
      %3308 = vmatmul.mubr.f32.gmra.mrb[0].mxu0 %v3190
      %v3309 = vpop.f32.mrb[0].mxu0
      %v3310 = vadd.f32 %v3117, %v3309
      %v3311 = vpop.f32.mrb[0].mxu0
      %3312 = vmatprep.mubr.f32.mxu0 0.0
      %3313 = vmatmul.mubr.f32.gmra.mrb[0].mxu0 %v3193
      %v3314 = vpop.f32.mrb[0].mxu0
      %v3315 = vadd.f32 %v3122, %v3314
      %v3316 = vpop.f32.mrb[0].mxu0
      %3317 = vmatprep.mubr.f32.mxu0 0.0
      %3318 = vmatmul.mubr.f32.gmra.mrb[0].mxu0 %v3196
      %v3319 = vpop.f32.mrb[0].mxu0
      %v3320 = vadd.f32 %v3127, %v3319
      %v3321 = vpop.f32.mrb[0].mxu0
      %3322 = vmatprep.mubr.f32.mxu0 0.0
      %3323 = vmatmul.mubr.f32.gmra.mrb[0].mxu0 %v3199
      %v3324 = vpop.f32.mrb[0].mxu0
      %v3325 = vadd.f32 %v3132, %v3324
      %v3326 = vpop.f32.mrb[0].mxu0
      %3327 = vmatprep.mubr.f32.mxu0 0.0
      %3328 = vmatmul.mubr.f32.gmra.mrb[0].mxu0 %v3202
      %v3329 = vpop.f32.mrb[0].mxu0
      %v3330 = vadd.f32 %v3137, %v3329
      %v3331 = vpop.f32.mrb[0].mxu0
      %3332 = vmatprep.mubr.f32.mxu0 0.0
      %3333 = vmatmul.mubr.f32.gmra.mrb[0].mxu0 %v3205
      %v3334 = vpop.f32.mrb[0].mxu0
      %v3335 = vadd.f32 %v3142, %v3334
      %v3336 = vpop.f32.mrb[0].mxu0
      %3337 = vmatprep.mubr.f32.mxu0 0.0
      %3338 = vmatmul.mubr.f32.gmra.mrb[0].mxu0 %v3208
      %v3339 = vpop.f32.mrb[0].mxu0
      %v3340 = vadd.f32 %v3147, %v3339
      %v3341 = vpop.f32.mrb[0].mxu0
      %3342 = vmatprep.mubr.f32.mxu0 0.0
      %3343 = vmatmul.mubr.f32.gmra.mrb[0].mxu0 %v3211
      %v3344 = vpop.f32.mrb[0].mxu0
      %v3345 = vadd.f32 %v3152, %v3344
      %v3346 = vpop.f32.mrb[0].mxu0
      %3347 = vmatprep.mubr.f32.mxu0 0.0
      %3348 = vmatmul.mubr.f32.gmra.mrb[0].mxu0 %v3214
      %v3349 = vpop.f32.mrb[0].mxu0
      %v3350 = vadd.f32 %v3157, %v3349
      %v3351 = vpop.f32.mrb[0].mxu0
      %3352 = vmatprep.mubr.f32.mxu0 0.0
      %3353 = vmatmul.mubr.f32.gmra.mrb[0].mxu0 %v3217
      %v3354 = vpop.f32.mrb[0].mxu0
      %v3355 = vadd.f32 %v3162, %v3354
      %v3356 = vpop.f32.mrb[0].mxu0
      %3357 = vmatprep.mubr.f32.mxu0 0.0
      %3358 = vmatmul.mubr.f32.gmra.mrb[0].mxu0 %v3220
      %v3359 = vpop.f32.mrb[0].mxu0
      %v3360 = vadd.f32 %v3167, %v3359
      %v3361 = vpop.f32.mrb[0].mxu0
      %3362 = vmatprep.mubr.f32.mxu0 0.0
      %3363 = vmatmul.mubr.f32.gmra.mrb[0].mxu0 %v3223
      %v3364 = vpop.f32.mrb[0].mxu0
      %v3365 = vadd.f32 %v3172, %v3364
      %v3366 = vpop.f32.mrb[0].mxu0
      %3367 = vmatprep.mubr.f32.mxu0 0.0
      %3368 = vmatmul.mubr.f32.gmra.mrb[0].mxu0 %v3226
      %v3369 = vpop.f32.mrb[0].mxu0
      %v3370 = vadd.f32 %v3177, %v3369
      %v3371 = vpop.f32.mrb[0].mxu0
      %3372 = vdwg.mxu0
      %v3373 = vld [vmem:[#allocation2 + $0x10] sm:$0xff]
      %v3374 = vld [vmem:[#allocation2 + $0x18] sm:$0xff]
      %v3375 = vld [vmem:[#allocation2 + $0x20] sm:$0xff]
      %v3376 = vld [vmem:[#allocation2 + $0x28] sm:$0xff]
      %v3377 = vld [vmem:[#allocation2 + $0x30] sm:$0xff]
      %v3378 = vld [vmem:[#allocation2 + $0x38] sm:$0xff]
      %v3379 = vld [vmem:[#allocation2 + $0x40] sm:$0xff]
      %v3380 = vld [vmem:[#allocation2 + $0x48] sm:$0xff]
      %v3381 = vld [vmem:[#allocation2 + $0x50] sm:$0xff]
      %v3382 = vld [vmem:[#allocation2 + $0x58] sm:$0xff]
      %v3383 = vld [vmem:[#allocation2 + $0x60] sm:$0xff]
      %v3384 = vld [vmem:[#allocation2 + $0x68] sm:$0xff]
      %v3385 = vld [vmem:[#allocation2 + $0x70] sm:$0xff]
      %v3386 = vld [vmem:[#allocation2 + $0x78] sm:$0xff]
      %v3387 = vld [vmem:[#allocation2 + $0x80] sm:$0xff]
      %v3388 = vld [vmem:[#allocation2 + $0x88] sm:$0xff]
      %v3389 = vld [vmem:[%s1492 + $0x10] sm:$0xff]
      %v3390 = vld [vmem:[%s1492 + $0x18] sm:$0xff]
      %v3391 = vld [vmem:[%s1492 + $0x20] sm:$0xff]
      %v3392 = vld [vmem:[%s1492 + $0x28] sm:$0xff]
      %v3393 = vld [vmem:[%s1492 + $0x30] sm:$0xff]
      %v3394 = vld [vmem:[%s1492 + $0x38] sm:$0xff]
      %v3395 = vld [vmem:[%s1492 + $0x40] sm:$0xff]
      %v3396 = vld [vmem:[%s1492 + $0x48] sm:$0xff]
      %v3397 = vld [vmem:[%s1492 + $0x50] sm:$0xff]
      %v3398 = vld [vmem:[%s1492 + $0x58] sm:$0xff]
      %v3399 = vld [vmem:[%s1492 + $0x60] sm:$0xff]
      %v3400 = vld [vmem:[%s1492 + $0x68] sm:$0xff]
      %v3401 = vld [vmem:[%s1492 + $0x70] sm:$0xff]
      %v3402 = vld [vmem:[%s1492 + $0x78] sm:$0xff]
      %v3403 = vld [vmem:[%s1492 + $0x80] sm:$0xff]
      %v3404 = vld [vmem:[%s1492 + $0x88] sm:$0xff]
      %v3405 = vld [vmem:[#allocation2 + $0x11] sm:$0xff]
      %v3406 = vld [vmem:[#allocation2 + $0x19] sm:$0xff]
      %v3407 = vld [vmem:[#allocation2 + $0x21] sm:$0xff]
      %v3408 = vld [vmem:[#allocation2 + $0x29] sm:$0xff]
      %v3409 = vld [vmem:[#allocation2 + $0x31] sm:$0xff]
      %v3410 = vld [vmem:[#allocation2 + $0x39] sm:$0xff]
      %v3411 = vld [vmem:[#allocation2 + $0x41] sm:$0xff]
      %v3412 = vld [vmem:[#allocation2 + $0x49] sm:$0xff]
      %v3413 = vld [vmem:[#allocation2 + $0x51] sm:$0xff]
      %v3414 = vld [vmem:[#allocation2 + $0x59] sm:$0xff]
      %v3415 = vld [vmem:[#allocation2 + $0x61] sm:$0xff]
      %v3416 = vld [vmem:[#allocation2 + $0x69] sm:$0xff]
      %v3417 = vld [vmem:[#allocation2 + $0x71] sm:$0xff]
      %v3418 = vld [vmem:[#allocation2 + $0x79] sm:$0xff]
      %v3419 = vld [vmem:[#allocation2 + $0x81] sm:$0xff]
      %v3420 = vld [vmem:[#allocation2 + $0x89] sm:$0xff]
      %3437 = vrot.lane.b32.xlu0 %v3389, 8
      %v3438 = vpop.permute.xlu0 %3437
      %3439 = vrot.lane.b32.xlu0 %v3390, 8
      %v3440 = vpop.permute.xlu0 %3439
      %3441 = vrot.lane.b32.xlu0 %v3391, 8
      %v3442 = vpop.permute.xlu0 %3441
      %3443 = vrot.lane.b32.xlu0 %v3392, 8
      %v3444 = vpop.permute.xlu0 %3443
      %3445 = vrot.lane.b32.xlu0 %v3393, 8
      %v3446 = vpop.permute.xlu0 %3445
      %3447 = vrot.lane.b32.xlu0 %v3394, 8
      %v3448 = vpop.permute.xlu0 %3447
      %3449 = vrot.lane.b32.xlu0 %v3395, 8
      %v3450 = vpop.permute.xlu0 %3449
      %3451 = vrot.lane.b32.xlu0 %v3396, 8
      %v3452 = vpop.permute.xlu0 %3451
      %3453 = vrot.lane.b32.xlu0 %v3397, 8
      %v3454 = vpop.permute.xlu0 %3453
      %3455 = vrot.lane.b32.xlu0 %v3398, 8
      %v3456 = vpop.permute.xlu0 %3455
      %3457 = vrot.lane.b32.xlu0 %v3399, 8
      %v3458 = vpop.permute.xlu0 %3457
      %3459 = vrot.lane.b32.xlu0 %v3400, 8
      %v3460 = vpop.permute.xlu0 %3459
      %3461 = vrot.lane.b32.xlu0 %v3401, 8
      %v3462 = vpop.permute.xlu0 %3461
      %3463 = vrot.lane.b32.xlu0 %v3402, 8
      %v3464 = vpop.permute.xlu0 %3463
      %3465 = vrot.lane.b32.xlu0 %v3403, 8
      %v3466 = vpop.permute.xlu0 %3465
      %3467 = vrot.lane.b32.xlu0 %v3404, 8
      %v3468 = vpop.permute.xlu0 %3467
      %3501 = vrot.lane.b32.xlu0 %v3405, 16
      %v3502 = vpop.permute.xlu0 %3501
      %3503 = vrot.lane.b32.xlu0 %v3406, 16
      %v3504 = vpop.permute.xlu0 %3503
      %3505 = vrot.lane.b32.xlu0 %v3407, 16
      %v3506 = vpop.permute.xlu0 %3505
      %3507 = vrot.lane.b32.xlu0 %v3408, 16
      %v3508 = vpop.permute.xlu0 %3507
      %3509 = vrot.lane.b32.xlu0 %v3409, 16
      %v3510 = vpop.permute.xlu0 %3509
      %3511 = vrot.lane.b32.xlu0 %v3410, 16
      %v3512 = vpop.permute.xlu0 %3511
      %3513 = vrot.lane.b32.xlu0 %v3411, 16
      %v3514 = vpop.permute.xlu0 %3513
      %3515 = vrot.lane.b32.xlu0 %v3412, 16
      %v3516 = vpop.permute.xlu0 %3515
      %3517 = vrot.lane.b32.xlu0 %v3413, 16
      %v3518 = vpop.permute.xlu0 %3517
      %3519 = vrot.lane.b32.xlu0 %v3414, 16
      %v3520 = vpop.permute.xlu0 %3519
      %3521 = vrot.lane.b32.xlu0 %v3415, 16
      %v3522 = vpop.permute.xlu0 %3521
      %3523 = vrot.lane.b32.xlu0 %v3416, 16
      %v3524 = vpop.permute.xlu0 %3523
      %3525 = vrot.lane.b32.xlu0 %v3417, 16
      %v3526 = vpop.permute.xlu0 %3525
      %3527 = vrot.lane.b32.xlu0 %v3418, 16
      %v3528 = vpop.permute.xlu0 %3527
      %3529 = vrot.lane.b32.xlu0 %v3419, 16
      %v3530 = vpop.permute.xlu0 %3529
      %3531 = vrot.lane.b32.xlu0 %v3420, 16
      %v3532 = vpop.permute.xlu0 %3531
      %v3549 = vsel %vm968, %v3373, %v3438
      %v3550 = vsel %vm968, %v3374, %v3440
      %v3551 = vsel %vm968, %v3375, %v3442
      %v3552 = vsel %vm968, %v3376, %v3444
      %v3553 = vsel %vm968, %v3377, %v3446
      %v3554 = vsel %vm968, %v3378, %v3448
      %v3555 = vsel %vm968, %v3379, %v3450
      %v3556 = vsel %vm968, %v3380, %v3452
      %v3557 = vsel %vm968, %v3381, %v3454
      %v3558 = vsel %vm968, %v3382, %v3456
      %v3559 = vsel %vm968, %v3383, %v3458
      %v3560 = vsel %vm968, %v3384, %v3460
      %v3561 = vsel %vm968, %v3385, %v3462
      %v3562 = vsel %vm968, %v3386, %v3464
      %v3563 = vsel %vm968, %v3387, %v3466
      %v3564 = vsel %vm968, %v3388, %v3468
      %v3565 = vsel %vm492, %v3549, %v3502
      %v3566 = vsel %vm492, %v3550, %v3504
      %v3567 = vsel %vm492, %v3551, %v3506
      %v3568 = vsel %vm492, %v3552, %v3508
      %v3569 = vsel %vm492, %v3553, %v3510
      %v3570 = vsel %vm492, %v3554, %v3512
      %v3571 = vsel %vm492, %v3555, %v3514
      %v3572 = vsel %vm492, %v3556, %v3516
      %v3573 = vsel %vm492, %v3557, %v3518
      %v3574 = vsel %vm492, %v3558, %v3520
      %v3575 = vsel %vm492, %v3559, %v3522
      %v3576 = vsel %vm492, %v3560, %v3524
      %v3577 = vsel %vm492, %v3561, %v3526
      %v3578 = vsel %vm492, %v3562, %v3528
      %v3579 = vsel %vm492, %v3563, %v3530
      %v3580 = vsel %vm492, %v3564, %v3532
      %s3581 = scalar_lea.vmem %s5, 48
      %v3582 = vld [vmem:[%s3581] sm:$0xff]
      %v3583 = vld [vmem:[%s3581 + $0x8] sm:$0xff]
      %v3584 = vld [vmem:[%s3581 + $0x10] sm:$0xff]
      %v3586 = vsel %vm2986, %v3565, 0
      %v3589 = vsel %vm2986, %v3566, 0
      %v3592 = vsel %vm2986, %v3567, 0
      %v3595 = vsel %vm2986, %v3568, 0
      %v3598 = vsel %vm2986, %v3569, 0
      %v3601 = vsel %vm2986, %v3570, 0
      %v3604 = vsel %vm2986, %v3571, 0
      %v3607 = vsel %vm2986, %v3572, 0
      %v3610 = vsel %vm2986, %v3573, 0
      %v3613 = vsel %vm2986, %v3574, 0
      %v3616 = vsel %vm2986, %v3575, 0
      %v3619 = vsel %vm2986, %v3576, 0
      %v3622 = vsel %vm2986, %v3577, 0
      %v3625 = vsel %vm2986, %v3578, 0
      %v3628 = vsel %vm2986, %v3579, 0
      %v3631 = vsel %vm2986, %v3580, 0
      %3633 = vmatprep.subr.mxu0 0.0
      %3634 = vmatpush1.msra.mxu0 %v3582
      %3635 = vmatprep.subr.mxu0 0.0
      %3636 = vmatpush1.msra.mxu0 %v3583
      %3637 = vmatprep.subr.mxu0 0.0
      %3638 = vmatpush1.msra.mxu0 %v3584
      %3639 = vmatprep.subr.mxu0 0.0
      %3640 = vmatpush1.msra.mxu0 0.0
      %3641 = vmatprep.subr.mxu0 0.0
      %3642 = vmatpush1.msra.mxu0 0.0
      %3643 = vmatprep.subr.mxu0 0.0
      %3644 = vmatpush1.msra.mxu0 0.0
      %3645 = vmatprep.subr.mxu0 0.0
      %3646 = vmatpush1.msra.mxu0 0.0
      %3647 = vmatprep.subr.mxu0 0.0
      %3648 = vmatpush1.msra.mxu0 0.0
      %3649 = vmatprep.subr.mxu0 0.0
      %3650 = vmatpush1.msra.mxu0 0.0
      %3651 = vmatprep.subr.mxu0 0.0
      %3652 = vmatpush1.msra.mxu0 0.0
      %3653 = vmatprep.subr.mxu0 0.0
      %3654 = vmatpush1.msra.mxu0 0.0
      %3655 = vmatprep.subr.mxu0 0.0
      %3656 = vmatpush1.msra.mxu0 0.0
      %3657 = vmatprep.subr.mxu0 0.0
      %3658 = vmatpush1.msra.mxu0 0.0
      %3659 = vmatprep.subr.mxu0 0.0
      %3660 = vmatpush1.msra.mxu0 0.0
      %3661 = vmatprep.subr.mxu0 0.0
      %3662 = vmatpush1.msra.mxu0 0.0
      %3663 = vmatprep.subr.mxu0 0.0
      %3664 = vmatpush1.msra.mxu0 0.0
      %3665 = vmatprep.subr.mxu0 0.0
      %3666 = vmatpush1.msra.mxu0 0.0
      %3667 = vmatprep.subr.mxu0 0.0
      %3668 = vmatpush1.msra.mxu0 0.0
      %3669 = vmatprep.subr.mxu0 0.0
      %3670 = vmatpush1.msra.mxu0 0.0
      %3671 = vmatprep.subr.mxu0 0.0
      %3672 = vmatpush1.msra.mxu0 0.0
      %3673 = vmatprep.subr.mxu0 0.0
      %3674 = vmatpush1.msra.mxu0 0.0
      %3675 = vmatprep.subr.mxu0 0.0
      %3676 = vmatpush1.msra.mxu0 0.0
      %3677 = vmatprep.subr.mxu0 0.0
      %3678 = vmatpush1.msra.mxu0 0.0
      %3679 = vmatprep.subr.mxu0 0.0
      %3680 = vmatpush1.msra.mxu0 0.0
      %3681 = vmatprep.subr.mxu0 0.0
      %3682 = vmatpush1.msra.mxu0 0.0
      %3683 = vmatprep.subr.mxu0 0.0
      %3684 = vmatpush1.msra.mxu0 0.0
      %3685 = vmatprep.subr.mxu0 0.0
      %3686 = vmatpush1.msra.mxu0 0.0
      %3687 = vmatprep.subr.mxu0 0.0
      %3688 = vmatpush1.msra.mxu0 0.0
      %3689 = vmatprep.subr.mxu0 0.0
      %3690 = vmatpush1.msra.mxu0 0.0
      %3691 = vmatprep.subr.mxu0 0.0
      %3692 = vmatpush1.msra.mxu0 0.0
      %3693 = vmatprep.subr.mxu0 0.0
      %3694 = vmatpush1.msra.mxu0 0.0
      %3695 = vmatprep.subr.mxu0 0.0
      %3696 = vmatpush1.msra.mxu0 0.0
      %3697 = vmatprep.mubr.f32.mxu0 0.0
      %3698 = vmatmul.mubr.f32.gmra.mrb[0].mxu0 %v3586
      %v3699 = vpop.f32.mrb[0].mxu0
      %v3700 = vadd.f32 0.0, %v3699
      %v3701 = vpop.f32.mrb[0].mxu0
      %3702 = vmatprep.mubr.f32.mxu0 0.0
      %3703 = vmatmul.mubr.f32.gmra.mrb[0].mxu0 %v3589
      %v3704 = vpop.f32.mrb[0].mxu0
      %v3705 = vadd.f32 0.0, %v3704
      %v3706 = vpop.f32.mrb[0].mxu0
      %3707 = vmatprep.mubr.f32.mxu0 0.0
      %3708 = vmatmul.mubr.f32.gmra.mrb[0].mxu0 %v3592
      %v3709 = vpop.f32.mrb[0].mxu0
      %v3710 = vadd.f32 0.0, %v3709
      %v3711 = vpop.f32.mrb[0].mxu0
      %3712 = vmatprep.mubr.f32.mxu0 0.0
      %3713 = vmatmul.mubr.f32.gmra.mrb[0].mxu0 %v3595
      %v3714 = vpop.f32.mrb[0].mxu0
      %v3715 = vadd.f32 0.0, %v3714
      %v3716 = vpop.f32.mrb[0].mxu0
      %3717 = vmatprep.mubr.f32.mxu0 0.0
      %3718 = vmatmul.mubr.f32.gmra.mrb[0].mxu0 %v3598
      %v3719 = vpop.f32.mrb[0].mxu0
      %v3720 = vadd.f32 0.0, %v3719
      %v3721 = vpop.f32.mrb[0].mxu0
      %3722 = vmatprep.mubr.f32.mxu0 0.0
      %3723 = vmatmul.mubr.f32.gmra.mrb[0].mxu0 %v3601
      %v3724 = vpop.f32.mrb[0].mxu0
      %v3725 = vadd.f32 0.0, %v3724
      %v3726 = vpop.f32.mrb[0].mxu0
      %3727 = vmatprep.mubr.f32.mxu0 0.0
      %3728 = vmatmul.mubr.f32.gmra.mrb[0].mxu0 %v3604
      %v3729 = vpop.f32.mrb[0].mxu0
      %v3730 = vadd.f32 0.0, %v3729
      %v3731 = vpop.f32.mrb[0].mxu0
      %3732 = vmatprep.mubr.f32.mxu0 0.0
      %3733 = vmatmul.mubr.f32.gmra.mrb[0].mxu0 %v3607
      %v3734 = vpop.f32.mrb[0].mxu0
      %v3735 = vadd.f32 0.0, %v3734
      %v3736 = vpop.f32.mrb[0].mxu0
      %3737 = vmatprep.mubr.f32.mxu0 0.0
      %3738 = vmatmul.mubr.f32.gmra.mrb[0].mxu0 %v3610
      %v3739 = vpop.f32.mrb[0].mxu0
      %v3740 = vadd.f32 0.0, %v3739
      %v3741 = vpop.f32.mrb[0].mxu0
      %3742 = vmatprep.mubr.f32.mxu0 0.0
      %3743 = vmatmul.mubr.f32.gmra.mrb[0].mxu0 %v3613
      %v3744 = vpop.f32.mrb[0].mxu0
      %v3745 = vadd.f32 0.0, %v3744
      %v3746 = vpop.f32.mrb[0].mxu0
      %3747 = vmatprep.mubr.f32.mxu0 0.0
      %3748 = vmatmul.mubr.f32.gmra.mrb[0].mxu0 %v3616
      %v3749 = vpop.f32.mrb[0].mxu0
      %v3750 = vadd.f32 0.0, %v3749
      %v3751 = vpop.f32.mrb[0].mxu0
      %3752 = vmatprep.mubr.f32.mxu0 0.0
      %3753 = vmatmul.mubr.f32.gmra.mrb[0].mxu0 %v3619
      %v3754 = vpop.f32.mrb[0].mxu0
      %v3755 = vadd.f32 0.0, %v3754
      %v3756 = vpop.f32.mrb[0].mxu0
      %3757 = vmatprep.mubr.f32.mxu0 0.0
      %3758 = vmatmul.mubr.f32.gmra.mrb[0].mxu0 %v3622
      %v3759 = vpop.f32.mrb[0].mxu0
      %v3760 = vadd.f32 0.0, %v3759
      %v3761 = vpop.f32.mrb[0].mxu0
      %3762 = vmatprep.mubr.f32.mxu0 0.0
      %3763 = vmatmul.mubr.f32.gmra.mrb[0].mxu0 %v3625
      %v3764 = vpop.f32.mrb[0].mxu0
      %v3765 = vadd.f32 0.0, %v3764
      %v3766 = vpop.f32.mrb[0].mxu0
      %3767 = vmatprep.mubr.f32.mxu0 0.0
      %3768 = vmatmul.mubr.f32.gmra.mrb[0].mxu0 %v3628
      %v3769 = vpop.f32.mrb[0].mxu0
      %v3770 = vadd.f32 0.0, %v3769
      %v3771 = vpop.f32.mrb[0].mxu0
      %3772 = vmatprep.mubr.f32.mxu0 0.0
      %3773 = vmatmul.mubr.f32.gmra.mrb[0].mxu0 %v3631
      %v3774 = vpop.f32.mrb[0].mxu0
      %v3775 = vadd.f32 0.0, %v3774
      %v3776 = vpop.f32.mrb[0].mxu0
      %3777 = vdwg.mxu0
      %v3778 = vadd.f32 %v3295, %v3700
      %v3779 = vadd.f32 %v3300, %v3705
      %v3780 = vadd.f32 %v3305, %v3710
      %v3781 = vadd.f32 %v3310, %v3715
      %v3782 = vadd.f32 %v3315, %v3720
      %v3783 = vadd.f32 %v3320, %v3725
      %v3784 = vadd.f32 %v3325, %v3730
      %v3785 = vadd.f32 %v3330, %v3735
      %v3786 = vadd.f32 %v3335, %v3740
      %v3787 = vadd.f32 %v3340, %v3745
      %v3788 = vadd.f32 %v3345, %v3750
      %v3789 = vadd.f32 %v3350, %v3755
      %v3790 = vadd.f32 %v3355, %v3760
      %v3791 = vadd.f32 %v3360, %v3765
      %v3792 = vadd.f32 %v3365, %v3770
      %v3793 = vadd.f32 %v3370, %v3775
      %v3794 = vld [vmem:[%s6] sm:$0x1]
      %v3796 = vlaneseq
      %v3797 = vshrl.u32 %v3796, 7
      %v3798 = vsub.s32 0, %v3797
      %v3799 = vrot.slane %v3794, %v3798
      %v3801 = vmul.f32 %v3778, %v3799
      %v3802 = vmul.f32 %v3779, %v3799
      %v3803 = vmul.f32 %v3780, %v3799
      %v3804 = vmul.f32 %v3781, %v3799
      %v3805 = vmul.f32 %v3782, %v3799
      %v3806 = vmul.f32 %v3783, %v3799
      %v3807 = vmul.f32 %v3784, %v3799
      %v3808 = vmul.f32 %v3785, %v3799
      %v3809 = vmul.f32 %v3786, %v3799
      %v3810 = vmul.f32 %v3787, %v3799
      %v3811 = vmul.f32 %v3788, %v3799
      %v3812 = vmul.f32 %v3789, %v3799
      %v3813 = vmul.f32 %v3790, %v3799
      %v3814 = vmul.f32 %v3791, %v3799
      %v3815 = vmul.f32 %v3792, %v3799
      %v3816 = vmul.f32 %v3793, %v3799
      %v3817 = vld [vmem:[%s7] sm:$0x1]
      %v3819 = vlaneseq
      %v3820 = vshrl.u32 %v3819, 7
      %v3821 = vsub.s32 0, %v3820
      %v3822 = vrot.slane %v3817, %v3821
      %v3824 = vadd.f32 %v3801, %v3822
      %v3825 = vadd.f32 %v3802, %v3822
      %v3826 = vadd.f32 %v3803, %v3822
      %v3827 = vadd.f32 %v3804, %v3822
      %v3828 = vadd.f32 %v3805, %v3822
      %v3829 = vadd.f32 %v3806, %v3822
      %v3830 = vadd.f32 %v3807, %v3822
      %v3831 = vadd.f32 %v3808, %v3822
      %v3832 = vadd.f32 %v3809, %v3822
      %v3833 = vadd.f32 %v3810, %v3822
      %v3834 = vadd.f32 %v3811, %v3822
      %v3835 = vadd.f32 %v3812, %v3822
      %v3836 = vadd.f32 %v3813, %v3822
      %v3837 = vadd.f32 %v3814, %v3822
      %v3838 = vadd.f32 %v3815, %v3822
      %v3839 = vadd.f32 %v3816, %v3822
      %v3840 = vmax.f32 %v3824, 0.0
      %v3841 = vmax.f32 %v3825, 0.0
      %v3842 = vmax.f32 %v3826, 0.0
      %v3843 = vmax.f32 %v3827, 0.0
      %v3844 = vmax.f32 %v3828, 0.0
      %v3845 = vmax.f32 %v3829, 0.0
      %v3846 = vmax.f32 %v3830, 0.0
      %v3847 = vmax.f32 %v3831, 0.0
      %v3848 = vmax.f32 %v3832, 0.0
      %v3849 = vmax.f32 %v3833, 0.0
      %v3850 = vmax.f32 %v3834, 0.0
      %v3851 = vmax.f32 %v3835, 0.0
      %v3852 = vmax.f32 %v3836, 0.0
      %v3853 = vmax.f32 %v3837, 0.0
      %v3854 = vmax.f32 %v3838, 0.0
      %v3855 = vmax.f32 %v3839, 0.0
      %v3856 = vld [vmem:[%s8] sm:$0xff]
      %v3858 = vsel %vm968, %v3840, 0
      %v3861 = vsel %vm968, %v3841, 0
      %v3864 = vsel %vm968, %v3842, 0
      %v3867 = vsel %vm968, %v3843, 0
      %v3870 = vsel %vm968, %v3844, 0
      %v3873 = vsel %vm968, %v3845, 0
      %v3876 = vsel %vm968, %v3846, 0
      %v3879 = vsel %vm968, %v3847, 0
      %v3882 = vsel %vm968, %v3848, 0
      %v3885 = vsel %vm968, %v3849, 0
      %v3888 = vsel %vm968, %v3850, 0
      %v3891 = vsel %vm968, %v3851, 0
      %v3894 = vsel %vm968, %v3852, 0
      %v3897 = vsel %vm968, %v3853, 0
      %v3900 = vsel %vm968, %v3854, 0
      %v3903 = vsel %vm968, %v3855, 0
      %3905 = vmatprep.subr.mxu0 0.0
      %3906 = vmatpush1.msra.mxu0 %v3856
      %3907 = vmatprep.subr.mxu0 0.0
      %3908 = vmatpush1.msra.mxu0 0.0
      %3909 = vmatprep.subr.mxu0 0.0
      %3910 = vmatpush1.msra.mxu0 0.0
      %3911 = vmatprep.subr.mxu0 0.0
      %3912 = vmatpush1.msra.mxu0 0.0
      %3913 = vmatprep.subr.mxu0 0.0
      %3914 = vmatpush1.msra.mxu0 0.0
      %3915 = vmatprep.subr.mxu0 0.0
      %3916 = vmatpush1.msra.mxu0 0.0
      %3917 = vmatprep.subr.mxu0 0.0
      %3918 = vmatpush1.msra.mxu0 0.0
      %3919 = vmatprep.subr.mxu0 0.0
      %3920 = vmatpush1.msra.mxu0 0.0
      %3921 = vmatprep.subr.mxu0 0.0
      %3922 = vmatpush1.msra.mxu0 0.0
      %3923 = vmatprep.subr.mxu0 0.0
      %3924 = vmatpush1.msra.mxu0 0.0
      %3925 = vmatprep.subr.mxu0 0.0
      %3926 = vmatpush1.msra.mxu0 0.0
      %3927 = vmatprep.subr.mxu0 0.0
      %3928 = vmatpush1.msra.mxu0 0.0
      %3929 = vmatprep.subr.mxu0 0.0
      %3930 = vmatpush1.msra.mxu0 0.0
      %3931 = vmatprep.subr.mxu0 0.0
      %3932 = vmatpush1.msra.mxu0 0.0
      %3933 = vmatprep.subr.mxu0 0.0
      %3934 = vmatpush1.msra.mxu0 0.0
      %3935 = vmatprep.subr.mxu0 0.0
      %3936 = vmatpush1.msra.mxu0 0.0
      %3937 = vmatprep.subr.mxu0 0.0
      %3938 = vmatpush1.msra.mxu0 0.0
      %3939 = vmatprep.subr.mxu0 0.0
      %3940 = vmatpush1.msra.mxu0 0.0
      %3941 = vmatprep.subr.mxu0 0.0
      %3942 = vmatpush1.msra.mxu0 0.0
      %3943 = vmatprep.subr.mxu0 0.0
      %3944 = vmatpush1.msra.mxu0 0.0
      %3945 = vmatprep.subr.mxu0 0.0
      %3946 = vmatpush1.msra.mxu0 0.0
      %3947 = vmatprep.subr.mxu0 0.0
      %3948 = vmatpush1.msra.mxu0 0.0
      %3949 = vmatprep.subr.mxu0 0.0
      %3950 = vmatpush1.msra.mxu0 0.0
      %3951 = vmatprep.subr.mxu0 0.0
      %3952 = vmatpush1.msra.mxu0 0.0
      %3953 = vmatprep.subr.mxu0 0.0
      %3954 = vmatpush1.msra.mxu0 0.0
      %3955 = vmatprep.subr.mxu0 0.0
      %3956 = vmatpush1.msra.mxu0 0.0
      %3957 = vmatprep.subr.mxu0 0.0
      %3958 = vmatpush1.msra.mxu0 0.0
      %3959 = vmatprep.subr.mxu0 0.0
      %3960 = vmatpush1.msra.mxu0 0.0
      %3961 = vmatprep.subr.mxu0 0.0
      %3962 = vmatpush1.msra.mxu0 0.0
      %3963 = vmatprep.subr.mxu0 0.0
      %3964 = vmatpush1.msra.mxu0 0.0
      %3965 = vmatprep.subr.mxu0 0.0
      %3966 = vmatpush1.msra.mxu0 0.0
      %3967 = vmatprep.subr.mxu0 0.0
      %3968 = vmatpush1.msra.mxu0 0.0
      %3969 = vmatprep.mubr.f32.mxu0 0.0
      %3970 = vmatmul.mubr.f32.gmra.mrb[0].mxu0 %v3858
      %v3971 = vpop.f32.mrb[0].mxu0
      %v3972 = vadd.f32 0.0, %v3971
      %v3973 = vpop.f32.mrb[0].mxu0
      %3974 = vmatprep.mubr.f32.mxu0 0.0
      %3975 = vmatmul.mubr.f32.gmra.mrb[0].mxu0 %v3861
      %v3976 = vpop.f32.mrb[0].mxu0
      %v3977 = vpop.f32.mrb[0].mxu0
      %3978 = vmatprep.mubr.f32.mxu0 0.0
      %3979 = vmatmul.mubr.f32.gmra.mrb[0].mxu0 %v3864
      %v3980 = vpop.f32.mrb[0].mxu0
      %v3981 = vadd.f32 0.0, %v3980
      %v3982 = vpop.f32.mrb[0].mxu0
      %3983 = vmatprep.mubr.f32.mxu0 0.0
      %3984 = vmatmul.mubr.f32.gmra.mrb[0].mxu0 %v3867
      %v3985 = vpop.f32.mrb[0].mxu0
      %v3986 = vpop.f32.mrb[0].mxu0
      %3987 = vmatprep.mubr.f32.mxu0 0.0
      %3988 = vmatmul.mubr.f32.gmra.mrb[0].mxu0 %v3870
      %v3989 = vpop.f32.mrb[0].mxu0
      %v3990 = vadd.f32 0.0, %v3989
      %v3991 = vpop.f32.mrb[0].mxu0
      %3992 = vmatprep.mubr.f32.mxu0 0.0
      %3993 = vmatmul.mubr.f32.gmra.mrb[0].mxu0 %v3873
      %v3994 = vpop.f32.mrb[0].mxu0
      %v3995 = vpop.f32.mrb[0].mxu0
      %3996 = vmatprep.mubr.f32.mxu0 0.0
      %3997 = vmatmul.mubr.f32.gmra.mrb[0].mxu0 %v3876
      %v3998 = vpop.f32.mrb[0].mxu0
      %v3999 = vadd.f32 0.0, %v3998
      %v4000 = vpop.f32.mrb[0].mxu0
      %4001 = vmatprep.mubr.f32.mxu0 0.0
      %4002 = vmatmul.mubr.f32.gmra.mrb[0].mxu0 %v3879
      %v4003 = vpop.f32.mrb[0].mxu0
      %v4004 = vpop.f32.mrb[0].mxu0
      %4005 = vmatprep.mubr.f32.mxu0 0.0
      %4006 = vmatmul.mubr.f32.gmra.mrb[0].mxu0 %v3882
      %v4007 = vpop.f32.mrb[0].mxu0
      %v4008 = vadd.f32 0.0, %v4007
      %v4009 = vpop.f32.mrb[0].mxu0
      %4010 = vmatprep.mubr.f32.mxu0 0.0
      %4011 = vmatmul.mubr.f32.gmra.mrb[0].mxu0 %v3885
      %v4012 = vpop.f32.mrb[0].mxu0
      %v4013 = vpop.f32.mrb[0].mxu0
      %4014 = vmatprep.mubr.f32.mxu0 0.0
      %4015 = vmatmul.mubr.f32.gmra.mrb[0].mxu0 %v3888
      %v4016 = vpop.f32.mrb[0].mxu0
      %v4017 = vadd.f32 0.0, %v4016
      %v4018 = vpop.f32.mrb[0].mxu0
      %4019 = vmatprep.mubr.f32.mxu0 0.0
      %4020 = vmatmul.mubr.f32.gmra.mrb[0].mxu0 %v3891
      %v4021 = vpop.f32.mrb[0].mxu0
      %v4022 = vpop.f32.mrb[0].mxu0
      %4023 = vmatprep.mubr.f32.mxu0 0.0
      %4024 = vmatmul.mubr.f32.gmra.mrb[0].mxu0 %v3894
      %v4025 = vpop.f32.mrb[0].mxu0
      %v4026 = vadd.f32 0.0, %v4025
      %v4027 = vpop.f32.mrb[0].mxu0
      %4028 = vmatprep.mubr.f32.mxu0 0.0
      %4029 = vmatmul.mubr.f32.gmra.mrb[0].mxu0 %v3897
      %v4030 = vpop.f32.mrb[0].mxu0
      %v4031 = vpop.f32.mrb[0].mxu0
      %4032 = vmatprep.mubr.f32.mxu0 0.0
      %4033 = vmatmul.mubr.f32.gmra.mrb[0].mxu0 %v3900
      %v4034 = vpop.f32.mrb[0].mxu0
      %v4035 = vadd.f32 0.0, %v4034
      %v4036 = vpop.f32.mrb[0].mxu0
      %4037 = vmatprep.mubr.f32.mxu0 0.0
      %4038 = vmatmul.mubr.f32.gmra.mrb[0].mxu0 %v3903
      %v4039 = vpop.f32.mrb[0].mxu0
      %v4040 = vpop.f32.mrb[0].mxu0
      %4041 = vdwg.mxu0
      %v4042 = vld [vmem:[%s9] sm:$0x1]
      %v4044 = vlaneseq
      %v4045 = vshrl.u32 %v4044, 7
      %v4046 = vsub.s32 0, %v4045
      %v4047 = vrot.slane %v4042, %v4046
      %v4049 = vmul.f32 %v3972, %v4047
      %v4050 = vmul.f32 %v3981, %v4047
      %v4051 = vmul.f32 %v3990, %v4047
      %v4052 = vmul.f32 %v3999, %v4047
      %v4053 = vmul.f32 %v4008, %v4047
      %v4054 = vmul.f32 %v4017, %v4047
      %v4055 = vmul.f32 %v4026, %v4047
      %v4056 = vmul.f32 %v4035, %v4047
      %v4057 = vld [vmem:[%s10] sm:$0x1]
      %v4059 = vlaneseq
      %v4060 = vshrl.u32 %v4059, 7
      %v4061 = vsub.s32 0, %v4060
      %v4062 = vrot.slane %v4057, %v4061
      %v4064 = vadd.f32 %v4049, %v4062
      %v4065 = vadd.f32 %v4050, %v4062
      %v4066 = vadd.f32 %v4051, %v4062
      %v4067 = vadd.f32 %v4052, %v4062
      %v4068 = vadd.f32 %v4053, %v4062
      %v4069 = vadd.f32 %v4054, %v4062
      %v4070 = vadd.f32 %v4055, %v4062
      %v4071 = vadd.f32 %v4056, %v4062
      %v4072 = vld [vmem:[%s2039] sm:$0xff]
      %v4073 = vld [vmem:[%s2039 + $0x8] sm:$0xff]
      %v4074 = vld [vmem:[%s2039 + $0x10] sm:$0xff]
      %v4075 = vld [vmem:[%s2039 + $0x18] sm:$0xff]
      %v4076 = vld [vmem:[%s2039 + $0x20] sm:$0xff]
      %v4077 = vld [vmem:[%s2039 + $0x28] sm:$0xff]
      %v4078 = vld [vmem:[%s2039 + $0x30] sm:$0xff]
      %v4079 = vld [vmem:[%s2039 + $0x38] sm:$0xff]
      %v4080 = vld [vmem:[%s2039 + $0x40] sm:$0xff]
      %v4081 = vld [vmem:[%s2039 + $0x48] sm:$0xff]
      %v4082 = vld [vmem:[%s2039 + $0x50] sm:$0xff]
      %v4083 = vld [vmem:[%s2039 + $0x58] sm:$0xff]
      %v4084 = vld [vmem:[%s2039 + $0x60] sm:$0xff]
      %v4085 = vld [vmem:[%s2039 + $0x68] sm:$0xff]
      %v4086 = vld [vmem:[%s2039 + $0x70] sm:$0xff]
      %v4087 = vld [vmem:[%s2039 + $0x78] sm:$0xff]
      %v4088 = vld [vmem:[%s11] sm:$0xff]
      %v4089 = vld [vmem:[%s11 + $0x8] sm:$0xff]
      %v4091 = vsel %vm492, %v4072, 0
      %v4094 = vsel %vm492, %v4073, 0
      %v4097 = vsel %vm492, %v4074, 0
      %v4100 = vsel %vm492, %v4075, 0
      %v4103 = vsel %vm492, %v4076, 0
      %v4106 = vsel %vm492, %v4077, 0
      %v4109 = vsel %vm492, %v4078, 0
      %v4112 = vsel %vm492, %v4079, 0
      %v4115 = vsel %vm492, %v4080, 0
      %v4118 = vsel %vm492, %v4081, 0
      %v4121 = vsel %vm492, %v4082, 0
      %v4124 = vsel %vm492, %v4083, 0
      %v4127 = vsel %vm492, %v4084, 0
      %v4130 = vsel %vm492, %v4085, 0
      %v4133 = vsel %vm492, %v4086, 0
      %v4136 = vsel %vm492, %v4087, 0
      %4138 = vmatprep.subr.mxu0 0.0
      %4139 = vmatpush1.msra.mxu0 %v4088
      %4140 = vmatprep.subr.mxu0 0.0
      %4141 = vmatpush1.msra.mxu0 %v4089
      %4142 = vmatprep.subr.mxu0 0.0
      %4143 = vmatpush1.msra.mxu0 0.0
      %4144 = vmatprep.subr.mxu0 0.0
      %4145 = vmatpush1.msra.mxu0 0.0
      %4146 = vmatprep.subr.mxu0 0.0
      %4147 = vmatpush1.msra.mxu0 0.0
      %4148 = vmatprep.subr.mxu0 0.0
      %4149 = vmatpush1.msra.mxu0 0.0
      %4150 = vmatprep.subr.mxu0 0.0
      %4151 = vmatpush1.msra.mxu0 0.0
      %4152 = vmatprep.subr.mxu0 0.0
      %4153 = vmatpush1.msra.mxu0 0.0
      %4154 = vmatprep.subr.mxu0 0.0
      %4155 = vmatpush1.msra.mxu0 0.0
      %4156 = vmatprep.subr.mxu0 0.0
      %4157 = vmatpush1.msra.mxu0 0.0
      %4158 = vmatprep.subr.mxu0 0.0
      %4159 = vmatpush1.msra.mxu0 0.0
      %4160 = vmatprep.subr.mxu0 0.0
      %4161 = vmatpush1.msra.mxu0 0.0
      %4162 = vmatprep.subr.mxu0 0.0
      %4163 = vmatpush1.msra.mxu0 0.0
      %4164 = vmatprep.subr.mxu0 0.0
      %4165 = vmatpush1.msra.mxu0 0.0
      %4166 = vmatprep.subr.mxu0 0.0
      %4167 = vmatpush1.msra.mxu0 0.0
      %4168 = vmatprep.subr.mxu0 0.0
      %4169 = vmatpush1.msra.mxu0 0.0
      %4170 = vmatprep.subr.mxu0 0.0
      %4171 = vmatpush1.msra.mxu0 0.0
      %4172 = vmatprep.subr.mxu0 0.0
      %4173 = vmatpush1.msra.mxu0 0.0
      %4174 = vmatprep.subr.mxu0 0.0
      %4175 = vmatpush1.msra.mxu0 0.0
      %4176 = vmatprep.subr.mxu0 0.0
      %4177 = vmatpush1.msra.mxu0 0.0
      %4178 = vmatprep.subr.mxu0 0.0
      %4179 = vmatpush1.msra.mxu0 0.0
      %4180 = vmatprep.subr.mxu0 0.0
      %4181 = vmatpush1.msra.mxu0 0.0
      %4182 = vmatprep.subr.mxu0 0.0
      %4183 = vmatpush1.msra.mxu0 0.0
      %4184 = vmatprep.subr.mxu0 0.0
      %4185 = vmatpush1.msra.mxu0 0.0
      %4186 = vmatprep.subr.mxu0 0.0
      %4187 = vmatpush1.msra.mxu0 0.0
      %4188 = vmatprep.subr.mxu0 0.0
      %4189 = vmatpush1.msra.mxu0 0.0
      %4190 = vmatprep.subr.mxu0 0.0
      %4191 = vmatpush1.msra.mxu0 0.0
      %4192 = vmatprep.subr.mxu0 0.0
      %4193 = vmatpush1.msra.mxu0 0.0
      %4194 = vmatprep.subr.mxu0 0.0
      %4195 = vmatpush1.msra.mxu0 0.0
      %4196 = vmatprep.subr.mxu0 0.0
      %4197 = vmatpush1.msra.mxu0 0.0
      %4198 = vmatprep.subr.mxu0 0.0
      %4199 = vmatpush1.msra.mxu0 0.0
      %4200 = vmatprep.subr.mxu0 0.0
      %4201 = vmatpush1.msra.mxu0 0.0
      %4202 = vmatprep.mubr.f32.mxu0 0.0
      %4203 = vmatmul.mubr.f32.gmra.mrb[0].mxu0 %v4091
      %v4204 = vpop.f32.mrb[0].mxu0
      %v4205 = vadd.f32 0.0, %v4204
      %v4206 = vpop.f32.mrb[0].mxu0
      %4207 = vmatprep.mubr.f32.mxu0 0.0
      %4208 = vmatmul.mubr.f32.gmra.mrb[0].mxu0 %v4094
      %v4209 = vpop.f32.mrb[0].mxu0
      %v4210 = vpop.f32.mrb[0].mxu0
      %4211 = vmatprep.mubr.f32.mxu0 0.0
      %4212 = vmatmul.mubr.f32.gmra.mrb[0].mxu0 %v4097
      %v4213 = vpop.f32.mrb[0].mxu0
      %v4214 = vadd.f32 0.0, %v4213
      %v4215 = vpop.f32.mrb[0].mxu0
      %4216 = vmatprep.mubr.f32.mxu0 0.0
      %4217 = vmatmul.mubr.f32.gmra.mrb[0].mxu0 %v4100
      %v4218 = vpop.f32.mrb[0].mxu0
      %v4219 = vpop.f32.mrb[0].mxu0
      %4220 = vmatprep.mubr.f32.mxu0 0.0
      %4221 = vmatmul.mubr.f32.gmra.mrb[0].mxu0 %v4103
      %v4222 = vpop.f32.mrb[0].mxu0
      %v4223 = vadd.f32 0.0, %v4222
      %v4224 = vpop.f32.mrb[0].mxu0
      %4225 = vmatprep.mubr.f32.mxu0 0.0
      %4226 = vmatmul.mubr.f32.gmra.mrb[0].mxu0 %v4106
      %v4227 = vpop.f32.mrb[0].mxu0
      %v4228 = vpop.f32.mrb[0].mxu0
      %4229 = vmatprep.mubr.f32.mxu0 0.0
      %4230 = vmatmul.mubr.f32.gmra.mrb[0].mxu0 %v4109
      %v4231 = vpop.f32.mrb[0].mxu0
      %v4232 = vadd.f32 0.0, %v4231
      %v4233 = vpop.f32.mrb[0].mxu0
      %4234 = vmatprep.mubr.f32.mxu0 0.0
      %4235 = vmatmul.mubr.f32.gmra.mrb[0].mxu0 %v4112
      %v4236 = vpop.f32.mrb[0].mxu0
      %v4237 = vpop.f32.mrb[0].mxu0
      %4238 = vmatprep.mubr.f32.mxu0 0.0
      %4239 = vmatmul.mubr.f32.gmra.mrb[0].mxu0 %v4115
      %v4240 = vpop.f32.mrb[0].mxu0
      %v4241 = vadd.f32 0.0, %v4240
      %v4242 = vpop.f32.mrb[0].mxu0
      %4243 = vmatprep.mubr.f32.mxu0 0.0
      %4244 = vmatmul.mubr.f32.gmra.mrb[0].mxu0 %v4118
      %v4245 = vpop.f32.mrb[0].mxu0
      %v4246 = vpop.f32.mrb[0].mxu0
      %4247 = vmatprep.mubr.f32.mxu0 0.0
      %4248 = vmatmul.mubr.f32.gmra.mrb[0].mxu0 %v4121
      %v4249 = vpop.f32.mrb[0].mxu0
      %v4250 = vadd.f32 0.0, %v4249
      %v4251 = vpop.f32.mrb[0].mxu0
      %4252 = vmatprep.mubr.f32.mxu0 0.0
      %4253 = vmatmul.mubr.f32.gmra.mrb[0].mxu0 %v4124
      %v4254 = vpop.f32.mrb[0].mxu0
      %v4255 = vpop.f32.mrb[0].mxu0
      %4256 = vmatprep.mubr.f32.mxu0 0.0
      %4257 = vmatmul.mubr.f32.gmra.mrb[0].mxu0 %v4127
      %v4258 = vpop.f32.mrb[0].mxu0
      %v4259 = vadd.f32 0.0, %v4258
      %v4260 = vpop.f32.mrb[0].mxu0
      %4261 = vmatprep.mubr.f32.mxu0 0.0
      %4262 = vmatmul.mubr.f32.gmra.mrb[0].mxu0 %v4130
      %v4263 = vpop.f32.mrb[0].mxu0
      %v4264 = vpop.f32.mrb[0].mxu0
      %4265 = vmatprep.mubr.f32.mxu0 0.0
      %4266 = vmatmul.mubr.f32.gmra.mrb[0].mxu0 %v4133
      %v4267 = vpop.f32.mrb[0].mxu0
      %v4268 = vadd.f32 0.0, %v4267
      %v4269 = vpop.f32.mrb[0].mxu0
      %4270 = vmatprep.mubr.f32.mxu0 0.0
      %4271 = vmatmul.mubr.f32.gmra.mrb[0].mxu0 %v4136
      %v4272 = vpop.f32.mrb[0].mxu0
      %v4273 = vpop.f32.mrb[0].mxu0
      %4274 = vdwg.mxu0
      %v4275 = vld [vmem:[%s12] sm:$0x1]
      %v4277 = vlaneseq
      %v4278 = vshrl.u32 %v4277, 7
      %v4279 = vsub.s32 0, %v4278
      %v4280 = vrot.slane %v4275, %v4279
      %v4282 = vmul.f32 %v4205, %v4280
      %v4283 = vmul.f32 %v4214, %v4280
      %v4284 = vmul.f32 %v4223, %v4280
      %v4285 = vmul.f32 %v4232, %v4280
      %v4286 = vmul.f32 %v4241, %v4280
      %v4287 = vmul.f32 %v4250, %v4280
      %v4288 = vmul.f32 %v4259, %v4280
      %v4289 = vmul.f32 %v4268, %v4280
      %v4290 = vld [vmem:[%s13] sm:$0x1]
      %v4292 = vlaneseq
      %v4293 = vshrl.u32 %v4292, 7
      %v4294 = vsub.s32 0, %v4293
      %v4295 = vrot.slane %v4290, %v4294
      %v4297 = vadd.f32 %v4282, %v4295
      %v4298 = vadd.f32 %v4283, %v4295
      %v4299 = vadd.f32 %v4284, %v4295
      %v4300 = vadd.f32 %v4285, %v4295
      %v4301 = vadd.f32 %v4286, %v4295
      %v4302 = vadd.f32 %v4287, %v4295
      %v4303 = vadd.f32 %v4288, %v4295
      %v4304 = vadd.f32 %v4289, %v4295
      %v4305 = vadd.f32 %v4064, %v4297
      %v4306 = vadd.f32 %v4065, %v4298
      %v4307 = vadd.f32 %v4066, %v4299
      %v4308 = vadd.f32 %v4067, %v4300
      %v4309 = vadd.f32 %v4068, %v4301
      %v4310 = vadd.f32 %v4069, %v4302
      %v4311 = vadd.f32 %v4070, %v4303
      %v4312 = vadd.f32 %v4071, %v4304
      %v4313 = vmax.f32 %v4305, 0.0
      %v4314 = vmax.f32 %v4306, 0.0
      %v4315 = vmax.f32 %v4307, 0.0
      %v4316 = vmax.f32 %v4308, 0.0
      %v4317 = vmax.f32 %v4309, 0.0
      %v4318 = vmax.f32 %v4310, 0.0
      %v4319 = vmax.f32 %v4311, 0.0
      %v4320 = vmax.f32 %v4312, 0.0
      %vm4321 = vcmask 261120
      %4322 = vst.msk [vmem:[%s467] sm:$0xff] %vm4321, %v4313
      %4323 = vst.msk [vmem:[%s467 + $0x8] sm:$0xff] %vm4321, %v4314
      %4324 = vst.msk [vmem:[%s467 + $0x10] sm:$0xff] %vm4321, %v4315
      %4325 = vst.msk [vmem:[%s467 + $0x18] sm:$0xff] %vm4321, %v4316
      %4326 = vst.msk [vmem:[%s467 + $0x20] sm:$0xff] %vm4321, %v4317
      %4327 = vst.msk [vmem:[%s467 + $0x28] sm:$0xff] %vm4321, %v4318
      %4328 = vst.msk [vmem:[%s467 + $0x30] sm:$0xff] %vm4321, %v4319
      %4329 = vst.msk [vmem:[%s467 + $0x38] sm:$0xff] %vm4321, %v4320
      %p4330 = scmp.lt.s32.totalorder %s25, 1
      %s4331 = scalar_select %p4330, %s25, 1
      %s4332 = smul.addr %s4331, 8
      %s4333 = smul.addr %s4332, 8
      %s4334 = scalar_lea.vmem %s14, %s4333
      // Predicated region
      $region77: #{tpu_custom_call.1} parent=75 // pred_check
        %p4335 = pneg %p342
      $region78: #{tpu_custom_call.1} parent=75 // pred_check_branch
        %4337 = sbr.rel (%p4335) target = $region80
      $region79: #{tpu_custom_call.1} parent=75 // pred_region
        _
      $region80: #{tpu_custom_call.1} parent=75 // pred_fallthru
        _
    $region76: #{tpu_custom_call.1} parent=5 // pred_fallthru
      _
    %p4338 = scmp.le.s32.totalorder 2, %s20
    // Predicated region
    $region81: #{tpu_custom_call.1} parent=5 // pred_check
      %p4339 = pneg %p4338
    $region82: #{tpu_custom_call.1} parent=5 // pred_check_branch
      %4341 = sbr.rel (%p4339) target = $region84
    $region83: #{tpu_custom_call.1} parent=5 // pred_region
      %s4342 = ssub.s32 %s20, 2
      // Predicated region
      $region85: #{tpu_custom_call.1} parent=83 // pred_check
        %p4343 = pneg %p348
      $region86: #{tpu_custom_call.1} parent=83 // pred_check_branch
        %4345 = sbr.rel (%p4343) target = $region88
      $region87: #{tpu_custom_call.1} parent=83 // pred_region
        %p4346 = scmp.lt.s32.totalorder %s26, 1
        %s4347 = scalar_select %p4346, %s26, 1
        %s4348 = smul.addr %s4347, 8
        %s4349 = smul.addr %s4348, 8
        %s4350 = scalar_lea.vmem %s14, %s4349
      $region88: #{tpu_custom_call.1} parent=83 // pred_fallthru
        _
    $region84: #{tpu_custom_call.1} parent=5 // pred_fallthru
      _
  $region6: #{tpu_custom_call.1} parent=0 // loop_footer
    %s24 = sadd.s32 1, %s20
  $region7: #{tpu_custom_call.1} parent=0 // loop_footer_branch
    %19 = sbr.rel target = $region3
  $region8: #{tpu_custom_call.1} parent=0 // loop_exit
    _

// kernel: tpu_custom_call.1
$region0: #{tpu_custom_call.1}
  #allocation0 [shape = 'u32[]', space=smem, size = 0x4, offset = 0x4, fixed_abs, tag = 'smem constant byte address 0x4 - core index']
  #allocation1 [shape = 'u32[144,128]{1,0:T(1,128)}', space=vmem, size = 0x12000, scoped, tag = 'internal scratch']
  #allocation2 [shape = 'f32[4,176,8]{2,1,0:T(8,128)}', space=vmem, size = 0x58000, scoped, tag = 'scratch operand']
  %s0 = inlined_call_operand.vmem [shape: f32[2,4,176,16], index: 0, kind: input, shape index: {}]
  %s1 = inlined_call_operand.vmem [shape: f32[4,176,1], index: 1, kind: input, shape index: {}]
  %s2 = inlined_call_operand.vmem [shape: f32[16,8], index: 2, kind: input, shape index: {}]
  %s3 = inlined_call_operand.vmem [shape: f32[1,8], index: 3, kind: input, shape index: {}]
  %s4 = inlined_call_operand.vmem [shape: f32[1,8], index: 4, kind: input, shape index: {}]
  %s5 = inlined_call_operand.vmem [shape: f32[3,24,8], index: 5, kind: input, shape index: {}]
  %s6 = inlined_call_operand.vmem [shape: f32[1,8], index: 6, kind: input, shape index: {}]
  %s7 = inlined_call_operand.vmem [shape: f32[1,8], index: 7, kind: input, shape index: {}]
  %s8 = inlined_call_operand.vmem [shape: f32[8,32], index: 8, kind: input, shape index: {}]
  %s9 = inlined_call_operand.vmem [shape: f32[1,32], index: 9, kind: input, shape index: {}]
  %s10 = inlined_call_operand.vmem [shape: f32[1,32], index: 10, kind: input, shape index: {}]
  %s11 = inlined_call_operand.vmem [shape: f32[16,32], index: 11, kind: input, shape index: {}]
  %s12 = inlined_call_operand.vmem [shape: f32[1,32], index: 12, kind: input, shape index: {}]
  %s13 = inlined_call_operand.vmem [shape: f32[1,32], index: 13, kind: input, shape index: {}]
  %s14 = inlined_call_operand.vmem [shape: f32[2,64,32], index: 14, kind: output, shape index: {}]
  %s15 = sld [smem:[#allocation0]]
  $region89: #{tpu_custom_call.1} parent=0
    _
  %s17 = ssub.s32 1, %s15
  %s18 = scalar_select 0, %s17, %s15
  loop: start=0, step=1, limit=4
  $region2: #{tpu_custom_call.1} parent=0 // loop_pre_header
    _
  $region3: #{tpu_custom_call.1} parent=0 // loop_header
    %s20 = sphi 0, %s24
    %p21 = scmp.ge.s32.totalorder %s20, 4
    %s30 = sphi 0, %s32
    %s33 = sphi 0, %s30
    %s34 = sphi 0, %s33
    %s50 = sphi 0, %s34
    %s54 = sphi 0, %s54
    %s56 = sphi 0, %s54
    %s57 = sphi 0, %s56
    %s71 = sphi 0, %s57
    %s75 = sphi 0, %s75
    %s77 = sphi 0, %s75
    %s78 = sphi 0, %s77
    %s92 = sphi 0, %s78
    %s96 = sphi 0, %s96
    %s98 = sphi 0, %s96
    %s99 = sphi 0, %s98
    %s113 = sphi 0, %s99
    %s117 = sphi 0, %s117
    %s119 = sphi 0, %s117
    %s120 = sphi 0, %s119
    %s134 = sphi 0, %s120
    %s138 = sphi 0, %s138
    %s140 = sphi 0, %s138
    %s141 = sphi 0, %s140
    %s155 = sphi 0, %s141
    %s159 = sphi 0, %s159
    %s161 = sphi 0, %s159
    %s162 = sphi 0, %s161
    %s176 = sphi 0, %s162
    %s180 = sphi 0, %s180
    %s182 = sphi 0, %s180
    %s183 = sphi 0, %s182
    %s197 = sphi 0, %s183
    %s201 = sphi 0, %s201
    %s203 = sphi 0, %s201
    %s204 = sphi 0, %s203
    %s218 = sphi 0, %s204
    %s222 = sphi 0, %s222
    %s224 = sphi 0, %s222
    %s225 = sphi 0, %s224
    %s239 = sphi 0, %s225
    %s243 = sphi 0, %s243
    %s245 = sphi 0, %s243
    %s246 = sphi 0, %s245
    %s260 = sphi 0, %s246
    %s264 = sphi 0, %s264
    %s266 = sphi 0, %s264
    %s267 = sphi 0, %s266
    %s281 = sphi 0, %s267
    %s285 = sphi 0, %s285
    %s287 = sphi 0, %s285
    %s288 = sphi 0, %s287
    %s302 = sphi 0, %s288
    %s306 = sphi 0, %s306
    %s308 = sphi 0, %s306
    %s309 = sphi 0, %s308
    %s323 = sphi 0, %s309
    %s329 = sphi 0, %s331
    %s332 = sphi 0, %s329
    %s333 = sphi 0, %s332
    %s349 = sphi 0, %s333
  $region4: #{tpu_custom_call.1} parent=0 // loop_header_branch
    %23 = sbr.rel (%p21) target = $region8
  $region5: #{tpu_custom_call.1} parent=0 // loop_body
    %s25 = ssub.s32 %s20, 1
    %s26 = ssub.s32 %s20, 2
    %s27 = sadd.s32 %s20, 1
    %s28 = ssub.s32 %s20, %s27
    %p29 = scmp.eq.s32.totalorder %s28, 0
    %s31 = sadd.s32 %s30, 1
    %s32 = scalar_select %p29, %s30, %s31
    %p35 = pneg %p29
    %p36 = scmp.eq.s32.totalorder %s20, 1
    %p37 = por %p35, %p36
    %p38 = scmp.ne.s32.totalorder %s30, %s33
    %p39 = scmp.eq.s32.totalorder %s20, 0
    %p40 = por %p38, %p39
    %p41 = scmp.ne.s32.totalorder %s30, %s33
    %p42 = scmp.eq.s32.totalorder %s25, 1
    %p43 = por %p41, %p42
    %p44 = scmp.ne.s32.totalorder %s33, %s34
    %p45 = scmp.eq.s32.totalorder %s25, 0
    %p46 = por %p44, %p45
    %p47 = scmp.ne.s32.totalorder %s33, %s34
    %p48 = scmp.eq.s32.totalorder %s26, 1
    %p49 = por %p47, %p48
    %p51 = scmp.ne.s32.totalorder %s34, %s50
    %p52 = scmp.eq.s32.totalorder %s26, 0
    %p53 = por %p51, %p52
    %s55 = sadd.s32 %s54, 1
    %p58 = scmp.eq.s32.totalorder %s20, 1
    %p59 = scmp.ne.s32.totalorder %s54, %s56
    %p60 = scmp.eq.s32.totalorder %s20, 0
    %p61 = por %p59, %p60
    %p62 = scmp.ne.s32.totalorder %s54, %s56
    %p63 = scmp.eq.s32.totalorder %s25, 1
    %p64 = por %p62, %p63
    %p65 = scmp.ne.s32.totalorder %s56, %s57
    %p66 = scmp.eq.s32.totalorder %s25, 0
    %p67 = por %p65, %p66
    %p68 = scmp.ne.s32.totalorder %s56, %s57
    %p69 = scmp.eq.s32.totalorder %s26, 1
    %p70 = por %p68, %p69
    %p72 = scmp.ne.s32.totalorder %s57, %s71
    %p73 = scmp.eq.s32.totalorder %s26, 0
    %p74 = por %p72, %p73
    %s76 = sadd.s32 %s75, 1
    %p79 = scmp.eq.s32.totalorder %s20, 1
    %p80 = scmp.ne.s32.totalorder %s75, %s77
    %p81 = scmp.eq.s32.totalorder %s20, 0
    %p82 = por %p80, %p81
    %p83 = scmp.ne.s32.totalorder %s75, %s77
    %p84 = scmp.eq.s32.totalorder %s25, 1
    %p85 = por %p83, %p84
    %p86 = scmp.ne.s32.totalorder %s77, %s78
    %p87 = scmp.eq.s32.totalorder %s25, 0
    %p88 = por %p86, %p87
    %p89 = scmp.ne.s32.totalorder %s77, %s78
    %p90 = scmp.eq.s32.totalorder %s26, 1
    %p91 = por %p89, %p90
    %p93 = scmp.ne.s32.totalorder %s78, %s92
    %p94 = scmp.eq.s32.totalorder %s26, 0
    %p95 = por %p93, %p94
    %s97 = sadd.s32 %s96, 1
    %p100 = scmp.eq.s32.totalorder %s20, 1
    %p101 = scmp.ne.s32.totalorder %s96, %s98
    %p102 = scmp.eq.s32.totalorder %s20, 0
    %p103 = por %p101, %p102
    %p104 = scmp.ne.s32.totalorder %s96, %s98
    %p105 = scmp.eq.s32.totalorder %s25, 1
    %p106 = por %p104, %p105
    %p107 = scmp.ne.s32.totalorder %s98, %s99
    %p108 = scmp.eq.s32.totalorder %s25, 0
    %p109 = por %p107, %p108
    %p110 = scmp.ne.s32.totalorder %s98, %s99
    %p111 = scmp.eq.s32.totalorder %s26, 1
    %p112 = por %p110, %p111
    %p114 = scmp.ne.s32.totalorder %s99, %s113
    %p115 = scmp.eq.s32.totalorder %s26, 0
    %p116 = por %p114, %p115
    %s118 = sadd.s32 %s117, 1
    %p121 = scmp.eq.s32.totalorder %s20, 1
    %p122 = scmp.ne.s32.totalorder %s117, %s119
    %p123 = scmp.eq.s32.totalorder %s20, 0
    %p124 = por %p122, %p123
    %p125 = scmp.ne.s32.totalorder %s117, %s119
    %p126 = scmp.eq.s32.totalorder %s25, 1
    %p127 = por %p125, %p126
    %p128 = scmp.ne.s32.totalorder %s119, %s120
    %p129 = scmp.eq.s32.totalorder %s25, 0
    %p130 = por %p128, %p129
    %p131 = scmp.ne.s32.totalorder %s119, %s120
    %p132 = scmp.eq.s32.totalorder %s26, 1
    %p133 = por %p131, %p132
    %p135 = scmp.ne.s32.totalorder %s120, %s134
    %p136 = scmp.eq.s32.totalorder %s26, 0
    %p137 = por %p135, %p136
    %s139 = sadd.s32 %s138, 1
    %p142 = scmp.eq.s32.totalorder %s20, 1
    %p143 = scmp.ne.s32.totalorder %s138, %s140
    %p144 = scmp.eq.s32.totalorder %s20, 0
    %p145 = por %p143, %p144
    %p146 = scmp.ne.s32.totalorder %s138, %s140
    %p147 = scmp.eq.s32.totalorder %s25, 1
    %p148 = por %p146, %p147
    %p149 = scmp.ne.s32.totalorder %s140, %s141
    %p150 = scmp.eq.s32.totalorder %s25, 0
    %p151 = por %p149, %p150
    %p152 = scmp.ne.s32.totalorder %s140, %s141
    %p153 = scmp.eq.s32.totalorder %s26, 1
    %p154 = por %p152, %p153
    %p156 = scmp.ne.s32.totalorder %s141, %s155
    %p157 = scmp.eq.s32.totalorder %s26, 0
    %p158 = por %p156, %p157
    %s160 = sadd.s32 %s159, 1
    %p163 = scmp.eq.s32.totalorder %s20, 1
    %p164 = scmp.ne.s32.totalorder %s159, %s161
    %p165 = scmp.eq.s32.totalorder %s20, 0
    %p166 = por %p164, %p165
    %p167 = scmp.ne.s32.totalorder %s159, %s161
    %p168 = scmp.eq.s32.totalorder %s25, 1
    %p169 = por %p167, %p168
    %p170 = scmp.ne.s32.totalorder %s161, %s162
    %p171 = scmp.eq.s32.totalorder %s25, 0
    %p172 = por %p170, %p171
    %p173 = scmp.ne.s32.totalorder %s161, %s162
    %p174 = scmp.eq.s32.totalorder %s26, 1
    %p175 = por %p173, %p174
    %p177 = scmp.ne.s32.totalorder %s162, %s176
    %p178 = scmp.eq.s32.totalorder %s26, 0
    %p179 = por %p177, %p178
    %s181 = sadd.s32 %s180, 1
    %p184 = scmp.eq.s32.totalorder %s20, 1
    %p185 = scmp.ne.s32.totalorder %s180, %s182
    %p186 = scmp.eq.s32.totalorder %s20, 0
    %p187 = por %p185, %p186
    %p188 = scmp.ne.s32.totalorder %s180, %s182
    %p189 = scmp.eq.s32.totalorder %s25, 1
    %p190 = por %p188, %p189
    %p191 = scmp.ne.s32.totalorder %s182, %s183
    %p192 = scmp.eq.s32.totalorder %s25, 0
    %p193 = por %p191, %p192
    %p194 = scmp.ne.s32.totalorder %s182, %s183
    %p195 = scmp.eq.s32.totalorder %s26, 1
    %p196 = por %p194, %p195
    %p198 = scmp.ne.s32.totalorder %s183, %s197
    %p199 = scmp.eq.s32.totalorder %s26, 0
    %p200 = por %p198, %p199
    %s202 = sadd.s32 %s201, 1
    %p205 = scmp.eq.s32.totalorder %s20, 1
    %p206 = scmp.ne.s32.totalorder %s201, %s203
    %p207 = scmp.eq.s32.totalorder %s20, 0
    %p208 = por %p206, %p207
    %p209 = scmp.ne.s32.totalorder %s201, %s203
    %p210 = scmp.eq.s32.totalorder %s25, 1
    %p211 = por %p209, %p210
    %p212 = scmp.ne.s32.totalorder %s203, %s204
    %p213 = scmp.eq.s32.totalorder %s25, 0
    %p214 = por %p212, %p213
    %p215 = scmp.ne.s32.totalorder %s203, %s204
    %p216 = scmp.eq.s32.totalorder %s26, 1
    %p217 = por %p215, %p216
    %p219 = scmp.ne.s32.totalorder %s204, %s218
    %p220 = scmp.eq.s32.totalorder %s26, 0
    %p221 = por %p219, %p220
    %s223 = sadd.s32 %s222, 1
    %p226 = scmp.eq.s32.totalorder %s20, 1
    %p227 = scmp.ne.s32.totalorder %s222, %s224
    %p228 = scmp.eq.s32.totalorder %s20, 0
    %p229 = por %p227, %p228
    %p230 = scmp.ne.s32.totalorder %s222, %s224
    %p231 = scmp.eq.s32.totalorder %s25, 1
    %p232 = por %p230, %p231
    %p233 = scmp.ne.s32.totalorder %s224, %s225
    %p234 = scmp.eq.s32.totalorder %s25, 0
    %p235 = por %p233, %p234
    %p236 = scmp.ne.s32.totalorder %s224, %s225
    %p237 = scmp.eq.s32.totalorder %s26, 1
    %p238 = por %p236, %p237
    %p240 = scmp.ne.s32.totalorder %s225, %s239
    %p241 = scmp.eq.s32.totalorder %s26, 0
    %p242 = por %p240, %p241
    %s244 = sadd.s32 %s243, 1
    %p247 = scmp.eq.s32.totalorder %s20, 1
    %p248 = scmp.ne.s32.totalorder %s243, %s245
    %p249 = scmp.eq.s32.totalorder %s20, 0
    %p250 = por %p248, %p249
    %p251 = scmp.ne.s32.totalorder %s243, %s245
    %p252 = scmp.eq.s32.totalorder %s25, 1
    %p253 = por %p251, %p252
    %p254 = scmp.ne.s32.totalorder %s245, %s246
    %p255 = scmp.eq.s32.totalorder %s25, 0
    %p256 = por %p254, %p255
    %p257 = scmp.ne.s32.totalorder %s245, %s246
    %p258 = scmp.eq.s32.totalorder %s26, 1
    %p259 = por %p257, %p258
    %p261 = scmp.ne.s32.totalorder %s246, %s260
    %p262 = scmp.eq.s32.totalorder %s26, 0
    %p263 = por %p261, %p262
    %s265 = sadd.s32 %s264, 1
    %p268 = scmp.eq.s32.totalorder %s20, 1
    %p269 = scmp.ne.s32.totalorder %s264, %s266
    %p270 = scmp.eq.s32.totalorder %s20, 0
    %p271 = por %p269, %p270
    %p272 = scmp.ne.s32.totalorder %s264, %s266
    %p273 = scmp.eq.s32.totalorder %s25, 1
    %p274 = por %p272, %p273
    %p275 = scmp.ne.s32.totalorder %s266, %s267
    %p276 = scmp.eq.s32.totalorder %s25, 0
    %p277 = por %p275, %p276
    %p278 = scmp.ne.s32.totalorder %s266, %s267
    %p279 = scmp.eq.s32.totalorder %s26, 1
    %p280 = por %p278, %p279
    %p282 = scmp.ne.s32.totalorder %s267, %s281
    %p283 = scmp.eq.s32.totalorder %s26, 0
    %p284 = por %p282, %p283
    %s286 = sadd.s32 %s285, 1
    %p289 = scmp.eq.s32.totalorder %s20, 1
    %p290 = scmp.ne.s32.totalorder %s285, %s287
    %p291 = scmp.eq.s32.totalorder %s20, 0
    %p292 = por %p290, %p291
    %p293 = scmp.ne.s32.totalorder %s285, %s287
    %p294 = scmp.eq.s32.totalorder %s25, 1
    %p295 = por %p293, %p294
    %p296 = scmp.ne.s32.totalorder %s287, %s288
    %p297 = scmp.eq.s32.totalorder %s25, 0
    %p298 = por %p296, %p297
    %p299 = scmp.ne.s32.totalorder %s287, %s288
    %p300 = scmp.eq.s32.totalorder %s26, 1
    %p301 = por %p299, %p300
    %p303 = scmp.ne.s32.totalorder %s288, %s302
    %p304 = scmp.eq.s32.totalorder %s26, 0
    %p305 = por %p303, %p304
    %s307 = sadd.s32 %s306, 1
    %p310 = scmp.eq.s32.totalorder %s20, 1
    %p311 = scmp.ne.s32.totalorder %s306, %s308
    %p312 = scmp.eq.s32.totalorder %s20, 0
    %p313 = por %p311, %p312
    %p314 = scmp.ne.s32.totalorder %s306, %s308
    %p315 = scmp.eq.s32.totalorder %s25, 1
    %p316 = por %p314, %p315
    %p317 = scmp.ne.s32.totalorder %s308, %s309
    %p318 = scmp.eq.s32.totalorder %s25, 0
    %p319 = por %p317, %p318
    %p320 = scmp.ne.s32.totalorder %s308, %s309
    %p321 = scmp.eq.s32.totalorder %s26, 1
    %p322 = por %p320, %p321
    %p324 = scmp.ne.s32.totalorder %s309, %s323
    %p325 = scmp.eq.s32.totalorder %s26, 0
    %p326 = por %p324, %p325
    %s327 = ssub.s32 %s20, %s27
    %p328 = scmp.eq.s32.totalorder %s327, 0
    %s330 = sadd.s32 %s329, 1
    %s331 = scalar_select %p328, %s329, %s330
    %p334 = pneg %p328
    %p335 = scmp.eq.s32.totalorder %s20, 1
    %p336 = por %p334, %p335
    %p337 = scmp.ne.s32.totalorder %s329, %s332
    %p338 = scmp.eq.s32.totalorder %s20, 0
    %p339 = por %p337, %p338
    %p340 = scmp.ne.s32.totalorder %s329, %s332
    %p341 = scmp.eq.s32.totalorder %s25, 1
    %p342 = por %p340, %p341
    %p343 = scmp.ne.s32.totalorder %s332, %s333
    %p344 = scmp.eq.s32.totalorder %s25, 0
    %p345 = por %p343, %p344
    %p346 = scmp.ne.s32.totalorder %s332, %s333
    %p347 = scmp.eq.s32.totalorder %s26, 1
    %p348 = por %p346, %p347
    %p350 = scmp.ne.s32.totalorder %s333, %s349
    %p351 = scmp.eq.s32.totalorder %s26, 0
    %p352 = por %p350, %p351
    %p353 = scmp.le.s32.totalorder 1, %s20
    %p354 = scmp.lt.s32.totalorder %s20, 3
    %p355 = pnand %p353, %p354
    %p356 = pneg %p355
    // Predicated region
    $region9: #{tpu_custom_call.1} parent=5 // pred_check
      _
    $region10: #{tpu_custom_call.1} parent=5 // pred_check_branch
      %358 = sbr.rel (%p355) target = $region12
    $region11: #{tpu_custom_call.1} parent=5 // pred_region
      %s359 = ssub.s32 %s20, 1
      // Predicated region
      $region13: #{tpu_custom_call.1} parent=11 // pred_check
        %p360 = pneg %p67
      $region14: #{tpu_custom_call.1} parent=11 // pred_check_branch
        %362 = sbr.rel (%p360) target = $region16
      $region15: #{tpu_custom_call.1} parent=11 // pred_region
        _
      $region16: #{tpu_custom_call.1} parent=11 // pred_fallthru
        _
      // Predicated region
      $region17: #{tpu_custom_call.1} parent=11 // pred_check
        %p363 = pneg %p88
      $region18: #{tpu_custom_call.1} parent=11 // pred_check_branch
        %365 = sbr.rel (%p363) target = $region20
      $region19: #{tpu_custom_call.1} parent=11 // pred_region
        _
      $region20: #{tpu_custom_call.1} parent=11 // pred_fallthru
        _
      // Predicated region
      $region21: #{tpu_custom_call.1} parent=11 // pred_check
        %p366 = pneg %p109
      $region22: #{tpu_custom_call.1} parent=11 // pred_check_branch
        %368 = sbr.rel (%p366) target = $region24
      $region23: #{tpu_custom_call.1} parent=11 // pred_region
        _
      $region24: #{tpu_custom_call.1} parent=11 // pred_fallthru
        _
      // Predicated region
      $region25: #{tpu_custom_call.1} parent=11 // pred_check
        %p369 = pneg %p130
      $region26: #{tpu_custom_call.1} parent=11 // pred_check_branch
        %371 = sbr.rel (%p369) target = $region28
      $region27: #{tpu_custom_call.1} parent=11 // pred_region
        _
      $region28: #{tpu_custom_call.1} parent=11 // pred_fallthru
        _
      // Predicated region
      $region29: #{tpu_custom_call.1} parent=11 // pred_check
        %p372 = pneg %p151
      $region30: #{tpu_custom_call.1} parent=11 // pred_check_branch
        %374 = sbr.rel (%p372) target = $region32
      $region31: #{tpu_custom_call.1} parent=11 // pred_region
        _
      $region32: #{tpu_custom_call.1} parent=11 // pred_fallthru
        _
      // Predicated region
      $region33: #{tpu_custom_call.1} parent=11 // pred_check
        %p375 = pneg %p172
      $region34: #{tpu_custom_call.1} parent=11 // pred_check_branch
        %377 = sbr.rel (%p375) target = $region36
      $region35: #{tpu_custom_call.1} parent=11 // pred_region
        _
      $region36: #{tpu_custom_call.1} parent=11 // pred_fallthru
        _
      // Predicated region
      $region37: #{tpu_custom_call.1} parent=11 // pred_check
        %p378 = pneg %p193
      $region38: #{tpu_custom_call.1} parent=11 // pred_check_branch
        %380 = sbr.rel (%p378) target = $region40
      $region39: #{tpu_custom_call.1} parent=11 // pred_region
        _
      $region40: #{tpu_custom_call.1} parent=11 // pred_fallthru
        _
      // Predicated region
      $region41: #{tpu_custom_call.1} parent=11 // pred_check
        %p381 = pneg %p214
      $region42: #{tpu_custom_call.1} parent=11 // pred_check_branch
        %383 = sbr.rel (%p381) target = $region44
      $region43: #{tpu_custom_call.1} parent=11 // pred_region
        _
      $region44: #{tpu_custom_call.1} parent=11 // pred_fallthru
        _
      // Predicated region
      $region45: #{tpu_custom_call.1} parent=11 // pred_check
        %p384 = pneg %p235
      $region46: #{tpu_custom_call.1} parent=11 // pred_check_branch
        %386 = sbr.rel (%p384) target = $region48
      $region47: #{tpu_custom_call.1} parent=11 // pred_region
        _
      $region48: #{tpu_custom_call.1} parent=11 // pred_fallthru
        _
      // Predicated region
      $region49: #{tpu_custom_call.1} parent=11 // pred_check
        %p387 = pneg %p256
      $region50: #{tpu_custom_call.1} parent=11 // pred_check_branch
        %389 = sbr.rel (%p387) target = $region52
      $region51: #{tpu_custom_call.1} parent=11 // pred_region
        _
      $region52: #{tpu_custom_call.1} parent=11 // pred_fallthru
        _
      // Predicated region
      $region53: #{tpu_custom_call.1} parent=11 // pred_check
        %p390 = pneg %p277
      $region54: #{tpu_custom_call.1} parent=11 // pred_check_branch
        %392 = sbr.rel (%p390) target = $region56
      $region55: #{tpu_custom_call.1} parent=11 // pred_region
        _
      $region56: #{tpu_custom_call.1} parent=11 // pred_fallthru
        _
      // Predicated region
      $region57: #{tpu_custom_call.1} parent=11 // pred_check
        %p393 = pneg %p298
      $region58: #{tpu_custom_call.1} parent=11 // pred_check_branch
        %395 = sbr.rel (%p393) target = $region60
      $region59: #{tpu_custom_call.1} parent=11 // pred_region
        _
      $region60: #{tpu_custom_call.1} parent=11 // pred_fallthru
        _
      // Predicated region
      $region61: #{tpu_custom_call.1} parent=11 // pred_check
        %p396 = pneg %p319
      $region62: #{tpu_custom_call.1} parent=11 // pred_check_branch
        %398 = sbr.rel (%p396) target = $region64
      $region63: #{tpu_custom_call.1} parent=11 // pred_region
        _
      $region64: #{tpu_custom_call.1} parent=11 // pred_fallthru
        _
    $region12: #{tpu_custom_call.1} parent=5 // pred_fallthru
      _
    %p399 = scmp.lt.s32.totalorder %s20, 2
    // Predicated region
    $region65: #{tpu_custom_call.1} parent=5 // pred_check
      %p400 = pneg %p399
    $region66: #{tpu_custom_call.1} parent=5 // pred_check_branch
      %402 = sbr.rel (%p400) target = $region68
    $region67: #{tpu_custom_call.1} parent=5 // pred_region
      // Predicated region
      $region69: #{tpu_custom_call.1} parent=67 // pred_check
        %p403 = pneg %p40
      $region70: #{tpu_custom_call.1} parent=67 // pred_check_branch
        %405 = sbr.rel (%p403) target = $region72
      $region71: #{tpu_custom_call.1} parent=67 // pred_region
        %p406 = scmp.lt.s32.totalorder %s20, 1
        %s407 = scalar_select %p406, %s20, 1
        %s408 = smul.addr %s407, 88
        %s409 = smul.addr %s408, 8
        %s410 = scalar_lea.vmem %s0, %s409
      $region72: #{tpu_custom_call.1} parent=67 // pred_fallthru
        _
    $region68: #{tpu_custom_call.1} parent=5 // pred_fallthru
      _
    %p411 = scmp.le.s32.totalorder 1, %s20
    %p412 = scmp.lt.s32.totalorder %s20, 3
    %p413 = pnand %p411, %p412
    %p414 = pneg %p413
    // Predicated region
    $region73: #{tpu_custom_call.1} parent=5 // pred_check
      _
    $region74: #{tpu_custom_call.1} parent=5 // pred_check_branch
      %416 = sbr.rel (%p413) target = $region76
    $region75: #{tpu_custom_call.1} parent=5 // pred_region
      %s417 = ssub.s32 %s20, 1
      %p418 = scmp.lt.s32.totalorder %s25, 1
      %s419 = scalar_select %p418, %s25, 1
      %s420 = smul.addr %s419, 88
      %s421 = smul.addr %s420, 8
      %s422 = scalar_lea.vmem %s0, %s421
      %p423 = pneg %p46
      %p424 = pneg %p43
      %p425 = pneg %p67
      %p426 = pneg %p64
      %p427 = pneg %p88
      %p428 = pneg %p85
      %p429 = pneg %p109
      %p430 = pneg %p106
      %p431 = pneg %p130
      %p432 = pneg %p127
      %p433 = pneg %p151
      %p434 = pneg %p148
      %p435 = pneg %p172
      %p436 = pneg %p169
      %p437 = pneg %p193
      %p438 = pneg %p190
      %p439 = pneg %p214
      %p440 = pneg %p211
      %p441 = pneg %p235
      %p442 = pneg %p232
      %p443 = pneg %p256
      %p444 = pneg %p253
      %p445 = pneg %p277
      %p446 = pneg %p274
      %p447 = pneg %p298
      %p448 = pneg %p295
      %p449 = pneg %p319
      %p450 = pneg %p316
      %p451 = pneg %p345
      %p452 = pneg %p342
      %p453 = scmp.lt.s32.totalorder %s25, 1
      %s454 = scalar_select %p453, %s25, 1
      %s455 = smul.addr %s454, 8
      %s456 = smul.addr %s455, 8
      %s457 = scalar_lea.vmem %s14, %s456
      %p458 = scmp.lt.s32.totalorder %s25, 1
      %s459 = scalar_select %p458, %s25, 1
      %s460 = smul.addr %s459, 88
      %s461 = smul.addr %s460, 8
      %s462 = scalar_lea.vmem %s0, %s461
      %p463 = scmp.lt.s32.totalorder %s25, 1
      %s464 = scalar_select %p463, %s25, 1
      %s465 = smul.addr %s464, 8
      %s466 = smul.addr %s465, 8
      %s467 = scalar_lea.vmem %s14, %s466
      %v468 = vld [vmem:[%s462] sm:$0xff]
      %v469 = vld [vmem:[%s462 + $0x8] sm:$0xff]
      %v470 = vld [vmem:[%s462 + $0x10] sm:$0xff]
      %v471 = vld [vmem:[%s462 + $0x18] sm:$0xff]
      %v472 = vld [vmem:[%s462 + $0x20] sm:$0xff]
      %v473 = vld [vmem:[%s462 + $0x28] sm:$0xff]
      %v474 = vld [vmem:[%s462 + $0x30] sm:$0xff]
      %v475 = vld [vmem:[%s462 + $0x38] sm:$0xff]
      %v476 = vld [vmem:[%s462 + $0x40] sm:$0xff]
      %v477 = vld [vmem:[%s462 + $0x48] sm:$0xff]
      %v478 = vld [vmem:[%s462 + $0x50] sm:$0xff]
      %v479 = vld [vmem:[%s462 + $0x58] sm:$0xff]
      %v480 = vld [vmem:[%s462 + $0x60] sm:$0xff]
      %v481 = vld [vmem:[%s462 + $0x68] sm:$0xff]
      %v482 = vld [vmem:[%s462 + $0x70] sm:$0xff]
      %v483 = vld [vmem:[%s462 + $0x78] sm:$0xff]
      %v484 = vld [vmem:[%s462 + $0x80] sm:$0xff]
      %v485 = vld [vmem:[%s462 + $0x88] sm:$0xff]
      %v486 = vld [vmem:[%s462 + $0x90] sm:$0xff]
      %v487 = vld [vmem:[%s462 + $0x98] sm:$0xff]
      %v488 = vld [vmem:[%s462 + $0xa0] sm:$0xff]
      %v489 = vld [vmem:[%s462 + $0xa8] sm:$0xff]
      %v490 = vld [vmem:[%s2] sm:$0xff]
      %v491 = vld [vmem:[%s2 + $0x8] sm:$0xff]
      %vm492 = vcmask 130048
      %v494 = vsel %vm492, %v468, 0
      %v497 = vsel %vm492, %v469, 0
      %v500 = vsel %vm492, %v470, 0
      %v503 = vsel %vm492, %v471, 0
      %v506 = vsel %vm492, %v472, 0
      %v509 = vsel %vm492, %v473, 0
      %v512 = vsel %vm492, %v474, 0
      %v515 = vsel %vm492, %v475, 0
      %v518 = vsel %vm492, %v476, 0
      %v521 = vsel %vm492, %v477, 0
      %v524 = vsel %vm492, %v478, 0
      %v527 = vsel %vm492, %v479, 0
      %v530 = vsel %vm492, %v480, 0
      %v533 = vsel %vm492, %v481, 0
      %v536 = vsel %vm492, %v482, 0
      %v539 = vsel %vm492, %v483, 0
      %v542 = vsel %vm492, %v484, 0
      %v545 = vsel %vm492, %v485, 0
      %v548 = vsel %vm492, %v486, 0
      %v551 = vsel %vm492, %v487, 0
      %v554 = vsel %vm492, %v488, 0
      %v557 = vsel %vm492, %v489, 0
      %559 = vmatprep.subr.mxu0 0.0
      %560 = vmatpush1.msra.mxu0 %v490
      %561 = vmatprep.subr.mxu0 0.0
      %562 = vmatpush1.msra.mxu0 %v491
      %563 = vmatprep.subr.mxu0 0.0
      %564 = vmatpush1.msra.mxu0 0.0
      %565 = vmatprep.subr.mxu0 0.0
      %566 = vmatpush1.msra.mxu0 0.0
      %567 = vmatprep.subr.mxu0 0.0
      %568 = vmatpush1.msra.mxu0 0.0
      %569 = vmatprep.subr.mxu0 0.0
      %570 = vmatpush1.msra.mxu0 0.0
      %571 = vmatprep.subr.mxu0 0.0
      %572 = vmatpush1.msra.mxu0 0.0
      %573 = vmatprep.subr.mxu0 0.0
      %574 = vmatpush1.msra.mxu0 0.0
      %575 = vmatprep.subr.mxu0 0.0
      %576 = vmatpush1.msra.mxu0 0.0
      %577 = vmatprep.subr.mxu0 0.0
      %578 = vmatpush1.msra.mxu0 0.0
      %579 = vmatprep.subr.mxu0 0.0
      %580 = vmatpush1.msra.mxu0 0.0
      %581 = vmatprep.subr.mxu0 0.0
      %582 = vmatpush1.msra.mxu0 0.0
      %583 = vmatprep.subr.mxu0 0.0
      %584 = vmatpush1.msra.mxu0 0.0
      %585 = vmatprep.subr.mxu0 0.0
      %586 = vmatpush1.msra.mxu0 0.0
      %587 = vmatprep.subr.mxu0 0.0
      %588 = vmatpush1.msra.mxu0 0.0
      %589 = vmatprep.subr.mxu0 0.0
      %590 = vmatpush1.msra.mxu0 0.0
      %591 = vmatprep.subr.mxu0 0.0
      %592 = vmatpush1.msra.mxu0 0.0
      %593 = vmatprep.subr.mxu0 0.0
      %594 = vmatpush1.msra.mxu0 0.0
      %595 = vmatprep.subr.mxu0 0.0
      %596 = vmatpush1.msra.mxu0 0.0
      %597 = vmatprep.subr.mxu0 0.0
      %598 = vmatpush1.msra.mxu0 0.0
      %599 = vmatprep.subr.mxu0 0.0
      %600 = vmatpush1.msra.mxu0 0.0
      %601 = vmatprep.subr.mxu0 0.0
      %602 = vmatpush1.msra.mxu0 0.0
      %603 = vmatprep.subr.mxu0 0.0
      %604 = vmatpush1.msra.mxu0 0.0
      %605 = vmatprep.subr.mxu0 0.0
      %606 = vmatpush1.msra.mxu0 0.0
      %607 = vmatprep.subr.mxu0 0.0
      %608 = vmatpush1.msra.mxu0 0.0
      %609 = vmatprep.subr.mxu0 0.0
      %610 = vmatpush1.msra.mxu0 0.0
      %611 = vmatprep.subr.mxu0 0.0
      %612 = vmatpush1.msra.mxu0 0.0
      %613 = vmatprep.subr.mxu0 0.0
      %614 = vmatpush1.msra.mxu0 0.0
      %615 = vmatprep.subr.mxu0 0.0
      %616 = vmatpush1.msra.mxu0 0.0
      %617 = vmatprep.subr.mxu0 0.0
      %618 = vmatpush1.msra.mxu0 0.0
      %619 = vmatprep.subr.mxu0 0.0
      %620 = vmatpush1.msra.mxu0 0.0
      %621 = vmatprep.subr.mxu0 0.0
      %622 = vmatpush1.msra.mxu0 0.0
      %623 = vmatprep.mubr.f32.mxu0 0.0
      %624 = vmatmul.mubr.f32.gmra.mrb[0].mxu0 %v494
      %v625 = vpop.f32.mrb[0].mxu0
      %v626 = vadd.f32 0.0, %v625
      %v627 = vpop.f32.mrb[0].mxu0
      %628 = vmatprep.mubr.f32.mxu0 0.0
      %629 = vmatmul.mubr.f32.gmra.mrb[0].mxu0 %v497
      %v630 = vpop.f32.mrb[0].mxu0
      %v631 = vadd.f32 0.0, %v630
      %v632 = vpop.f32.mrb[0].mxu0
      %633 = vmatprep.mubr.f32.mxu0 0.0
      %634 = vmatmul.mubr.f32.gmra.mrb[0].mxu0 %v500
      %v635 = vpop.f32.mrb[0].mxu0
      %v636 = vadd.f32 0.0, %v635
      %v637 = vpop.f32.mrb[0].mxu0
      %638 = vmatprep.mubr.f32.mxu0 0.0
      %639 = vmatmul.mubr.f32.gmra.mrb[0].mxu0 %v503
      %v640 = vpop.f32.mrb[0].mxu0
      %v641 = vadd.f32 0.0, %v640
      %v642 = vpop.f32.mrb[0].mxu0
      %643 = vmatprep.mubr.f32.mxu0 0.0
      %644 = vmatmul.mubr.f32.gmra.mrb[0].mxu0 %v506
      %v645 = vpop.f32.mrb[0].mxu0
      %v646 = vadd.f32 0.0, %v645
      %v647 = vpop.f32.mrb[0].mxu0
      %648 = vmatprep.mubr.f32.mxu0 0.0
      %649 = vmatmul.mubr.f32.gmra.mrb[0].mxu0 %v509
      %v650 = vpop.f32.mrb[0].mxu0
      %v651 = vadd.f32 0.0, %v650
      %v652 = vpop.f32.mrb[0].mxu0
      %653 = vmatprep.mubr.f32.mxu0 0.0
      %654 = vmatmul.mubr.f32.gmra.mrb[0].mxu0 %v512
      %v655 = vpop.f32.mrb[0].mxu0
      %v656 = vadd.f32 0.0, %v655
      %v657 = vpop.f32.mrb[0].mxu0
      %658 = vmatprep.mubr.f32.mxu0 0.0
      %659 = vmatmul.mubr.f32.gmra.mrb[0].mxu0 %v515
      %v660 = vpop.f32.mrb[0].mxu0
      %v661 = vadd.f32 0.0, %v660
      %v662 = vpop.f32.mrb[0].mxu0
      %663 = vmatprep.mubr.f32.mxu0 0.0
      %664 = vmatmul.mubr.f32.gmra.mrb[0].mxu0 %v518
      %v665 = vpop.f32.mrb[0].mxu0
      %v666 = vadd.f32 0.0, %v665
      %v667 = vpop.f32.mrb[0].mxu0
      %668 = vmatprep.mubr.f32.mxu0 0.0
      %669 = vmatmul.mubr.f32.gmra.mrb[0].mxu0 %v521
      %v670 = vpop.f32.mrb[0].mxu0
      %v671 = vadd.f32 0.0, %v670
      %v672 = vpop.f32.mrb[0].mxu0
      %673 = vmatprep.mubr.f32.mxu0 0.0
      %674 = vmatmul.mubr.f32.gmra.mrb[0].mxu0 %v524
      %v675 = vpop.f32.mrb[0].mxu0
      %v676 = vadd.f32 0.0, %v675
      %v677 = vpop.f32.mrb[0].mxu0
      %678 = vmatprep.mubr.f32.mxu0 0.0
      %679 = vmatmul.mubr.f32.gmra.mrb[0].mxu0 %v527
      %v680 = vpop.f32.mrb[0].mxu0
      %v681 = vadd.f32 0.0, %v680
      %v682 = vpop.f32.mrb[0].mxu0
      %683 = vmatprep.mubr.f32.mxu0 0.0
      %684 = vmatmul.mubr.f32.gmra.mrb[0].mxu0 %v530
      %v685 = vpop.f32.mrb[0].mxu0
      %v686 = vadd.f32 0.0, %v685
      %v687 = vpop.f32.mrb[0].mxu0
      %688 = vmatprep.mubr.f32.mxu0 0.0
      %689 = vmatmul.mubr.f32.gmra.mrb[0].mxu0 %v533
      %v690 = vpop.f32.mrb[0].mxu0
      %v691 = vadd.f32 0.0, %v690
      %v692 = vpop.f32.mrb[0].mxu0
      %693 = vmatprep.mubr.f32.mxu0 0.0
      %694 = vmatmul.mubr.f32.gmra.mrb[0].mxu0 %v536
      %v695 = vpop.f32.mrb[0].mxu0
      %v696 = vadd.f32 0.0, %v695
      %v697 = vpop.f32.mrb[0].mxu0
      %698 = vmatprep.mubr.f32.mxu0 0.0
      %699 = vmatmul.mubr.f32.gmra.mrb[0].mxu0 %v539
      %v700 = vpop.f32.mrb[0].mxu0
      %v701 = vadd.f32 0.0, %v700
      %v702 = vpop.f32.mrb[0].mxu0
      %703 = vmatprep.mubr.f32.mxu0 0.0
      %704 = vmatmul.mubr.f32.gmra.mrb[0].mxu0 %v542
      %v705 = vpop.f32.mrb[0].mxu0
      %v706 = vadd.f32 0.0, %v705
      %v707 = vpop.f32.mrb[0].mxu0
      %708 = vmatprep.mubr.f32.mxu0 0.0
      %709 = vmatmul.mubr.f32.gmra.mrb[0].mxu0 %v545
      %v710 = vpop.f32.mrb[0].mxu0
      %v711 = vadd.f32 0.0, %v710
      %v712 = vpop.f32.mrb[0].mxu0
      %713 = vmatprep.mubr.f32.mxu0 0.0
      %714 = vmatmul.mubr.f32.gmra.mrb[0].mxu0 %v548
      %v715 = vpop.f32.mrb[0].mxu0
      %v716 = vadd.f32 0.0, %v715
      %v717 = vpop.f32.mrb[0].mxu0
      %718 = vmatprep.mubr.f32.mxu0 0.0
      %719 = vmatmul.mubr.f32.gmra.mrb[0].mxu0 %v551
      %v720 = vpop.f32.mrb[0].mxu0
      %v721 = vadd.f32 0.0, %v720
      %v722 = vpop.f32.mrb[0].mxu0
      %723 = vmatprep.mubr.f32.mxu0 0.0
      %724 = vmatmul.mubr.f32.gmra.mrb[0].mxu0 %v554
      %v725 = vpop.f32.mrb[0].mxu0
      %v726 = vadd.f32 0.0, %v725
      %v727 = vpop.f32.mrb[0].mxu0
      %728 = vmatprep.mubr.f32.mxu0 0.0
      %729 = vmatmul.mubr.f32.gmra.mrb[0].mxu0 %v557
      %v730 = vpop.f32.mrb[0].mxu0
      %v731 = vadd.f32 0.0, %v730
      %v732 = vpop.f32.mrb[0].mxu0
      %733 = vdwg.mxu0
      %v734 = vld [vmem:[%s3] sm:$0x1]
      %v736 = vlaneseq
      %v737 = vshrl.u32 %v736, 7
      %v738 = vsub.s32 0, %v737
      %v739 = vrot.slane %v734, %v738
      %v741 = vmul.f32 %v626, %v739
      %v742 = vmul.f32 %v631, %v739
      %v743 = vmul.f32 %v636, %v739
      %v744 = vmul.f32 %v641, %v739
      %v745 = vmul.f32 %v646, %v739
      %v746 = vmul.f32 %v651, %v739
      %v747 = vmul.f32 %v656, %v739
      %v748 = vmul.f32 %v661, %v739
      %v749 = vmul.f32 %v666, %v739
      %v750 = vmul.f32 %v671, %v739
      %v751 = vmul.f32 %v676, %v739
      %v752 = vmul.f32 %v681, %v739
      %v753 = vmul.f32 %v686, %v739
      %v754 = vmul.f32 %v691, %v739
      %v755 = vmul.f32 %v696, %v739
      %v756 = vmul.f32 %v701, %v739
      %v757 = vmul.f32 %v706, %v739
      %v758 = vmul.f32 %v711, %v739
      %v759 = vmul.f32 %v716, %v739
      %v760 = vmul.f32 %v721, %v739
      %v761 = vmul.f32 %v726, %v739
      %v762 = vmul.f32 %v731, %v739
      %v763 = vld [vmem:[%s4] sm:$0x1]
      %v765 = vlaneseq
      %v766 = vshrl.u32 %v765, 7
      %v767 = vsub.s32 0, %v766
      %v768 = vrot.slane %v763, %v767
      %v770 = vadd.f32 %v741, %v768
      %v771 = vadd.f32 %v742, %v768
      %v772 = vadd.f32 %v743, %v768
      %v773 = vadd.f32 %v744, %v768
      %v774 = vadd.f32 %v745, %v768
      %v775 = vadd.f32 %v746, %v768
      %v776 = vadd.f32 %v747, %v768
      %v777 = vadd.f32 %v748, %v768
      %v778 = vadd.f32 %v749, %v768
      %v779 = vadd.f32 %v750, %v768
      %v780 = vadd.f32 %v751, %v768
      %v781 = vadd.f32 %v752, %v768
      %v782 = vadd.f32 %v753, %v768
      %v783 = vadd.f32 %v754, %v768
      %v784 = vadd.f32 %v755, %v768
      %v785 = vadd.f32 %v756, %v768
      %v786 = vadd.f32 %v757, %v768
      %v787 = vadd.f32 %v758, %v768
      %v788 = vadd.f32 %v759, %v768
      %v789 = vadd.f32 %v760, %v768
      %v790 = vadd.f32 %v761, %v768
      %v791 = vadd.f32 %v762, %v768
      %v792 = vmax.f32 %v770, 0.0
      %v793 = vmax.f32 %v771, 0.0
      %v794 = vmax.f32 %v772, 0.0
      %v795 = vmax.f32 %v773, 0.0
      %v796 = vmax.f32 %v774, 0.0
      %v797 = vmax.f32 %v775, 0.0
      %v798 = vmax.f32 %v776, 0.0
      %v799 = vmax.f32 %v777, 0.0
      %v800 = vmax.f32 %v778, 0.0
      %v801 = vmax.f32 %v779, 0.0
      %v802 = vmax.f32 %v780, 0.0
      %v803 = vmax.f32 %v781, 0.0
      %v804 = vmax.f32 %v782, 0.0
      %v805 = vmax.f32 %v783, 0.0
      %v806 = vmax.f32 %v784, 0.0
      %v807 = vmax.f32 %v785, 0.0
      %v808 = vmax.f32 %v786, 0.0
      %v809 = vmax.f32 %v787, 0.0
      %v810 = vmax.f32 %v788, 0.0
      %v811 = vmax.f32 %v789, 0.0
      %v812 = vmax.f32 %v790, 0.0
      %v813 = vmax.f32 %v791, 0.0
      %v814 = vld [vmem:[%s1] sm:$0xff]
      %v815 = vld [vmem:[%s1 + $0x8] sm:$0xff]
      %v816 = vld [vmem:[%s1 + $0x10] sm:$0xff]
      %v817 = vld [vmem:[%s1 + $0x18] sm:$0xff]
      %v818 = vld [vmem:[%s1 + $0x20] sm:$0xff]
      %v819 = vld [vmem:[%s1 + $0x28] sm:$0xff]
      %v820 = vld [vmem:[%s1 + $0x30] sm:$0xff]
      %v821 = vld [vmem:[%s1 + $0x38] sm:$0xff]
      %v822 = vld [vmem:[%s1 + $0x40] sm:$0xff]
      %v823 = vld [vmem:[%s1 + $0x48] sm:$0xff]
      %v824 = vld [vmem:[%s1 + $0x50] sm:$0xff]
      %v825 = vld [vmem:[%s1 + $0x58] sm:$0xff]
      %v826 = vld [vmem:[%s1 + $0x60] sm:$0xff]
      %v827 = vld [vmem:[%s1 + $0x68] sm:$0xff]
      %v828 = vld [vmem:[%s1 + $0x70] sm:$0xff]
      %v829 = vld [vmem:[%s1 + $0x78] sm:$0xff]
      %v830 = vld [vmem:[%s1 + $0x80] sm:$0xff]
      %v831 = vld [vmem:[%s1 + $0x88] sm:$0xff]
      %v832 = vld [vmem:[%s1 + $0x90] sm:$0xff]
      %v833 = vld [vmem:[%s1 + $0x98] sm:$0xff]
      %v834 = vld [vmem:[%s1 + $0xa0] sm:$0xff]
      %v835 = vld [vmem:[%s1 + $0xa8] sm:$0xff]
      %837 = vset.pattern.permute.xlu0 0
      %838 = vperm.xlu0 %837, %v814
      %v839 = vpop.permute.xlu0 %838
      %842 = vset.pattern.permute.xlu0 0
      %843 = vperm.xlu0 %842, %v815
      %v844 = vpop.permute.xlu0 %843
      %847 = vset.pattern.permute.xlu0 0
      %848 = vperm.xlu0 %847, %v816
      %v849 = vpop.permute.xlu0 %848
      %852 = vset.pattern.permute.xlu0 0
      %853 = vperm.xlu0 %852, %v817
      %v854 = vpop.permute.xlu0 %853
      %857 = vset.pattern.permute.xlu0 0
      %858 = vperm.xlu0 %857, %v818
      %v859 = vpop.permute.xlu0 %858
      %862 = vset.pattern.permute.xlu0 0
      %863 = vperm.xlu0 %862, %v819
      %v864 = vpop.permute.xlu0 %863
      %867 = vset.pattern.permute.xlu0 0
      %868 = vperm.xlu0 %867, %v820
      %v869 = vpop.permute.xlu0 %868
      %872 = vset.pattern.permute.xlu0 0
      %873 = vperm.xlu0 %872, %v821
      %v874 = vpop.permute.xlu0 %873
      %877 = vset.pattern.permute.xlu0 0
      %878 = vperm.xlu0 %877, %v822
      %v879 = vpop.permute.xlu0 %878
      %882 = vset.pattern.permute.xlu0 0
      %883 = vperm.xlu0 %882, %v823
      %v884 = vpop.permute.xlu0 %883
      %887 = vset.pattern.permute.xlu0 0
      %888 = vperm.xlu0 %887, %v824
      %v889 = vpop.permute.xlu0 %888
      %892 = vset.pattern.permute.xlu0 0
      %893 = vperm.xlu0 %892, %v825
      %v894 = vpop.permute.xlu0 %893
      %897 = vset.pattern.permute.xlu0 0
      %898 = vperm.xlu0 %897, %v826
      %v899 = vpop.permute.xlu0 %898
      %902 = vset.pattern.permute.xlu0 0
      %903 = vperm.xlu0 %902, %v827
      %v904 = vpop.permute.xlu0 %903
      %907 = vset.pattern.permute.xlu0 0
      %908 = vperm.xlu0 %907, %v828
      %v909 = vpop.permute.xlu0 %908
      %912 = vset.pattern.permute.xlu0 0
      %913 = vperm.xlu0 %912, %v829
      %v914 = vpop.permute.xlu0 %913
      %917 = vset.pattern.permute.xlu0 0
      %918 = vperm.xlu0 %917, %v830
      %v919 = vpop.permute.xlu0 %918
      %922 = vset.pattern.permute.xlu0 0
      %923 = vperm.xlu0 %922, %v831
      %v924 = vpop.permute.xlu0 %923
      %927 = vset.pattern.permute.xlu0 0
      %928 = vperm.xlu0 %927, %v832
      %v929 = vpop.permute.xlu0 %928
      %932 = vset.pattern.permute.xlu0 0
      %933 = vperm.xlu0 %932, %v833
      %v934 = vpop.permute.xlu0 %933
      %937 = vset.pattern.permute.xlu0 0
      %938 = vperm.xlu0 %937, %v834
      %v939 = vpop.permute.xlu0 %938
      %942 = vset.pattern.permute.xlu0 0
      %943 = vperm.xlu0 %942, %v835
      %v944 = vpop.permute.xlu0 %943
      %v946 = vmul.f32 %v792, %v839
      %v947 = vmul.f32 %v793, %v844
      %v948 = vmul.f32 %v794, %v849
      %v949 = vmul.f32 %v795, %v854
      %v950 = vmul.f32 %v796, %v859
      %v951 = vmul.f32 %v797, %v864
      %v952 = vmul.f32 %v798, %v869
      %v953 = vmul.f32 %v799, %v874
      %v954 = vmul.f32 %v800, %v879
      %v955 = vmul.f32 %v801, %v884
      %v956 = vmul.f32 %v802, %v889
      %v957 = vmul.f32 %v803, %v894
      %v958 = vmul.f32 %v804, %v899
      %v959 = vmul.f32 %v805, %v904
      %v960 = vmul.f32 %v806, %v909
      %v961 = vmul.f32 %v807, %v914
      %v962 = vmul.f32 %v808, %v919
      %v963 = vmul.f32 %v809, %v924
      %v964 = vmul.f32 %v810, %v929
      %v965 = vmul.f32 %v811, %v934
      %v966 = vmul.f32 %v812, %v939
      %v967 = vmul.f32 %v813, %v944
      %vm968 = vcmask 64512
      %969 = vst.msk [vmem:[#allocation2] sm:$0xff] %vm968, %v946
      %970 = vst.msk [vmem:[#allocation2 + $0x8] sm:$0xff] %vm968, %v947
      %971 = vst.msk [vmem:[#allocation2 + $0x10] sm:$0xff] %vm968, %v948
      %972 = vst.msk [vmem:[#allocation2 + $0x18] sm:$0xff] %vm968, %v949
      %973 = vst.msk [vmem:[#allocation2 + $0x20] sm:$0xff] %vm968, %v950
      %974 = vst.msk [vmem:[#allocation2 + $0x28] sm:$0xff] %vm968, %v951
      %975 = vst.msk [vmem:[#allocation2 + $0x30] sm:$0xff] %vm968, %v952
      %976 = vst.msk [vmem:[#allocation2 + $0x38] sm:$0xff] %vm968, %v953
      %977 = vst.msk [vmem:[#allocation2 + $0x40] sm:$0xff] %vm968, %v954
      %978 = vst.msk [vmem:[#allocation2 + $0x48] sm:$0xff] %vm968, %v955
      %979 = vst.msk [vmem:[#allocation2 + $0x50] sm:$0xff] %vm968, %v956
      %980 = vst.msk [vmem:[#allocation2 + $0x58] sm:$0xff] %vm968, %v957
      %981 = vst.msk [vmem:[#allocation2 + $0x60] sm:$0xff] %vm968, %v958
      %982 = vst.msk [vmem:[#allocation2 + $0x68] sm:$0xff] %vm968, %v959
      %983 = vst.msk [vmem:[#allocation2 + $0x70] sm:$0xff] %vm968, %v960
      %984 = vst.msk [vmem:[#allocation2 + $0x78] sm:$0xff] %vm968, %v961
      %985 = vst.msk [vmem:[#allocation2 + $0x80] sm:$0xff] %vm968, %v962
      %986 = vst.msk [vmem:[#allocation2 + $0x88] sm:$0xff] %vm968, %v963
      %987 = vst.msk [vmem:[#allocation2 + $0x90] sm:$0xff] %vm968, %v964
      %988 = vst.msk [vmem:[#allocation2 + $0x98] sm:$0xff] %vm968, %v965
      %989 = vst.msk [vmem:[#allocation2 + $0xa0] sm:$0xff] %vm968, %v966
      %990 = vst.msk [vmem:[#allocation2 + $0xa8] sm:$0xff] %vm968, %v967
      %s991 = scalar_lea.vmem %s462, 176
      %v992 = vld [vmem:[%s991] sm:$0xff]
      %v993 = vld [vmem:[%s991 + $0x8] sm:$0xff]
      %v994 = vld [vmem:[%s991 + $0x10] sm:$0xff]
      %v995 = vld [vmem:[%s991 + $0x18] sm:$0xff]
      %v996 = vld [vmem:[%s991 + $0x20] sm:$0xff]
      %v997 = vld [vmem:[%s991 + $0x28] sm:$0xff]
      %v998 = vld [vmem:[%s991 + $0x30] sm:$0xff]
      %v999 = vld [vmem:[%s991 + $0x38] sm:$0xff]
      %v1000 = vld [vmem:[%s991 + $0x40] sm:$0xff]
      %v1001 = vld [vmem:[%s991 + $0x48] sm:$0xff]
      %v1002 = vld [vmem:[%s991 + $0x50] sm:$0xff]
      %v1003 = vld [vmem:[%s991 + $0x58] sm:$0xff]
      %v1004 = vld [vmem:[%s991 + $0x60] sm:$0xff]
      %v1005 = vld [vmem:[%s991 + $0x68] sm:$0xff]
      %v1006 = vld [vmem:[%s991 + $0x70] sm:$0xff]
      %v1007 = vld [vmem:[%s991 + $0x78] sm:$0xff]
      %v1008 = vld [vmem:[%s991 + $0x80] sm:$0xff]
      %v1009 = vld [vmem:[%s991 + $0x88] sm:$0xff]
      %v1010 = vld [vmem:[%s991 + $0x90] sm:$0xff]
      %v1011 = vld [vmem:[%s991 + $0x98] sm:$0xff]
      %v1012 = vld [vmem:[%s991 + $0xa0] sm:$0xff]
      %v1013 = vld [vmem:[%s991 + $0xa8] sm:$0xff]
      %v1014 = vld [vmem:[%s2] sm:$0xff]
      %v1015 = vld [vmem:[%s2 + $0x8] sm:$0xff]
      %v1017 = vsel %vm492, %v992, 0
      %v1020 = vsel %vm492, %v993, 0
      %v1023 = vsel %vm492, %v994, 0
      %v1026 = vsel %vm492, %v995, 0
      %v1029 = vsel %vm492, %v996, 0
      %v1032 = vsel %vm492, %v997, 0
      %v1035 = vsel %vm492, %v998, 0
      %v1038 = vsel %vm492, %v999, 0
      %v1041 = vsel %vm492, %v1000, 0
      %v1044 = vsel %vm492, %v1001, 0
      %v1047 = vsel %vm492, %v1002, 0
      %v1050 = vsel %vm492, %v1003, 0
      %v1053 = vsel %vm492, %v1004, 0
      %v1056 = vsel %vm492, %v1005, 0
      %v1059 = vsel %vm492, %v1006, 0
      %v1062 = vsel %vm492, %v1007, 0
      %v1065 = vsel %vm492, %v1008, 0
      %v1068 = vsel %vm492, %v1009, 0
      %v1071 = vsel %vm492, %v1010, 0
      %v1074 = vsel %vm492, %v1011, 0
      %v1077 = vsel %vm492, %v1012, 0
      %v1080 = vsel %vm492, %v1013, 0
      %1082 = vmatprep.subr.mxu0 0.0
      %1083 = vmatpush1.msra.mxu0 %v1014
      %1084 = vmatprep.subr.mxu0 0.0
      %1085 = vmatpush1.msra.mxu0 %v1015
      %1086 = vmatprep.subr.mxu0 0.0
      %1087 = vmatpush1.msra.mxu0 0.0
      %1088 = vmatprep.subr.mxu0 0.0
      %1089 = vmatpush1.msra.mxu0 0.0
      %1090 = vmatprep.subr.mxu0 0.0
      %1091 = vmatpush1.msra.mxu0 0.0
      %1092 = vmatprep.subr.mxu0 0.0
      %1093 = vmatpush1.msra.mxu0 0.0
      %1094 = vmatprep.subr.mxu0 0.0
      %1095 = vmatpush1.msra.mxu0 0.0
      %1096 = vmatprep.subr.mxu0 0.0
      %1097 = vmatpush1.msra.mxu0 0.0
      %1098 = vmatprep.subr.mxu0 0.0
      %1099 = vmatpush1.msra.mxu0 0.0
      %1100 = vmatprep.subr.mxu0 0.0
      %1101 = vmatpush1.msra.mxu0 0.0
      %1102 = vmatprep.subr.mxu0 0.0
      %1103 = vmatpush1.msra.mxu0 0.0
      %1104 = vmatprep.subr.mxu0 0.0
      %1105 = vmatpush1.msra.mxu0 0.0
      %1106 = vmatprep.subr.mxu0 0.0
      %1107 = vmatpush1.msra.mxu0 0.0
      %1108 = vmatprep.subr.mxu0 0.0
      %1109 = vmatpush1.msra.mxu0 0.0
      %1110 = vmatprep.subr.mxu0 0.0
      %1111 = vmatpush1.msra.mxu0 0.0
      %1112 = vmatprep.subr.mxu0 0.0
      %1113 = vmatpush1.msra.mxu0 0.0
      %1114 = vmatprep.subr.mxu0 0.0
      %1115 = vmatpush1.msra.mxu0 0.0
      %1116 = vmatprep.subr.mxu0 0.0
      %1117 = vmatpush1.msra.mxu0 0.0
      %1118 = vmatprep.subr.mxu0 0.0
      %1119 = vmatpush1.msra.mxu0 0.0
      %1120 = vmatprep.subr.mxu0 0.0
      %1121 = vmatpush1.msra.mxu0 0.0
      %1122 = vmatprep.subr.mxu0 0.0
      %1123 = vmatpush1.msra.mxu0 0.0
      %1124 = vmatprep.subr.mxu0 0.0
      %1125 = vmatpush1.msra.mxu0 0.0
      %1126 = vmatprep.subr.mxu0 0.0
      %1127 = vmatpush1.msra.mxu0 0.0
      %1128 = vmatprep.subr.mxu0 0.0
      %1129 = vmatpush1.msra.mxu0 0.0
      %1130 = vmatprep.subr.mxu0 0.0
      %1131 = vmatpush1.msra.mxu0 0.0
      %1132 = vmatprep.subr.mxu0 0.0
      %1133 = vmatpush1.msra.mxu0 0.0
      %1134 = vmatprep.subr.mxu0 0.0
      %1135 = vmatpush1.msra.mxu0 0.0
      %1136 = vmatprep.subr.mxu0 0.0
      %1137 = vmatpush1.msra.mxu0 0.0
      %1138 = vmatprep.subr.mxu0 0.0
      %1139 = vmatpush1.msra.mxu0 0.0
      %1140 = vmatprep.subr.mxu0 0.0
      %1141 = vmatpush1.msra.mxu0 0.0
      %1142 = vmatprep.subr.mxu0 0.0
      %1143 = vmatpush1.msra.mxu0 0.0
      %1144 = vmatprep.subr.mxu0 0.0
      %1145 = vmatpush1.msra.mxu0 0.0
      %1146 = vmatprep.mubr.f32.mxu0 0.0
      %1147 = vmatmul.mubr.f32.gmra.mrb[0].mxu0 %v1017
      %v1148 = vpop.f32.mrb[0].mxu0
      %v1149 = vadd.f32 0.0, %v1148
      %v1150 = vpop.f32.mrb[0].mxu0
      %1151 = vmatprep.mubr.f32.mxu0 0.0
      %1152 = vmatmul.mubr.f32.gmra.mrb[0].mxu0 %v1020
      %v1153 = vpop.f32.mrb[0].mxu0
      %v1154 = vadd.f32 0.0, %v1153
      %v1155 = vpop.f32.mrb[0].mxu0
      %1156 = vmatprep.mubr.f32.mxu0 0.0
      %1157 = vmatmul.mubr.f32.gmra.mrb[0].mxu0 %v1023
      %v1158 = vpop.f32.mrb[0].mxu0
      %v1159 = vadd.f32 0.0, %v1158
      %v1160 = vpop.f32.mrb[0].mxu0
      %1161 = vmatprep.mubr.f32.mxu0 0.0
      %1162 = vmatmul.mubr.f32.gmra.mrb[0].mxu0 %v1026
      %v1163 = vpop.f32.mrb[0].mxu0
      %v1164 = vadd.f32 0.0, %v1163
      %v1165 = vpop.f32.mrb[0].mxu0
      %1166 = vmatprep.mubr.f32.mxu0 0.0
      %1167 = vmatmul.mubr.f32.gmra.mrb[0].mxu0 %v1029
      %v1168 = vpop.f32.mrb[0].mxu0
      %v1169 = vadd.f32 0.0, %v1168
      %v1170 = vpop.f32.mrb[0].mxu0
      %1171 = vmatprep.mubr.f32.mxu0 0.0
      %1172 = vmatmul.mubr.f32.gmra.mrb[0].mxu0 %v1032
      %v1173 = vpop.f32.mrb[0].mxu0
      %v1174 = vadd.f32 0.0, %v1173
      %v1175 = vpop.f32.mrb[0].mxu0
      %1176 = vmatprep.mubr.f32.mxu0 0.0
      %1177 = vmatmul.mubr.f32.gmra.mrb[0].mxu0 %v1035
      %v1178 = vpop.f32.mrb[0].mxu0
      %v1179 = vadd.f32 0.0, %v1178
      %v1180 = vpop.f32.mrb[0].mxu0
      %1181 = vmatprep.mubr.f32.mxu0 0.0
      %1182 = vmatmul.mubr.f32.gmra.mrb[0].mxu0 %v1038
      %v1183 = vpop.f32.mrb[0].mxu0
      %v1184 = vadd.f32 0.0, %v1183
      %v1185 = vpop.f32.mrb[0].mxu0
      %1186 = vmatprep.mubr.f32.mxu0 0.0
      %1187 = vmatmul.mubr.f32.gmra.mrb[0].mxu0 %v1041
      %v1188 = vpop.f32.mrb[0].mxu0
      %v1189 = vadd.f32 0.0, %v1188
      %v1190 = vpop.f32.mrb[0].mxu0
      %1191 = vmatprep.mubr.f32.mxu0 0.0
      %1192 = vmatmul.mubr.f32.gmra.mrb[0].mxu0 %v1044
      %v1193 = vpop.f32.mrb[0].mxu0
      %v1194 = vadd.f32 0.0, %v1193
      %v1195 = vpop.f32.mrb[0].mxu0
      %1196 = vmatprep.mubr.f32.mxu0 0.0
      %1197 = vmatmul.mubr.f32.gmra.mrb[0].mxu0 %v1047
      %v1198 = vpop.f32.mrb[0].mxu0
      %v1199 = vadd.f32 0.0, %v1198
      %v1200 = vpop.f32.mrb[0].mxu0
      %1201 = vmatprep.mubr.f32.mxu0 0.0
      %1202 = vmatmul.mubr.f32.gmra.mrb[0].mxu0 %v1050
      %v1203 = vpop.f32.mrb[0].mxu0
      %v1204 = vadd.f32 0.0, %v1203
      %v1205 = vpop.f32.mrb[0].mxu0
      %1206 = vmatprep.mubr.f32.mxu0 0.0
      %1207 = vmatmul.mubr.f32.gmra.mrb[0].mxu0 %v1053
      %v1208 = vpop.f32.mrb[0].mxu0
      %v1209 = vadd.f32 0.0, %v1208
      %v1210 = vpop.f32.mrb[0].mxu0
      %1211 = vmatprep.mubr.f32.mxu0 0.0
      %1212 = vmatmul.mubr.f32.gmra.mrb[0].mxu0 %v1056
      %v1213 = vpop.f32.mrb[0].mxu0
      %v1214 = vadd.f32 0.0, %v1213
      %v1215 = vpop.f32.mrb[0].mxu0
      %1216 = vmatprep.mubr.f32.mxu0 0.0
      %1217 = vmatmul.mubr.f32.gmra.mrb[0].mxu0 %v1059
      %v1218 = vpop.f32.mrb[0].mxu0
      %v1219 = vadd.f32 0.0, %v1218
      %v1220 = vpop.f32.mrb[0].mxu0
      %1221 = vmatprep.mubr.f32.mxu0 0.0
      %1222 = vmatmul.mubr.f32.gmra.mrb[0].mxu0 %v1062
      %v1223 = vpop.f32.mrb[0].mxu0
      %v1224 = vadd.f32 0.0, %v1223
      %v1225 = vpop.f32.mrb[0].mxu0
      %1226 = vmatprep.mubr.f32.mxu0 0.0
      %1227 = vmatmul.mubr.f32.gmra.mrb[0].mxu0 %v1065
      %v1228 = vpop.f32.mrb[0].mxu0
      %v1229 = vadd.f32 0.0, %v1228
      %v1230 = vpop.f32.mrb[0].mxu0
      %1231 = vmatprep.mubr.f32.mxu0 0.0
      %1232 = vmatmul.mubr.f32.gmra.mrb[0].mxu0 %v1068
      %v1233 = vpop.f32.mrb[0].mxu0
      %v1234 = vadd.f32 0.0, %v1233
      %v1235 = vpop.f32.mrb[0].mxu0
      %1236 = vmatprep.mubr.f32.mxu0 0.0
      %1237 = vmatmul.mubr.f32.gmra.mrb[0].mxu0 %v1071
      %v1238 = vpop.f32.mrb[0].mxu0
      %v1239 = vadd.f32 0.0, %v1238
      %v1240 = vpop.f32.mrb[0].mxu0
      %1241 = vmatprep.mubr.f32.mxu0 0.0
      %1242 = vmatmul.mubr.f32.gmra.mrb[0].mxu0 %v1074
      %v1243 = vpop.f32.mrb[0].mxu0
      %v1244 = vadd.f32 0.0, %v1243
      %v1245 = vpop.f32.mrb[0].mxu0
      %1246 = vmatprep.mubr.f32.mxu0 0.0
      %1247 = vmatmul.mubr.f32.gmra.mrb[0].mxu0 %v1077
      %v1248 = vpop.f32.mrb[0].mxu0
      %v1249 = vadd.f32 0.0, %v1248
      %v1250 = vpop.f32.mrb[0].mxu0
      %1251 = vmatprep.mubr.f32.mxu0 0.0
      %1252 = vmatmul.mubr.f32.gmra.mrb[0].mxu0 %v1080
      %v1253 = vpop.f32.mrb[0].mxu0
      %v1254 = vadd.f32 0.0, %v1253
      %v1255 = vpop.f32.mrb[0].mxu0
      %1256 = vdwg.mxu0
      %v1257 = vld [vmem:[%s3] sm:$0x1]
      %v1259 = vlaneseq
      %v1260 = vshrl.u32 %v1259, 7
      %v1261 = vsub.s32 0, %v1260
      %v1262 = vrot.slane %v1257, %v1261
      %v1264 = vmul.f32 %v1149, %v1262
      %v1265 = vmul.f32 %v1154, %v1262
      %v1266 = vmul.f32 %v1159, %v1262
      %v1267 = vmul.f32 %v1164, %v1262
      %v1268 = vmul.f32 %v1169, %v1262
      %v1269 = vmul.f32 %v1174, %v1262
      %v1270 = vmul.f32 %v1179, %v1262
      %v1271 = vmul.f32 %v1184, %v1262
      %v1272 = vmul.f32 %v1189, %v1262
      %v1273 = vmul.f32 %v1194, %v1262
      %v1274 = vmul.f32 %v1199, %v1262
      %v1275 = vmul.f32 %v1204, %v1262
      %v1276 = vmul.f32 %v1209, %v1262
      %v1277 = vmul.f32 %v1214, %v1262
      %v1278 = vmul.f32 %v1219, %v1262
      %v1279 = vmul.f32 %v1224, %v1262
      %v1280 = vmul.f32 %v1229, %v1262
      %v1281 = vmul.f32 %v1234, %v1262
      %v1282 = vmul.f32 %v1239, %v1262
      %v1283 = vmul.f32 %v1244, %v1262
      %v1284 = vmul.f32 %v1249, %v1262
      %v1285 = vmul.f32 %v1254, %v1262
      %v1286 = vld [vmem:[%s4] sm:$0x1]
      %v1288 = vlaneseq
      %v1289 = vshrl.u32 %v1288, 7
      %v1290 = vsub.s32 0, %v1289
      %v1291 = vrot.slane %v1286, %v1290
      %v1293 = vadd.f32 %v1264, %v1291
      %v1294 = vadd.f32 %v1265, %v1291
      %v1295 = vadd.f32 %v1266, %v1291
      %v1296 = vadd.f32 %v1267, %v1291
      %v1297 = vadd.f32 %v1268, %v1291
      %v1298 = vadd.f32 %v1269, %v1291
      %v1299 = vadd.f32 %v1270, %v1291
      %v1300 = vadd.f32 %v1271, %v1291
      %v1301 = vadd.f32 %v1272, %v1291
      %v1302 = vadd.f32 %v1273, %v1291
      %v1303 = vadd.f32 %v1274, %v1291
      %v1304 = vadd.f32 %v1275, %v1291
      %v1305 = vadd.f32 %v1276, %v1291
      %v1306 = vadd.f32 %v1277, %v1291
      %v1307 = vadd.f32 %v1278, %v1291
      %v1308 = vadd.f32 %v1279, %v1291
      %v1309 = vadd.f32 %v1280, %v1291
      %v1310 = vadd.f32 %v1281, %v1291
      %v1311 = vadd.f32 %v1282, %v1291
      %v1312 = vadd.f32 %v1283, %v1291
      %v1313 = vadd.f32 %v1284, %v1291
      %v1314 = vadd.f32 %v1285, %v1291
      %v1315 = vmax.f32 %v1293, 0.0
      %v1316 = vmax.f32 %v1294, 0.0
      %v1317 = vmax.f32 %v1295, 0.0
      %v1318 = vmax.f32 %v1296, 0.0
      %v1319 = vmax.f32 %v1297, 0.0
      %v1320 = vmax.f32 %v1298, 0.0
      %v1321 = vmax.f32 %v1299, 0.0
      %v1322 = vmax.f32 %v1300, 0.0
      %v1323 = vmax.f32 %v1301, 0.0
      %v1324 = vmax.f32 %v1302, 0.0
      %v1325 = vmax.f32 %v1303, 0.0
      %v1326 = vmax.f32 %v1304, 0.0
      %v1327 = vmax.f32 %v1305, 0.0
      %v1328 = vmax.f32 %v1306, 0.0
      %v1329 = vmax.f32 %v1307, 0.0
      %v1330 = vmax.f32 %v1308, 0.0
      %v1331 = vmax.f32 %v1309, 0.0
      %v1332 = vmax.f32 %v1310, 0.0
      %v1333 = vmax.f32 %v1311, 0.0
      %v1334 = vmax.f32 %v1312, 0.0
      %v1335 = vmax.f32 %v1313, 0.0
      %v1336 = vmax.f32 %v1314, 0.0
      %s1337 = scalar_lea.vmem %s1, 176
      %v1338 = vld [vmem:[%s1337] sm:$0xff]
      %v1339 = vld [vmem:[%s1337 + $0x8] sm:$0xff]
      %v1340 = vld [vmem:[%s1337 + $0x10] sm:$0xff]
      %v1341 = vld [vmem:[%s1337 + $0x18] sm:$0xff]
      %v1342 = vld [vmem:[%s1337 + $0x20] sm:$0xff]
      %v1343 = vld [vmem:[%s1337 + $0x28] sm:$0xff]
      %v1344 = vld [vmem:[%s1337 + $0x30] sm:$0xff]
      %v1345 = vld [vmem:[%s1337 + $0x38] sm:$0xff]
      %v1346 = vld [vmem:[%s1337 + $0x40] sm:$0xff]
      %v1347 = vld [vmem:[%s1337 + $0x48] sm:$0xff]
      %v1348 = vld [vmem:[%s1337 + $0x50] sm:$0xff]
      %v1349 = vld [vmem:[%s1337 + $0x58] sm:$0xff]
      %v1350 = vld [vmem:[%s1337 + $0x60] sm:$0xff]
      %v1351 = vld [vmem:[%s1337 + $0x68] sm:$0xff]
      %v1352 = vld [vmem:[%s1337 + $0x70] sm:$0xff]
      %v1353 = vld [vmem:[%s1337 + $0x78] sm:$0xff]
      %v1354 = vld [vmem:[%s1337 + $0x80] sm:$0xff]
      %v1355 = vld [vmem:[%s1337 + $0x88] sm:$0xff]
      %v1356 = vld [vmem:[%s1337 + $0x90] sm:$0xff]
      %v1357 = vld [vmem:[%s1337 + $0x98] sm:$0xff]
      %v1358 = vld [vmem:[%s1337 + $0xa0] sm:$0xff]
      %v1359 = vld [vmem:[%s1337 + $0xa8] sm:$0xff]
      %1361 = vset.pattern.permute.xlu0 0
      %1362 = vperm.xlu0 %1361, %v1338
      %v1363 = vpop.permute.xlu0 %1362
      %1366 = vset.pattern.permute.xlu0 0
      %1367 = vperm.xlu0 %1366, %v1339
      %v1368 = vpop.permute.xlu0 %1367
      %1371 = vset.pattern.permute.xlu0 0
      %1372 = vperm.xlu0 %1371, %v1340
      %v1373 = vpop.permute.xlu0 %1372
      %1376 = vset.pattern.permute.xlu0 0
      %1377 = vperm.xlu0 %1376, %v1341
      %v1378 = vpop.permute.xlu0 %1377
      %1381 = vset.pattern.permute.xlu0 0
      %1382 = vperm.xlu0 %1381, %v1342
      %v1383 = vpop.permute.xlu0 %1382
      %1386 = vset.pattern.permute.xlu0 0
      %1387 = vperm.xlu0 %1386, %v1343
      %v1388 = vpop.permute.xlu0 %1387
      %1391 = vset.pattern.permute.xlu0 0
      %1392 = vperm.xlu0 %1391, %v1344
      %v1393 = vpop.permute.xlu0 %1392
      %1396 = vset.pattern.permute.xlu0 0
      %1397 = vperm.xlu0 %1396, %v1345
      %v1398 = vpop.permute.xlu0 %1397
      %1401 = vset.pattern.permute.xlu0 0
      %1402 = vperm.xlu0 %1401, %v1346
      %v1403 = vpop.permute.xlu0 %1402
      %1406 = vset.pattern.permute.xlu0 0
      %1407 = vperm.xlu0 %1406, %v1347
      %v1408 = vpop.permute.xlu0 %1407
      %1411 = vset.pattern.permute.xlu0 0
      %1412 = vperm.xlu0 %1411, %v1348
      %v1413 = vpop.permute.xlu0 %1412
      %1416 = vset.pattern.permute.xlu0 0
      %1417 = vperm.xlu0 %1416, %v1349
      %v1418 = vpop.permute.xlu0 %1417
      %1421 = vset.pattern.permute.xlu0 0
      %1422 = vperm.xlu0 %1421, %v1350
      %v1423 = vpop.permute.xlu0 %1422
      %1426 = vset.pattern.permute.xlu0 0
      %1427 = vperm.xlu0 %1426, %v1351
      %v1428 = vpop.permute.xlu0 %1427
      %1431 = vset.pattern.permute.xlu0 0
      %1432 = vperm.xlu0 %1431, %v1352
      %v1433 = vpop.permute.xlu0 %1432
      %1436 = vset.pattern.permute.xlu0 0
      %1437 = vperm.xlu0 %1436, %v1353
      %v1438 = vpop.permute.xlu0 %1437
      %1441 = vset.pattern.permute.xlu0 0
      %1442 = vperm.xlu0 %1441, %v1354
      %v1443 = vpop.permute.xlu0 %1442
      %1446 = vset.pattern.permute.xlu0 0
      %1447 = vperm.xlu0 %1446, %v1355
      %v1448 = vpop.permute.xlu0 %1447
      %1451 = vset.pattern.permute.xlu0 0
      %1452 = vperm.xlu0 %1451, %v1356
      %v1453 = vpop.permute.xlu0 %1452
      %1456 = vset.pattern.permute.xlu0 0
      %1457 = vperm.xlu0 %1456, %v1357
      %v1458 = vpop.permute.xlu0 %1457
      %1461 = vset.pattern.permute.xlu0 0
      %1462 = vperm.xlu0 %1461, %v1358
      %v1463 = vpop.permute.xlu0 %1462
      %1466 = vset.pattern.permute.xlu0 0
      %1467 = vperm.xlu0 %1466, %v1359
      %v1468 = vpop.permute.xlu0 %1467
      %v1470 = vmul.f32 %v1315, %v1363
      %v1471 = vmul.f32 %v1316, %v1368
      %v1472 = vmul.f32 %v1317, %v1373
      %v1473 = vmul.f32 %v1318, %v1378
      %v1474 = vmul.f32 %v1319, %v1383
      %v1475 = vmul.f32 %v1320, %v1388
      %v1476 = vmul.f32 %v1321, %v1393
      %v1477 = vmul.f32 %v1322, %v1398
      %v1478 = vmul.f32 %v1323, %v1403
      %v1479 = vmul.f32 %v1324, %v1408
      %v1480 = vmul.f32 %v1325, %v1413
      %v1481 = vmul.f32 %v1326, %v1418
      %v1482 = vmul.f32 %v1327, %v1423
      %v1483 = vmul.f32 %v1328, %v1428
      %v1484 = vmul.f32 %v1329, %v1433
      %v1485 = vmul.f32 %v1330, %v1438
      %v1486 = vmul.f32 %v1331, %v1443
      %v1487 = vmul.f32 %v1332, %v1448
      %v1488 = vmul.f32 %v1333, %v1453
      %v1489 = vmul.f32 %v1334, %v1458
      %v1490 = vmul.f32 %v1335, %v1463
      %v1491 = vmul.f32 %v1336, %v1468
      %s1492 = scalar_lea.vmem [#allocation2], 176
      %1493 = vst.msk [vmem:[%s1492] sm:$0xff] %vm968, %v1470
      %1494 = vst.msk [vmem:[%s1492 + $0x8] sm:$0xff] %vm968, %v1471
      %1495 = vst.msk [vmem:[%s1492 + $0x10] sm:$0xff] %vm968, %v1472
      %1496 = vst.msk [vmem:[%s1492 + $0x18] sm:$0xff] %vm968, %v1473
      %1497 = vst.msk [vmem:[%s1492 + $0x20] sm:$0xff] %vm968, %v1474
      %1498 = vst.msk [vmem:[%s1492 + $0x28] sm:$0xff] %vm968, %v1475
      %1499 = vst.msk [vmem:[%s1492 + $0x30] sm:$0xff] %vm968, %v1476
      %1500 = vst.msk [vmem:[%s1492 + $0x38] sm:$0xff] %vm968, %v1477
      %1501 = vst.msk [vmem:[%s1492 + $0x40] sm:$0xff] %vm968, %v1478
      %1502 = vst.msk [vmem:[%s1492 + $0x48] sm:$0xff] %vm968, %v1479
      %1503 = vst.msk [vmem:[%s1492 + $0x50] sm:$0xff] %vm968, %v1480
      %1504 = vst.msk [vmem:[%s1492 + $0x58] sm:$0xff] %vm968, %v1481
      %1505 = vst.msk [vmem:[%s1492 + $0x60] sm:$0xff] %vm968, %v1482
      %1506 = vst.msk [vmem:[%s1492 + $0x68] sm:$0xff] %vm968, %v1483
      %1507 = vst.msk [vmem:[%s1492 + $0x70] sm:$0xff] %vm968, %v1484
      %1508 = vst.msk [vmem:[%s1492 + $0x78] sm:$0xff] %vm968, %v1485
      %1509 = vst.msk [vmem:[%s1492 + $0x80] sm:$0xff] %vm968, %v1486
      %1510 = vst.msk [vmem:[%s1492 + $0x88] sm:$0xff] %vm968, %v1487
      %1511 = vst.msk [vmem:[%s1492 + $0x90] sm:$0xff] %vm968, %v1488
      %1512 = vst.msk [vmem:[%s1492 + $0x98] sm:$0xff] %vm968, %v1489
      %1513 = vst.msk [vmem:[%s1492 + $0xa0] sm:$0xff] %vm968, %v1490
      %1514 = vst.msk [vmem:[%s1492 + $0xa8] sm:$0xff] %vm968, %v1491
      %s1515 = scalar_lea.vmem %s462, 352
      %v1516 = vld [vmem:[%s1515] sm:$0xff]
      %v1517 = vld [vmem:[%s1515 + $0x8] sm:$0xff]
      %v1518 = vld [vmem:[%s1515 + $0x10] sm:$0xff]
      %v1519 = vld [vmem:[%s1515 + $0x18] sm:$0xff]
      %v1520 = vld [vmem:[%s1515 + $0x20] sm:$0xff]
      %v1521 = vld [vmem:[%s1515 + $0x28] sm:$0xff]
      %v1522 = vld [vmem:[%s1515 + $0x30] sm:$0xff]
      %v1523 = vld [vmem:[%s1515 + $0x38] sm:$0xff]
      %v1524 = vld [vmem:[%s1515 + $0x40] sm:$0xff]
      %v1525 = vld [vmem:[%s1515 + $0x48] sm:$0xff]
      %v1526 = vld [vmem:[%s1515 + $0x50] sm:$0xff]
      %v1527 = vld [vmem:[%s1515 + $0x58] sm:$0xff]
      %v1528 = vld [vmem:[%s1515 + $0x60] sm:$0xff]
      %v1529 = vld [vmem:[%s1515 + $0x68] sm:$0xff]
      %v1530 = vld [vmem:[%s1515 + $0x70] sm:$0xff]
      %v1531 = vld [vmem:[%s1515 + $0x78] sm:$0xff]
      %v1532 = vld [vmem:[%s1515 + $0x80] sm:$0xff]
      %v1533 = vld [vmem:[%s1515 + $0x88] sm:$0xff]
      %v1534 = vld [vmem:[%s1515 + $0x90] sm:$0xff]
      %v1535 = vld [vmem:[%s1515 + $0x98] sm:$0xff]
      %v1536 = vld [vmem:[%s1515 + $0xa0] sm:$0xff]
      %v1537 = vld [vmem:[%s1515 + $0xa8] sm:$0xff]
      %v1538 = vld [vmem:[%s2] sm:$0xff]
      %v1539 = vld [vmem:[%s2 + $0x8] sm:$0xff]
      %v1541 = vsel %vm492, %v1516, 0
      %v1544 = vsel %vm492, %v1517, 0
      %v1547 = vsel %vm492, %v1518, 0
      %v1550 = vsel %vm492, %v1519, 0
      %v1553 = vsel %vm492, %v1520, 0
      %v1556 = vsel %vm492, %v1521, 0
      %v1559 = vsel %vm492, %v1522, 0
      %v1562 = vsel %vm492, %v1523, 0
      %v1565 = vsel %vm492, %v1524, 0
      %v1568 = vsel %vm492, %v1525, 0
      %v1571 = vsel %vm492, %v1526, 0
      %v1574 = vsel %vm492, %v1527, 0
      %v1577 = vsel %vm492, %v1528, 0
      %v1580 = vsel %vm492, %v1529, 0
      %v1583 = vsel %vm492, %v1530, 0
      %v1586 = vsel %vm492, %v1531, 0
      %v1589 = vsel %vm492, %v1532, 0
      %v1592 = vsel %vm492, %v1533, 0
      %v1595 = vsel %vm492, %v1534, 0
      %v1598 = vsel %vm492, %v1535, 0
      %v1601 = vsel %vm492, %v1536, 0
      %v1604 = vsel %vm492, %v1537, 0
      %1606 = vmatprep.subr.mxu0 0.0
      %1607 = vmatpush1.msra.mxu0 %v1538
      %1608 = vmatprep.subr.mxu0 0.0
      %1609 = vmatpush1.msra.mxu0 %v1539
      %1610 = vmatprep.subr.mxu0 0.0
      %1611 = vmatpush1.msra.mxu0 0.0
      %1612 = vmatprep.subr.mxu0 0.0
      %1613 = vmatpush1.msra.mxu0 0.0
      %1614 = vmatprep.subr.mxu0 0.0
      %1615 = vmatpush1.msra.mxu0 0.0
      %1616 = vmatprep.subr.mxu0 0.0
      %1617 = vmatpush1.msra.mxu0 0.0
      %1618 = vmatprep.subr.mxu0 0.0
      %1619 = vmatpush1.msra.mxu0 0.0
      %1620 = vmatprep.subr.mxu0 0.0
      %1621 = vmatpush1.msra.mxu0 0.0
      %1622 = vmatprep.subr.mxu0 0.0
      %1623 = vmatpush1.msra.mxu0 0.0
      %1624 = vmatprep.subr.mxu0 0.0
      %1625 = vmatpush1.msra.mxu0 0.0
      %1626 = vmatprep.subr.mxu0 0.0
      %1627 = vmatpush1.msra.mxu0 0.0
      %1628 = vmatprep.subr.mxu0 0.0
      %1629 = vmatpush1.msra.mxu0 0.0
      %1630 = vmatprep.subr.mxu0 0.0
      %1631 = vmatpush1.msra.mxu0 0.0
      %1632 = vmatprep.subr.mxu0 0.0
      %1633 = vmatpush1.msra.mxu0 0.0
      %1634 = vmatprep.subr.mxu0 0.0
      %1635 = vmatpush1.msra.mxu0 0.0
      %1636 = vmatprep.subr.mxu0 0.0
      %1637 = vmatpush1.msra.mxu0 0.0
      %1638 = vmatprep.subr.mxu0 0.0
      %1639 = vmatpush1.msra.mxu0 0.0
      %1640 = vmatprep.subr.mxu0 0.0
      %1641 = vmatpush1.msra.mxu0 0.0
      %1642 = vmatprep.subr.mxu0 0.0
      %1643 = vmatpush1.msra.mxu0 0.0
      %1644 = vmatprep.subr.mxu0 0.0
      %1645 = vmatpush1.msra.mxu0 0.0
      %1646 = vmatprep.subr.mxu0 0.0
      %1647 = vmatpush1.msra.mxu0 0.0
      %1648 = vmatprep.subr.mxu0 0.0
      %1649 = vmatpush1.msra.mxu0 0.0
      %1650 = vmatprep.subr.mxu0 0.0
      %1651 = vmatpush1.msra.mxu0 0.0
      %1652 = vmatprep.subr.mxu0 0.0
      %1653 = vmatpush1.msra.mxu0 0.0
      %1654 = vmatprep.subr.mxu0 0.0
      %1655 = vmatpush1.msra.mxu0 0.0
      %1656 = vmatprep.subr.mxu0 0.0
      %1657 = vmatpush1.msra.mxu0 0.0
      %1658 = vmatprep.subr.mxu0 0.0
      %1659 = vmatpush1.msra.mxu0 0.0
      %1660 = vmatprep.subr.mxu0 0.0
      %1661 = vmatpush1.msra.mxu0 0.0
      %1662 = vmatprep.subr.mxu0 0.0
      %1663 = vmatpush1.msra.mxu0 0.0
      %1664 = vmatprep.subr.mxu0 0.0
      %1665 = vmatpush1.msra.mxu0 0.0
      %1666 = vmatprep.subr.mxu0 0.0
      %1667 = vmatpush1.msra.mxu0 0.0
      %1668 = vmatprep.subr.mxu0 0.0
      %1669 = vmatpush1.msra.mxu0 0.0
      %1670 = vmatprep.mubr.f32.mxu0 0.0
      %1671 = vmatmul.mubr.f32.gmra.mrb[0].mxu0 %v1541
      %v1672 = vpop.f32.mrb[0].mxu0
      %v1673 = vadd.f32 0.0, %v1672
      %v1674 = vpop.f32.mrb[0].mxu0
      %1675 = vmatprep.mubr.f32.mxu0 0.0
      %1676 = vmatmul.mubr.f32.gmra.mrb[0].mxu0 %v1544
      %v1677 = vpop.f32.mrb[0].mxu0
      %v1678 = vadd.f32 0.0, %v1677
      %v1679 = vpop.f32.mrb[0].mxu0
      %1680 = vmatprep.mubr.f32.mxu0 0.0
      %1681 = vmatmul.mubr.f32.gmra.mrb[0].mxu0 %v1547
      %v1682 = vpop.f32.mrb[0].mxu0
      %v1683 = vadd.f32 0.0, %v1682
      %v1684 = vpop.f32.mrb[0].mxu0
      %1685 = vmatprep.mubr.f32.mxu0 0.0
      %1686 = vmatmul.mubr.f32.gmra.mrb[0].mxu0 %v1550
      %v1687 = vpop.f32.mrb[0].mxu0
      %v1688 = vadd.f32 0.0, %v1687
      %v1689 = vpop.f32.mrb[0].mxu0
      %1690 = vmatprep.mubr.f32.mxu0 0.0
      %1691 = vmatmul.mubr.f32.gmra.mrb[0].mxu0 %v1553
      %v1692 = vpop.f32.mrb[0].mxu0
      %v1693 = vadd.f32 0.0, %v1692
      %v1694 = vpop.f32.mrb[0].mxu0
      %1695 = vmatprep.mubr.f32.mxu0 0.0
      %1696 = vmatmul.mubr.f32.gmra.mrb[0].mxu0 %v1556
      %v1697 = vpop.f32.mrb[0].mxu0
      %v1698 = vadd.f32 0.0, %v1697
      %v1699 = vpop.f32.mrb[0].mxu0
      %1700 = vmatprep.mubr.f32.mxu0 0.0
      %1701 = vmatmul.mubr.f32.gmra.mrb[0].mxu0 %v1559
      %v1702 = vpop.f32.mrb[0].mxu0
      %v1703 = vadd.f32 0.0, %v1702
      %v1704 = vpop.f32.mrb[0].mxu0
      %1705 = vmatprep.mubr.f32.mxu0 0.0
      %1706 = vmatmul.mubr.f32.gmra.mrb[0].mxu0 %v1562
      %v1707 = vpop.f32.mrb[0].mxu0
      %v1708 = vadd.f32 0.0, %v1707
      %v1709 = vpop.f32.mrb[0].mxu0
      %1710 = vmatprep.mubr.f32.mxu0 0.0
      %1711 = vmatmul.mubr.f32.gmra.mrb[0].mxu0 %v1565
      %v1712 = vpop.f32.mrb[0].mxu0
      %v1713 = vadd.f32 0.0, %v1712
      %v1714 = vpop.f32.mrb[0].mxu0
      %1715 = vmatprep.mubr.f32.mxu0 0.0
      %1716 = vmatmul.mubr.f32.gmra.mrb[0].mxu0 %v1568
      %v1717 = vpop.f32.mrb[0].mxu0
      %v1718 = vadd.f32 0.0, %v1717
      %v1719 = vpop.f32.mrb[0].mxu0
      %1720 = vmatprep.mubr.f32.mxu0 0.0
      %1721 = vmatmul.mubr.f32.gmra.mrb[0].mxu0 %v1571
      %v1722 = vpop.f32.mrb[0].mxu0
      %v1723 = vadd.f32 0.0, %v1722
      %v1724 = vpop.f32.mrb[0].mxu0
      %1725 = vmatprep.mubr.f32.mxu0 0.0
      %1726 = vmatmul.mubr.f32.gmra.mrb[0].mxu0 %v1574
      %v1727 = vpop.f32.mrb[0].mxu0
      %v1728 = vadd.f32 0.0, %v1727
      %v1729 = vpop.f32.mrb[0].mxu0
      %1730 = vmatprep.mubr.f32.mxu0 0.0
      %1731 = vmatmul.mubr.f32.gmra.mrb[0].mxu0 %v1577
      %v1732 = vpop.f32.mrb[0].mxu0
      %v1733 = vadd.f32 0.0, %v1732
      %v1734 = vpop.f32.mrb[0].mxu0
      %1735 = vmatprep.mubr.f32.mxu0 0.0
      %1736 = vmatmul.mubr.f32.gmra.mrb[0].mxu0 %v1580
      %v1737 = vpop.f32.mrb[0].mxu0
      %v1738 = vadd.f32 0.0, %v1737
      %v1739 = vpop.f32.mrb[0].mxu0
      %1740 = vmatprep.mubr.f32.mxu0 0.0
      %1741 = vmatmul.mubr.f32.gmra.mrb[0].mxu0 %v1583
      %v1742 = vpop.f32.mrb[0].mxu0
      %v1743 = vadd.f32 0.0, %v1742
      %v1744 = vpop.f32.mrb[0].mxu0
      %1745 = vmatprep.mubr.f32.mxu0 0.0
      %1746 = vmatmul.mubr.f32.gmra.mrb[0].mxu0 %v1586
      %v1747 = vpop.f32.mrb[0].mxu0
      %v1748 = vadd.f32 0.0, %v1747
      %v1749 = vpop.f32.mrb[0].mxu0
      %1750 = vmatprep.mubr.f32.mxu0 0.0
      %1751 = vmatmul.mubr.f32.gmra.mrb[0].mxu0 %v1589
      %v1752 = vpop.f32.mrb[0].mxu0
      %v1753 = vadd.f32 0.0, %v1752
      %v1754 = vpop.f32.mrb[0].mxu0
      %1755 = vmatprep.mubr.f32.mxu0 0.0
      %1756 = vmatmul.mubr.f32.gmra.mrb[0].mxu0 %v1592
      %v1757 = vpop.f32.mrb[0].mxu0
      %v1758 = vadd.f32 0.0, %v1757
      %v1759 = vpop.f32.mrb[0].mxu0
      %1760 = vmatprep.mubr.f32.mxu0 0.0
      %1761 = vmatmul.mubr.f32.gmra.mrb[0].mxu0 %v1595
      %v1762 = vpop.f32.mrb[0].mxu0
      %v1763 = vadd.f32 0.0, %v1762
      %v1764 = vpop.f32.mrb[0].mxu0
      %1765 = vmatprep.mubr.f32.mxu0 0.0
      %1766 = vmatmul.mubr.f32.gmra.mrb[0].mxu0 %v1598
      %v1767 = vpop.f32.mrb[0].mxu0
      %v1768 = vadd.f32 0.0, %v1767
      %v1769 = vpop.f32.mrb[0].mxu0
      %1770 = vmatprep.mubr.f32.mxu0 0.0
      %1771 = vmatmul.mubr.f32.gmra.mrb[0].mxu0 %v1601
      %v1772 = vpop.f32.mrb[0].mxu0
      %v1773 = vadd.f32 0.0, %v1772
      %v1774 = vpop.f32.mrb[0].mxu0
      %1775 = vmatprep.mubr.f32.mxu0 0.0
      %1776 = vmatmul.mubr.f32.gmra.mrb[0].mxu0 %v1604
      %v1777 = vpop.f32.mrb[0].mxu0
      %v1778 = vadd.f32 0.0, %v1777
      %v1779 = vpop.f32.mrb[0].mxu0
      %1780 = vdwg.mxu0
      %v1781 = vld [vmem:[%s3] sm:$0x1]
      %v1783 = vlaneseq
      %v1784 = vshrl.u32 %v1783, 7
      %v1785 = vsub.s32 0, %v1784
      %v1786 = vrot.slane %v1781, %v1785
      %v1788 = vmul.f32 %v1673, %v1786
      %v1789 = vmul.f32 %v1678, %v1786
      %v1790 = vmul.f32 %v1683, %v1786
      %v1791 = vmul.f32 %v1688, %v1786
      %v1792 = vmul.f32 %v1693, %v1786
      %v1793 = vmul.f32 %v1698, %v1786
      %v1794 = vmul.f32 %v1703, %v1786
      %v1795 = vmul.f32 %v1708, %v1786
      %v1796 = vmul.f32 %v1713, %v1786
      %v1797 = vmul.f32 %v1718, %v1786
      %v1798 = vmul.f32 %v1723, %v1786
      %v1799 = vmul.f32 %v1728, %v1786
      %v1800 = vmul.f32 %v1733, %v1786
      %v1801 = vmul.f32 %v1738, %v1786
      %v1802 = vmul.f32 %v1743, %v1786
      %v1803 = vmul.f32 %v1748, %v1786
      %v1804 = vmul.f32 %v1753, %v1786
      %v1805 = vmul.f32 %v1758, %v1786
      %v1806 = vmul.f32 %v1763, %v1786
      %v1807 = vmul.f32 %v1768, %v1786
      %v1808 = vmul.f32 %v1773, %v1786
      %v1809 = vmul.f32 %v1778, %v1786
      %v1810 = vld [vmem:[%s4] sm:$0x1]
      %v1812 = vlaneseq
      %v1813 = vshrl.u32 %v1812, 7
      %v1814 = vsub.s32 0, %v1813
      %v1815 = vrot.slane %v1810, %v1814
      %v1817 = vadd.f32 %v1788, %v1815
      %v1818 = vadd.f32 %v1789, %v1815
      %v1819 = vadd.f32 %v1790, %v1815
      %v1820 = vadd.f32 %v1791, %v1815
      %v1821 = vadd.f32 %v1792, %v1815
      %v1822 = vadd.f32 %v1793, %v1815
      %v1823 = vadd.f32 %v1794, %v1815
      %v1824 = vadd.f32 %v1795, %v1815
      %v1825 = vadd.f32 %v1796, %v1815
      %v1826 = vadd.f32 %v1797, %v1815
      %v1827 = vadd.f32 %v1798, %v1815
      %v1828 = vadd.f32 %v1799, %v1815
      %v1829 = vadd.f32 %v1800, %v1815
      %v1830 = vadd.f32 %v1801, %v1815
      %v1831 = vadd.f32 %v1802, %v1815
      %v1832 = vadd.f32 %v1803, %v1815
      %v1833 = vadd.f32 %v1804, %v1815
      %v1834 = vadd.f32 %v1805, %v1815
      %v1835 = vadd.f32 %v1806, %v1815
      %v1836 = vadd.f32 %v1807, %v1815
      %v1837 = vadd.f32 %v1808, %v1815
      %v1838 = vadd.f32 %v1809, %v1815
      %v1839 = vmax.f32 %v1817, 0.0
      %v1840 = vmax.f32 %v1818, 0.0
      %v1841 = vmax.f32 %v1819, 0.0
      %v1842 = vmax.f32 %v1820, 0.0
      %v1843 = vmax.f32 %v1821, 0.0
      %v1844 = vmax.f32 %v1822, 0.0
      %v1845 = vmax.f32 %v1823, 0.0
      %v1846 = vmax.f32 %v1824, 0.0
      %v1847 = vmax.f32 %v1825, 0.0
      %v1848 = vmax.f32 %v1826, 0.0
      %v1849 = vmax.f32 %v1827, 0.0
      %v1850 = vmax.f32 %v1828, 0.0
      %v1851 = vmax.f32 %v1829, 0.0
      %v1852 = vmax.f32 %v1830, 0.0
      %v1853 = vmax.f32 %v1831, 0.0
      %v1854 = vmax.f32 %v1832, 0.0
      %v1855 = vmax.f32 %v1833, 0.0
      %v1856 = vmax.f32 %v1834, 0.0
      %v1857 = vmax.f32 %v1835, 0.0
      %v1858 = vmax.f32 %v1836, 0.0
      %v1859 = vmax.f32 %v1837, 0.0
      %v1860 = vmax.f32 %v1838, 0.0
      %s1861 = scalar_lea.vmem %s1, 352
      %v1862 = vld [vmem:[%s1861] sm:$0xff]
      %v1863 = vld [vmem:[%s1861 + $0x8] sm:$0xff]
      %v1864 = vld [vmem:[%s1861 + $0x10] sm:$0xff]
      %v1865 = vld [vmem:[%s1861 + $0x18] sm:$0xff]
      %v1866 = vld [vmem:[%s1861 + $0x20] sm:$0xff]
      %v1867 = vld [vmem:[%s1861 + $0x28] sm:$0xff]
      %v1868 = vld [vmem:[%s1861 + $0x30] sm:$0xff]
      %v1869 = vld [vmem:[%s1861 + $0x38] sm:$0xff]
      %v1870 = vld [vmem:[%s1861 + $0x40] sm:$0xff]
      %v1871 = vld [vmem:[%s1861 + $0x48] sm:$0xff]
      %v1872 = vld [vmem:[%s1861 + $0x50] sm:$0xff]
      %v1873 = vld [vmem:[%s1861 + $0x58] sm:$0xff]
      %v1874 = vld [vmem:[%s1861 + $0x60] sm:$0xff]
      %v1875 = vld [vmem:[%s1861 + $0x68] sm:$0xff]
      %v1876 = vld [vmem:[%s1861 + $0x70] sm:$0xff]
      %v1877 = vld [vmem:[%s1861 + $0x78] sm:$0xff]
      %v1878 = vld [vmem:[%s1861 + $0x80] sm:$0xff]
      %v1879 = vld [vmem:[%s1861 + $0x88] sm:$0xff]
      %v1880 = vld [vmem:[%s1861 + $0x90] sm:$0xff]
      %v1881 = vld [vmem:[%s1861 + $0x98] sm:$0xff]
      %v1882 = vld [vmem:[%s1861 + $0xa0] sm:$0xff]
      %v1883 = vld [vmem:[%s1861 + $0xa8] sm:$0xff]
      %1885 = vset.pattern.permute.xlu0 0
      %1886 = vperm.xlu0 %1885, %v1862
      %v1887 = vpop.permute.xlu0 %1886
      %1890 = vset.pattern.permute.xlu0 0
      %1891 = vperm.xlu0 %1890, %v1863
      %v1892 = vpop.permute.xlu0 %1891
      %1895 = vset.pattern.permute.xlu0 0
      %1896 = vperm.xlu0 %1895, %v1864
      %v1897 = vpop.permute.xlu0 %1896
      %1900 = vset.pattern.permute.xlu0 0
      %1901 = vperm.xlu0 %1900, %v1865
      %v1902 = vpop.permute.xlu0 %1901
      %1905 = vset.pattern.permute.xlu0 0
      %1906 = vperm.xlu0 %1905, %v1866
      %v1907 = vpop.permute.xlu0 %1906
      %1910 = vset.pattern.permute.xlu0 0
      %1911 = vperm.xlu0 %1910, %v1867
      %v1912 = vpop.permute.xlu0 %1911
      %1915 = vset.pattern.permute.xlu0 0
      %1916 = vperm.xlu0 %1915, %v1868
      %v1917 = vpop.permute.xlu0 %1916
      %1920 = vset.pattern.permute.xlu0 0
      %1921 = vperm.xlu0 %1920, %v1869
      %v1922 = vpop.permute.xlu0 %1921
      %1925 = vset.pattern.permute.xlu0 0
      %1926 = vperm.xlu0 %1925, %v1870
      %v1927 = vpop.permute.xlu0 %1926
      %1930 = vset.pattern.permute.xlu0 0
      %1931 = vperm.xlu0 %1930, %v1871
      %v1932 = vpop.permute.xlu0 %1931
      %1935 = vset.pattern.permute.xlu0 0
      %1936 = vperm.xlu0 %1935, %v1872
      %v1937 = vpop.permute.xlu0 %1936
      %1940 = vset.pattern.permute.xlu0 0
      %1941 = vperm.xlu0 %1940, %v1873
      %v1942 = vpop.permute.xlu0 %1941
      %1945 = vset.pattern.permute.xlu0 0
      %1946 = vperm.xlu0 %1945, %v1874
      %v1947 = vpop.permute.xlu0 %1946
      %1950 = vset.pattern.permute.xlu0 0
      %1951 = vperm.xlu0 %1950, %v1875
      %v1952 = vpop.permute.xlu0 %1951
      %1955 = vset.pattern.permute.xlu0 0
      %1956 = vperm.xlu0 %1955, %v1876
      %v1957 = vpop.permute.xlu0 %1956
      %1960 = vset.pattern.permute.xlu0 0
      %1961 = vperm.xlu0 %1960, %v1877
      %v1962 = vpop.permute.xlu0 %1961
      %1965 = vset.pattern.permute.xlu0 0
      %1966 = vperm.xlu0 %1965, %v1878
      %v1967 = vpop.permute.xlu0 %1966
      %1970 = vset.pattern.permute.xlu0 0
      %1971 = vperm.xlu0 %1970, %v1879
      %v1972 = vpop.permute.xlu0 %1971
      %1975 = vset.pattern.permute.xlu0 0
      %1976 = vperm.xlu0 %1975, %v1880
      %v1977 = vpop.permute.xlu0 %1976
      %1980 = vset.pattern.permute.xlu0 0
      %1981 = vperm.xlu0 %1980, %v1881
      %v1982 = vpop.permute.xlu0 %1981
      %1985 = vset.pattern.permute.xlu0 0
      %1986 = vperm.xlu0 %1985, %v1882
      %v1987 = vpop.permute.xlu0 %1986
      %1990 = vset.pattern.permute.xlu0 0
      %1991 = vperm.xlu0 %1990, %v1883
      %v1992 = vpop.permute.xlu0 %1991
      %v1994 = vmul.f32 %v1839, %v1887
      %v1995 = vmul.f32 %v1840, %v1892
      %v1996 = vmul.f32 %v1841, %v1897
      %v1997 = vmul.f32 %v1842, %v1902
      %v1998 = vmul.f32 %v1843, %v1907
      %v1999 = vmul.f32 %v1844, %v1912
      %v2000 = vmul.f32 %v1845, %v1917
      %v2001 = vmul.f32 %v1846, %v1922
      %v2002 = vmul.f32 %v1847, %v1927
      %v2003 = vmul.f32 %v1848, %v1932
      %v2004 = vmul.f32 %v1849, %v1937
      %v2005 = vmul.f32 %v1850, %v1942
      %v2006 = vmul.f32 %v1851, %v1947
      %v2007 = vmul.f32 %v1852, %v1952
      %v2008 = vmul.f32 %v1853, %v1957
      %v2009 = vmul.f32 %v1854, %v1962
      %v2010 = vmul.f32 %v1855, %v1967
      %v2011 = vmul.f32 %v1856, %v1972
      %v2012 = vmul.f32 %v1857, %v1977
      %v2013 = vmul.f32 %v1858, %v1982
      %v2014 = vmul.f32 %v1859, %v1987
      %v2015 = vmul.f32 %v1860, %v1992
      %s2016 = scalar_lea.vmem [#allocation2], 352
      %2017 = vst.msk [vmem:[%s2016] sm:$0xff] %vm968, %v1994
      %2018 = vst.msk [vmem:[%s2016 + $0x8] sm:$0xff] %vm968, %v1995
      %2019 = vst.msk [vmem:[%s2016 + $0x10] sm:$0xff] %vm968, %v1996
      %2020 = vst.msk [vmem:[%s2016 + $0x18] sm:$0xff] %vm968, %v1997
      %2021 = vst.msk [vmem:[%s2016 + $0x20] sm:$0xff] %vm968, %v1998
      %2022 = vst.msk [vmem:[%s2016 + $0x28] sm:$0xff] %vm968, %v1999
      %2023 = vst.msk [vmem:[%s2016 + $0x30] sm:$0xff] %vm968, %v2000
      %2024 = vst.msk [vmem:[%s2016 + $0x38] sm:$0xff] %vm968, %v2001
      %2025 = vst.msk [vmem:[%s2016 + $0x40] sm:$0xff] %vm968, %v2002
      %2026 = vst.msk [vmem:[%s2016 + $0x48] sm:$0xff] %vm968, %v2003
      %2027 = vst.msk [vmem:[%s2016 + $0x50] sm:$0xff] %vm968, %v2004
      %2028 = vst.msk [vmem:[%s2016 + $0x58] sm:$0xff] %vm968, %v2005
      %2029 = vst.msk [vmem:[%s2016 + $0x60] sm:$0xff] %vm968, %v2006
      %2030 = vst.msk [vmem:[%s2016 + $0x68] sm:$0xff] %vm968, %v2007
      %2031 = vst.msk [vmem:[%s2016 + $0x70] sm:$0xff] %vm968, %v2008
      %2032 = vst.msk [vmem:[%s2016 + $0x78] sm:$0xff] %vm968, %v2009
      %2033 = vst.msk [vmem:[%s2016 + $0x80] sm:$0xff] %vm968, %v2010
      %2034 = vst.msk [vmem:[%s2016 + $0x88] sm:$0xff] %vm968, %v2011
      %2035 = vst.msk [vmem:[%s2016 + $0x90] sm:$0xff] %vm968, %v2012
      %2036 = vst.msk [vmem:[%s2016 + $0x98] sm:$0xff] %vm968, %v2013
      %2037 = vst.msk [vmem:[%s2016 + $0xa0] sm:$0xff] %vm968, %v2014
      %2038 = vst.msk [vmem:[%s2016 + $0xa8] sm:$0xff] %vm968, %v2015
      %s2039 = scalar_lea.vmem %s462, 528
      %v2040 = vld [vmem:[%s2039] sm:$0xff]
      %v2041 = vld [vmem:[%s2039 + $0x8] sm:$0xff]
      %v2042 = vld [vmem:[%s2039 + $0x10] sm:$0xff]
      %v2043 = vld [vmem:[%s2039 + $0x18] sm:$0xff]
      %v2044 = vld [vmem:[%s2039 + $0x20] sm:$0xff]
      %v2045 = vld [vmem:[%s2039 + $0x28] sm:$0xff]
      %v2046 = vld [vmem:[%s2039 + $0x30] sm:$0xff]
      %v2047 = vld [vmem:[%s2039 + $0x38] sm:$0xff]
      %v2048 = vld [vmem:[%s2039 + $0x40] sm:$0xff]
      %v2049 = vld [vmem:[%s2039 + $0x48] sm:$0xff]
      %v2050 = vld [vmem:[%s2039 + $0x50] sm:$0xff]
      %v2051 = vld [vmem:[%s2039 + $0x58] sm:$0xff]
      %v2052 = vld [vmem:[%s2039 + $0x60] sm:$0xff]
      %v2053 = vld [vmem:[%s2039 + $0x68] sm:$0xff]
      %v2054 = vld [vmem:[%s2039 + $0x70] sm:$0xff]
      %v2055 = vld [vmem:[%s2039 + $0x78] sm:$0xff]
      %v2056 = vld [vmem:[%s2039 + $0x80] sm:$0xff]
      %v2057 = vld [vmem:[%s2039 + $0x88] sm:$0xff]
      %v2058 = vld [vmem:[%s2039 + $0x90] sm:$0xff]
      %v2059 = vld [vmem:[%s2039 + $0x98] sm:$0xff]
      %v2060 = vld [vmem:[%s2039 + $0xa0] sm:$0xff]
      %v2061 = vld [vmem:[%s2039 + $0xa8] sm:$0xff]
      %v2062 = vld [vmem:[%s2] sm:$0xff]
      %v2063 = vld [vmem:[%s2 + $0x8] sm:$0xff]
      %v2065 = vsel %vm492, %v2040, 0
      %v2068 = vsel %vm492, %v2041, 0
      %v2071 = vsel %vm492, %v2042, 0
      %v2074 = vsel %vm492, %v2043, 0
      %v2077 = vsel %vm492, %v2044, 0
      %v2080 = vsel %vm492, %v2045, 0
      %v2083 = vsel %vm492, %v2046, 0
      %v2086 = vsel %vm492, %v2047, 0
      %v2089 = vsel %vm492, %v2048, 0
      %v2092 = vsel %vm492, %v2049, 0
      %v2095 = vsel %vm492, %v2050, 0
      %v2098 = vsel %vm492, %v2051, 0
      %v2101 = vsel %vm492, %v2052, 0
      %v2104 = vsel %vm492, %v2053, 0
      %v2107 = vsel %vm492, %v2054, 0
      %v2110 = vsel %vm492, %v2055, 0
      %v2113 = vsel %vm492, %v2056, 0
      %v2116 = vsel %vm492, %v2057, 0
      %v2119 = vsel %vm492, %v2058, 0
      %v2122 = vsel %vm492, %v2059, 0
      %v2125 = vsel %vm492, %v2060, 0
      %v2128 = vsel %vm492, %v2061, 0
      %2130 = vmatprep.subr.mxu0 0.0
      %2131 = vmatpush1.msra.mxu0 %v2062
      %2132 = vmatprep.subr.mxu0 0.0
      %2133 = vmatpush1.msra.mxu0 %v2063
      %2134 = vmatprep.subr.mxu0 0.0
      %2135 = vmatpush1.msra.mxu0 0.0
      %2136 = vmatprep.subr.mxu0 0.0
      %2137 = vmatpush1.msra.mxu0 0.0
      %2138 = vmatprep.subr.mxu0 0.0
      %2139 = vmatpush1.msra.mxu0 0.0
      %2140 = vmatprep.subr.mxu0 0.0
      %2141 = vmatpush1.msra.mxu0 0.0
      %2142 = vmatprep.subr.mxu0 0.0
      %2143 = vmatpush1.msra.mxu0 0.0
      %2144 = vmatprep.subr.mxu0 0.0
      %2145 = vmatpush1.msra.mxu0 0.0
      %2146 = vmatprep.subr.mxu0 0.0
      %2147 = vmatpush1.msra.mxu0 0.0
      %2148 = vmatprep.subr.mxu0 0.0
      %2149 = vmatpush1.msra.mxu0 0.0
      %2150 = vmatprep.subr.mxu0 0.0
      %2151 = vmatpush1.msra.mxu0 0.0
      %2152 = vmatprep.subr.mxu0 0.0
      %2153 = vmatpush1.msra.mxu0 0.0
      %2154 = vmatprep.subr.mxu0 0.0
      %2155 = vmatpush1.msra.mxu0 0.0
      %2156 = vmatprep.subr.mxu0 0.0
      %2157 = vmatpush1.msra.mxu0 0.0
      %2158 = vmatprep.subr.mxu0 0.0
      %2159 = vmatpush1.msra.mxu0 0.0
      %2160 = vmatprep.subr.mxu0 0.0
      %2161 = vmatpush1.msra.mxu0 0.0
      %2162 = vmatprep.subr.mxu0 0.0
      %2163 = vmatpush1.msra.mxu0 0.0
      %2164 = vmatprep.subr.mxu0 0.0
      %2165 = vmatpush1.msra.mxu0 0.0
      %2166 = vmatprep.subr.mxu0 0.0
      %2167 = vmatpush1.msra.mxu0 0.0
      %2168 = vmatprep.subr.mxu0 0.0
      %2169 = vmatpush1.msra.mxu0 0.0
      %2170 = vmatprep.subr.mxu0 0.0
      %2171 = vmatpush1.msra.mxu0 0.0
      %2172 = vmatprep.subr.mxu0 0.0
      %2173 = vmatpush1.msra.mxu0 0.0
      %2174 = vmatprep.subr.mxu0 0.0
      %2175 = vmatpush1.msra.mxu0 0.0
      %2176 = vmatprep.subr.mxu0 0.0
      %2177 = vmatpush1.msra.mxu0 0.0
      %2178 = vmatprep.subr.mxu0 0.0
      %2179 = vmatpush1.msra.mxu0 0.0
      %2180 = vmatprep.subr.mxu0 0.0
      %2181 = vmatpush1.msra.mxu0 0.0
      %2182 = vmatprep.subr.mxu0 0.0
      %2183 = vmatpush1.msra.mxu0 0.0
      %2184 = vmatprep.subr.mxu0 0.0
      %2185 = vmatpush1.msra.mxu0 0.0
      %2186 = vmatprep.subr.mxu0 0.0
      %2187 = vmatpush1.msra.mxu0 0.0
      %2188 = vmatprep.subr.mxu0 0.0
      %2189 = vmatpush1.msra.mxu0 0.0
      %2190 = vmatprep.subr.mxu0 0.0
      %2191 = vmatpush1.msra.mxu0 0.0
      %2192 = vmatprep.subr.mxu0 0.0
      %2193 = vmatpush1.msra.mxu0 0.0
      %2194 = vmatprep.mubr.f32.mxu0 0.0
      %2195 = vmatmul.mubr.f32.gmra.mrb[0].mxu0 %v2065
      %v2196 = vpop.f32.mrb[0].mxu0
      %v2197 = vadd.f32 0.0, %v2196
      %v2198 = vpop.f32.mrb[0].mxu0
      %2199 = vmatprep.mubr.f32.mxu0 0.0
      %2200 = vmatmul.mubr.f32.gmra.mrb[0].mxu0 %v2068
      %v2201 = vpop.f32.mrb[0].mxu0
      %v2202 = vadd.f32 0.0, %v2201
      %v2203 = vpop.f32.mrb[0].mxu0
      %2204 = vmatprep.mubr.f32.mxu0 0.0
      %2205 = vmatmul.mubr.f32.gmra.mrb[0].mxu0 %v2071
      %v2206 = vpop.f32.mrb[0].mxu0
      %v2207 = vadd.f32 0.0, %v2206
      %v2208 = vpop.f32.mrb[0].mxu0
      %2209 = vmatprep.mubr.f32.mxu0 0.0
      %2210 = vmatmul.mubr.f32.gmra.mrb[0].mxu0 %v2074
      %v2211 = vpop.f32.mrb[0].mxu0
      %v2212 = vadd.f32 0.0, %v2211
      %v2213 = vpop.f32.mrb[0].mxu0
      %2214 = vmatprep.mubr.f32.mxu0 0.0
      %2215 = vmatmul.mubr.f32.gmra.mrb[0].mxu0 %v2077
      %v2216 = vpop.f32.mrb[0].mxu0
      %v2217 = vadd.f32 0.0, %v2216
      %v2218 = vpop.f32.mrb[0].mxu0
      %2219 = vmatprep.mubr.f32.mxu0 0.0
      %2220 = vmatmul.mubr.f32.gmra.mrb[0].mxu0 %v2080
      %v2221 = vpop.f32.mrb[0].mxu0
      %v2222 = vadd.f32 0.0, %v2221
      %v2223 = vpop.f32.mrb[0].mxu0
      %2224 = vmatprep.mubr.f32.mxu0 0.0
      %2225 = vmatmul.mubr.f32.gmra.mrb[0].mxu0 %v2083
      %v2226 = vpop.f32.mrb[0].mxu0
      %v2227 = vadd.f32 0.0, %v2226
      %v2228 = vpop.f32.mrb[0].mxu0
      %2229 = vmatprep.mubr.f32.mxu0 0.0
      %2230 = vmatmul.mubr.f32.gmra.mrb[0].mxu0 %v2086
      %v2231 = vpop.f32.mrb[0].mxu0
      %v2232 = vadd.f32 0.0, %v2231
      %v2233 = vpop.f32.mrb[0].mxu0
      %2234 = vmatprep.mubr.f32.mxu0 0.0
      %2235 = vmatmul.mubr.f32.gmra.mrb[0].mxu0 %v2089
      %v2236 = vpop.f32.mrb[0].mxu0
      %v2237 = vadd.f32 0.0, %v2236
      %v2238 = vpop.f32.mrb[0].mxu0
      %2239 = vmatprep.mubr.f32.mxu0 0.0
      %2240 = vmatmul.mubr.f32.gmra.mrb[0].mxu0 %v2092
      %v2241 = vpop.f32.mrb[0].mxu0
      %v2242 = vadd.f32 0.0, %v2241
      %v2243 = vpop.f32.mrb[0].mxu0
      %2244 = vmatprep.mubr.f32.mxu0 0.0
      %2245 = vmatmul.mubr.f32.gmra.mrb[0].mxu0 %v2095
      %v2246 = vpop.f32.mrb[0].mxu0
      %v2247 = vadd.f32 0.0, %v2246
      %v2248 = vpop.f32.mrb[0].mxu0
      %2249 = vmatprep.mubr.f32.mxu0 0.0
      %2250 = vmatmul.mubr.f32.gmra.mrb[0].mxu0 %v2098
      %v2251 = vpop.f32.mrb[0].mxu0
      %v2252 = vadd.f32 0.0, %v2251
      %v2253 = vpop.f32.mrb[0].mxu0
      %2254 = vmatprep.mubr.f32.mxu0 0.0
      %2255 = vmatmul.mubr.f32.gmra.mrb[0].mxu0 %v2101
      %v2256 = vpop.f32.mrb[0].mxu0
      %v2257 = vadd.f32 0.0, %v2256
      %v2258 = vpop.f32.mrb[0].mxu0
      %2259 = vmatprep.mubr.f32.mxu0 0.0
      %2260 = vmatmul.mubr.f32.gmra.mrb[0].mxu0 %v2104
      %v2261 = vpop.f32.mrb[0].mxu0
      %v2262 = vadd.f32 0.0, %v2261
      %v2263 = vpop.f32.mrb[0].mxu0
      %2264 = vmatprep.mubr.f32.mxu0 0.0
      %2265 = vmatmul.mubr.f32.gmra.mrb[0].mxu0 %v2107
      %v2266 = vpop.f32.mrb[0].mxu0
      %v2267 = vadd.f32 0.0, %v2266
      %v2268 = vpop.f32.mrb[0].mxu0
      %2269 = vmatprep.mubr.f32.mxu0 0.0
      %2270 = vmatmul.mubr.f32.gmra.mrb[0].mxu0 %v2110
      %v2271 = vpop.f32.mrb[0].mxu0
      %v2272 = vadd.f32 0.0, %v2271
      %v2273 = vpop.f32.mrb[0].mxu0
      %2274 = vmatprep.mubr.f32.mxu0 0.0
      %2275 = vmatmul.mubr.f32.gmra.mrb[0].mxu0 %v2113
      %v2276 = vpop.f32.mrb[0].mxu0
      %v2277 = vadd.f32 0.0, %v2276
      %v2278 = vpop.f32.mrb[0].mxu0
      %2279 = vmatprep.mubr.f32.mxu0 0.0
      %2280 = vmatmul.mubr.f32.gmra.mrb[0].mxu0 %v2116
      %v2281 = vpop.f32.mrb[0].mxu0
      %v2282 = vadd.f32 0.0, %v2281
      %v2283 = vpop.f32.mrb[0].mxu0
      %2284 = vmatprep.mubr.f32.mxu0 0.0
      %2285 = vmatmul.mubr.f32.gmra.mrb[0].mxu0 %v2119
      %v2286 = vpop.f32.mrb[0].mxu0
      %v2287 = vadd.f32 0.0, %v2286
      %v2288 = vpop.f32.mrb[0].mxu0
      %2289 = vmatprep.mubr.f32.mxu0 0.0
      %2290 = vmatmul.mubr.f32.gmra.mrb[0].mxu0 %v2122
      %v2291 = vpop.f32.mrb[0].mxu0
      %v2292 = vadd.f32 0.0, %v2291
      %v2293 = vpop.f32.mrb[0].mxu0
      %2294 = vmatprep.mubr.f32.mxu0 0.0
      %2295 = vmatmul.mubr.f32.gmra.mrb[0].mxu0 %v2125
      %v2296 = vpop.f32.mrb[0].mxu0
      %v2297 = vadd.f32 0.0, %v2296
      %v2298 = vpop.f32.mrb[0].mxu0
      %2299 = vmatprep.mubr.f32.mxu0 0.0
      %2300 = vmatmul.mubr.f32.gmra.mrb[0].mxu0 %v2128
      %v2301 = vpop.f32.mrb[0].mxu0
      %v2302 = vadd.f32 0.0, %v2301
      %v2303 = vpop.f32.mrb[0].mxu0
      %2304 = vdwg.mxu0
      %v2305 = vld [vmem:[%s3] sm:$0x1]
      %v2307 = vlaneseq
      %v2308 = vshrl.u32 %v2307, 7
      %v2309 = vsub.s32 0, %v2308
      %v2310 = vrot.slane %v2305, %v2309
      %v2312 = vmul.f32 %v2197, %v2310
      %v2313 = vmul.f32 %v2202, %v2310
      %v2314 = vmul.f32 %v2207, %v2310
      %v2315 = vmul.f32 %v2212, %v2310
      %v2316 = vmul.f32 %v2217, %v2310
      %v2317 = vmul.f32 %v2222, %v2310
      %v2318 = vmul.f32 %v2227, %v2310
      %v2319 = vmul.f32 %v2232, %v2310
      %v2320 = vmul.f32 %v2237, %v2310
      %v2321 = vmul.f32 %v2242, %v2310
      %v2322 = vmul.f32 %v2247, %v2310
      %v2323 = vmul.f32 %v2252, %v2310
      %v2324 = vmul.f32 %v2257, %v2310
      %v2325 = vmul.f32 %v2262, %v2310
      %v2326 = vmul.f32 %v2267, %v2310
      %v2327 = vmul.f32 %v2272, %v2310
      %v2328 = vmul.f32 %v2277, %v2310
      %v2329 = vmul.f32 %v2282, %v2310
      %v2330 = vmul.f32 %v2287, %v2310
      %v2331 = vmul.f32 %v2292, %v2310
      %v2332 = vmul.f32 %v2297, %v2310
      %v2333 = vmul.f32 %v2302, %v2310
      %v2334 = vld [vmem:[%s4] sm:$0x1]
      %v2336 = vlaneseq
      %v2337 = vshrl.u32 %v2336, 7
      %v2338 = vsub.s32 0, %v2337
      %v2339 = vrot.slane %v2334, %v2338
      %v2341 = vadd.f32 %v2312, %v2339
      %v2342 = vadd.f32 %v2313, %v2339
      %v2343 = vadd.f32 %v2314, %v2339
      %v2344 = vadd.f32 %v2315, %v2339
      %v2345 = vadd.f32 %v2316, %v2339
      %v2346 = vadd.f32 %v2317, %v2339
      %v2347 = vadd.f32 %v2318, %v2339
      %v2348 = vadd.f32 %v2319, %v2339
      %v2349 = vadd.f32 %v2320, %v2339
      %v2350 = vadd.f32 %v2321, %v2339
      %v2351 = vadd.f32 %v2322, %v2339
      %v2352 = vadd.f32 %v2323, %v2339
      %v2353 = vadd.f32 %v2324, %v2339
      %v2354 = vadd.f32 %v2325, %v2339
      %v2355 = vadd.f32 %v2326, %v2339
      %v2356 = vadd.f32 %v2327, %v2339
      %v2357 = vadd.f32 %v2328, %v2339
      %v2358 = vadd.f32 %v2329, %v2339
      %v2359 = vadd.f32 %v2330, %v2339
      %v2360 = vadd.f32 %v2331, %v2339
      %v2361 = vadd.f32 %v2332, %v2339
      %v2362 = vadd.f32 %v2333, %v2339
      %v2363 = vmax.f32 %v2341, 0.0
      %v2364 = vmax.f32 %v2342, 0.0
      %v2365 = vmax.f32 %v2343, 0.0
      %v2366 = vmax.f32 %v2344, 0.0
      %v2367 = vmax.f32 %v2345, 0.0
      %v2368 = vmax.f32 %v2346, 0.0
      %v2369 = vmax.f32 %v2347, 0.0
      %v2370 = vmax.f32 %v2348, 0.0
      %v2371 = vmax.f32 %v2349, 0.0
      %v2372 = vmax.f32 %v2350, 0.0
      %v2373 = vmax.f32 %v2351, 0.0
      %v2374 = vmax.f32 %v2352, 0.0
      %v2375 = vmax.f32 %v2353, 0.0
      %v2376 = vmax.f32 %v2354, 0.0
      %v2377 = vmax.f32 %v2355, 0.0
      %v2378 = vmax.f32 %v2356, 0.0
      %v2379 = vmax.f32 %v2357, 0.0
      %v2380 = vmax.f32 %v2358, 0.0
      %v2381 = vmax.f32 %v2359, 0.0
      %v2382 = vmax.f32 %v2360, 0.0
      %v2383 = vmax.f32 %v2361, 0.0
      %v2384 = vmax.f32 %v2362, 0.0
      %s2385 = scalar_lea.vmem %s1, 528
      %v2386 = vld [vmem:[%s2385] sm:$0xff]
      %v2387 = vld [vmem:[%s2385 + $0x8] sm:$0xff]
      %v2388 = vld [vmem:[%s2385 + $0x10] sm:$0xff]
      %v2389 = vld [vmem:[%s2385 + $0x18] sm:$0xff]
      %v2390 = vld [vmem:[%s2385 + $0x20] sm:$0xff]
      %v2391 = vld [vmem:[%s2385 + $0x28] sm:$0xff]
      %v2392 = vld [vmem:[%s2385 + $0x30] sm:$0xff]
      %v2393 = vld [vmem:[%s2385 + $0x38] sm:$0xff]
      %v2394 = vld [vmem:[%s2385 + $0x40] sm:$0xff]
      %v2395 = vld [vmem:[%s2385 + $0x48] sm:$0xff]
      %v2396 = vld [vmem:[%s2385 + $0x50] sm:$0xff]
      %v2397 = vld [vmem:[%s2385 + $0x58] sm:$0xff]
      %v2398 = vld [vmem:[%s2385 + $0x60] sm:$0xff]
      %v2399 = vld [vmem:[%s2385 + $0x68] sm:$0xff]
      %v2400 = vld [vmem:[%s2385 + $0x70] sm:$0xff]
      %v2401 = vld [vmem:[%s2385 + $0x78] sm:$0xff]
      %v2402 = vld [vmem:[%s2385 + $0x80] sm:$0xff]
      %v2403 = vld [vmem:[%s2385 + $0x88] sm:$0xff]
      %v2404 = vld [vmem:[%s2385 + $0x90] sm:$0xff]
      %v2405 = vld [vmem:[%s2385 + $0x98] sm:$0xff]
      %v2406 = vld [vmem:[%s2385 + $0xa0] sm:$0xff]
      %v2407 = vld [vmem:[%s2385 + $0xa8] sm:$0xff]
      %2409 = vset.pattern.permute.xlu0 0
      %2410 = vperm.xlu0 %2409, %v2386
      %v2411 = vpop.permute.xlu0 %2410
      %2414 = vset.pattern.permute.xlu0 0
      %2415 = vperm.xlu0 %2414, %v2387
      %v2416 = vpop.permute.xlu0 %2415
      %2419 = vset.pattern.permute.xlu0 0
      %2420 = vperm.xlu0 %2419, %v2388
      %v2421 = vpop.permute.xlu0 %2420
      %2424 = vset.pattern.permute.xlu0 0
      %2425 = vperm.xlu0 %2424, %v2389
      %v2426 = vpop.permute.xlu0 %2425
      %2429 = vset.pattern.permute.xlu0 0
      %2430 = vperm.xlu0 %2429, %v2390
      %v2431 = vpop.permute.xlu0 %2430
      %2434 = vset.pattern.permute.xlu0 0
      %2435 = vperm.xlu0 %2434, %v2391
      %v2436 = vpop.permute.xlu0 %2435
      %2439 = vset.pattern.permute.xlu0 0
      %2440 = vperm.xlu0 %2439, %v2392
      %v2441 = vpop.permute.xlu0 %2440
      %2444 = vset.pattern.permute.xlu0 0
      %2445 = vperm.xlu0 %2444, %v2393
      %v2446 = vpop.permute.xlu0 %2445
      %2449 = vset.pattern.permute.xlu0 0
      %2450 = vperm.xlu0 %2449, %v2394
      %v2451 = vpop.permute.xlu0 %2450
      %2454 = vset.pattern.permute.xlu0 0
      %2455 = vperm.xlu0 %2454, %v2395
      %v2456 = vpop.permute.xlu0 %2455
      %2459 = vset.pattern.permute.xlu0 0
      %2460 = vperm.xlu0 %2459, %v2396
      %v2461 = vpop.permute.xlu0 %2460
      %2464 = vset.pattern.permute.xlu0 0
      %2465 = vperm.xlu0 %2464, %v2397
      %v2466 = vpop.permute.xlu0 %2465
      %2469 = vset.pattern.permute.xlu0 0
      %2470 = vperm.xlu0 %2469, %v2398
      %v2471 = vpop.permute.xlu0 %2470
      %2474 = vset.pattern.permute.xlu0 0
      %2475 = vperm.xlu0 %2474, %v2399
      %v2476 = vpop.permute.xlu0 %2475
      %2479 = vset.pattern.permute.xlu0 0
      %2480 = vperm.xlu0 %2479, %v2400
      %v2481 = vpop.permute.xlu0 %2480
      %2484 = vset.pattern.permute.xlu0 0
      %2485 = vperm.xlu0 %2484, %v2401
      %v2486 = vpop.permute.xlu0 %2485
      %2489 = vset.pattern.permute.xlu0 0
      %2490 = vperm.xlu0 %2489, %v2402
      %v2491 = vpop.permute.xlu0 %2490
      %2494 = vset.pattern.permute.xlu0 0
      %2495 = vperm.xlu0 %2494, %v2403
      %v2496 = vpop.permute.xlu0 %2495
      %2499 = vset.pattern.permute.xlu0 0
      %2500 = vperm.xlu0 %2499, %v2404
      %v2501 = vpop.permute.xlu0 %2500
      %2504 = vset.pattern.permute.xlu0 0
      %2505 = vperm.xlu0 %2504, %v2405
      %v2506 = vpop.permute.xlu0 %2505
      %2509 = vset.pattern.permute.xlu0 0
      %2510 = vperm.xlu0 %2509, %v2406
      %v2511 = vpop.permute.xlu0 %2510
      %2514 = vset.pattern.permute.xlu0 0
      %2515 = vperm.xlu0 %2514, %v2407
      %v2516 = vpop.permute.xlu0 %2515
      %v2518 = vmul.f32 %v2363, %v2411
      %v2519 = vmul.f32 %v2364, %v2416
      %v2520 = vmul.f32 %v2365, %v2421
      %v2521 = vmul.f32 %v2366, %v2426
      %v2522 = vmul.f32 %v2367, %v2431
      %v2523 = vmul.f32 %v2368, %v2436
      %v2524 = vmul.f32 %v2369, %v2441
      %v2525 = vmul.f32 %v2370, %v2446
      %v2526 = vmul.f32 %v2371, %v2451
      %v2527 = vmul.f32 %v2372, %v2456
      %v2528 = vmul.f32 %v2373, %v2461
      %v2529 = vmul.f32 %v2374, %v2466
      %v2530 = vmul.f32 %v2375, %v2471
      %v2531 = vmul.f32 %v2376, %v2476
      %v2532 = vmul.f32 %v2377, %v2481
      %v2533 = vmul.f32 %v2378, %v2486
      %v2534 = vmul.f32 %v2379, %v2491
      %v2535 = vmul.f32 %v2380, %v2496
      %v2536 = vmul.f32 %v2381, %v2501
      %v2537 = vmul.f32 %v2382, %v2506
      %v2538 = vmul.f32 %v2383, %v2511
      %v2539 = vmul.f32 %v2384, %v2516
      %s2540 = scalar_lea.vmem [#allocation2], 528
      %2541 = vst.msk [vmem:[%s2540] sm:$0xff] %vm968, %v2518
      %2542 = vst.msk [vmem:[%s2540 + $0x8] sm:$0xff] %vm968, %v2519
      %2543 = vst.msk [vmem:[%s2540 + $0x10] sm:$0xff] %vm968, %v2520
      %2544 = vst.msk [vmem:[%s2540 + $0x18] sm:$0xff] %vm968, %v2521
      %2545 = vst.msk [vmem:[%s2540 + $0x20] sm:$0xff] %vm968, %v2522
      %2546 = vst.msk [vmem:[%s2540 + $0x28] sm:$0xff] %vm968, %v2523
      %2547 = vst.msk [vmem:[%s2540 + $0x30] sm:$0xff] %vm968, %v2524
      %2548 = vst.msk [vmem:[%s2540 + $0x38] sm:$0xff] %vm968, %v2525
      %2549 = vst.msk [vmem:[%s2540 + $0x40] sm:$0xff] %vm968, %v2526
      %2550 = vst.msk [vmem:[%s2540 + $0x48] sm:$0xff] %vm968, %v2527
      %2551 = vst.msk [vmem:[%s2540 + $0x50] sm:$0xff] %vm968, %v2528
      %2552 = vst.msk [vmem:[%s2540 + $0x58] sm:$0xff] %vm968, %v2529
      %2553 = vst.msk [vmem:[%s2540 + $0x60] sm:$0xff] %vm968, %v2530
      %2554 = vst.msk [vmem:[%s2540 + $0x68] sm:$0xff] %vm968, %v2531
      %2555 = vst.msk [vmem:[%s2540 + $0x70] sm:$0xff] %vm968, %v2532
      %2556 = vst.msk [vmem:[%s2540 + $0x78] sm:$0xff] %vm968, %v2533
      %2557 = vst.msk [vmem:[%s2540 + $0x80] sm:$0xff] %vm968, %v2534
      %2558 = vst.msk [vmem:[%s2540 + $0x88] sm:$0xff] %vm968, %v2535
      %2559 = vst.msk [vmem:[%s2540 + $0x90] sm:$0xff] %vm968, %v2536
      %2560 = vst.msk [vmem:[%s2540 + $0x98] sm:$0xff] %vm968, %v2537
      %2561 = vst.msk [vmem:[%s2540 + $0xa0] sm:$0xff] %vm968, %v2538
      %2562 = vst.msk [vmem:[%s2540 + $0xa8] sm:$0xff] %vm968, %v2539
      %v2563 = vld [vmem:[#allocation2] sm:$0xff]
      %v2564 = vld [vmem:[#allocation2 + $0x8] sm:$0xff]
      %v2565 = vld [vmem:[#allocation2 + $0x10] sm:$0xff]
      %v2566 = vld [vmem:[#allocation2 + $0x18] sm:$0xff]
      %v2567 = vld [vmem:[#allocation2 + $0x20] sm:$0xff]
      %v2568 = vld [vmem:[#allocation2 + $0x28] sm:$0xff]
      %v2569 = vld [vmem:[#allocation2 + $0x30] sm:$0xff]
      %v2570 = vld [vmem:[#allocation2 + $0x38] sm:$0xff]
      %v2571 = vld [vmem:[#allocation2 + $0x40] sm:$0xff]
      %v2572 = vld [vmem:[#allocation2 + $0x48] sm:$0xff]
      %v2573 = vld [vmem:[#allocation2 + $0x50] sm:$0xff]
      %v2574 = vld [vmem:[#allocation2 + $0x58] sm:$0xff]
      %v2575 = vld [vmem:[#allocation2 + $0x60] sm:$0xff]
      %v2576 = vld [vmem:[#allocation2 + $0x68] sm:$0xff]
      %v2577 = vld [vmem:[#allocation2 + $0x70] sm:$0xff]
      %v2578 = vld [vmem:[#allocation2 + $0x78] sm:$0xff]
      %v2579 = vld [vmem:[%s1492] sm:$0xff]
      %v2580 = vld [vmem:[%s1492 + $0x8] sm:$0xff]
      %v2581 = vld [vmem:[%s1492 + $0x10] sm:$0xff]
      %v2582 = vld [vmem:[%s1492 + $0x18] sm:$0xff]
      %v2583 = vld [vmem:[%s1492 + $0x20] sm:$0xff]
      %v2584 = vld [vmem:[%s1492 + $0x28] sm:$0xff]
      %v2585 = vld [vmem:[%s1492 + $0x30] sm:$0xff]
      %v2586 = vld [vmem:[%s1492 + $0x38] sm:$0xff]
      %v2587 = vld [vmem:[%s1492 + $0x40] sm:$0xff]
      %v2588 = vld [vmem:[%s1492 + $0x48] sm:$0xff]
      %v2589 = vld [vmem:[%s1492 + $0x50] sm:$0xff]
      %v2590 = vld [vmem:[%s1492 + $0x58] sm:$0xff]
      %v2591 = vld [vmem:[%s1492 + $0x60] sm:$0xff]
      %v2592 = vld [vmem:[%s1492 + $0x68] sm:$0xff]
      %v2593 = vld [vmem:[%s1492 + $0x70] sm:$0xff]
      %v2594 = vld [vmem:[%s1492 + $0x78] sm:$0xff]
      %v2595 = vld [vmem:[#allocation2 + $0x1] sm:$0xff]
      %v2596 = vld [vmem:[#allocation2 + $0x9] sm:$0xff]
      %v2597 = vld [vmem:[#allocation2 + $0x11] sm:$0xff]
      %v2598 = vld [vmem:[#allocation2 + $0x19] sm:$0xff]
      %v2599 = vld [vmem:[#allocation2 + $0x21] sm:$0xff]
      %v2600 = vld [vmem:[#allocation2 + $0x29] sm:$0xff]
      %v2601 = vld [vmem:[#allocation2 + $0x31] sm:$0xff]
      %v2602 = vld [vmem:[#allocation2 + $0x39] sm:$0xff]
      %v2603 = vld [vmem:[#allocation2 + $0x41] sm:$0xff]
      %v2604 = vld [vmem:[#allocation2 + $0x49] sm:$0xff]
      %v2605 = vld [vmem:[#allocation2 + $0x51] sm:$0xff]
      %v2606 = vld [vmem:[#allocation2 + $0x59] sm:$0xff]
      %v2607 = vld [vmem:[#allocation2 + $0x61] sm:$0xff]
      %v2608 = vld [vmem:[#allocation2 + $0x69] sm:$0xff]
      %v2609 = vld [vmem:[#allocation2 + $0x71] sm:$0xff]
      %v2610 = vld [vmem:[#allocation2 + $0x79] sm:$0xff]
      %2627 = vrot.lane.b32.xlu0 %v2579, 8
      %v2628 = vpop.permute.xlu0 %2627
      %2629 = vrot.lane.b32.xlu0 %v2580, 8
      %v2630 = vpop.permute.xlu0 %2629
      %2631 = vrot.lane.b32.xlu0 %v2581, 8
      %v2632 = vpop.permute.xlu0 %2631
      %2633 = vrot.lane.b32.xlu0 %v2582, 8
      %v2634 = vpop.permute.xlu0 %2633
      %2635 = vrot.lane.b32.xlu0 %v2583, 8
      %v2636 = vpop.permute.xlu0 %2635
      %2637 = vrot.lane.b32.xlu0 %v2584, 8
      %v2638 = vpop.permute.xlu0 %2637
      %2639 = vrot.lane.b32.xlu0 %v2585, 8
      %v2640 = vpop.permute.xlu0 %2639
      %2641 = vrot.lane.b32.xlu0 %v2586, 8
      %v2642 = vpop.permute.xlu0 %2641
      %2643 = vrot.lane.b32.xlu0 %v2587, 8
      %v2644 = vpop.permute.xlu0 %2643
      %2645 = vrot.lane.b32.xlu0 %v2588, 8
      %v2646 = vpop.permute.xlu0 %2645
      %2647 = vrot.lane.b32.xlu0 %v2589, 8
      %v2648 = vpop.permute.xlu0 %2647
      %2649 = vrot.lane.b32.xlu0 %v2590, 8
      %v2650 = vpop.permute.xlu0 %2649
      %2651 = vrot.lane.b32.xlu0 %v2591, 8
      %v2652 = vpop.permute.xlu0 %2651
      %2653 = vrot.lane.b32.xlu0 %v2592, 8
      %v2654 = vpop.permute.xlu0 %2653
      %2655 = vrot.lane.b32.xlu0 %v2593, 8
      %v2656 = vpop.permute.xlu0 %2655
      %2657 = vrot.lane.b32.xlu0 %v2594, 8
      %v2658 = vpop.permute.xlu0 %2657
      %2691 = vrot.lane.b32.xlu0 %v2595, 16
      %v2692 = vpop.permute.xlu0 %2691
      %2693 = vrot.lane.b32.xlu0 %v2596, 16
      %v2694 = vpop.permute.xlu0 %2693
      %2695 = vrot.lane.b32.xlu0 %v2597, 16
      %v2696 = vpop.permute.xlu0 %2695
      %2697 = vrot.lane.b32.xlu0 %v2598, 16
      %v2698 = vpop.permute.xlu0 %2697
      %2699 = vrot.lane.b32.xlu0 %v2599, 16
      %v2700 = vpop.permute.xlu0 %2699
      %2701 = vrot.lane.b32.xlu0 %v2600, 16
      %v2702 = vpop.permute.xlu0 %2701
      %2703 = vrot.lane.b32.xlu0 %v2601, 16
      %v2704 = vpop.permute.xlu0 %2703
      %2705 = vrot.lane.b32.xlu0 %v2602, 16
      %v2706 = vpop.permute.xlu0 %2705
      %2707 = vrot.lane.b32.xlu0 %v2603, 16
      %v2708 = vpop.permute.xlu0 %2707
      %2709 = vrot.lane.b32.xlu0 %v2604, 16
      %v2710 = vpop.permute.xlu0 %2709
      %2711 = vrot.lane.b32.xlu0 %v2605, 16
      %v2712 = vpop.permute.xlu0 %2711
      %2713 = vrot.lane.b32.xlu0 %v2606, 16
      %v2714 = vpop.permute.xlu0 %2713
      %2715 = vrot.lane.b32.xlu0 %v2607, 16
      %v2716 = vpop.permute.xlu0 %2715
      %2717 = vrot.lane.b32.xlu0 %v2608, 16
      %v2718 = vpop.permute.xlu0 %2717
      %2719 = vrot.lane.b32.xlu0 %v2609, 16
      %v2720 = vpop.permute.xlu0 %2719
      %2721 = vrot.lane.b32.xlu0 %v2610, 16
      %v2722 = vpop.permute.xlu0 %2721
      %v2739 = vsel %vm968, %v2563, %v2628
      %v2740 = vsel %vm968, %v2564, %v2630
      %v2741 = vsel %vm968, %v2565, %v2632
      %v2742 = vsel %vm968, %v2566, %v2634
      %v2743 = vsel %vm968, %v2567, %v2636
      %v2744 = vsel %vm968, %v2568, %v2638
      %v2745 = vsel %vm968, %v2569, %v2640
      %v2746 = vsel %vm968, %v2570, %v2642
      %v2747 = vsel %vm968, %v2571, %v2644
      %v2748 = vsel %vm968, %v2572, %v2646
      %v2749 = vsel %vm968, %v2573, %v2648
      %v2750 = vsel %vm968, %v2574, %v2650
      %v2751 = vsel %vm968, %v2575, %v2652
      %v2752 = vsel %vm968, %v2576, %v2654
      %v2753 = vsel %vm968, %v2577, %v2656
      %v2754 = vsel %vm968, %v2578, %v2658
      %v2755 = vsel %vm492, %v2739, %v2692
      %v2756 = vsel %vm492, %v2740, %v2694
      %v2757 = vsel %vm492, %v2741, %v2696
      %v2758 = vsel %vm492, %v2742, %v2698
      %v2759 = vsel %vm492, %v2743, %v2700
      %v2760 = vsel %vm492, %v2744, %v2702
      %v2761 = vsel %vm492, %v2745, %v2704
      %v2762 = vsel %vm492, %v2746, %v2706
      %v2763 = vsel %vm492, %v2747, %v2708
      %v2764 = vsel %vm492, %v2748, %v2710
      %v2765 = vsel %vm492, %v2749, %v2712
      %v2766 = vsel %vm492, %v2750, %v2714
      %v2767 = vsel %vm492, %v2751, %v2716
      %v2768 = vsel %vm492, %v2752, %v2718
      %v2769 = vsel %vm492, %v2753, %v2720
      %v2770 = vsel %vm492, %v2754, %v2722
      %v2771 = vld [vmem:[%s5] sm:$0xff]
      %v2772 = vld [vmem:[%s5 + $0x8] sm:$0xff]
      %v2773 = vld [vmem:[%s5 + $0x10] sm:$0xff]
      %v2774 = vld [vmem:[%s2016] sm:$0xff]
      %v2775 = vld [vmem:[%s2016 + $0x8] sm:$0xff]
      %v2776 = vld [vmem:[%s2016 + $0x10] sm:$0xff]
      %v2777 = vld [vmem:[%s2016 + $0x18] sm:$0xff]
      %v2778 = vld [vmem:[%s2016 + $0x20] sm:$0xff]
      %v2779 = vld [vmem:[%s2016 + $0x28] sm:$0xff]
      %v2780 = vld [vmem:[%s2016 + $0x30] sm:$0xff]
      %v2781 = vld [vmem:[%s2016 + $0x38] sm:$0xff]
      %v2782 = vld [vmem:[%s2016 + $0x40] sm:$0xff]
      %v2783 = vld [vmem:[%s2016 + $0x48] sm:$0xff]
      %v2784 = vld [vmem:[%s2016 + $0x50] sm:$0xff]
      %v2785 = vld [vmem:[%s2016 + $0x58] sm:$0xff]
      %v2786 = vld [vmem:[%s2016 + $0x60] sm:$0xff]
      %v2787 = vld [vmem:[%s2016 + $0x68] sm:$0xff]
      %v2788 = vld [vmem:[%s2016 + $0x70] sm:$0xff]
      %v2789 = vld [vmem:[%s2016 + $0x78] sm:$0xff]
      %v2790 = vld [vmem:[%s2540] sm:$0xff]
      %v2791 = vld [vmem:[%s2540 + $0x8] sm:$0xff]
      %v2792 = vld [vmem:[%s2540 + $0x10] sm:$0xff]
      %v2793 = vld [vmem:[%s2540 + $0x18] sm:$0xff]
      %v2794 = vld [vmem:[%s2540 + $0x20] sm:$0xff]
      %v2795 = vld [vmem:[%s2540 + $0x28] sm:$0xff]
      %v2796 = vld [vmem:[%s2540 + $0x30] sm:$0xff]
      %v2797 = vld [vmem:[%s2540 + $0x38] sm:$0xff]
      %v2798 = vld [vmem:[%s2540 + $0x40] sm:$0xff]
      %v2799 = vld [vmem:[%s2540 + $0x48] sm:$0xff]
      %v2800 = vld [vmem:[%s2540 + $0x50] sm:$0xff]
      %v2801 = vld [vmem:[%s2540 + $0x58] sm:$0xff]
      %v2802 = vld [vmem:[%s2540 + $0x60] sm:$0xff]
      %v2803 = vld [vmem:[%s2540 + $0x68] sm:$0xff]
      %v2804 = vld [vmem:[%s2540 + $0x70] sm:$0xff]
      %v2805 = vld [vmem:[%s2540 + $0x78] sm:$0xff]
      %v2806 = vld [vmem:[%s2016 + $0x1] sm:$0xff]
      %v2807 = vld [vmem:[%s2016 + $0x9] sm:$0xff]
      %v2808 = vld [vmem:[%s2016 + $0x11] sm:$0xff]
      %v2809 = vld [vmem:[%s2016 + $0x19] sm:$0xff]
      %v2810 = vld [vmem:[%s2016 + $0x21] sm:$0xff]
      %v2811 = vld [vmem:[%s2016 + $0x29] sm:$0xff]
      %v2812 = vld [vmem:[%s2016 + $0x31] sm:$0xff]
      %v2813 = vld [vmem:[%s2016 + $0x39] sm:$0xff]
      %v2814 = vld [vmem:[%s2016 + $0x41] sm:$0xff]
      %v2815 = vld [vmem:[%s2016 + $0x49] sm:$0xff]
      %v2816 = vld [vmem:[%s2016 + $0x51] sm:$0xff]
      %v2817 = vld [vmem:[%s2016 + $0x59] sm:$0xff]
      %v2818 = vld [vmem:[%s2016 + $0x61] sm:$0xff]
      %v2819 = vld [vmem:[%s2016 + $0x69] sm:$0xff]
      %v2820 = vld [vmem:[%s2016 + $0x71] sm:$0xff]
      %v2821 = vld [vmem:[%s2016 + $0x79] sm:$0xff]
      %2838 = vrot.lane.b32.xlu0 %v2790, 8
      %v2839 = vpop.permute.xlu0 %2838
      %2840 = vrot.lane.b32.xlu0 %v2791, 8
      %v2841 = vpop.permute.xlu0 %2840
      %2842 = vrot.lane.b32.xlu0 %v2792, 8
      %v2843 = vpop.permute.xlu0 %2842
      %2844 = vrot.lane.b32.xlu0 %v2793, 8
      %v2845 = vpop.permute.xlu0 %2844
      %2846 = vrot.lane.b32.xlu0 %v2794, 8
      %v2847 = vpop.permute.xlu0 %2846
      %2848 = vrot.lane.b32.xlu0 %v2795, 8
      %v2849 = vpop.permute.xlu0 %2848
      %2850 = vrot.lane.b32.xlu0 %v2796, 8
      %v2851 = vpop.permute.xlu0 %2850
      %2852 = vrot.lane.b32.xlu0 %v2797, 8
      %v2853 = vpop.permute.xlu0 %2852
      %2854 = vrot.lane.b32.xlu0 %v2798, 8
      %v2855 = vpop.permute.xlu0 %2854
      %2856 = vrot.lane.b32.xlu0 %v2799, 8
      %v2857 = vpop.permute.xlu0 %2856
      %2858 = vrot.lane.b32.xlu0 %v2800, 8
      %v2859 = vpop.permute.xlu0 %2858
      %2860 = vrot.lane.b32.xlu0 %v2801, 8
      %v2861 = vpop.permute.xlu0 %2860
      %2862 = vrot.lane.b32.xlu0 %v2802, 8
      %v2863 = vpop.permute.xlu0 %2862
      %2864 = vrot.lane.b32.xlu0 %v2803, 8
      %v2865 = vpop.permute.xlu0 %2864
      %2866 = vrot.lane.b32.xlu0 %v2804, 8
      %v2867 = vpop.permute.xlu0 %2866
      %2868 = vrot.lane.b32.xlu0 %v2805, 8
      %v2869 = vpop.permute.xlu0 %2868
      %2902 = vrot.lane.b32.xlu0 %v2806, 16
      %v2903 = vpop.permute.xlu0 %2902
      %2904 = vrot.lane.b32.xlu0 %v2807, 16
      %v2905 = vpop.permute.xlu0 %2904
      %2906 = vrot.lane.b32.xlu0 %v2808, 16
      %v2907 = vpop.permute.xlu0 %2906
      %2908 = vrot.lane.b32.xlu0 %v2809, 16
      %v2909 = vpop.permute.xlu0 %2908
      %2910 = vrot.lane.b32.xlu0 %v2810, 16
      %v2911 = vpop.permute.xlu0 %2910
      %2912 = vrot.lane.b32.xlu0 %v2811, 16
      %v2913 = vpop.permute.xlu0 %2912
      %2914 = vrot.lane.b32.xlu0 %v2812, 16
      %v2915 = vpop.permute.xlu0 %2914
      %2916 = vrot.lane.b32.xlu0 %v2813, 16
      %v2917 = vpop.permute.xlu0 %2916
      %2918 = vrot.lane.b32.xlu0 %v2814, 16
      %v2919 = vpop.permute.xlu0 %2918
      %2920 = vrot.lane.b32.xlu0 %v2815, 16
      %v2921 = vpop.permute.xlu0 %2920
      %2922 = vrot.lane.b32.xlu0 %v2816, 16
      %v2923 = vpop.permute.xlu0 %2922
      %2924 = vrot.lane.b32.xlu0 %v2817, 16
      %v2925 = vpop.permute.xlu0 %2924
      %2926 = vrot.lane.b32.xlu0 %v2818, 16
      %v2927 = vpop.permute.xlu0 %2926
      %2928 = vrot.lane.b32.xlu0 %v2819, 16
      %v2929 = vpop.permute.xlu0 %2928
      %2930 = vrot.lane.b32.xlu0 %v2820, 16
      %v2931 = vpop.permute.xlu0 %2930
      %2932 = vrot.lane.b32.xlu0 %v2821, 16
      %v2933 = vpop.permute.xlu0 %2932
      %v2950 = vsel %vm968, %v2774, %v2839
      %v2951 = vsel %vm968, %v2775, %v2841
      %v2952 = vsel %vm968, %v2776, %v2843
      %v2953 = vsel %vm968, %v2777, %v2845
      %v2954 = vsel %vm968, %v2778, %v2847
      %v2955 = vsel %vm968, %v2779, %v2849
      %v2956 = vsel %vm968, %v2780, %v2851
      %v2957 = vsel %vm968, %v2781, %v2853
      %v2958 = vsel %vm968, %v2782, %v2855
      %v2959 = vsel %vm968, %v2783, %v2857
      %v2960 = vsel %vm968, %v2784, %v2859
      %v2961 = vsel %vm968, %v2785, %v2861
      %v2962 = vsel %vm968, %v2786, %v2863
      %v2963 = vsel %vm968, %v2787, %v2865
      %v2964 = vsel %vm968, %v2788, %v2867
      %v2965 = vsel %vm968, %v2789, %v2869
      %v2966 = vsel %vm492, %v2950, %v2903
      %v2967 = vsel %vm492, %v2951, %v2905
      %v2968 = vsel %vm492, %v2952, %v2907
      %v2969 = vsel %vm492, %v2953, %v2909
      %v2970 = vsel %vm492, %v2954, %v2911
      %v2971 = vsel %vm492, %v2955, %v2913
      %v2972 = vsel %vm492, %v2956, %v2915
      %v2973 = vsel %vm492, %v2957, %v2917
      %v2974 = vsel %vm492, %v2958, %v2919
      %v2975 = vsel %vm492, %v2959, %v2921
      %v2976 = vsel %vm492, %v2960, %v2923
      %v2977 = vsel %vm492, %v2961, %v2925
      %v2978 = vsel %vm492, %v2962, %v2927
      %v2979 = vsel %vm492, %v2963, %v2929
      %v2980 = vsel %vm492, %v2964, %v2931
      %v2981 = vsel %vm492, %v2965, %v2933
      %s2982 = scalar_lea.vmem %s5, 24
      %v2983 = vld [vmem:[%s2982] sm:$0xff]
      %v2984 = vld [vmem:[%s2982 + $0x8] sm:$0xff]
      %v2985 = vld [vmem:[%s2982 + $0x10] sm:$0xff]
      %vm2986 = vcmask 195584
      %v2988 = vsel %vm2986, %v2966, 0
      %v2991 = vsel %vm2986, %v2967, 0
      %v2994 = vsel %vm2986, %v2968, 0
      %v2997 = vsel %vm2986, %v2969, 0
      %v3000 = vsel %vm2986, %v2970, 0
      %v3003 = vsel %vm2986, %v2971, 0
      %v3006 = vsel %vm2986, %v2972, 0
      %v3009 = vsel %vm2986, %v2973, 0
      %v3012 = vsel %vm2986, %v2974, 0
      %v3015 = vsel %vm2986, %v2975, 0
      %v3018 = vsel %vm2986, %v2976, 0
      %v3021 = vsel %vm2986, %v2977, 0
      %v3024 = vsel %vm2986, %v2978, 0
      %v3027 = vsel %vm2986, %v2979, 0
      %v3030 = vsel %vm2986, %v2980, 0
      %v3033 = vsel %vm2986, %v2981, 0
      %3035 = vmatprep.subr.mxu0 0.0
      %3036 = vmatpush1.msra.mxu0 %v2983
      %3037 = vmatprep.subr.mxu0 0.0
      %3038 = vmatpush1.msra.mxu0 %v2984
      %3039 = vmatprep.subr.mxu0 0.0
      %3040 = vmatpush1.msra.mxu0 %v2985
      %3041 = vmatprep.subr.mxu0 0.0
      %3042 = vmatpush1.msra.mxu0 0.0
      %3043 = vmatprep.subr.mxu0 0.0
      %3044 = vmatpush1.msra.mxu0 0.0
      %3045 = vmatprep.subr.mxu0 0.0
      %3046 = vmatpush1.msra.mxu0 0.0
      %3047 = vmatprep.subr.mxu0 0.0
      %3048 = vmatpush1.msra.mxu0 0.0
      %3049 = vmatprep.subr.mxu0 0.0
      %3050 = vmatpush1.msra.mxu0 0.0
      %3051 = vmatprep.subr.mxu0 0.0
      %3052 = vmatpush1.msra.mxu0 0.0
      %3053 = vmatprep.subr.mxu0 0.0
      %3054 = vmatpush1.msra.mxu0 0.0
      %3055 = vmatprep.subr.mxu0 0.0
      %3056 = vmatpush1.msra.mxu0 0.0
      %3057 = vmatprep.subr.mxu0 0.0
      %3058 = vmatpush1.msra.mxu0 0.0
      %3059 = vmatprep.subr.mxu0 0.0
      %3060 = vmatpush1.msra.mxu0 0.0
      %3061 = vmatprep.subr.mxu0 0.0
      %3062 = vmatpush1.msra.mxu0 0.0
      %3063 = vmatprep.subr.mxu0 0.0
      %3064 = vmatpush1.msra.mxu0 0.0
      %3065 = vmatprep.subr.mxu0 0.0
      %3066 = vmatpush1.msra.mxu0 0.0
      %3067 = vmatprep.subr.mxu0 0.0
      %3068 = vmatpush1.msra.mxu0 0.0
      %3069 = vmatprep.subr.mxu0 0.0
      %3070 = vmatpush1.msra.mxu0 0.0
      %3071 = vmatprep.subr.mxu0 0.0
      %3072 = vmatpush1.msra.mxu0 0.0
      %3073 = vmatprep.subr.mxu0 0.0
      %3074 = vmatpush1.msra.mxu0 0.0
      %3075 = vmatprep.subr.mxu0 0.0
      %3076 = vmatpush1.msra.mxu0 0.0
      %3077 = vmatprep.subr.mxu0 0.0
      %3078 = vmatpush1.msra.mxu0 0.0
      %3079 = vmatprep.subr.mxu0 0.0
      %3080 = vmatpush1.msra.mxu0 0.0
      %3081 = vmatprep.subr.mxu0 0.0
      %3082 = vmatpush1.msra.mxu0 0.0
      %3083 = vmatprep.subr.mxu0 0.0
      %3084 = vmatpush1.msra.mxu0 0.0
      %3085 = vmatprep.subr.mxu0 0.0
      %3086 = vmatpush1.msra.mxu0 0.0
      %3087 = vmatprep.subr.mxu0 0.0
      %3088 = vmatpush1.msra.mxu0 0.0
      %3089 = vmatprep.subr.mxu0 0.0
      %3090 = vmatpush1.msra.mxu0 0.0
      %3091 = vmatprep.subr.mxu0 0.0
      %3092 = vmatpush1.msra.mxu0 0.0
      %3093 = vmatprep.subr.mxu0 0.0
      %3094 = vmatpush1.msra.mxu0 0.0
      %3095 = vmatprep.subr.mxu0 0.0
      %3096 = vmatpush1.msra.mxu0 0.0
      %3097 = vmatprep.subr.mxu0 0.0
      %3098 = vmatpush1.msra.mxu0 0.0
      %3099 = vmatprep.mubr.f32.mxu0 0.0
      %3100 = vmatmul.mubr.f32.gmra.mrb[0].mxu0 %v2988
      %v3101 = vpop.f32.mrb[0].mxu0
      %v3102 = vadd.f32 0.0, %v3101
      %v3103 = vpop.f32.mrb[0].mxu0
      %3104 = vmatprep.mubr.f32.mxu0 0.0
      %3105 = vmatmul.mubr.f32.gmra.mrb[0].mxu0 %v2991
      %v3106 = vpop.f32.mrb[0].mxu0
      %v3107 = vadd.f32 0.0, %v3106
      %v3108 = vpop.f32.mrb[0].mxu0
      %3109 = vmatprep.mubr.f32.mxu0 0.0
      %3110 = vmatmul.mubr.f32.gmra.mrb[0].mxu0 %v2994
      %v3111 = vpop.f32.mrb[0].mxu0
      %v3112 = vadd.f32 0.0, %v3111
      %v3113 = vpop.f32.mrb[0].mxu0
      %3114 = vmatprep.mubr.f32.mxu0 0.0
      %3115 = vmatmul.mubr.f32.gmra.mrb[0].mxu0 %v2997
      %v3116 = vpop.f32.mrb[0].mxu0
      %v3117 = vadd.f32 0.0, %v3116
      %v3118 = vpop.f32.mrb[0].mxu0
      %3119 = vmatprep.mubr.f32.mxu0 0.0
      %3120 = vmatmul.mubr.f32.gmra.mrb[0].mxu0 %v3000
      %v3121 = vpop.f32.mrb[0].mxu0
      %v3122 = vadd.f32 0.0, %v3121
      %v3123 = vpop.f32.mrb[0].mxu0
      %3124 = vmatprep.mubr.f32.mxu0 0.0
      %3125 = vmatmul.mubr.f32.gmra.mrb[0].mxu0 %v3003
      %v3126 = vpop.f32.mrb[0].mxu0
      %v3127 = vadd.f32 0.0, %v3126
      %v3128 = vpop.f32.mrb[0].mxu0
      %3129 = vmatprep.mubr.f32.mxu0 0.0
      %3130 = vmatmul.mubr.f32.gmra.mrb[0].mxu0 %v3006
      %v3131 = vpop.f32.mrb[0].mxu0
      %v3132 = vadd.f32 0.0, %v3131
      %v3133 = vpop.f32.mrb[0].mxu0
      %3134 = vmatprep.mubr.f32.mxu0 0.0
      %3135 = vmatmul.mubr.f32.gmra.mrb[0].mxu0 %v3009
      %v3136 = vpop.f32.mrb[0].mxu0
      %v3137 = vadd.f32 0.0, %v3136
      %v3138 = vpop.f32.mrb[0].mxu0
      %3139 = vmatprep.mubr.f32.mxu0 0.0
      %3140 = vmatmul.mubr.f32.gmra.mrb[0].mxu0 %v3012
      %v3141 = vpop.f32.mrb[0].mxu0
      %v3142 = vadd.f32 0.0, %v3141
      %v3143 = vpop.f32.mrb[0].mxu0
      %3144 = vmatprep.mubr.f32.mxu0 0.0
      %3145 = vmatmul.mubr.f32.gmra.mrb[0].mxu0 %v3015
      %v3146 = vpop.f32.mrb[0].mxu0
      %v3147 = vadd.f32 0.0, %v3146
      %v3148 = vpop.f32.mrb[0].mxu0
      %3149 = vmatprep.mubr.f32.mxu0 0.0
      %3150 = vmatmul.mubr.f32.gmra.mrb[0].mxu0 %v3018
      %v3151 = vpop.f32.mrb[0].mxu0
      %v3152 = vadd.f32 0.0, %v3151
      %v3153 = vpop.f32.mrb[0].mxu0
      %3154 = vmatprep.mubr.f32.mxu0 0.0
      %3155 = vmatmul.mubr.f32.gmra.mrb[0].mxu0 %v3021
      %v3156 = vpop.f32.mrb[0].mxu0
      %v3157 = vadd.f32 0.0, %v3156
      %v3158 = vpop.f32.mrb[0].mxu0
      %3159 = vmatprep.mubr.f32.mxu0 0.0
      %3160 = vmatmul.mubr.f32.gmra.mrb[0].mxu0 %v3024
      %v3161 = vpop.f32.mrb[0].mxu0
      %v3162 = vadd.f32 0.0, %v3161
      %v3163 = vpop.f32.mrb[0].mxu0
      %3164 = vmatprep.mubr.f32.mxu0 0.0
      %3165 = vmatmul.mubr.f32.gmra.mrb[0].mxu0 %v3027
      %v3166 = vpop.f32.mrb[0].mxu0
      %v3167 = vadd.f32 0.0, %v3166
      %v3168 = vpop.f32.mrb[0].mxu0
      %3169 = vmatprep.mubr.f32.mxu0 0.0
      %3170 = vmatmul.mubr.f32.gmra.mrb[0].mxu0 %v3030
      %v3171 = vpop.f32.mrb[0].mxu0
      %v3172 = vadd.f32 0.0, %v3171
      %v3173 = vpop.f32.mrb[0].mxu0
      %3174 = vmatprep.mubr.f32.mxu0 0.0
      %3175 = vmatmul.mubr.f32.gmra.mrb[0].mxu0 %v3033
      %v3176 = vpop.f32.mrb[0].mxu0
      %v3177 = vadd.f32 0.0, %v3176
      %v3178 = vpop.f32.mrb[0].mxu0
      %3179 = vdwg.mxu0
      %v3181 = vsel %vm2986, %v2755, 0
      %v3184 = vsel %vm2986, %v2756, 0
      %v3187 = vsel %vm2986, %v2757, 0
      %v3190 = vsel %vm2986, %v2758, 0
      %v3193 = vsel %vm2986, %v2759, 0
      %v3196 = vsel %vm2986, %v2760, 0
      %v3199 = vsel %vm2986, %v2761, 0
      %v3202 = vsel %vm2986, %v2762, 0
      %v3205 = vsel %vm2986, %v2763, 0
      %v3208 = vsel %vm2986, %v2764, 0
      %v3211 = vsel %vm2986, %v2765, 0
      %v3214 = vsel %vm2986, %v2766, 0
      %v3217 = vsel %vm2986, %v2767, 0
      %v3220 = vsel %vm2986, %v2768, 0
      %v3223 = vsel %vm2986, %v2769, 0
      %v3226 = vsel %vm2986, %v2770, 0
      %3228 = vmatprep.subr.mxu0 0.0
      %3229 = vmatpush1.msra.mxu0 %v2771
      %3230 = vmatprep.subr.mxu0 0.0
      %3231 = vmatpush1.msra.mxu0 %v2772
      %3232 = vmatprep.subr.mxu0 0.0
      %3233 = vmatpush1.msra.mxu0 %v2773
      %3234 = vmatprep.subr.mxu0 0.0
      %3235 = vmatpush1.msra.mxu0 0.0
      %3236 = vmatprep.subr.mxu0 0.0
      %3237 = vmatpush1.msra.mxu0 0.0
      %3238 = vmatprep.subr.mxu0 0.0
      %3239 = vmatpush1.msra.mxu0 0.0
      %3240 = vmatprep.subr.mxu0 0.0
      %3241 = vmatpush1.msra.mxu0 0.0
      %3242 = vmatprep.subr.mxu0 0.0
      %3243 = vmatpush1.msra.mxu0 0.0
      %3244 = vmatprep.subr.mxu0 0.0
      %3245 = vmatpush1.msra.mxu0 0.0
      %3246 = vmatprep.subr.mxu0 0.0
      %3247 = vmatpush1.msra.mxu0 0.0
      %3248 = vmatprep.subr.mxu0 0.0
      %3249 = vmatpush1.msra.mxu0 0.0
      %3250 = vmatprep.subr.mxu0 0.0
      %3251 = vmatpush1.msra.mxu0 0.0
      %3252 = vmatprep.subr.mxu0 0.0
      %3253 = vmatpush1.msra.mxu0 0.0
      %3254 = vmatprep.subr.mxu0 0.0
      %3255 = vmatpush1.msra.mxu0 0.0
      %3256 = vmatprep.subr.mxu0 0.0
      %3257 = vmatpush1.msra.mxu0 0.0
      %3258 = vmatprep.subr.mxu0 0.0
      %3259 = vmatpush1.msra.mxu0 0.0
      %3260 = vmatprep.subr.mxu0 0.0
      %3261 = vmatpush1.msra.mxu0 0.0
      %3262 = vmatprep.subr.mxu0 0.0
      %3263 = vmatpush1.msra.mxu0 0.0
      %3264 = vmatprep.subr.mxu0 0.0
      %3265 = vmatpush1.msra.mxu0 0.0
      %3266 = vmatprep.subr.mxu0 0.0
      %3267 = vmatpush1.msra.mxu0 0.0
      %3268 = vmatprep.subr.mxu0 0.0
      %3269 = vmatpush1.msra.mxu0 0.0
      %3270 = vmatprep.subr.mxu0 0.0
      %3271 = vmatpush1.msra.mxu0 0.0
      %3272 = vmatprep.subr.mxu0 0.0
      %3273 = vmatpush1.msra.mxu0 0.0
      %3274 = vmatprep.subr.mxu0 0.0
      %3275 = vmatpush1.msra.mxu0 0.0
      %3276 = vmatprep.subr.mxu0 0.0
      %3277 = vmatpush1.msra.mxu0 0.0
      %3278 = vmatprep.subr.mxu0 0.0
      %3279 = vmatpush1.msra.mxu0 0.0
      %3280 = vmatprep.subr.mxu0 0.0
      %3281 = vmatpush1.msra.mxu0 0.0
      %3282 = vmatprep.subr.mxu0 0.0
      %3283 = vmatpush1.msra.mxu0 0.0
      %3284 = vmatprep.subr.mxu0 0.0
      %3285 = vmatpush1.msra.mxu0 0.0
      %3286 = vmatprep.subr.mxu0 0.0
      %3287 = vmatpush1.msra.mxu0 0.0
      %3288 = vmatprep.subr.mxu0 0.0
      %3289 = vmatpush1.msra.mxu0 0.0
      %3290 = vmatprep.subr.mxu0 0.0
      %3291 = vmatpush1.msra.mxu0 0.0
      %3292 = vmatprep.mubr.f32.mxu0 0.0
      %3293 = vmatmul.mubr.f32.gmra.mrb[0].mxu0 %v3181
      %v3294 = vpop.f32.mrb[0].mxu0
      %v3295 = vadd.f32 %v3102, %v3294
      %v3296 = vpop.f32.mrb[0].mxu0
      %3297 = vmatprep.mubr.f32.mxu0 0.0
      %3298 = vmatmul.mubr.f32.gmra.mrb[0].mxu0 %v3184
      %v3299 = vpop.f32.mrb[0].mxu0
      %v3300 = vadd.f32 %v3107, %v3299
      %v3301 = vpop.f32.mrb[0].mxu0
      %3302 = vmatprep.mubr.f32.mxu0 0.0
      %3303 = vmatmul.mubr.f32.gmra.mrb[0].mxu0 %v3187
      %v3304 = vpop.f32.mrb[0].mxu0
      %v3305 = vadd.f32 %v3112, %v3304
      %v3306 = vpop.f32.mrb[0].mxu0
      %3307 = vmatprep.mubr.f32.mxu0 0.0
      %3308 = vmatmul.mubr.f32.gmra.mrb[0].mxu0 %v3190
      %v3309 = vpop.f32.mrb[0].mxu0
      %v3310 = vadd.f32 %v3117, %v3309
      %v3311 = vpop.f32.mrb[0].mxu0
      %3312 = vmatprep.mubr.f32.mxu0 0.0
      %3313 = vmatmul.mubr.f32.gmra.mrb[0].mxu0 %v3193
      %v3314 = vpop.f32.mrb[0].mxu0
      %v3315 = vadd.f32 %v3122, %v3314
      %v3316 = vpop.f32.mrb[0].mxu0
      %3317 = vmatprep.mubr.f32.mxu0 0.0
      %3318 = vmatmul.mubr.f32.gmra.mrb[0].mxu0 %v3196
      %v3319 = vpop.f32.mrb[0].mxu0
      %v3320 = vadd.f32 %v3127, %v3319
      %v3321 = vpop.f32.mrb[0].mxu0
      %3322 = vmatprep.mubr.f32.mxu0 0.0
      %3323 = vmatmul.mubr.f32.gmra.mrb[0].mxu0 %v3199
      %v3324 = vpop.f32.mrb[0].mxu0
      %v3325 = vadd.f32 %v3132, %v3324
      %v3326 = vpop.f32.mrb[0].mxu0
      %3327 = vmatprep.mubr.f32.mxu0 0.0
      %3328 = vmatmul.mubr.f32.gmra.mrb[0].mxu0 %v3202
      %v3329 = vpop.f32.mrb[0].mxu0
      %v3330 = vadd.f32 %v3137, %v3329
      %v3331 = vpop.f32.mrb[0].mxu0
      %3332 = vmatprep.mubr.f32.mxu0 0.0
      %3333 = vmatmul.mubr.f32.gmra.mrb[0].mxu0 %v3205
      %v3334 = vpop.f32.mrb[0].mxu0
      %v3335 = vadd.f32 %v3142, %v3334
      %v3336 = vpop.f32.mrb[0].mxu0
      %3337 = vmatprep.mubr.f32.mxu0 0.0
      %3338 = vmatmul.mubr.f32.gmra.mrb[0].mxu0 %v3208
      %v3339 = vpop.f32.mrb[0].mxu0
      %v3340 = vadd.f32 %v3147, %v3339
      %v3341 = vpop.f32.mrb[0].mxu0
      %3342 = vmatprep.mubr.f32.mxu0 0.0
      %3343 = vmatmul.mubr.f32.gmra.mrb[0].mxu0 %v3211
      %v3344 = vpop.f32.mrb[0].mxu0
      %v3345 = vadd.f32 %v3152, %v3344
      %v3346 = vpop.f32.mrb[0].mxu0
      %3347 = vmatprep.mubr.f32.mxu0 0.0
      %3348 = vmatmul.mubr.f32.gmra.mrb[0].mxu0 %v3214
      %v3349 = vpop.f32.mrb[0].mxu0
      %v3350 = vadd.f32 %v3157, %v3349
      %v3351 = vpop.f32.mrb[0].mxu0
      %3352 = vmatprep.mubr.f32.mxu0 0.0
      %3353 = vmatmul.mubr.f32.gmra.mrb[0].mxu0 %v3217
      %v3354 = vpop.f32.mrb[0].mxu0
      %v3355 = vadd.f32 %v3162, %v3354
      %v3356 = vpop.f32.mrb[0].mxu0
      %3357 = vmatprep.mubr.f32.mxu0 0.0
      %3358 = vmatmul.mubr.f32.gmra.mrb[0].mxu0 %v3220
      %v3359 = vpop.f32.mrb[0].mxu0
      %v3360 = vadd.f32 %v3167, %v3359
      %v3361 = vpop.f32.mrb[0].mxu0
      %3362 = vmatprep.mubr.f32.mxu0 0.0
      %3363 = vmatmul.mubr.f32.gmra.mrb[0].mxu0 %v3223
      %v3364 = vpop.f32.mrb[0].mxu0
      %v3365 = vadd.f32 %v3172, %v3364
      %v3366 = vpop.f32.mrb[0].mxu0
      %3367 = vmatprep.mubr.f32.mxu0 0.0
      %3368 = vmatmul.mubr.f32.gmra.mrb[0].mxu0 %v3226
      %v3369 = vpop.f32.mrb[0].mxu0
      %v3370 = vadd.f32 %v3177, %v3369
      %v3371 = vpop.f32.mrb[0].mxu0
      %3372 = vdwg.mxu0
      %v3373 = vld [vmem:[#allocation2 + $0x10] sm:$0xff]
      %v3374 = vld [vmem:[#allocation2 + $0x18] sm:$0xff]
      %v3375 = vld [vmem:[#allocation2 + $0x20] sm:$0xff]
      %v3376 = vld [vmem:[#allocation2 + $0x28] sm:$0xff]
      %v3377 = vld [vmem:[#allocation2 + $0x30] sm:$0xff]
      %v3378 = vld [vmem:[#allocation2 + $0x38] sm:$0xff]
      %v3379 = vld [vmem:[#allocation2 + $0x40] sm:$0xff]
      %v3380 = vld [vmem:[#allocation2 + $0x48] sm:$0xff]
      %v3381 = vld [vmem:[#allocation2 + $0x50] sm:$0xff]
      %v3382 = vld [vmem:[#allocation2 + $0x58] sm:$0xff]
      %v3383 = vld [vmem:[#allocation2 + $0x60] sm:$0xff]
      %v3384 = vld [vmem:[#allocation2 + $0x68] sm:$0xff]
      %v3385 = vld [vmem:[#allocation2 + $0x70] sm:$0xff]
      %v3386 = vld [vmem:[#allocation2 + $0x78] sm:$0xff]
      %v3387 = vld [vmem:[#allocation2 + $0x80] sm:$0xff]
      %v3388 = vld [vmem:[#allocation2 + $0x88] sm:$0xff]
      %v3389 = vld [vmem:[%s1492 + $0x10] sm:$0xff]
      %v3390 = vld [vmem:[%s1492 + $0x18] sm:$0xff]
      %v3391 = vld [vmem:[%s1492 + $0x20] sm:$0xff]
      %v3392 = vld [vmem:[%s1492 + $0x28] sm:$0xff]
      %v3393 = vld [vmem:[%s1492 + $0x30] sm:$0xff]
      %v3394 = vld [vmem:[%s1492 + $0x38] sm:$0xff]
      %v3395 = vld [vmem:[%s1492 + $0x40] sm:$0xff]
      %v3396 = vld [vmem:[%s1492 + $0x48] sm:$0xff]
      %v3397 = vld [vmem:[%s1492 + $0x50] sm:$0xff]
      %v3398 = vld [vmem:[%s1492 + $0x58] sm:$0xff]
      %v3399 = vld [vmem:[%s1492 + $0x60] sm:$0xff]
      %v3400 = vld [vmem:[%s1492 + $0x68] sm:$0xff]
      %v3401 = vld [vmem:[%s1492 + $0x70] sm:$0xff]
      %v3402 = vld [vmem:[%s1492 + $0x78] sm:$0xff]
      %v3403 = vld [vmem:[%s1492 + $0x80] sm:$0xff]
      %v3404 = vld [vmem:[%s1492 + $0x88] sm:$0xff]
      %v3405 = vld [vmem:[#allocation2 + $0x11] sm:$0xff]
      %v3406 = vld [vmem:[#allocation2 + $0x19] sm:$0xff]
      %v3407 = vld [vmem:[#allocation2 + $0x21] sm:$0xff]
      %v3408 = vld [vmem:[#allocation2 + $0x29] sm:$0xff]
      %v3409 = vld [vmem:[#allocation2 + $0x31] sm:$0xff]
      %v3410 = vld [vmem:[#allocation2 + $0x39] sm:$0xff]
      %v3411 = vld [vmem:[#allocation2 + $0x41] sm:$0xff]
      %v3412 = vld [vmem:[#allocation2 + $0x49] sm:$0xff]
      %v3413 = vld [vmem:[#allocation2 + $0x51] sm:$0xff]
      %v3414 = vld [vmem:[#allocation2 + $0x59] sm:$0xff]
      %v3415 = vld [vmem:[#allocation2 + $0x61] sm:$0xff]
      %v3416 = vld [vmem:[#allocation2 + $0x69] sm:$0xff]
      %v3417 = vld [vmem:[#allocation2 + $0x71] sm:$0xff]
      %v3418 = vld [vmem:[#allocation2 + $0x79] sm:$0xff]
      %v3419 = vld [vmem:[#allocation2 + $0x81] sm:$0xff]
      %v3420 = vld [vmem:[#allocation2 + $0x89] sm:$0xff]
      %3437 = vrot.lane.b32.xlu0 %v3389, 8
      %v3438 = vpop.permute.xlu0 %3437
      %3439 = vrot.lane.b32.xlu0 %v3390, 8
      %v3440 = vpop.permute.xlu0 %3439
      %3441 = vrot.lane.b32.xlu0 %v3391, 8
      %v3442 = vpop.permute.xlu0 %3441
      %3443 = vrot.lane.b32.xlu0 %v3392, 8
      %v3444 = vpop.permute.xlu0 %3443
      %3445 = vrot.lane.b32.xlu0 %v3393, 8
      %v3446 = vpop.permute.xlu0 %3445
      %3447 = vrot.lane.b32.xlu0 %v3394, 8
      %v3448 = vpop.permute.xlu0 %3447
      %3449 = vrot.lane.b32.xlu0 %v3395, 8
      %v3450 = vpop.permute.xlu0 %3449
      %3451 = vrot.lane.b32.xlu0 %v3396, 8
      %v3452 = vpop.permute.xlu0 %3451
      %3453 = vrot.lane.b32.xlu0 %v3397, 8
      %v3454 = vpop.permute.xlu0 %3453
      %3455 = vrot.lane.b32.xlu0 %v3398, 8
      %v3456 = vpop.permute.xlu0 %3455
      %3457 = vrot.lane.b32.xlu0 %v3399, 8
      %v3458 = vpop.permute.xlu0 %3457
      %3459 = vrot.lane.b32.xlu0 %v3400, 8
      %v3460 = vpop.permute.xlu0 %3459
      %3461 = vrot.lane.b32.xlu0 %v3401, 8
      %v3462 = vpop.permute.xlu0 %3461
      %3463 = vrot.lane.b32.xlu0 %v3402, 8
      %v3464 = vpop.permute.xlu0 %3463
      %3465 = vrot.lane.b32.xlu0 %v3403, 8
      %v3466 = vpop.permute.xlu0 %3465
      %3467 = vrot.lane.b32.xlu0 %v3404, 8
      %v3468 = vpop.permute.xlu0 %3467
      %3501 = vrot.lane.b32.xlu0 %v3405, 16
      %v3502 = vpop.permute.xlu0 %3501
      %3503 = vrot.lane.b32.xlu0 %v3406, 16
      %v3504 = vpop.permute.xlu0 %3503
      %3505 = vrot.lane.b32.xlu0 %v3407, 16
      %v3506 = vpop.permute.xlu0 %3505
      %3507 = vrot.lane.b32.xlu0 %v3408, 16
      %v3508 = vpop.permute.xlu0 %3507
      %3509 = vrot.lane.b32.xlu0 %v3409, 16
      %v3510 = vpop.permute.xlu0 %3509
      %3511 = vrot.lane.b32.xlu0 %v3410, 16
      %v3512 = vpop.permute.xlu0 %3511
      %3513 = vrot.lane.b32.xlu0 %v3411, 16
      %v3514 = vpop.permute.xlu0 %3513
      %3515 = vrot.lane.b32.xlu0 %v3412, 16
      %v3516 = vpop.permute.xlu0 %3515
      %3517 = vrot.lane.b32.xlu0 %v3413, 16
      %v3518 = vpop.permute.xlu0 %3517
      %3519 = vrot.lane.b32.xlu0 %v3414, 16
      %v3520 = vpop.permute.xlu0 %3519
      %3521 = vrot.lane.b32.xlu0 %v3415, 16
      %v3522 = vpop.permute.xlu0 %3521
      %3523 = vrot.lane.b32.xlu0 %v3416, 16
      %v3524 = vpop.permute.xlu0 %3523
      %3525 = vrot.lane.b32.xlu0 %v3417, 16
      %v3526 = vpop.permute.xlu0 %3525
      %3527 = vrot.lane.b32.xlu0 %v3418, 16
      %v3528 = vpop.permute.xlu0 %3527
      %3529 = vrot.lane.b32.xlu0 %v3419, 16
      %v3530 = vpop.permute.xlu0 %3529
      %3531 = vrot.lane.b32.xlu0 %v3420, 16
      %v3532 = vpop.permute.xlu0 %3531
      %v3549 = vsel %vm968, %v3373, %v3438
      %v3550 = vsel %vm968, %v3374, %v3440
      %v3551 = vsel %vm968, %v3375, %v3442
      %v3552 = vsel %vm968, %v3376, %v3444
      %v3553 = vsel %vm968, %v3377, %v3446
      %v3554 = vsel %vm968, %v3378, %v3448
      %v3555 = vsel %vm968, %v3379, %v3450
      %v3556 = vsel %vm968, %v3380, %v3452
      %v3557 = vsel %vm968, %v3381, %v3454
      %v3558 = vsel %vm968, %v3382, %v3456
      %v3559 = vsel %vm968, %v3383, %v3458
      %v3560 = vsel %vm968, %v3384, %v3460
      %v3561 = vsel %vm968, %v3385, %v3462
      %v3562 = vsel %vm968, %v3386, %v3464
      %v3563 = vsel %vm968, %v3387, %v3466
      %v3564 = vsel %vm968, %v3388, %v3468
      %v3565 = vsel %vm492, %v3549, %v3502
      %v3566 = vsel %vm492, %v3550, %v3504
      %v3567 = vsel %vm492, %v3551, %v3506
      %v3568 = vsel %vm492, %v3552, %v3508
      %v3569 = vsel %vm492, %v3553, %v3510
      %v3570 = vsel %vm492, %v3554, %v3512
      %v3571 = vsel %vm492, %v3555, %v3514
      %v3572 = vsel %vm492, %v3556, %v3516
      %v3573 = vsel %vm492, %v3557, %v3518
      %v3574 = vsel %vm492, %v3558, %v3520
      %v3575 = vsel %vm492, %v3559, %v3522
      %v3576 = vsel %vm492, %v3560, %v3524
      %v3577 = vsel %vm492, %v3561, %v3526
      %v3578 = vsel %vm492, %v3562, %v3528
      %v3579 = vsel %vm492, %v3563, %v3530
      %v3580 = vsel %vm492, %v3564, %v3532
      %s3581 = scalar_lea.vmem %s5, 48
      %v3582 = vld [vmem:[%s3581] sm:$0xff]
      %v3583 = vld [vmem:[%s3581 + $0x8] sm:$0xff]
      %v3584 = vld [vmem:[%s3581 + $0x10] sm:$0xff]
      %v3586 = vsel %vm2986, %v3565, 0
      %v3589 = vsel %vm2986, %v3566, 0
      %v3592 = vsel %vm2986, %v3567, 0
      %v3595 = vsel %vm2986, %v3568, 0
      %v3598 = vsel %vm2986, %v3569, 0
      %v3601 = vsel %vm2986, %v3570, 0
      %v3604 = vsel %vm2986, %v3571, 0
      %v3607 = vsel %vm2986, %v3572, 0
      %v3610 = vsel %vm2986, %v3573, 0
      %v3613 = vsel %vm2986, %v3574, 0
      %v3616 = vsel %vm2986, %v3575, 0
      %v3619 = vsel %vm2986, %v3576, 0
      %v3622 = vsel %vm2986, %v3577, 0
      %v3625 = vsel %vm2986, %v3578, 0
      %v3628 = vsel %vm2986, %v3579, 0
      %v3631 = vsel %vm2986, %v3580, 0
      %3633 = vmatprep.subr.mxu0 0.0
      %3634 = vmatpush1.msra.mxu0 %v3582
      %3635 = vmatprep.subr.mxu0 0.0
      %3636 = vmatpush1.msra.mxu0 %v3583
      %3637 = vmatprep.subr.mxu0 0.0
      %3638 = vmatpush1.msra.mxu0 %v3584
      %3639 = vmatprep.subr.mxu0 0.0
      %3640 = vmatpush1.msra.mxu0 0.0
      %3641 = vmatprep.subr.mxu0 0.0
      %3642 = vmatpush1.msra.mxu0 0.0
      %3643 = vmatprep.subr.mxu0 0.0
      %3644 = vmatpush1.msra.mxu0 0.0
      %3645 = vmatprep.subr.mxu0 0.0
      %3646 = vmatpush1.msra.mxu0 0.0
      %3647 = vmatprep.subr.mxu0 0.0
      %3648 = vmatpush1.msra.mxu0 0.0
      %3649 = vmatprep.subr.mxu0 0.0
      %3650 = vmatpush1.msra.mxu0 0.0
      %3651 = vmatprep.subr.mxu0 0.0
      %3652 = vmatpush1.msra.mxu0 0.0
      %3653 = vmatprep.subr.mxu0 0.0
      %3654 = vmatpush1.msra.mxu0 0.0
      %3655 = vmatprep.subr.mxu0 0.0
      %3656 = vmatpush1.msra.mxu0 0.0
      %3657 = vmatprep.subr.mxu0 0.0
      %3658 = vmatpush1.msra.mxu0 0.0
      %3659 = vmatprep.subr.mxu0 0.0
      %3660 = vmatpush1.msra.mxu0 0.0
      %3661 = vmatprep.subr.mxu0 0.0
      %3662 = vmatpush1.msra.mxu0 0.0
      %3663 = vmatprep.subr.mxu0 0.0
      %3664 = vmatpush1.msra.mxu0 0.0
      %3665 = vmatprep.subr.mxu0 0.0
      %3666 = vmatpush1.msra.mxu0 0.0
      %3667 = vmatprep.subr.mxu0 0.0
      %3668 = vmatpush1.msra.mxu0 0.0
      %3669 = vmatprep.subr.mxu0 0.0
      %3670 = vmatpush1.msra.mxu0 0.0
      %3671 = vmatprep.subr.mxu0 0.0
      %3672 = vmatpush1.msra.mxu0 0.0
      %3673 = vmatprep.subr.mxu0 0.0
      %3674 = vmatpush1.msra.mxu0 0.0
      %3675 = vmatprep.subr.mxu0 0.0
      %3676 = vmatpush1.msra.mxu0 0.0
      %3677 = vmatprep.subr.mxu0 0.0
      %3678 = vmatpush1.msra.mxu0 0.0
      %3679 = vmatprep.subr.mxu0 0.0
      %3680 = vmatpush1.msra.mxu0 0.0
      %3681 = vmatprep.subr.mxu0 0.0
      %3682 = vmatpush1.msra.mxu0 0.0
      %3683 = vmatprep.subr.mxu0 0.0
      %3684 = vmatpush1.msra.mxu0 0.0
      %3685 = vmatprep.subr.mxu0 0.0
      %3686 = vmatpush1.msra.mxu0 0.0
      %3687 = vmatprep.subr.mxu0 0.0
      %3688 = vmatpush1.msra.mxu0 0.0
      %3689 = vmatprep.subr.mxu0 0.0
      %3690 = vmatpush1.msra.mxu0 0.0
      %3691 = vmatprep.subr.mxu0 0.0
      %3692 = vmatpush1.msra.mxu0 0.0
      %3693 = vmatprep.subr.mxu0 0.0
      %3694 = vmatpush1.msra.mxu0 0.0
      %3695 = vmatprep.subr.mxu0 0.0
      %3696 = vmatpush1.msra.mxu0 0.0
      %3697 = vmatprep.mubr.f32.mxu0 0.0
      %3698 = vmatmul.mubr.f32.gmra.mrb[0].mxu0 %v3586
      %v3699 = vpop.f32.mrb[0].mxu0
      %v3700 = vadd.f32 0.0, %v3699
      %v3701 = vpop.f32.mrb[0].mxu0
      %3702 = vmatprep.mubr.f32.mxu0 0.0
      %3703 = vmatmul.mubr.f32.gmra.mrb[0].mxu0 %v3589
      %v3704 = vpop.f32.mrb[0].mxu0
      %v3705 = vadd.f32 0.0, %v3704
      %v3706 = vpop.f32.mrb[0].mxu0
      %3707 = vmatprep.mubr.f32.mxu0 0.0
      %3708 = vmatmul.mubr.f32.gmra.mrb[0].mxu0 %v3592
      %v3709 = vpop.f32.mrb[0].mxu0
      %v3710 = vadd.f32 0.0, %v3709
      %v3711 = vpop.f32.mrb[0].mxu0
      %3712 = vmatprep.mubr.f32.mxu0 0.0
      %3713 = vmatmul.mubr.f32.gmra.mrb[0].mxu0 %v3595
      %v3714 = vpop.f32.mrb[0].mxu0
      %v3715 = vadd.f32 0.0, %v3714
      %v3716 = vpop.f32.mrb[0].mxu0
      %3717 = vmatprep.mubr.f32.mxu0 0.0
      %3718 = vmatmul.mubr.f32.gmra.mrb[0].mxu0 %v3598
      %v3719 = vpop.f32.mrb[0].mxu0
      %v3720 = vadd.f32 0.0, %v3719
      %v3721 = vpop.f32.mrb[0].mxu0
      %3722 = vmatprep.mubr.f32.mxu0 0.0
      %3723 = vmatmul.mubr.f32.gmra.mrb[0].mxu0 %v3601
      %v3724 = vpop.f32.mrb[0].mxu0
      %v3725 = vadd.f32 0.0, %v3724
      %v3726 = vpop.f32.mrb[0].mxu0
      %3727 = vmatprep.mubr.f32.mxu0 0.0
      %3728 = vmatmul.mubr.f32.gmra.mrb[0].mxu0 %v3604
      %v3729 = vpop.f32.mrb[0].mxu0
      %v3730 = vadd.f32 0.0, %v3729
      %v3731 = vpop.f32.mrb[0].mxu0
      %3732 = vmatprep.mubr.f32.mxu0 0.0
      %3733 = vmatmul.mubr.f32.gmra.mrb[0].mxu0 %v3607
      %v3734 = vpop.f32.mrb[0].mxu0
      %v3735 = vadd.f32 0.0, %v3734
      %v3736 = vpop.f32.mrb[0].mxu0
      %3737 = vmatprep.mubr.f32.mxu0 0.0
      %3738 = vmatmul.mubr.f32.gmra.mrb[0].mxu0 %v3610
      %v3739 = vpop.f32.mrb[0].mxu0
      %v3740 = vadd.f32 0.0, %v3739
      %v3741 = vpop.f32.mrb[0].mxu0
      %3742 = vmatprep.mubr.f32.mxu0 0.0
      %3743 = vmatmul.mubr.f32.gmra.mrb[0].mxu0 %v3613
      %v3744 = vpop.f32.mrb[0].mxu0
      %v3745 = vadd.f32 0.0, %v3744
      %v3746 = vpop.f32.mrb[0].mxu0
      %3747 = vmatprep.mubr.f32.mxu0 0.0
      %3748 = vmatmul.mubr.f32.gmra.mrb[0].mxu0 %v3616
      %v3749 = vpop.f32.mrb[0].mxu0
      %v3750 = vadd.f32 0.0, %v3749
      %v3751 = vpop.f32.mrb[0].mxu0
      %3752 = vmatprep.mubr.f32.mxu0 0.0
      %3753 = vmatmul.mubr.f32.gmra.mrb[0].mxu0 %v3619
      %v3754 = vpop.f32.mrb[0].mxu0
      %v3755 = vadd.f32 0.0, %v3754
      %v3756 = vpop.f32.mrb[0].mxu0
      %3757 = vmatprep.mubr.f32.mxu0 0.0
      %3758 = vmatmul.mubr.f32.gmra.mrb[0].mxu0 %v3622
      %v3759 = vpop.f32.mrb[0].mxu0
      %v3760 = vadd.f32 0.0, %v3759
      %v3761 = vpop.f32.mrb[0].mxu0
      %3762 = vmatprep.mubr.f32.mxu0 0.0
      %3763 = vmatmul.mubr.f32.gmra.mrb[0].mxu0 %v3625
      %v3764 = vpop.f32.mrb[0].mxu0
      %v3765 = vadd.f32 0.0, %v3764
      %v3766 = vpop.f32.mrb[0].mxu0
      %3767 = vmatprep.mubr.f32.mxu0 0.0
      %3768 = vmatmul.mubr.f32.gmra.mrb[0].mxu0 %v3628
      %v3769 = vpop.f32.mrb[0].mxu0
      %v3770 = vadd.f32 0.0, %v3769
      %v3771 = vpop.f32.mrb[0].mxu0
      %3772 = vmatprep.mubr.f32.mxu0 0.0
      %3773 = vmatmul.mubr.f32.gmra.mrb[0].mxu0 %v3631
      %v3774 = vpop.f32.mrb[0].mxu0
      %v3775 = vadd.f32 0.0, %v3774
      %v3776 = vpop.f32.mrb[0].mxu0
      %3777 = vdwg.mxu0
      %v3778 = vadd.f32 %v3295, %v3700
      %v3779 = vadd.f32 %v3300, %v3705
      %v3780 = vadd.f32 %v3305, %v3710
      %v3781 = vadd.f32 %v3310, %v3715
      %v3782 = vadd.f32 %v3315, %v3720
      %v3783 = vadd.f32 %v3320, %v3725
      %v3784 = vadd.f32 %v3325, %v3730
      %v3785 = vadd.f32 %v3330, %v3735
      %v3786 = vadd.f32 %v3335, %v3740
      %v3787 = vadd.f32 %v3340, %v3745
      %v3788 = vadd.f32 %v3345, %v3750
      %v3789 = vadd.f32 %v3350, %v3755
      %v3790 = vadd.f32 %v3355, %v3760
      %v3791 = vadd.f32 %v3360, %v3765
      %v3792 = vadd.f32 %v3365, %v3770
      %v3793 = vadd.f32 %v3370, %v3775
      %v3794 = vld [vmem:[%s6] sm:$0x1]
      %v3796 = vlaneseq
      %v3797 = vshrl.u32 %v3796, 7
      %v3798 = vsub.s32 0, %v3797
      %v3799 = vrot.slane %v3794, %v3798
      %v3801 = vmul.f32 %v3778, %v3799
      %v3802 = vmul.f32 %v3779, %v3799
      %v3803 = vmul.f32 %v3780, %v3799
      %v3804 = vmul.f32 %v3781, %v3799
      %v3805 = vmul.f32 %v3782, %v3799
      %v3806 = vmul.f32 %v3783, %v3799
      %v3807 = vmul.f32 %v3784, %v3799
      %v3808 = vmul.f32 %v3785, %v3799
      %v3809 = vmul.f32 %v3786, %v3799
      %v3810 = vmul.f32 %v3787, %v3799
      %v3811 = vmul.f32 %v3788, %v3799
      %v3812 = vmul.f32 %v3789, %v3799
      %v3813 = vmul.f32 %v3790, %v3799
      %v3814 = vmul.f32 %v3791, %v3799
      %v3815 = vmul.f32 %v3792, %v3799
      %v3816 = vmul.f32 %v3793, %v3799
      %v3817 = vld [vmem:[%s7] sm:$0x1]
      %v3819 = vlaneseq
      %v3820 = vshrl.u32 %v3819, 7
      %v3821 = vsub.s32 0, %v3820
      %v3822 = vrot.slane %v3817, %v3821
      %v3824 = vadd.f32 %v3801, %v3822
      %v3825 = vadd.f32 %v3802, %v3822
      %v3826 = vadd.f32 %v3803, %v3822
      %v3827 = vadd.f32 %v3804, %v3822
      %v3828 = vadd.f32 %v3805, %v3822
      %v3829 = vadd.f32 %v3806, %v3822
      %v3830 = vadd.f32 %v3807, %v3822
      %v3831 = vadd.f32 %v3808, %v3822
      %v3832 = vadd.f32 %v3809, %v3822
      %v3833 = vadd.f32 %v3810, %v3822
      %v3834 = vadd.f32 %v3811, %v3822
      %v3835 = vadd.f32 %v3812, %v3822
      %v3836 = vadd.f32 %v3813, %v3822
      %v3837 = vadd.f32 %v3814, %v3822
      %v3838 = vadd.f32 %v3815, %v3822
      %v3839 = vadd.f32 %v3816, %v3822
      %v3840 = vmax.f32 %v3824, 0.0
      %v3841 = vmax.f32 %v3825, 0.0
      %v3842 = vmax.f32 %v3826, 0.0
      %v3843 = vmax.f32 %v3827, 0.0
      %v3844 = vmax.f32 %v3828, 0.0
      %v3845 = vmax.f32 %v3829, 0.0
      %v3846 = vmax.f32 %v3830, 0.0
      %v3847 = vmax.f32 %v3831, 0.0
      %v3848 = vmax.f32 %v3832, 0.0
      %v3849 = vmax.f32 %v3833, 0.0
      %v3850 = vmax.f32 %v3834, 0.0
      %v3851 = vmax.f32 %v3835, 0.0
      %v3852 = vmax.f32 %v3836, 0.0
      %v3853 = vmax.f32 %v3837, 0.0
      %v3854 = vmax.f32 %v3838, 0.0
      %v3855 = vmax.f32 %v3839, 0.0
      %v3856 = vld [vmem:[%s8] sm:$0xff]
      %v3858 = vsel %vm968, %v3840, 0
      %v3861 = vsel %vm968, %v3841, 0
      %v3864 = vsel %vm968, %v3842, 0
      %v3867 = vsel %vm968, %v3843, 0
      %v3870 = vsel %vm968, %v3844, 0
      %v3873 = vsel %vm968, %v3845, 0
      %v3876 = vsel %vm968, %v3846, 0
      %v3879 = vsel %vm968, %v3847, 0
      %v3882 = vsel %vm968, %v3848, 0
      %v3885 = vsel %vm968, %v3849, 0
      %v3888 = vsel %vm968, %v3850, 0
      %v3891 = vsel %vm968, %v3851, 0
      %v3894 = vsel %vm968, %v3852, 0
      %v3897 = vsel %vm968, %v3853, 0
      %v3900 = vsel %vm968, %v3854, 0
      %v3903 = vsel %vm968, %v3855, 0
      %3905 = vmatprep.subr.mxu0 0.0
      %3906 = vmatpush1.msra.mxu0 %v3856
      %3907 = vmatprep.subr.mxu0 0.0
      %3908 = vmatpush1.msra.mxu0 0.0
      %3909 = vmatprep.subr.mxu0 0.0
      %3910 = vmatpush1.msra.mxu0 0.0
      %3911 = vmatprep.subr.mxu0 0.0
      %3912 = vmatpush1.msra.mxu0 0.0
      %3913 = vmatprep.subr.mxu0 0.0
      %3914 = vmatpush1.msra.mxu0 0.0
      %3915 = vmatprep.subr.mxu0 0.0
      %3916 = vmatpush1.msra.mxu0 0.0
      %3917 = vmatprep.subr.mxu0 0.0
      %3918 = vmatpush1.msra.mxu0 0.0
      %3919 = vmatprep.subr.mxu0 0.0
      %3920 = vmatpush1.msra.mxu0 0.0
      %3921 = vmatprep.subr.mxu0 0.0
      %3922 = vmatpush1.msra.mxu0 0.0
      %3923 = vmatprep.subr.mxu0 0.0
      %3924 = vmatpush1.msra.mxu0 0.0
      %3925 = vmatprep.subr.mxu0 0.0
      %3926 = vmatpush1.msra.mxu0 0.0
      %3927 = vmatprep.subr.mxu0 0.0
      %3928 = vmatpush1.msra.mxu0 0.0
      %3929 = vmatprep.subr.mxu0 0.0
      %3930 = vmatpush1.msra.mxu0 0.0
      %3931 = vmatprep.subr.mxu0 0.0
      %3932 = vmatpush1.msra.mxu0 0.0
      %3933 = vmatprep.subr.mxu0 0.0
      %3934 = vmatpush1.msra.mxu0 0.0
      %3935 = vmatprep.subr.mxu0 0.0
      %3936 = vmatpush1.msra.mxu0 0.0
      %3937 = vmatprep.subr.mxu0 0.0
      %3938 = vmatpush1.msra.mxu0 0.0
      %3939 = vmatprep.subr.mxu0 0.0
      %3940 = vmatpush1.msra.mxu0 0.0
      %3941 = vmatprep.subr.mxu0 0.0
      %3942 = vmatpush1.msra.mxu0 0.0
      %3943 = vmatprep.subr.mxu0 0.0
      %3944 = vmatpush1.msra.mxu0 0.0
      %3945 = vmatprep.subr.mxu0 0.0
      %3946 = vmatpush1.msra.mxu0 0.0
      %3947 = vmatprep.subr.mxu0 0.0
      %3948 = vmatpush1.msra.mxu0 0.0
      %3949 = vmatprep.subr.mxu0 0.0
      %3950 = vmatpush1.msra.mxu0 0.0
      %3951 = vmatprep.subr.mxu0 0.0
      %3952 = vmatpush1.msra.mxu0 0.0
      %3953 = vmatprep.subr.mxu0 0.0
      %3954 = vmatpush1.msra.mxu0 0.0
      %3955 = vmatprep.subr.mxu0 0.0
      %3956 = vmatpush1.msra.mxu0 0.0
      %3957 = vmatprep.subr.mxu0 0.0
      %3958 = vmatpush1.msra.mxu0 0.0
      %3959 = vmatprep.subr.mxu0 0.0
      %3960 = vmatpush1.msra.mxu0 0.0
      %3961 = vmatprep.subr.mxu0 0.0
      %3962 = vmatpush1.msra.mxu0 0.0
      %3963 = vmatprep.subr.mxu0 0.0
      %3964 = vmatpush1.msra.mxu0 0.0
      %3965 = vmatprep.subr.mxu0 0.0
      %3966 = vmatpush1.msra.mxu0 0.0
      %3967 = vmatprep.subr.mxu0 0.0
      %3968 = vmatpush1.msra.mxu0 0.0
      %3969 = vmatprep.mubr.f32.mxu0 0.0
      %3970 = vmatmul.mubr.f32.gmra.mrb[0].mxu0 %v3858
      %v3971 = vpop.f32.mrb[0].mxu0
      %v3972 = vadd.f32 0.0, %v3971
      %v3973 = vpop.f32.mrb[0].mxu0
      %3974 = vmatprep.mubr.f32.mxu0 0.0
      %3975 = vmatmul.mubr.f32.gmra.mrb[0].mxu0 %v3861
      %v3976 = vpop.f32.mrb[0].mxu0
      %v3977 = vpop.f32.mrb[0].mxu0
      %3978 = vmatprep.mubr.f32.mxu0 0.0
      %3979 = vmatmul.mubr.f32.gmra.mrb[0].mxu0 %v3864
      %v3980 = vpop.f32.mrb[0].mxu0
      %v3981 = vadd.f32 0.0, %v3980
      %v3982 = vpop.f32.mrb[0].mxu0
      %3983 = vmatprep.mubr.f32.mxu0 0.0
      %3984 = vmatmul.mubr.f32.gmra.mrb[0].mxu0 %v3867
      %v3985 = vpop.f32.mrb[0].mxu0
      %v3986 = vpop.f32.mrb[0].mxu0
      %3987 = vmatprep.mubr.f32.mxu0 0.0
      %3988 = vmatmul.mubr.f32.gmra.mrb[0].mxu0 %v3870
      %v3989 = vpop.f32.mrb[0].mxu0
      %v3990 = vadd.f32 0.0, %v3989
      %v3991 = vpop.f32.mrb[0].mxu0
      %3992 = vmatprep.mubr.f32.mxu0 0.0
      %3993 = vmatmul.mubr.f32.gmra.mrb[0].mxu0 %v3873
      %v3994 = vpop.f32.mrb[0].mxu0
      %v3995 = vpop.f32.mrb[0].mxu0
      %3996 = vmatprep.mubr.f32.mxu0 0.0
      %3997 = vmatmul.mubr.f32.gmra.mrb[0].mxu0 %v3876
      %v3998 = vpop.f32.mrb[0].mxu0
      %v3999 = vadd.f32 0.0, %v3998
      %v4000 = vpop.f32.mrb[0].mxu0
      %4001 = vmatprep.mubr.f32.mxu0 0.0
      %4002 = vmatmul.mubr.f32.gmra.mrb[0].mxu0 %v3879
      %v4003 = vpop.f32.mrb[0].mxu0
      %v4004 = vpop.f32.mrb[0].mxu0
      %4005 = vmatprep.mubr.f32.mxu0 0.0
      %4006 = vmatmul.mubr.f32.gmra.mrb[0].mxu0 %v3882
      %v4007 = vpop.f32.mrb[0].mxu0
      %v4008 = vadd.f32 0.0, %v4007
      %v4009 = vpop.f32.mrb[0].mxu0
      %4010 = vmatprep.mubr.f32.mxu0 0.0
      %4011 = vmatmul.mubr.f32.gmra.mrb[0].mxu0 %v3885
      %v4012 = vpop.f32.mrb[0].mxu0
      %v4013 = vpop.f32.mrb[0].mxu0
      %4014 = vmatprep.mubr.f32.mxu0 0.0
      %4015 = vmatmul.mubr.f32.gmra.mrb[0].mxu0 %v3888
      %v4016 = vpop.f32.mrb[0].mxu0
      %v4017 = vadd.f32 0.0, %v4016
      %v4018 = vpop.f32.mrb[0].mxu0
      %4019 = vmatprep.mubr.f32.mxu0 0.0
      %4020 = vmatmul.mubr.f32.gmra.mrb[0].mxu0 %v3891
      %v4021 = vpop.f32.mrb[0].mxu0
      %v4022 = vpop.f32.mrb[0].mxu0
      %4023 = vmatprep.mubr.f32.mxu0 0.0
      %4024 = vmatmul.mubr.f32.gmra.mrb[0].mxu0 %v3894
      %v4025 = vpop.f32.mrb[0].mxu0
      %v4026 = vadd.f32 0.0, %v4025
      %v4027 = vpop.f32.mrb[0].mxu0
      %4028 = vmatprep.mubr.f32.mxu0 0.0
      %4029 = vmatmul.mubr.f32.gmra.mrb[0].mxu0 %v3897
      %v4030 = vpop.f32.mrb[0].mxu0
      %v4031 = vpop.f32.mrb[0].mxu0
      %4032 = vmatprep.mubr.f32.mxu0 0.0
      %4033 = vmatmul.mubr.f32.gmra.mrb[0].mxu0 %v3900
      %v4034 = vpop.f32.mrb[0].mxu0
      %v4035 = vadd.f32 0.0, %v4034
      %v4036 = vpop.f32.mrb[0].mxu0
      %4037 = vmatprep.mubr.f32.mxu0 0.0
      %4038 = vmatmul.mubr.f32.gmra.mrb[0].mxu0 %v3903
      %v4039 = vpop.f32.mrb[0].mxu0
      %v4040 = vpop.f32.mrb[0].mxu0
      %4041 = vdwg.mxu0
      %v4042 = vld [vmem:[%s9] sm:$0x1]
      %v4044 = vlaneseq
      %v4045 = vshrl.u32 %v4044, 7
      %v4046 = vsub.s32 0, %v4045
      %v4047 = vrot.slane %v4042, %v4046
      %v4049 = vmul.f32 %v3972, %v4047
      %v4050 = vmul.f32 %v3981, %v4047
      %v4051 = vmul.f32 %v3990, %v4047
      %v4052 = vmul.f32 %v3999, %v4047
      %v4053 = vmul.f32 %v4008, %v4047
      %v4054 = vmul.f32 %v4017, %v4047
      %v4055 = vmul.f32 %v4026, %v4047
      %v4056 = vmul.f32 %v4035, %v4047
      %v4057 = vld [vmem:[%s10] sm:$0x1]
      %v4059 = vlaneseq
      %v4060 = vshrl.u32 %v4059, 7
      %v4061 = vsub.s32 0, %v4060
      %v4062 = vrot.slane %v4057, %v4061
      %v4064 = vadd.f32 %v4049, %v4062
      %v4065 = vadd.f32 %v4050, %v4062
      %v4066 = vadd.f32 %v4051, %v4062
      %v4067 = vadd.f32 %v4052, %v4062
      %v4068 = vadd.f32 %v4053, %v4062
      %v4069 = vadd.f32 %v4054, %v4062
      %v4070 = vadd.f32 %v4055, %v4062
      %v4071 = vadd.f32 %v4056, %v4062
      %v4072 = vld [vmem:[%s2039] sm:$0xff]
      %v4073 = vld [vmem:[%s2039 + $0x8] sm:$0xff]
      %v4074 = vld [vmem:[%s2039 + $0x10] sm:$0xff]
      %v4075 = vld [vmem:[%s2039 + $0x18] sm:$0xff]
      %v4076 = vld [vmem:[%s2039 + $0x20] sm:$0xff]
      %v4077 = vld [vmem:[%s2039 + $0x28] sm:$0xff]
      %v4078 = vld [vmem:[%s2039 + $0x30] sm:$0xff]
      %v4079 = vld [vmem:[%s2039 + $0x38] sm:$0xff]
      %v4080 = vld [vmem:[%s2039 + $0x40] sm:$0xff]
      %v4081 = vld [vmem:[%s2039 + $0x48] sm:$0xff]
      %v4082 = vld [vmem:[%s2039 + $0x50] sm:$0xff]
      %v4083 = vld [vmem:[%s2039 + $0x58] sm:$0xff]
      %v4084 = vld [vmem:[%s2039 + $0x60] sm:$0xff]
      %v4085 = vld [vmem:[%s2039 + $0x68] sm:$0xff]
      %v4086 = vld [vmem:[%s2039 + $0x70] sm:$0xff]
      %v4087 = vld [vmem:[%s2039 + $0x78] sm:$0xff]
      %v4088 = vld [vmem:[%s11] sm:$0xff]
      %v4089 = vld [vmem:[%s11 + $0x8] sm:$0xff]
      %v4091 = vsel %vm492, %v4072, 0
      %v4094 = vsel %vm492, %v4073, 0
      %v4097 = vsel %vm492, %v4074, 0
      %v4100 = vsel %vm492, %v4075, 0
      %v4103 = vsel %vm492, %v4076, 0
      %v4106 = vsel %vm492, %v4077, 0
      %v4109 = vsel %vm492, %v4078, 0
      %v4112 = vsel %vm492, %v4079, 0
      %v4115 = vsel %vm492, %v4080, 0
      %v4118 = vsel %vm492, %v4081, 0
      %v4121 = vsel %vm492, %v4082, 0
      %v4124 = vsel %vm492, %v4083, 0
      %v4127 = vsel %vm492, %v4084, 0
      %v4130 = vsel %vm492, %v4085, 0
      %v4133 = vsel %vm492, %v4086, 0
      %v4136 = vsel %vm492, %v4087, 0
      %4138 = vmatprep.subr.mxu0 0.0
      %4139 = vmatpush1.msra.mxu0 %v4088
      %4140 = vmatprep.subr.mxu0 0.0
      %4141 = vmatpush1.msra.mxu0 %v4089
      %4142 = vmatprep.subr.mxu0 0.0
      %4143 = vmatpush1.msra.mxu0 0.0
      %4144 = vmatprep.subr.mxu0 0.0
      %4145 = vmatpush1.msra.mxu0 0.0
      %4146 = vmatprep.subr.mxu0 0.0
      %4147 = vmatpush1.msra.mxu0 0.0
      %4148 = vmatprep.subr.mxu0 0.0
      %4149 = vmatpush1.msra.mxu0 0.0
      %4150 = vmatprep.subr.mxu0 0.0
      %4151 = vmatpush1.msra.mxu0 0.0
      %4152 = vmatprep.subr.mxu0 0.0
      %4153 = vmatpush1.msra.mxu0 0.0
      %4154 = vmatprep.subr.mxu0 0.0
      %4155 = vmatpush1.msra.mxu0 0.0
      %4156 = vmatprep.subr.mxu0 0.0
      %4157 = vmatpush1.msra.mxu0 0.0
      %4158 = vmatprep.subr.mxu0 0.0
      %4159 = vmatpush1.msra.mxu0 0.0
      %4160 = vmatprep.subr.mxu0 0.0
      %4161 = vmatpush1.msra.mxu0 0.0
      %4162 = vmatprep.subr.mxu0 0.0
      %4163 = vmatpush1.msra.mxu0 0.0
      %4164 = vmatprep.subr.mxu0 0.0
      %4165 = vmatpush1.msra.mxu0 0.0
      %4166 = vmatprep.subr.mxu0 0.0
      %4167 = vmatpush1.msra.mxu0 0.0
      %4168 = vmatprep.subr.mxu0 0.0
      %4169 = vmatpush1.msra.mxu0 0.0
      %4170 = vmatprep.subr.mxu0 0.0
      %4171 = vmatpush1.msra.mxu0 0.0
      %4172 = vmatprep.subr.mxu0 0.0
      %4173 = vmatpush1.msra.mxu0 0.0
      %4174 = vmatprep.subr.mxu0 0.0
      %4175 = vmatpush1.msra.mxu0 0.0
      %4176 = vmatprep.subr.mxu0 0.0
      %4177 = vmatpush1.msra.mxu0 0.0
      %4178 = vmatprep.subr.mxu0 0.0
      %4179 = vmatpush1.msra.mxu0 0.0
      %4180 = vmatprep.subr.mxu0 0.0
      %4181 = vmatpush1.msra.mxu0 0.0
      %4182 = vmatprep.subr.mxu0 0.0
      %4183 = vmatpush1.msra.mxu0 0.0
      %4184 = vmatprep.subr.mxu0 0.0
      %4185 = vmatpush1.msra.mxu0 0.0
      %4186 = vmatprep.subr.mxu0 0.0
      %4187 = vmatpush1.msra.mxu0 0.0
      %4188 = vmatprep.subr.mxu0 0.0
      %4189 = vmatpush1.msra.mxu0 0.0
      %4190 = vmatprep.subr.mxu0 0.0
      %4191 = vmatpush1.msra.mxu0 0.0
      %4192 = vmatprep.subr.mxu0 0.0
      %4193 = vmatpush1.msra.mxu0 0.0
      %4194 = vmatprep.subr.mxu0 0.0
      %4195 = vmatpush1.msra.mxu0 0.0
      %4196 = vmatprep.subr.mxu0 0.0
      %4197 = vmatpush1.msra.mxu0 0.0
      %4198 = vmatprep.subr.mxu0 0.0
      %4199 = vmatpush1.msra.mxu0 0.0
      %4200 = vmatprep.subr.mxu0 0.0
      %4201 = vmatpush1.msra.mxu0 0.0
      %4202 = vmatprep.mubr.f32.mxu0 0.0
      %4203 = vmatmul.mubr.f32.gmra.mrb[0].mxu0 %v4091
      %v4204 = vpop.f32.mrb[0].mxu0
      %v4205 = vadd.f32 0.0, %v4204
      %v4206 = vpop.f32.mrb[0].mxu0
      %4207 = vmatprep.mubr.f32.mxu0 0.0
      %4208 = vmatmul.mubr.f32.gmra.mrb[0].mxu0 %v4094
      %v4209 = vpop.f32.mrb[0].mxu0
      %v4210 = vpop.f32.mrb[0].mxu0
      %4211 = vmatprep.mubr.f32.mxu0 0.0
      %4212 = vmatmul.mubr.f32.gmra.mrb[0].mxu0 %v4097
      %v4213 = vpop.f32.mrb[0].mxu0
      %v4214 = vadd.f32 0.0, %v4213
      %v4215 = vpop.f32.mrb[0].mxu0
      %4216 = vmatprep.mubr.f32.mxu0 0.0
      %4217 = vmatmul.mubr.f32.gmra.mrb[0].mxu0 %v4100
      %v4218 = vpop.f32.mrb[0].mxu0
      %v4219 = vpop.f32.mrb[0].mxu0
      %4220 = vmatprep.mubr.f32.mxu0 0.0
      %4221 = vmatmul.mubr.f32.gmra.mrb[0].mxu0 %v4103
      %v4222 = vpop.f32.mrb[0].mxu0
      %v4223 = vadd.f32 0.0, %v4222
      %v4224 = vpop.f32.mrb[0].mxu0
      %4225 = vmatprep.mubr.f32.mxu0 0.0
      %4226 = vmatmul.mubr.f32.gmra.mrb[0].mxu0 %v4106
      %v4227 = vpop.f32.mrb[0].mxu0
      %v4228 = vpop.f32.mrb[0].mxu0
      %4229 = vmatprep.mubr.f32.mxu0 0.0
      %4230 = vmatmul.mubr.f32.gmra.mrb[0].mxu0 %v4109
      %v4231 = vpop.f32.mrb[0].mxu0
      %v4232 = vadd.f32 0.0, %v4231
      %v4233 = vpop.f32.mrb[0].mxu0
      %4234 = vmatprep.mubr.f32.mxu0 0.0
      %4235 = vmatmul.mubr.f32.gmra.mrb[0].mxu0 %v4112
      %v4236 = vpop.f32.mrb[0].mxu0
      %v4237 = vpop.f32.mrb[0].mxu0
      %4238 = vmatprep.mubr.f32.mxu0 0.0
      %4239 = vmatmul.mubr.f32.gmra.mrb[0].mxu0 %v4115
      %v4240 = vpop.f32.mrb[0].mxu0
      %v4241 = vadd.f32 0.0, %v4240
      %v4242 = vpop.f32.mrb[0].mxu0
      %4243 = vmatprep.mubr.f32.mxu0 0.0
      %4244 = vmatmul.mubr.f32.gmra.mrb[0].mxu0 %v4118
      %v4245 = vpop.f32.mrb[0].mxu0
      %v4246 = vpop.f32.mrb[0].mxu0
      %4247 = vmatprep.mubr.f32.mxu0 0.0
      %4248 = vmatmul.mubr.f32.gmra.mrb[0].mxu0 %v4121
      %v4249 = vpop.f32.mrb[0].mxu0
      %v4250 = vadd.f32 0.0, %v4249
      %v4251 = vpop.f32.mrb[0].mxu0
      %4252 = vmatprep.mubr.f32.mxu0 0.0
      %4253 = vmatmul.mubr.f32.gmra.mrb[0].mxu0 %v4124
      %v4254 = vpop.f32.mrb[0].mxu0
      %v4255 = vpop.f32.mrb[0].mxu0
      %4256 = vmatprep.mubr.f32.mxu0 0.0
      %4257 = vmatmul.mubr.f32.gmra.mrb[0].mxu0 %v4127
      %v4258 = vpop.f32.mrb[0].mxu0
      %v4259 = vadd.f32 0.0, %v4258
      %v4260 = vpop.f32.mrb[0].mxu0
      %4261 = vmatprep.mubr.f32.mxu0 0.0
      %4262 = vmatmul.mubr.f32.gmra.mrb[0].mxu0 %v4130
      %v4263 = vpop.f32.mrb[0].mxu0
      %v4264 = vpop.f32.mrb[0].mxu0
      %4265 = vmatprep.mubr.f32.mxu0 0.0
      %4266 = vmatmul.mubr.f32.gmra.mrb[0].mxu0 %v4133
      %v4267 = vpop.f32.mrb[0].mxu0
      %v4268 = vadd.f32 0.0, %v4267
      %v4269 = vpop.f32.mrb[0].mxu0
      %4270 = vmatprep.mubr.f32.mxu0 0.0
      %4271 = vmatmul.mubr.f32.gmra.mrb[0].mxu0 %v4136
      %v4272 = vpop.f32.mrb[0].mxu0
      %v4273 = vpop.f32.mrb[0].mxu0
      %4274 = vdwg.mxu0
      %v4275 = vld [vmem:[%s12] sm:$0x1]
      %v4277 = vlaneseq
      %v4278 = vshrl.u32 %v4277, 7
      %v4279 = vsub.s32 0, %v4278
      %v4280 = vrot.slane %v4275, %v4279
      %v4282 = vmul.f32 %v4205, %v4280
      %v4283 = vmul.f32 %v4214, %v4280
      %v4284 = vmul.f32 %v4223, %v4280
      %v4285 = vmul.f32 %v4232, %v4280
      %v4286 = vmul.f32 %v4241, %v4280
      %v4287 = vmul.f32 %v4250, %v4280
      %v4288 = vmul.f32 %v4259, %v4280
      %v4289 = vmul.f32 %v4268, %v4280
      %v4290 = vld [vmem:[%s13] sm:$0x1]
      %v4292 = vlaneseq
      %v4293 = vshrl.u32 %v4292, 7
      %v4294 = vsub.s32 0, %v4293
      %v4295 = vrot.slane %v4290, %v4294
      %v4297 = vadd.f32 %v4282, %v4295
      %v4298 = vadd.f32 %v4283, %v4295
      %v4299 = vadd.f32 %v4284, %v4295
      %v4300 = vadd.f32 %v4285, %v4295
      %v4301 = vadd.f32 %v4286, %v4295
      %v4302 = vadd.f32 %v4287, %v4295
      %v4303 = vadd.f32 %v4288, %v4295
      %v4304 = vadd.f32 %v4289, %v4295
      %v4305 = vadd.f32 %v4064, %v4297
      %v4306 = vadd.f32 %v4065, %v4298
      %v4307 = vadd.f32 %v4066, %v4299
      %v4308 = vadd.f32 %v4067, %v4300
      %v4309 = vadd.f32 %v4068, %v4301
      %v4310 = vadd.f32 %v4069, %v4302
      %v4311 = vadd.f32 %v4070, %v4303
      %v4312 = vadd.f32 %v4071, %v4304
      %v4313 = vmax.f32 %v4305, 0.0
      %v4314 = vmax.f32 %v4306, 0.0
      %v4315 = vmax.f32 %v4307, 0.0
      %v4316 = vmax.f32 %v4308, 0.0
      %v4317 = vmax.f32 %v4309, 0.0
      %v4318 = vmax.f32 %v4310, 0.0
      %v4319 = vmax.f32 %v4311, 0.0
      %v4320 = vmax.f32 %v4312, 0.0
      %vm4321 = vcmask 261120
      %4322 = vst.msk [vmem:[%s467] sm:$0xff] %vm4321, %v4313
      %4323 = vst.msk [vmem:[%s467 + $0x8] sm:$0xff] %vm4321, %v4314
      %4324 = vst.msk [vmem:[%s467 + $0x10] sm:$0xff] %vm4321, %v4315
      %4325 = vst.msk [vmem:[%s467 + $0x18] sm:$0xff] %vm4321, %v4316
      %4326 = vst.msk [vmem:[%s467 + $0x20] sm:$0xff] %vm4321, %v4317
      %4327 = vst.msk [vmem:[%s467 + $0x28] sm:$0xff] %vm4321, %v4318
      %4328 = vst.msk [vmem:[%s467 + $0x30] sm:$0xff] %vm4321, %v4319
      %4329 = vst.msk [vmem:[%s467 + $0x38] sm:$0xff] %vm4321, %v4320
      %p4330 = scmp.lt.s32.totalorder %s25, 1
      %s4331 = scalar_select %p4330, %s25, 1
      %s4332 = smul.addr %s4331, 8
      %s4333 = smul.addr %s4332, 8
      %s4334 = scalar_lea.vmem %s14, %s4333
      // Predicated region
      $region77: #{tpu_custom_call.1} parent=75 // pred_check
        %p4335 = pneg %p342
      $region78: #{tpu_custom_call.1} parent=75 // pred_check_branch
        %4337 = sbr.rel (%p4335) target = $region80
      $region79: #{tpu_custom_call.1} parent=75 // pred_region
        _
      $region80: #{tpu_custom_call.1} parent=75 // pred_fallthru
        _
    $region76: #{tpu_custom_call.1} parent=5 // pred_fallthru
      _
    %p4338 = scmp.le.s32.totalorder 2, %s20
    // Predicated region
    $region81: #{tpu_custom_call.1} parent=5 // pred_check
      %p4339 = pneg %p4338
    $region82: #{tpu_custom_call.1} parent=5 // pred_check_branch
      %4341 = sbr.rel (%p4339) target = $region84
    $region83: #{tpu_custom_call.1} parent=5 // pred_region
      %s4342 = ssub.s32 %s20, 2
      // Predicated region
      $region85: #{tpu_custom_call.1} parent=83 // pred_check
        %p4343 = pneg %p348
      $region86: #{tpu_custom_call.1} parent=83 // pred_check_branch
        %4345 = sbr.rel (%p4343) target = $region88
      $region87: #{tpu_custom_call.1} parent=83 // pred_region
        %p4346 = scmp.lt.s32.totalorder %s26, 1
        %s4347 = scalar_select %p4346, %s26, 1
        %s4348 = smul.addr %s4347, 8
        %s4349 = smul.addr %s4348, 8
        %s4350 = scalar_lea.vmem %s14, %s4349
      $region88: #{tpu_custom_call.1} parent=83 // pred_fallthru
        _
    $region84: #{tpu_custom_call.1} parent=5 // pred_fallthru
      _
  $region6: #{tpu_custom_call.1} parent=0 // loop_footer
    %s24 = sadd.s32 1, %s20
  $region7: #{tpu_custom_call.1} parent=0 // loop_footer_branch
    %19 = sbr.rel target = $region3
  $region8: #{tpu_custom_call.1} parent=0 // loop_exit
    _

</llo_original>
